<compile_context>
chip_gen: v5e
topology: v5e:2x2
jax: 0.10.0
libtpu: 0.0.40
codegen_flags: <defaults>
</compile_context>

<pallas_src>
import functools
import jax
import jax.numpy as jnp
from jax.experimental import pallas as pl
from jax.experimental.pallas import tpu as pltpu

LRELU_SLOPE = 0.2
BN_EPS = 1e-5
KW = 4                      # conv kernel size used throughout NLayerDiscriminator
VMEM_LIMIT = 48 * 1024 * 1024


def _round_up(x, m):
    return (x + m - 1) // m * m


def _row_tiling(M, max_single=512):
    """(Mp, tm): padded row count + row tile.  Small M -> one full block, no pad."""
    if M <= max_single:
        return M, M
    Mp = _round_up(M, 512)
    return Mp, 512


def _choose_tk(K, N):
    """Full-K (VMEM-resident B) block when the whole weight fits comfortably,
    otherwise split K in 128-multiples (reduction grid axis)."""
    if K % 128 != 0:
        return K                       # small / ragged K: single full block
    if K * max(N, 1) * 2 <= 8 * 1024 * 1024:   # bf16 bytes of whole B
        return K
    for t in (4096, 2048, 1024, 512, 256, 128):
        if K % t == 0:
            return t
    return K


# ---------------------------------------------------------------------------
# Pallas kernels
# ---------------------------------------------------------------------------
def _matmul_bias_kernel(a_ref, b_ref, bias_ref, o_ref, acc_ref, *, apply_lrelu):
    """out = A @ B + bias, optionally followed by LeakyReLU(0.2).  bf16 in, f32 acc."""
    k = pl.program_id(1)

    @pl.when(k == 0)
    def _():
        acc_ref[...] = jnp.zeros_like(acc_ref)

    acc_ref[...] += jnp.dot(a_ref[...], b_ref[...],
                            preferred_element_type=jnp.float32)

    @pl.when(k == pl.num_programs(1) - 1)
    def _():
        z = acc_ref[...] + bias_ref[...]
        if apply_lrelu:
            z = jnp.where(z > 0, z, LRELU_SLOPE * z)
        o_ref[...] = z.astype(o_ref.dtype)


def matmul_bias(a_bf16, b_bf16, bias, apply_lrelu):
    """(M,K)bf16 @ (K,N)bf16 + bias[N] -> (M,N)f32 via tiled Pallas matmul."""
    M, K = a_bf16.shape
    _, N = b_bf16.shape
    Mp, tm = _row_tiling(M)
    if Mp != M:
        a_bf16 = jnp.pad(a_bf16, ((0, Mp - M), (0, 0)))
    tk = _choose_tk(K, N)
    nk = K // tk

    kernel = functools.partial(_matmul_bias_kernel, apply_lrelu=apply_lrelu)
    out = pl.pallas_call(
        kernel,
        out_shape=jax.ShapeDtypeStruct((Mp, N), jnp.float32),
        grid_spec=pltpu.PrefetchScalarGridSpec(
            num_scalar_prefetch=0,
            grid=(Mp // tm, nk),
            in_specs=[
                pl.BlockSpec((tm, tk), lambda i, k: (i, k)),
                pl.BlockSpec((tk, N), lambda i, k: (k, 0)),   # resident when nk==1
                pl.BlockSpec((1, N), lambda i, k: (0, 0)),
            ],
            out_specs=pl.BlockSpec((tm, N), lambda i, k: (i, 0)),
            scratch_shapes=[pltpu.VMEM((tm, N), jnp.float32)],
        ),
        compiler_params=pltpu.CompilerParams(
            dimension_semantics=("parallel", "arbitrary"),
            vmem_limit_bytes=VMEM_LIMIT),
    )(a_bf16, b_bf16, bias.reshape(1, N).astype(jnp.float32))
    return out if Mp == M else out[:M]


def _rowdot_kernel(a_ref, w_ref, bias_ref, o_ref, *, apply_lrelu):
    """out[m] = sum_k a[m,k]*w[k] + bias  (VPU multiply + XLU lane reduce)."""
    a = a_ref[...].astype(jnp.float32)
    w = w_ref[...].astype(jnp.float32)
    z = jnp.sum(a * w, axis=-1, keepdims=True) + bias_ref[...]
    if apply_lrelu:
        z = jnp.where(z > 0, z, LRELU_SLOPE * z)
    o_ref[...] = z


def dot_single_out(a_bf16, w_bf16, bias, apply_lrelu):
    """(M,K)bf16 @ (K,1)bf16 + bias -> (M,1)f32 without a lane-sparse MXU pass."""
    M, K = a_bf16.shape
    Mp, tm = _row_tiling(M)
    if Mp != M:
        a_bf16 = jnp.pad(a_bf16, ((0, Mp - M), (0, 0)))
    out = pl.pallas_call(
        functools.partial(_rowdot_kernel, apply_lrelu=apply_lrelu),
        out_shape=jax.ShapeDtypeStruct((Mp, 1), jnp.float32),
        grid=(Mp // tm,),
        in_specs=[
            pl.BlockSpec((tm, K), lambda i: (i, 0)),
            pl.BlockSpec((1, K), lambda i: (0, 0)),
            pl.BlockSpec((1, 1), lambda i: (0, 0)),
        ],
        out_specs=pl.BlockSpec((tm, 1), lambda i: (i, 0)),
        compiler_params=pltpu.CompilerParams(
            dimension_semantics=("parallel",),
            vmem_limit_bytes=VMEM_LIMIT),
    )(a_bf16, w_bf16.reshape(1, K), bias.reshape(1, 1).astype(jnp.float32))
    return out if Mp == M else out[:M]


def _scale_shift_lrelu_kernel(x_ref, scale_ref, shift_ref, o_ref):
    """out = LeakyReLU(x * scale + shift)  (per-channel scale/shift)."""
    z = x_ref[...] * scale_ref[...] + shift_ref[...]
    o_ref[...] = jnp.where(z > 0, z, LRELU_SLOPE * z)


def batchnorm_lrelu(x_nhwc, gamma, beta):
    """Training-mode BatchNorm2d + LeakyReLU(0.2), single-pass stats, fused apply."""
    N, H, W, C = x_nhwc.shape
    M = N * H * W
    xf = x_nhwc.reshape(M, C)
    # One pass over the data: E[x] and E[x^2] (XLA fuses both reductions).
    s1 = jnp.sum(xf, axis=0)
    s2 = jnp.sum(xf * xf, axis=0)
    mean = s1 / M
    var = jnp.maximum(s2 / M - mean * mean, 0.0)   # biased variance (torch training)
    scale = gamma * jax.lax.rsqrt(var + BN_EPS)
    shift = beta - mean * scale

    Mp, tm = _row_tiling(M, max_single=1024)
    x_in = xf if Mp == M else jnp.pad(xf, ((0, Mp - M), (0, 0)))
    out = pl.pallas_call(
        _scale_shift_lrelu_kernel,
        out_shape=jax.ShapeDtypeStruct((Mp, C), jnp.float32),
        grid=(Mp // tm,),
        in_specs=[
            pl.BlockSpec((tm, C), lambda i: (i, 0)),
            pl.BlockSpec((1, C), lambda i: (0, 0)),
            pl.BlockSpec((1, C), lambda i: (0, 0)),
        ],
        out_specs=pl.BlockSpec((tm, C), lambda i: (i, 0)),
        compiler_params=pltpu.CompilerParams(
            dimension_semantics=("parallel",),
            vmem_limit_bytes=VMEM_LIMIT),
    )(x_in, scale.reshape(1, C), shift.reshape(1, C))
    out = out if Mp == M else out[:M]
    return out.reshape(N, H, W, C)


# ---------------------------------------------------------------------------
# Conv / pooling built on the kernels above
# ---------------------------------------------------------------------------
def conv2d(x_nhwc, w_oihw, bias, stride, apply_lrelu):
    """Conv2d(kernel=4, padding=2, given stride) via bf16 im2col + Pallas matmul."""
    N, H, W, Cin = x_nhwc.shape
    Cout = w_oihw.shape[0]
    pad = 2  # ceil((4 - 1) / 2)
    OH = (H + 2 * pad - KW) // stride + 1
    OW = (W + 2 * pad - KW) // stride + 1
    xp = jnp.pad(x_nhwc, ((0, 0), (pad, pad), (pad, pad), (0, 0))).astype(jnp.bfloat16)

    # Lean im2col: single bf16 concatenate along channels (tap-major, Cin-minor).
    # TODO(synk): a direct-conv kernel accumulating the 16 taps in-VMEM would
    # remove this K-times activation materialization in HBM entirely.
    cols = []
    for ky in range(KW):
        for kx in range(KW):
            cols.append(xp[:, ky:ky + stride * (OH - 1) + 1:stride,
                           kx:kx + stride * (OW - 1) + 1:stride, :])
    patches = jnp.concatenate(cols, axis=-1).reshape(N * OH * OW, KW * KW * Cin)

    # (Cout, Cin, kh, kw) -> (kh, kw, Cin, Cout) -> (kh*kw*Cin, Cout), bf16
    w2 = jnp.transpose(w_oihw, (2, 3, 1, 0)).reshape(KW * KW * Cin, Cout)
    w2 = w2.astype(jnp.bfloat16)

    if Cout == 1:
        out = dot_single_out(patches, w2, bias, apply_lrelu)
    else:
        out = matmul_bias(patches, w2, bias, apply_lrelu)
    return out.reshape(N, OH, OW, Cout)


def avgpool_3x3_s2(x_nhwc):
    """AvgPool2d(3, stride=2, padding=1, count_include_pad=False)."""
    # TODO(synk): pooling kept in plain JAX (tiny memory-bound glue vs conv matmuls)
    N, H, W, C = x_nhwc.shape
    OH = (H + 2 - 3) // 2 + 1
    OW = (W + 2 - 3) // 2 + 1
    xp = jnp.pad(x_nhwc, ((0, 0), (1, 1), (1, 1), (0, 0)))
    cp = jnp.pad(jnp.ones((1, H, W, 1), x_nhwc.dtype),
                 ((0, 0), (1, 1), (1, 1), (0, 0)))
    s = jnp.zeros((N, OH, OW, C), x_nhwc.dtype)
    c = jnp.zeros((1, OH, OW, 1), x_nhwc.dtype)
    for ky in range(3):
        for kx in range(3):
            s = s + xp[:, ky:ky + 2 * (OH - 1) + 1:2,
                       kx:kx + 2 * (OW - 1) + 1:2, :]
            c = c + cp[:, ky:ky + 2 * (OH - 1) + 1:2,
                       kx:kx + 2 * (OW - 1) + 1:2, :]
    return s / c


# ---------------------------------------------------------------------------
# Parameter init (deterministic, mimics torch default conv init bounds)
# ---------------------------------------------------------------------------
def _conv_params(key, cin, cout):
    k1, k2 = jax.random.split(key)
    bound = 1.0 / (cin * KW * KW) ** 0.5
    w = jax.random.uniform(k1, (cout, cin, KW, KW), jnp.float32, -bound, bound)
    b = jax.random.uniform(k2, (cout,), jnp.float32, -bound, bound)
    return w, b


def init_nlayer_params(key, input_nc, ndf, n_layers):
    keys = jax.random.split(key, n_layers + 2)
    params = []
    # layer 0: conv s2 + LeakyReLU (no norm)
    w, b = _conv_params(keys[0], input_nc, ndf)
    params.append(dict(w=w, b=b, stride=2, bn=None, lrelu=True))
    nf = ndf
    for n in range(1, n_layers):
        nf_prev, nf = nf, min(nf * 2, 512)
        w, b = _conv_params(keys[n], nf_prev, nf)
        params.append(dict(w=w, b=b, stride=2,
                           bn=(jnp.ones(nf), jnp.zeros(nf)), lrelu=True))
    nf_prev, nf = nf, min(nf * 2, 512)
    w, b = _conv_params(keys[n_layers], nf_prev, nf)
    params.append(dict(w=w, b=b, stride=1,
                       bn=(jnp.ones(nf), jnp.zeros(nf)), lrelu=True))
    w, b = _conv_params(keys[n_layers + 1], nf, 1)
    params.append(dict(w=w, b=b, stride=1, bn=None, lrelu=False))
    return params


def init_multiscale_params(key, input_nc, ndf, n_layers, num_D):
    keys = jax.random.split(key, num_D)
    return [init_nlayer_params(keys[i], input_nc, ndf, n_layers)
            for i in range(num_D)]


# ---------------------------------------------------------------------------
# Forward passes
# ---------------------------------------------------------------------------
def nlayer_forward(params, x_nhwc):
    h = x_nhwc
    for p in params:
        if p["bn"] is None:
            h = conv2d(h, p["w"], p["b"], p["stride"], apply_lrelu=p["lrelu"])
        else:
            h = conv2d(h, p["w"], p["b"], p["stride"], apply_lrelu=False)
            h = batchnorm_lrelu(h, p["bn"][0], p["bn"][1])
    return h


def multiscale_forward(all_params, x_nchw):
    """Returns list (len num_D) of [output] lists, each output in NCHW."""
    num_D = len(all_params)
    cur = jnp.transpose(x_nchw, (0, 2, 3, 1))  # NCHW -> NHWC
    result = []
    for i in range(num_D):
        params = all_params[num_D - 1 - i]
        out = nlayer_forward(params, cur)
        result.append([jnp.transpose(out, (0, 3, 1, 2))])  # back to NCHW
        if i != num_D - 1:
            cur = avgpool_3x3_s2(cur)
    return result


# ---------------------------------------------------------------------------
if __name__ == "__main__":
    input_nc, ndf, n_layers, num_D = 4, 16, 3, 3
    batch, spatial = 2, 16

    root = jax.random.PRNGKey(0)
    k_params, k_input = jax.random.split(root)
    all_params = init_multiscale_params(k_params, input_nc, ndf, n_layers, num_D)
    x = jax.random.normal(k_input, (batch, input_nc, spatial, spatial), jnp.float32)

    fwd = jax.jit(lambda inp: multiscale_forward(all_params, inp))
    result = fwd(x)
    jax.block_until_ready(result)

    # light sanity checks on output structure/shapes
    assert len(result) == num_D
    for scale_out in result:
        assert len(scale_out) == 1
        assert scale_out[0].shape[0] == batch and scale_out[0].shape[1] == 1
        assert jnp.all(jnp.isfinite(scale_out[0]))

    print("KERNEL_OK")
</pallas_src>

<mosaic_0001>
module attributes {stable_mosaic.version = 11 : i64} {
  func.func @_matmul_bias_kernel(%arg0: i32, %arg1: i32, %arg2: memref<18x64xbf16, #tpu.memory_space<vmem>>, %arg3: memref<64x16xbf16, #tpu.memory_space<vmem>>, %arg4: memref<1x16xf32, #tpu.memory_space<vmem>>, %arg5: memref<18x16xf32, #tpu.memory_space<vmem>>, %arg6: memref<18x16xf32, #tpu.memory_space<vmem>>) attributes {dimension_semantics = [#tpu.dimension_semantics<parallel>, #tpu.dimension_semantics<arbitrary>], iteration_bounds = array<i64: 1, 1>, scalar_prefetch = 0 : i64, scratch_operands = 1 : i64, tpu.core_type = #tpu.core_type<tc>, window_params = [{transform_indices = @transform_0, window_bounds = array<i64: 18, 64>}, {transform_indices = @transform_1, window_bounds = array<i64: 64, 16>}, {pipeline_mode = #tpu.pipeline_mode<synchronous>, transform_indices = @transform_2, window_bounds = array<i64: 1, 16>}, {transform_indices = @transform_3, window_bounds = array<i64: 18, 16>}]} {
    %c0_i32 = arith.constant 0 : i32
    %0 = arith.cmpi eq, %arg1, %c0_i32 : i32
    %1 = arith.extui %0 : i1 to i32
    %c0_i32_0 = arith.constant 0 : i32
    %2 = arith.cmpi ne, %1, %c0_i32_0 : i32
    scf.if %2 {
      %cst_10 = arith.constant 0.000000e+00 : f32
      %12 = vector.broadcast %cst_10 : f32 to vector<18x16xf32>
      %c0_11 = arith.constant 0 : index
      %c0_12 = arith.constant 0 : index
      %13 = vector.load %arg6[%c0_11, %c0_12] : memref<18x16xf32, #tpu.memory_space<vmem>>, vector<18x16xf32>
      tpu.vector_store %arg6[%c0_11, %c0_12], %12 {strides = array<i32>} : memref<18x16xf32, #tpu.memory_space<vmem>>, vector<18x16xf32>,
    } else {
    }
    %c0 = arith.constant 0 : index
    %c0_1 = arith.constant 0 : index
    %3 = vector.load %arg6[%c0, %c0_1] : memref<18x16xf32, #tpu.memory_space<vmem>>, vector<18x16xf32>
    %c0_2 = arith.constant 0 : index
    %c0_3 = arith.constant 0 : index
    %4 = vector.load %arg2[%c0_2, %c0_3] : memref<18x64xbf16, #tpu.memory_space<vmem>>, vector<18x64xbf16>
    %c0_4 = arith.constant 0 : index
    %c0_5 = arith.constant 0 : index
    %5 = vector.load %arg3[%c0_4, %c0_5] : memref<64x16xbf16, #tpu.memory_space<vmem>>, vector<64x16xbf16>
    %cst = arith.constant dense<0.000000e+00> : vector<18x16xf32>
    %6 = tpu.matmul %4, %5, %cst {dimension_numbers = #tpu.dot_dimension_numbers<[1], [0], [0], [1], [0, 0, 1, 1], [], []>} : vector<18x64xbf16>, vector<64x16xbf16>, vector<18x16xf32> -> vector<18x16xf32>
    %7 = arith.addf %3, %6 : vector<18x16xf32>
    %c0_6 = arith.constant 0 : index
    %c0_7 = arith.constant 0 : index
    %8 = vector.load %arg6[%c0_6, %c0_7] : memref<18x16xf32, #tpu.memory_space<vmem>>, vector<18x16xf32>
    tpu.vector_store %arg6[%c0_6, %c0_7], %7 {strides = array<i32>} : memref<18x16xf32, #tpu.memory_space<vmem>>, vector<18x16xf32>,
    %c0_i32_8 = arith.constant 0 : i32
    %9 = arith.cmpi eq, %arg1, %c0_i32_8 : i32
    %10 = arith.extui %9 : i1 to i32
    %c0_i32_9 = arith.constant 0 : i32
    %11 = arith.cmpi ne, %10, %c0_i32_9 : i32
    scf.if %11 {
      %c0_10 = arith.constant 0 : index
      %c0_11 = arith.constant 0 : index
      %12 = vector.load %arg6[%c0_10, %c0_11] : memref<18x16xf32, #tpu.memory_space<vmem>>, vector<18x16xf32>
      %c0_12 = arith.constant 0 : index
      %c0_13 = arith.constant 0 : index
      %13 = vector.load %arg4[%c0_12, %c0_13] : memref<1x16xf32, #tpu.memory_space<vmem>>, vector<1x16xf32>
      %14 = vector.broadcast %13 : vector<1x16xf32> to vector<18x16xf32>
      %15 = arith.addf %12, %14 : vector<18x16xf32>
      %cst_14 = arith.constant 0.000000e+00 : f32
      %16 = vector.broadcast %cst_14 : f32 to vector<18x16xf32>
      %17 = arith.cmpf ogt, %15, %16 : vector<18x16xf32>
      %cst_15 = arith.constant 2.000000e-01 : f32
      %18 = vector.broadcast %cst_15 : f32 to vector<18x16xf32>
      %19 = arith.mulf %18, %15 : vector<18x16xf32>
      %20 = arith.select %17, %15, %19 : vector<18x16xi1>, vector<18x16xf32>
      %c0_16 = arith.constant 0 : index
      %c0_17 = arith.constant 0 : index
      %21 = vector.load %arg5[%c0_16, %c0_17] : memref<18x16xf32, #tpu.memory_space<vmem>>, vector<18x16xf32>
      tpu.vector_store %arg5[%c0_16, %c0_17], %20 {strides = array<i32>} : memref<18x16xf32, #tpu.memory_space<vmem>>, vector<18x16xf32>,
    } else {
    }
    return
  }
  func.func @transform_0(%arg0: i32, %arg1: i32) -> (i32, i32) {
    %c0_i32 = arith.constant 0 : i32
    return %arg0, %arg1 : i32, i32
  }
  func.func @transform_1(%arg0: i32, %arg1: i32) -> (i32, i32) {
    %c0_i32 = arith.constant 0 : i32
    %c0_i32_0 = arith.constant 0 : i32
    return %arg1, %c0_i32 : i32, i32
  }
  func.func @transform_2(%arg0: i32, %arg1: i32) -> (i32, i32) {
    %c0_i32 = arith.constant 0 : i32
    %c0_i32_0 = arith.constant 0 : i32
    %c0_i32_1 = arith.constant 0 : i32
    return %c0_i32, %c0_i32_0 : i32, i32
  }
  func.func @transform_3(%arg0: i32, %arg1: i32) -> (i32, i32) {
    %c0_i32 = arith.constant 0 : i32
    %c0_i32_0 = arith.constant 0 : i32
    return %arg0, %c0_i32 : i32, i32
  }
}

module attributes {stable_mosaic.version = 11 : i64} {
  func.func @_matmul_bias_kernel(%arg0: i32, %arg1: i32, %arg2: memref<8x256xbf16, #tpu.memory_space<vmem>>, %arg3: memref<256x32xbf16, #tpu.memory_space<vmem>>, %arg4: memref<1x32xf32, #tpu.memory_space<vmem>>, %arg5: memref<8x32xf32, #tpu.memory_space<vmem>>, %arg6: memref<8x32xf32, #tpu.memory_space<vmem>>) attributes {dimension_semantics = [#tpu.dimension_semantics<parallel>, #tpu.dimension_semantics<arbitrary>], iteration_bounds = array<i64: 1, 1>, scalar_prefetch = 0 : i64, scratch_operands = 1 : i64, tpu.core_type = #tpu.core_type<tc>, window_params = [{transform_indices = @transform_0, window_bounds = array<i64: 8, 256>}, {transform_indices = @transform_1, window_bounds = array<i64: 256, 32>}, {pipeline_mode = #tpu.pipeline_mode<synchronous>, transform_indices = @transform_2, window_bounds = array<i64: 1, 32>}, {transform_indices = @transform_3, window_bounds = array<i64: 8, 32>}]} {
    %c0_i32 = arith.constant 0 : i32
    %0 = arith.cmpi eq, %arg1, %c0_i32 : i32
    %1 = arith.extui %0 : i1 to i32
    %c0_i32_0 = arith.constant 0 : i32
    %2 = arith.cmpi ne, %1, %c0_i32_0 : i32
    scf.if %2 {
      %cst_10 = arith.constant 0.000000e+00 : f32
      %12 = vector.broadcast %cst_10 : f32 to vector<8x32xf32>
      %c0_11 = arith.constant 0 : index
      %c0_12 = arith.constant 0 : index
      %13 = vector.load %arg6[%c0_11, %c0_12] : memref<8x32xf32, #tpu.memory_space<vmem>>, vector<8x32xf32>
      tpu.vector_store %arg6[%c0_11, %c0_12], %12 {strides = array<i32>} : memref<8x32xf32, #tpu.memory_space<vmem>>, vector<8x32xf32>,
    } else {
    }
    %c0 = arith.constant 0 : index
    %c0_1 = arith.constant 0 : index
    %3 = vector.load %arg6[%c0, %c0_1] : memref<8x32xf32, #tpu.memory_space<vmem>>, vector<8x32xf32>
    %c0_2 = arith.constant 0 : index
    %c0_3 = arith.constant 0 : index
    %4 = vector.load %arg2[%c0_2, %c0_3] : memref<8x256xbf16, #tpu.memory_space<vmem>>, vector<8x256xbf16>
    %c0_4 = arith.constant 0 : index
    %c0_5 = arith.constant 0 : index
    %5 = vector.load %arg3[%c0_4, %c0_5] : memref<256x32xbf16, #tpu.memory_space<vmem>>, vector<256x32xbf16>
    %cst = arith.constant dense<0.000000e+00> : vector<8x32xf32>
    %6 = tpu.matmul %4, %5, %cst {dimension_numbers = #tpu.dot_dimension_numbers<[1], [0], [0], [1], [0, 0, 1, 1], [], []>} : vector<8x256xbf16>, vector<256x32xbf16>, vector<8x32xf32> -> vector<8x32xf32>
    %7 = arith.addf %3, %6 : vector<8x32xf32>
    %c0_6 = arith.constant 0 : index
    %c0_7 = arith.constant 0 : index
    %8 = vector.load %arg6[%c0_6, %c0_7] : memref<8x32xf32, #tpu.memory_space<vmem>>, vector<8x32xf32>
    tpu.vector_store %arg6[%c0_6, %c0_7], %7 {strides = array<i32>} : memref<8x32xf32, #tpu.memory_space<vmem>>, vector<8x32xf32>,
    %c0_i32_8 = arith.constant 0 : i32
    %9 = arith.cmpi eq, %arg1, %c0_i32_8 : i32
    %10 = arith.extui %9 : i1 to i32
    %c0_i32_9 = arith.constant 0 : i32
    %11 = arith.cmpi ne, %10, %c0_i32_9 : i32
    scf.if %11 {
      %c0_10 = arith.constant 0 : index
      %c0_11 = arith.constant 0 : index
      %12 = vector.load %arg6[%c0_10, %c0_11] : memref<8x32xf32, #tpu.memory_space<vmem>>, vector<8x32xf32>
      %c0_12 = arith.constant 0 : index
      %c0_13 = arith.constant 0 : index
      %13 = vector.load %arg4[%c0_12, %c0_13] : memref<1x32xf32, #tpu.memory_space<vmem>>, vector<1x32xf32>
      %14 = vector.broadcast %13 : vector<1x32xf32> to vector<8x32xf32>
      %15 = arith.addf %12, %14 : vector<8x32xf32>
      %c0_14 = arith.constant 0 : index
      %c0_15 = arith.constant 0 : index
      %16 = vector.load %arg5[%c0_14, %c0_15] : memref<8x32xf32, #tpu.memory_space<vmem>>, vector<8x32xf32>
      tpu.vector_store %arg5[%c0_14, %c0_15], %15 {strides = array<i32>} : memref<8x32xf32, #tpu.memory_space<vmem>>, vector<8x32xf32>,
    } else {
    }
    return
  }
  func.func @transform_0(%arg0: i32, %arg1: i32) -> (i32, i32) {
    %c0_i32 = arith.constant 0 : i32
    return %arg0, %arg1 : i32, i32
  }
  func.func @transform_1(%arg0: i32, %arg1: i32) -> (i32, i32) {
    %c0_i32 = arith.constant 0 : i32
    %c0_i32_0 = arith.constant 0 : i32
    return %arg1, %c0_i32 : i32, i32
  }
  func.func @transform_2(%arg0: i32, %arg1: i32) -> (i32, i32) {
    %c0_i32 = arith.constant 0 : i32
    %c0_i32_0 = arith.constant 0 : i32
    %c0_i32_1 = arith.constant 0 : i32
    return %c0_i32, %c0_i32_0 : i32, i32
  }
  func.func @transform_3(%arg0: i32, %arg1: i32) -> (i32, i32) {
    %c0_i32 = arith.constant 0 : i32
    %c0_i32_0 = arith.constant 0 : i32
    return %arg0, %c0_i32 : i32, i32
  }
}

module attributes {stable_mosaic.version = 11 : i64} {
  func.func @_scale_shift_lrelu_kernel(%arg0: i32, %arg1: memref<8x32xf32, #tpu.memory_space<vmem>>, %arg2: memref<1x32xf32, #tpu.memory_space<vmem>>, %arg3: memref<1x32xf32, #tpu.memory_space<vmem>>, %arg4: memref<8x32xf32, #tpu.memory_space<vmem>>) attributes {dimension_semantics = [#tpu.dimension_semantics<parallel>], iteration_bounds = array<i64: 1>, scalar_prefetch = 0 : i64, scratch_operands = 0 : i64, tpu.core_type = #tpu.core_type<tc>, window_params = [{transform_indices = @transform_0, window_bounds = array<i64: 8, 32>}, {pipeline_mode = #tpu.pipeline_mode<synchronous>, transform_indices = @transform_1, window_bounds = array<i64: 1, 32>}, {pipeline_mode = #tpu.pipeline_mode<synchronous>, transform_indices = @transform_2, window_bounds = array<i64: 1, 32>}, {transform_indices = @transform_3, window_bounds = array<i64: 8, 32>}]} {
    %c0 = arith.constant 0 : index
    %c0_0 = arith.constant 0 : index
    %0 = vector.load %arg1[%c0, %c0_0] : memref<8x32xf32, #tpu.memory_space<vmem>>, vector<8x32xf32>
    %c0_1 = arith.constant 0 : index
    %c0_2 = arith.constant 0 : index
    %1 = vector.load %arg2[%c0_1, %c0_2] : memref<1x32xf32, #tpu.memory_space<vmem>>, vector<1x32xf32>
    %2 = vector.broadcast %1 : vector<1x32xf32> to vector<8x32xf32>
    %3 = arith.mulf %0, %2 : vector<8x32xf32>
    %c0_3 = arith.constant 0 : index
    %c0_4 = arith.constant 0 : index
    %4 = vector.load %arg3[%c0_3, %c0_4] : memref<1x32xf32, #tpu.memory_space<vmem>>, vector<1x32xf32>
    %5 = vector.broadcast %4 : vector<1x32xf32> to vector<8x32xf32>
    %6 = arith.addf %3, %5 : vector<8x32xf32>
    %cst = arith.constant 0.000000e+00 : f32
    %7 = vector.broadcast %cst : f32 to vector<8x32xf32>
    %8 = arith.cmpf ogt, %6, %7 : vector<8x32xf32>
    %cst_5 = arith.constant 2.000000e-01 : f32
    %9 = vector.broadcast %cst_5 : f32 to vector<8x32xf32>
    %10 = arith.mulf %9, %6 : vector<8x32xf32>
    %11 = arith.select %8, %6, %10 : vector<8x32xi1>, vector<8x32xf32>
    %c0_6 = arith.constant 0 : index
    %c0_7 = arith.constant 0 : index
    %12 = vector.load %arg4[%c0_6, %c0_7] : memref<8x32xf32, #tpu.memory_space<vmem>>, vector<8x32xf32>
    tpu.vector_store %arg4[%c0_6, %c0_7], %11 {strides = array<i32>} : memref<8x32xf32, #tpu.memory_space<vmem>>, vector<8x32xf32>,
    return
  }
  func.func @transform_0(%arg0: i32) -> (i32, i32) {
    %c0_i32 = arith.constant 0 : i32
    %c0_i32_0 = arith.constant 0 : i32
    return %arg0, %c0_i32 : i32, i32
  }
  func.func @transform_1(%arg0: i32) -> (i32, i32) {
    %c0_i32 = arith.constant 0 : i32
    %c0_i32_0 = arith.constant 0 : i32
    %c0_i32_1 = arith.constant 0 : i32
    return %c0_i32, %c0_i32_0 : i32, i32
  }
  func.func @transform_2(%arg0: i32) -> (i32, i32) {
    %c0_i32 = arith.constant 0 : i32
    %c0_i32_0 = arith.constant 0 : i32
    %c0_i32_1 = arith.constant 0 : i32
    return %c0_i32, %c0_i32_0 : i32, i32
  }
  func.func @transform_3(%arg0: i32) -> (i32, i32) {
    %c0_i32 = arith.constant 0 : i32
    %c0_i32_0 = arith.constant 0 : i32
    return %arg0, %c0_i32 : i32, i32
  }
}

module attributes {stable_mosaic.version = 11 : i64} {
  func.func @_matmul_bias_kernel(%arg0: i32, %arg1: i32, %arg2: memref<8x512xbf16, #tpu.memory_space<vmem>>, %arg3: memref<512x64xbf16, #tpu.memory_space<vmem>>, %arg4: memref<1x64xf32, #tpu.memory_space<vmem>>, %arg5: memref<8x64xf32, #tpu.memory_space<vmem>>, %arg6: memref<8x64xf32, #tpu.memory_space<vmem>>) attributes {dimension_semantics = [#tpu.dimension_semantics<parallel>, #tpu.dimension_semantics<arbitrary>], iteration_bounds = array<i64: 1, 1>, scalar_prefetch = 0 : i64, scratch_operands = 1 : i64, tpu.core_type = #tpu.core_type<tc>, window_params = [{transform_indices = @transform_0, window_bounds = array<i64: 8, 512>}, {transform_indices = @transform_1, window_bounds = array<i64: 512, 64>}, {pipeline_mode = #tpu.pipeline_mode<synchronous>, transform_indices = @transform_2, window_bounds = array<i64: 1, 64>}, {transform_indices = @transform_3, window_bounds = array<i64: 8, 64>}]} {
    %c0_i32 = arith.constant 0 : i32
    %0 = arith.cmpi eq, %arg1, %c0_i32 : i32
    %1 = arith.extui %0 : i1 to i32
    %c0_i32_0 = arith.constant 0 : i32
    %2 = arith.cmpi ne, %1, %c0_i32_0 : i32
    scf.if %2 {
      %cst_10 = arith.constant 0.000000e+00 : f32
      %12 = vector.broadcast %cst_10 : f32 to vector<8x64xf32>
      %c0_11 = arith.constant 0 : index
      %c0_12 = arith.constant 0 : index
      %13 = vector.load %arg6[%c0_11, %c0_12] : memref<8x64xf32, #tpu.memory_space<vmem>>, vector<8x64xf32>
      tpu.vector_store %arg6[%c0_11, %c0_12], %12 {strides = array<i32>} : memref<8x64xf32, #tpu.memory_space<vmem>>, vector<8x64xf32>,
    } else {
    }
    %c0 = arith.constant 0 : index
    %c0_1 = arith.constant 0 : index
    %3 = vector.load %arg6[%c0, %c0_1] : memref<8x64xf32, #tpu.memory_space<vmem>>, vector<8x64xf32>
    %c0_2 = arith.constant 0 : index
    %c0_3 = arith.constant 0 : index
    %4 = vector.load %arg2[%c0_2, %c0_3] : memref<8x512xbf16, #tpu.memory_space<vmem>>, vector<8x512xbf16>
    %c0_4 = arith.constant 0 : index
    %c0_5 = arith.constant 0 : index
    %5 = vector.load %arg3[%c0_4, %c0_5] : memref<512x64xbf16, #tpu.memory_space<vmem>>, vector<512x64xbf16>
    %cst = arith.constant dense<0.000000e+00> : vector<8x64xf32>
    %6 = tpu.matmul %4, %5, %cst {dimension_numbers = #tpu.dot_dimension_numbers<[1], [0], [0], [1], [0, 0, 1, 1], [], []>} : vector<8x512xbf16>, vector<512x64xbf16>, vector<8x64xf32> -> vector<8x64xf32>
    %7 = arith.addf %3, %6 : vector<8x64xf32>
    %c0_6 = arith.constant 0 : index
    %c0_7 = arith.constant 0 : index
    %8 = vector.load %arg6[%c0_6, %c0_7] : memref<8x64xf32, #tpu.memory_space<vmem>>, vector<8x64xf32>
    tpu.vector_store %arg6[%c0_6, %c0_7], %7 {strides = array<i32>} : memref<8x64xf32, #tpu.memory_space<vmem>>, vector<8x64xf32>,
    %c0_i32_8 = arith.constant 0 : i32
    %9 = arith.cmpi eq, %arg1, %c0_i32_8 : i32
    %10 = arith.extui %9 : i1 to i32
    %c0_i32_9 = arith.constant 0 : i32
    %11 = arith.cmpi ne, %10, %c0_i32_9 : i32
    scf.if %11 {
      %c0_10 = arith.constant 0 : index
      %c0_11 = arith.constant 0 : index
      %12 = vector.load %arg6[%c0_10, %c0_11] : memref<8x64xf32, #tpu.memory_space<vmem>>, vector<8x64xf32>
      %c0_12 = arith.constant 0 : index
      %c0_13 = arith.constant 0 : index
      %13 = vector.load %arg4[%c0_12, %c0_13] : memref<1x64xf32, #tpu.memory_space<vmem>>, vector<1x64xf32>
      %14 = vector.broadcast %13 : vector<1x64xf32> to vector<8x64xf32>
      %15 = arith.addf %12, %14 : vector<8x64xf32>
      %c0_14 = arith.constant 0 : index
      %c0_15 = arith.constant 0 : index
      %16 = vector.load %arg5[%c0_14, %c0_15] : memref<8x64xf32, #tpu.memory_space<vmem>>, vector<8x64xf32>
      tpu.vector_store %arg5[%c0_14, %c0_15], %15 {strides = array<i32>} : memref<8x64xf32, #tpu.memory_space<vmem>>, vector<8x64xf32>,
    } else {
    }
    return
  }
  func.func @transform_0(%arg0: i32, %arg1: i32) -> (i32, i32) {
    %c0_i32 = arith.constant 0 : i32
    return %arg0, %arg1 : i32, i32
  }
  func.func @transform_1(%arg0: i32, %arg1: i32) -> (i32, i32) {
    %c0_i32 = arith.constant 0 : i32
    %c0_i32_0 = arith.constant 0 : i32
    return %arg1, %c0_i32 : i32, i32
  }
  func.func @transform_2(%arg0: i32, %arg1: i32) -> (i32, i32) {
    %c0_i32 = arith.constant 0 : i32
    %c0_i32_0 = arith.constant 0 : i32
    %c0_i32_1 = arith.constant 0 : i32
    return %c0_i32, %c0_i32_0 : i32, i32
  }
  func.func @transform_3(%arg0: i32, %arg1: i32) -> (i32, i32) {
    %c0_i32 = arith.constant 0 : i32
    %c0_i32_0 = arith.constant 0 : i32
    return %arg0, %c0_i32 : i32, i32
  }
}

module attributes {stable_mosaic.version = 11 : i64} {
  func.func @_scale_shift_lrelu_kernel(%arg0: i32, %arg1: memref<8x64xf32, #tpu.memory_space<vmem>>, %arg2: memref<1x64xf32, #tpu.memory_space<vmem>>, %arg3: memref<1x64xf32, #tpu.memory_space<vmem>>, %arg4: memref<8x64xf32, #tpu.memory_space<vmem>>) attributes {dimension_semantics = [#tpu.dimension_semantics<parallel>], iteration_bounds = array<i64: 1>, scalar_prefetch = 0 : i64, scratch_operands = 0 : i64, tpu.core_type = #tpu.core_type<tc>, window_params = [{transform_indices = @transform_0, window_bounds = array<i64: 8, 64>}, {pipeline_mode = #tpu.pipeline_mode<synchronous>, transform_indices = @transform_1, window_bounds = array<i64: 1, 64>}, {pipeline_mode = #tpu.pipeline_mode<synchronous>, transform_indices = @transform_2, window_bounds = array<i64: 1, 64>}, {transform_indices = @transform_3, window_bounds = array<i64: 8, 64>}]} {
    %c0 = arith.constant 0 : index
    %c0_0 = arith.constant 0 : index
    %0 = vector.load %arg1[%c0, %c0_0] : memref<8x64xf32, #tpu.memory_space<vmem>>, vector<8x64xf32>
    %c0_1 = arith.constant 0 : index
    %c0_2 = arith.constant 0 : index
    %1 = vector.load %arg2[%c0_1, %c0_2] : memref<1x64xf32, #tpu.memory_space<vmem>>, vector<1x64xf32>
    %2 = vector.broadcast %1 : vector<1x64xf32> to vector<8x64xf32>
    %3 = arith.mulf %0, %2 : vector<8x64xf32>
    %c0_3 = arith.constant 0 : index
    %c0_4 = arith.constant 0 : index
    %4 = vector.load %arg3[%c0_3, %c0_4] : memref<1x64xf32, #tpu.memory_space<vmem>>, vector<1x64xf32>
    %5 = vector.broadcast %4 : vector<1x64xf32> to vector<8x64xf32>
    %6 = arith.addf %3, %5 : vector<8x64xf32>
    %cst = arith.constant 0.000000e+00 : f32
    %7 = vector.broadcast %cst : f32 to vector<8x64xf32>
    %8 = arith.cmpf ogt, %6, %7 : vector<8x64xf32>
    %cst_5 = arith.constant 2.000000e-01 : f32
    %9 = vector.broadcast %cst_5 : f32 to vector<8x64xf32>
    %10 = arith.mulf %9, %6 : vector<8x64xf32>
    %11 = arith.select %8, %6, %10 : vector<8x64xi1>, vector<8x64xf32>
    %c0_6 = arith.constant 0 : index
    %c0_7 = arith.constant 0 : index
    %12 = vector.load %arg4[%c0_6, %c0_7] : memref<8x64xf32, #tpu.memory_space<vmem>>, vector<8x64xf32>
    tpu.vector_store %arg4[%c0_6, %c0_7], %11 {strides = array<i32>} : memref<8x64xf32, #tpu.memory_space<vmem>>, vector<8x64xf32>,
    return
  }
  func.func @transform_0(%arg0: i32) -> (i32, i32) {
    %c0_i32 = arith.constant 0 : i32
    %c0_i32_0 = arith.constant 0 : i32
    return %arg0, %c0_i32 : i32, i32
  }
  func.func @transform_1(%arg0: i32) -> (i32, i32) {
    %c0_i32 = arith.constant 0 : i32
    %c0_i32_0 = arith.constant 0 : i32
    %c0_i32_1 = arith.constant 0 : i32
    return %c0_i32, %c0_i32_0 : i32, i32
  }
  func.func @transform_2(%arg0: i32) -> (i32, i32) {
    %c0_i32 = arith.constant 0 : i32
    %c0_i32_0 = arith.constant 0 : i32
    %c0_i32_1 = arith.constant 0 : i32
    return %c0_i32, %c0_i32_0 : i32, i32
  }
  func.func @transform_3(%arg0: i32) -> (i32, i32) {
    %c0_i32 = arith.constant 0 : i32
    %c0_i32_0 = arith.constant 0 : i32
    return %arg0, %c0_i32 : i32, i32
  }
}

module attributes {stable_mosaic.version = 11 : i64} {
  func.func @_matmul_bias_kernel(%arg0: i32, %arg1: i32, %arg2: memref<18x1024xbf16, #tpu.memory_space<vmem>>, %arg3: memref<1024x128xbf16, #tpu.memory_space<vmem>>, %arg4: memref<1x128xf32, #tpu.memory_space<vmem>>, %arg5: memref<18x128xf32, #tpu.memory_space<vmem>>, %arg6: memref<18x128xf32, #tpu.memory_space<vmem>>) attributes {dimension_semantics = [#tpu.dimension_semantics<parallel>, #tpu.dimension_semantics<arbitrary>], iteration_bounds = array<i64: 1, 1>, scalar_prefetch = 0 : i64, scratch_operands = 1 : i64, tpu.core_type = #tpu.core_type<tc>, window_params = [{transform_indices = @transform_0, window_bounds = array<i64: 18, 1024>}, {transform_indices = @transform_1, window_bounds = array<i64: 1024, 128>}, {pipeline_mode = #tpu.pipeline_mode<synchronous>, transform_indices = @transform_2, window_bounds = array<i64: 1, 128>}, {transform_indices = @transform_3, window_bounds = array<i64: 18, 128>}]} {
    %c0_i32 = arith.constant 0 : i32
    %0 = arith.cmpi eq, %arg1, %c0_i32 : i32
    %1 = arith.extui %0 : i1 to i32
    %c0_i32_0 = arith.constant 0 : i32
    %2 = arith.cmpi ne, %1, %c0_i32_0 : i32
    scf.if %2 {
      %cst_10 = arith.constant 0.000000e+00 : f32
      %12 = vector.broadcast %cst_10 : f32 to vector<18x128xf32>
      %c0_11 = arith.constant 0 : index
      %c0_12 = arith.constant 0 : index
      %13 = vector.load %arg6[%c0_11, %c0_12] : memref<18x128xf32, #tpu.memory_space<vmem>>, vector<18x128xf32>
      tpu.vector_store %arg6[%c0_11, %c0_12], %12 {strides = array<i32>} : memref<18x128xf32, #tpu.memory_space<vmem>>, vector<18x128xf32>,
    } else {
    }
    %c0 = arith.constant 0 : index
    %c0_1 = arith.constant 0 : index
    %3 = vector.load %arg6[%c0, %c0_1] : memref<18x128xf32, #tpu.memory_space<vmem>>, vector<18x128xf32>
    %c0_2 = arith.constant 0 : index
    %c0_3 = arith.constant 0 : index
    %4 = vector.load %arg2[%c0_2, %c0_3] : memref<18x1024xbf16, #tpu.memory_space<vmem>>, vector<18x1024xbf16>
    %c0_4 = arith.constant 0 : index
    %c0_5 = arith.constant 0 : index
    %5 = vector.load %arg3[%c0_4, %c0_5] : memref<1024x128xbf16, #tpu.memory_space<vmem>>, vector<1024x128xbf16>
    %cst = arith.constant dense<0.000000e+00> : vector<18x128xf32>
    %6 = tpu.matmul %4, %5, %cst {dimension_numbers = #tpu.dot_dimension_numbers<[1], [0], [0], [1], [0, 0, 1, 1], [], []>} : vector<18x1024xbf16>, vector<1024x128xbf16>, vector<18x128xf32> -> vector<18x128xf32>
    %7 = arith.addf %3, %6 : vector<18x128xf32>
    %c0_6 = arith.constant 0 : index
    %c0_7 = arith.constant 0 : index
    %8 = vector.load %arg6[%c0_6, %c0_7] : memref<18x128xf32, #tpu.memory_space<vmem>>, vector<18x128xf32>
    tpu.vector_store %arg6[%c0_6, %c0_7], %7 {strides = array<i32>} : memref<18x128xf32, #tpu.memory_space<vmem>>, vector<18x128xf32>,
    %c0_i32_8 = arith.constant 0 : i32
    %9 = arith.cmpi eq, %arg1, %c0_i32_8 : i32
    %10 = arith.extui %9 : i1 to i32
    %c0_i32_9 = arith.constant 0 : i32
    %11 = arith.cmpi ne, %10, %c0_i32_9 : i32
    scf.if %11 {
      %c0_10 = arith.constant 0 : index
      %c0_11 = arith.constant 0 : index
      %12 = vector.load %arg6[%c0_10, %c0_11] : memref<18x128xf32, #tpu.memory_space<vmem>>, vector<18x128xf32>
      %c0_12 = arith.constant 0 : index
      %c0_13 = arith.constant 0 : index
      %13 = vector.load %arg4[%c0_12, %c0_13] : memref<1x128xf32, #tpu.memory_space<vmem>>, vector<1x128xf32>
      %14 = vector.broadcast %13 : vector<1x128xf32> to vector<18x128xf32>
      %15 = arith.addf %12, %14 : vector<18x128xf32>
      %c0_14 = arith.constant 0 : index
      %c0_15 = arith.constant 0 : index
      %16 = vector.load %arg5[%c0_14, %c0_15] : memref<18x128xf32, #tpu.memory_space<vmem>>, vector<18x128xf32>
      tpu.vector_store %arg5[%c0_14, %c0_15], %15 {strides = array<i32>} : memref<18x128xf32, #tpu.memory_space<vmem>>, vector<18x128xf32>,
    } else {
    }
    return
  }
  func.func @transform_0(%arg0: i32, %arg1: i32) -> (i32, i32) {
    %c0_i32 = arith.constant 0 : i32
    return %arg0, %arg1 : i32, i32
  }
  func.func @transform_1(%arg0: i32, %arg1: i32) -> (i32, i32) {
    %c0_i32 = arith.constant 0 : i32
    %c0_i32_0 = arith.constant 0 : i32
    return %arg1, %c0_i32 : i32, i32
  }
  func.func @transform_2(%arg0: i32, %arg1: i32) -> (i32, i32) {
    %c0_i32 = arith.constant 0 : i32
    %c0_i32_0 = arith.constant 0 : i32
    %c0_i32_1 = arith.constant 0 : i32
    return %c0_i32, %c0_i32_0 : i32, i32
  }
  func.func @transform_3(%arg0: i32, %arg1: i32) -> (i32, i32) {
    %c0_i32 = arith.constant 0 : i32
    %c0_i32_0 = arith.constant 0 : i32
    return %arg0, %c0_i32 : i32, i32
  }
}

module attributes {stable_mosaic.version = 11 : i64} {
  func.func @_scale_shift_lrelu_kernel(%arg0: i32, %arg1: memref<18x128xf32, #tpu.memory_space<vmem>>, %arg2: memref<1x128xf32, #tpu.memory_space<vmem>>, %arg3: memref<1x128xf32, #tpu.memory_space<vmem>>, %arg4: memref<18x128xf32, #tpu.memory_space<vmem>>) attributes {dimension_semantics = [#tpu.dimension_semantics<parallel>], iteration_bounds = array<i64: 1>, scalar_prefetch = 0 : i64, scratch_operands = 0 : i64, tpu.core_type = #tpu.core_type<tc>, window_params = [{transform_indices = @transform_0, window_bounds = array<i64: 18, 128>}, {pipeline_mode = #tpu.pipeline_mode<synchronous>, transform_indices = @transform_1, window_bounds = array<i64: 1, 128>}, {pipeline_mode = #tpu.pipeline_mode<synchronous>, transform_indices = @transform_2, window_bounds = array<i64: 1, 128>}, {transform_indices = @transform_3, window_bounds = array<i64: 18, 128>}]} {
    %c0 = arith.constant 0 : index
    %c0_0 = arith.constant 0 : index
    %0 = vector.load %arg1[%c0, %c0_0] : memref<18x128xf32, #tpu.memory_space<vmem>>, vector<18x128xf32>
    %c0_1 = arith.constant 0 : index
    %c0_2 = arith.constant 0 : index
    %1 = vector.load %arg2[%c0_1, %c0_2] : memref<1x128xf32, #tpu.memory_space<vmem>>, vector<1x128xf32>
    %2 = vector.broadcast %1 : vector<1x128xf32> to vector<18x128xf32>
    %3 = arith.mulf %0, %2 : vector<18x128xf32>
    %c0_3 = arith.constant 0 : index
    %c0_4 = arith.constant 0 : index
    %4 = vector.load %arg3[%c0_3, %c0_4] : memref<1x128xf32, #tpu.memory_space<vmem>>, vector<1x128xf32>
    %5 = vector.broadcast %4 : vector<1x128xf32> to vector<18x128xf32>
    %6 = arith.addf %3, %5 : vector<18x128xf32>
    %cst = arith.constant 0.000000e+00 : f32
    %7 = vector.broadcast %cst : f32 to vector<18x128xf32>
    %8 = arith.cmpf ogt, %6, %7 : vector<18x128xf32>
    %cst_5 = arith.constant 2.000000e-01 : f32
    %9 = vector.broadcast %cst_5 : f32 to vector<18x128xf32>
    %10 = arith.mulf %9, %6 : vector<18x128xf32>
    %11 = arith.select %8, %6, %10 : vector<18x128xi1>, vector<18x128xf32>
    %c0_6 = arith.constant 0 : index
    %c0_7 = arith.constant 0 : index
    %12 = vector.load %arg4[%c0_6, %c0_7] : memref<18x128xf32, #tpu.memory_space<vmem>>, vector<18x128xf32>
    tpu.vector_store %arg4[%c0_6, %c0_7], %11 {strides = array<i32>} : memref<18x128xf32, #tpu.memory_space<vmem>>, vector<18x128xf32>,
    return
  }
  func.func @transform_0(%arg0: i32) -> (i32, i32) {
    %c0_i32 = arith.constant 0 : i32
    %c0_i32_0 = arith.constant 0 : i32
    return %arg0, %c0_i32 : i32, i32
  }
  func.func @transform_1(%arg0: i32) -> (i32, i32) {
    %c0_i32 = arith.constant 0 : i32
    %c0_i32_0 = arith.constant 0 : i32
    %c0_i32_1 = arith.constant 0 : i32
    return %c0_i32, %c0_i32_0 : i32, i32
  }
  func.func @transform_2(%arg0: i32) -> (i32, i32) {
    %c0_i32 = arith.constant 0 : i32
    %c0_i32_0 = arith.constant 0 : i32
    %c0_i32_1 = arith.constant 0 : i32
    return %c0_i32, %c0_i32_0 : i32, i32
  }
  func.func @transform_3(%arg0: i32) -> (i32, i32) {
    %c0_i32 = arith.constant 0 : i32
    %c0_i32_0 = arith.constant 0 : i32
    return %arg0, %c0_i32 : i32, i32
  }
}

module attributes {stable_mosaic.version = 11 : i64} {
  func.func @_rowdot_kernel(%arg0: i32, %arg1: memref<32x2048xbf16, #tpu.memory_space<vmem>>, %arg2: memref<1x2048xbf16, #tpu.memory_space<vmem>>, %arg3: memref<1x1xf32, #tpu.memory_space<vmem>>, %arg4: memref<32x1xf32, #tpu.memory_space<vmem>>) attributes {dimension_semantics = [#tpu.dimension_semantics<parallel>], iteration_bounds = array<i64: 1>, scalar_prefetch = 0 : i64, scratch_operands = 0 : i64, tpu.core_type = #tpu.core_type<tc>, window_params = [{transform_indices = @transform_0, window_bounds = array<i64: 32, 2048>}, {pipeline_mode = #tpu.pipeline_mode<synchronous>, transform_indices = @transform_1, window_bounds = array<i64: 1, 2048>}, {pipeline_mode = #tpu.pipeline_mode<synchronous>, transform_indices = @transform_2, window_bounds = array<i64: 1, 1>}, {transform_indices = @transform_3, window_bounds = array<i64: 32, 1>}]} {
    %c0 = arith.constant 0 : index
    %c0_0 = arith.constant 0 : index
    %0 = vector.load %arg1[%c0, %c0_0] : memref<32x2048xbf16, #tpu.memory_space<vmem>>, vector<32x2048xbf16>
    %1 = arith.extf %0 : vector<32x2048xbf16> to vector<32x2048xf32>
    %c0_1 = arith.constant 0 : index
    %c0_2 = arith.constant 0 : index
    %2 = vector.load %arg2[%c0_1, %c0_2] : memref<1x2048xbf16, #tpu.memory_space<vmem>>, vector<1x2048xbf16>
    %3 = arith.extf %2 : vector<1x2048xbf16> to vector<1x2048xf32>
    %4 = vector.broadcast %3 : vector<1x2048xf32> to vector<32x2048xf32>
    %5 = arith.mulf %1, %4 : vector<32x2048xf32>
    %cst = arith.constant dense<0.000000e+00> : vector<32xf32>
    %6 = vector.multi_reduction <add>, %5, %cst [1] : vector<32x2048xf32> to vector<32xf32>
    %7 = vector.shape_cast %6 : vector<32xf32> to vector<32x1xf32>
    %c0_3 = arith.constant 0 : index
    %c0_4 = arith.constant 0 : index
    %8 = vector.load %arg3[%c0_3, %c0_4] : memref<1x1xf32, #tpu.memory_space<vmem>>, vector<1x1xf32>
    %9 = vector.broadcast %8 : vector<1x1xf32> to vector<32x1xf32>
    %10 = arith.addf %7, %9 : vector<32x1xf32>
    %c0_5 = arith.constant 0 : index
    %c0_6 = arith.constant 0 : index
    %11 = vector.load %arg4[%c0_5, %c0_6] : memref<32x1xf32, #tpu.memory_space<vmem>>, vector<32x1xf32>
    tpu.vector_store %arg4[%c0_5, %c0_6], %10 {strides = array<i32>} : memref<32x1xf32, #tpu.memory_space<vmem>>, vector<32x1xf32>,
    return
  }
  func.func @transform_0(%arg0: i32) -> (i32, i32) {
    %c0_i32 = arith.constant 0 : i32
    %c0_i32_0 = arith.constant 0 : i32
    return %arg0, %c0_i32 : i32, i32
  }
  func.func @transform_1(%arg0: i32) -> (i32, i32) {
    %c0_i32 = arith.constant 0 : i32
    %c0_i32_0 = arith.constant 0 : i32
    %c0_i32_1 = arith.constant 0 : i32
    return %c0_i32, %c0_i32_0 : i32, i32
  }
  func.func @transform_2(%arg0: i32) -> (i32, i32) {
    %c0_i32 = arith.constant 0 : i32
    %c0_i32_0 = arith.constant 0 : i32
    %c0_i32_1 = arith.constant 0 : i32
    return %c0_i32, %c0_i32_0 : i32, i32
  }
  func.func @transform_3(%arg0: i32) -> (i32, i32) {
    %c0_i32 = arith.constant 0 : i32
    %c0_i32_0 = arith.constant 0 : i32
    return %arg0, %c0_i32 : i32, i32
  }
}

module attributes {stable_mosaic.version = 11 : i64} {
  func.func @_matmul_bias_kernel(%arg0: i32, %arg1: i32, %arg2: memref<50x64xbf16, #tpu.memory_space<vmem>>, %arg3: memref<64x16xbf16, #tpu.memory_space<vmem>>, %arg4: memref<1x16xf32, #tpu.memory_space<vmem>>, %arg5: memref<50x16xf32, #tpu.memory_space<vmem>>, %arg6: memref<50x16xf32, #tpu.memory_space<vmem>>) attributes {dimension_semantics = [#tpu.dimension_semantics<parallel>, #tpu.dimension_semantics<arbitrary>], iteration_bounds = array<i64: 1, 1>, scalar_prefetch = 0 : i64, scratch_operands = 1 : i64, tpu.core_type = #tpu.core_type<tc>, window_params = [{transform_indices = @transform_0, window_bounds = array<i64: 50, 64>}, {transform_indices = @transform_1, window_bounds = array<i64: 64, 16>}, {pipeline_mode = #tpu.pipeline_mode<synchronous>, transform_indices = @transform_2, window_bounds = array<i64: 1, 16>}, {transform_indices = @transform_3, window_bounds = array<i64: 50, 16>}]} {
    %c0_i32 = arith.constant 0 : i32
    %0 = arith.cmpi eq, %arg1, %c0_i32 : i32
    %1 = arith.extui %0 : i1 to i32
    %c0_i32_0 = arith.constant 0 : i32
    %2 = arith.cmpi ne, %1, %c0_i32_0 : i32
    scf.if %2 {
      %cst_10 = arith.constant 0.000000e+00 : f32
      %12 = vector.broadcast %cst_10 : f32 to vector<50x16xf32>
      %c0_11 = arith.constant 0 : index
      %c0_12 = arith.constant 0 : index
      %13 = vector.load %arg6[%c0_11, %c0_12] : memref<50x16xf32, #tpu.memory_space<vmem>>, vector<50x16xf32>
      tpu.vector_store %arg6[%c0_11, %c0_12], %12 {strides = array<i32>} : memref<50x16xf32, #tpu.memory_space<vmem>>, vector<50x16xf32>,
    } else {
    }
    %c0 = arith.constant 0 : index
    %c0_1 = arith.constant 0 : index
    %3 = vector.load %arg6[%c0, %c0_1] : memref<50x16xf32, #tpu.memory_space<vmem>>, vector<50x16xf32>
    %c0_2 = arith.constant 0 : index
    %c0_3 = arith.constant 0 : index
    %4 = vector.load %arg2[%c0_2, %c0_3] : memref<50x64xbf16, #tpu.memory_space<vmem>>, vector<50x64xbf16>
    %c0_4 = arith.constant 0 : index
    %c0_5 = arith.constant 0 : index
    %5 = vector.load %arg3[%c0_4, %c0_5] : memref<64x16xbf16, #tpu.memory_space<vmem>>, vector<64x16xbf16>
    %cst = arith.constant dense<0.000000e+00> : vector<50x16xf32>
    %6 = tpu.matmul %4, %5, %cst {dimension_numbers = #tpu.dot_dimension_numbers<[1], [0], [0], [1], [0, 0, 1, 1], [], []>} : vector<50x64xbf16>, vector<64x16xbf16>, vector<50x16xf32> -> vector<50x16xf32>
    %7 = arith.addf %3, %6 : vector<50x16xf32>
    %c0_6 = arith.constant 0 : index
    %c0_7 = arith.constant 0 : index
    %8 = vector.load %arg6[%c0_6, %c0_7] : memref<50x16xf32, #tpu.memory_space<vmem>>, vector<50x16xf32>
    tpu.vector_store %arg6[%c0_6, %c0_7], %7 {strides = array<i32>} : memref<50x16xf32, #tpu.memory_space<vmem>>, vector<50x16xf32>,
    %c0_i32_8 = arith.constant 0 : i32
    %9 = arith.cmpi eq, %arg1, %c0_i32_8 : i32
    %10 = arith.extui %9 : i1 to i32
    %c0_i32_9 = arith.constant 0 : i32
    %11 = arith.cmpi ne, %10, %c0_i32_9 : i32
    scf.if %11 {
      %c0_10 = arith.constant 0 : index
      %c0_11 = arith.constant 0 : index
      %12 = vector.load %arg6[%c0_10, %c0_11] : memref<50x16xf32, #tpu.memory_space<vmem>>, vector<50x16xf32>
      %c0_12 = arith.constant 0 : index
      %c0_13 = arith.constant 0 : index
      %13 = vector.load %arg4[%c0_12, %c0_13] : memref<1x16xf32, #tpu.memory_space<vmem>>, vector<1x16xf32>
      %14 = vector.broadcast %13 : vector<1x16xf32> to vector<50x16xf32>
      %15 = arith.addf %12, %14 : vector<50x16xf32>
      %cst_14 = arith.constant 0.000000e+00 : f32
      %16 = vector.broadcast %cst_14 : f32 to vector<50x16xf32>
      %17 = arith.cmpf ogt, %15, %16 : vector<50x16xf32>
      %cst_15 = arith.constant 2.000000e-01 : f32
      %18 = vector.broadcast %cst_15 : f32 to vector<50x16xf32>
      %19 = arith.mulf %18, %15 : vector<50x16xf32>
      %20 = arith.select %17, %15, %19 : vector<50x16xi1>, vector<50x16xf32>
      %c0_16 = arith.constant 0 : index
      %c0_17 = arith.constant 0 : index
      %21 = vector.load %arg5[%c0_16, %c0_17] : memref<50x16xf32, #tpu.memory_space<vmem>>, vector<50x16xf32>
      tpu.vector_store %arg5[%c0_16, %c0_17], %20 {strides = array<i32>} : memref<50x16xf32, #tpu.memory_space<vmem>>, vector<50x16xf32>,
    } else {
    }
    return
  }
  func.func @transform_0(%arg0: i32, %arg1: i32) -> (i32, i32) {
    %c0_i32 = arith.constant 0 : i32
    return %arg0, %arg1 : i32, i32
  }
  func.func @transform_1(%arg0: i32, %arg1: i32) -> (i32, i32) {
    %c0_i32 = arith.constant 0 : i32
    %c0_i32_0 = arith.constant 0 : i32
    return %arg1, %c0_i32 : i32, i32
  }
  func.func @transform_2(%arg0: i32, %arg1: i32) -> (i32, i32) {
    %c0_i32 = arith.constant 0 : i32
    %c0_i32_0 = arith.constant 0 : i32
    %c0_i32_1 = arith.constant 0 : i32
    return %c0_i32, %c0_i32_0 : i32, i32
  }
  func.func @transform_3(%arg0: i32, %arg1: i32) -> (i32, i32) {
    %c0_i32 = arith.constant 0 : i32
    %c0_i32_0 = arith.constant 0 : i32
    return %arg0, %c0_i32 : i32, i32
  }
}

module attributes {stable_mosaic.version = 11 : i64} {
  func.func @_matmul_bias_kernel(%arg0: i32, %arg1: i32, %arg2: memref<18x256xbf16, #tpu.memory_space<vmem>>, %arg3: memref<256x32xbf16, #tpu.memory_space<vmem>>, %arg4: memref<1x32xf32, #tpu.memory_space<vmem>>, %arg5: memref<18x32xf32, #tpu.memory_space<vmem>>, %arg6: memref<18x32xf32, #tpu.memory_space<vmem>>) attributes {dimension_semantics = [#tpu.dimension_semantics<parallel>, #tpu.dimension_semantics<arbitrary>], iteration_bounds = array<i64: 1, 1>, scalar_prefetch = 0 : i64, scratch_operands = 1 : i64, tpu.core_type = #tpu.core_type<tc>, window_params = [{transform_indices = @transform_0, window_bounds = array<i64: 18, 256>}, {transform_indices = @transform_1, window_bounds = array<i64: 256, 32>}, {pipeline_mode = #tpu.pipeline_mode<synchronous>, transform_indices = @transform_2, window_bounds = array<i64: 1, 32>}, {transform_indices = @transform_3, window_bounds = array<i64: 18, 32>}]} {
    %c0_i32 = arith.constant 0 : i32
    %0 = arith.cmpi eq, %arg1, %c0_i32 : i32
    %1 = arith.extui %0 : i1 to i32
    %c0_i32_0 = arith.constant 0 : i32
    %2 = arith.cmpi ne, %1, %c0_i32_0 : i32
    scf.if %2 {
      %cst_10 = arith.constant 0.000000e+00 : f32
      %12 = vector.broadcast %cst_10 : f32 to vector<18x32xf32>
      %c0_11 = arith.constant 0 : index
      %c0_12 = arith.constant 0 : index
      %13 = vector.load %arg6[%c0_11, %c0_12] : memref<18x32xf32, #tpu.memory_space<vmem>>, vector<18x32xf32>
      tpu.vector_store %arg6[%c0_11, %c0_12], %12 {strides = array<i32>} : memref<18x32xf32, #tpu.memory_space<vmem>>, vector<18x32xf32>,
    } else {
    }
    %c0 = arith.constant 0 : index
    %c0_1 = arith.constant 0 : index
    %3 = vector.load %arg6[%c0, %c0_1] : memref<18x32xf32, #tpu.memory_space<vmem>>, vector<18x32xf32>
    %c0_2 = arith.constant 0 : index
    %c0_3 = arith.constant 0 : index
    %4 = vector.load %arg2[%c0_2, %c0_3] : memref<18x256xbf16, #tpu.memory_space<vmem>>, vector<18x256xbf16>
    %c0_4 = arith.constant 0 : index
    %c0_5 = arith.constant 0 : index
    %5 = vector.load %arg3[%c0_4, %c0_5] : memref<256x32xbf16, #tpu.memory_space<vmem>>, vector<256x32xbf16>
    %cst = arith.constant dense<0.000000e+00> : vector<18x32xf32>
    %6 = tpu.matmul %4, %5, %cst {dimension_numbers = #tpu.dot_dimension_numbers<[1], [0], [0], [1], [0, 0, 1, 1], [], []>} : vector<18x256xbf16>, vector<256x32xbf16>, vector<18x32xf32> -> vector<18x32xf32>
    %7 = arith.addf %3, %6 : vector<18x32xf32>
    %c0_6 = arith.constant 0 : index
    %c0_7 = arith.constant 0 : index
    %8 = vector.load %arg6[%c0_6, %c0_7] : memref<18x32xf32, #tpu.memory_space<vmem>>, vector<18x32xf32>
    tpu.vector_store %arg6[%c0_6, %c0_7], %7 {strides = array<i32>} : memref<18x32xf32, #tpu.memory_space<vmem>>, vector<18x32xf32>,
    %c0_i32_8 = arith.constant 0 : i32
    %9 = arith.cmpi eq, %arg1, %c0_i32_8 : i32
    %10 = arith.extui %9 : i1 to i32
    %c0_i32_9 = arith.constant 0 : i32
    %11 = arith.cmpi ne, %10, %c0_i32_9 : i32
    scf.if %11 {
      %c0_10 = arith.constant 0 : index
      %c0_11 = arith.constant 0 : index
      %12 = vector.load %arg6[%c0_10, %c0_11] : memref<18x32xf32, #tpu.memory_space<vmem>>, vector<18x32xf32>
      %c0_12 = arith.constant 0 : index
      %c0_13 = arith.constant 0 : index
      %13 = vector.load %arg4[%c0_12, %c0_13] : memref<1x32xf32, #tpu.memory_space<vmem>>, vector<1x32xf32>
      %14 = vector.broadcast %13 : vector<1x32xf32> to vector<18x32xf32>
      %15 = arith.addf %12, %14 : vector<18x32xf32>
      %c0_14 = arith.constant 0 : index
      %c0_15 = arith.constant 0 : index
      %16 = vector.load %arg5[%c0_14, %c0_15] : memref<18x32xf32, #tpu.memory_space<vmem>>, vector<18x32xf32>
      tpu.vector_store %arg5[%c0_14, %c0_15], %15 {strides = array<i32>} : memref<18x32xf32, #tpu.memory_space<vmem>>, vector<18x32xf32>,
    } else {
    }
    return
  }
  func.func @transform_0(%arg0: i32, %arg1: i32) -> (i32, i32) {
    %c0_i32 = arith.constant 0 : i32
    return %arg0, %arg1 : i32, i32
  }
  func.func @transform_1(%arg0: i32, %arg1: i32) -> (i32, i32) {
    %c0_i32 = arith.constant 0 : i32
    %c0_i32_0 = arith.constant 0 : i32
    return %arg1, %c0_i32 : i32, i32
  }
  func.func @transform_2(%arg0: i32, %arg1: i32) -> (i32, i32) {
    %c0_i32 = arith.constant 0 : i32
    %c0_i32_0 = arith.constant 0 : i32
    %c0_i32_1 = arith.constant 0 : i32
    return %c0_i32, %c0_i32_0 : i32, i32
  }
  func.func @transform_3(%arg0: i32, %arg1: i32) -> (i32, i32) {
    %c0_i32 = arith.constant 0 : i32
    %c0_i32_0 = arith.constant 0 : i32
    return %arg0, %c0_i32 : i32, i32
  }
}

module attributes {stable_mosaic.version = 11 : i64} {
  func.func @_scale_shift_lrelu_kernel(%arg0: i32, %arg1: memref<18x32xf32, #tpu.memory_space<vmem>>, %arg2: memref<1x32xf32, #tpu.memory_space<vmem>>, %arg3: memref<1x32xf32, #tpu.memory_space<vmem>>, %arg4: memref<18x32xf32, #tpu.memory_space<vmem>>) attributes {dimension_semantics = [#tpu.dimension_semantics<parallel>], iteration_bounds = array<i64: 1>, scalar_prefetch = 0 : i64, scratch_operands = 0 : i64, tpu.core_type = #tpu.core_type<tc>, window_params = [{transform_indices = @transform_0, window_bounds = array<i64: 18, 32>}, {pipeline_mode = #tpu.pipeline_mode<synchronous>, transform_indices = @transform_1, window_bounds = array<i64: 1, 32>}, {pipeline_mode = #tpu.pipeline_mode<synchronous>, transform_indices = @transform_2, window_bounds = array<i64: 1, 32>}, {transform_indices = @transform_3, window_bounds = array<i64: 18, 32>}]} {
    %c0 = arith.constant 0 : index
    %c0_0 = arith.constant 0 : index
    %0 = vector.load %arg1[%c0, %c0_0] : memref<18x32xf32, #tpu.memory_space<vmem>>, vector<18x32xf32>
    %c0_1 = arith.constant 0 : index
    %c0_2 = arith.constant 0 : index
    %1 = vector.load %arg2[%c0_1, %c0_2] : memref<1x32xf32, #tpu.memory_space<vmem>>, vector<1x32xf32>
    %2 = vector.broadcast %1 : vector<1x32xf32> to vector<18x32xf32>
    %3 = arith.mulf %0, %2 : vector<18x32xf32>
    %c0_3 = arith.constant 0 : index
    %c0_4 = arith.constant 0 : index
    %4 = vector.load %arg3[%c0_3, %c0_4] : memref<1x32xf32, #tpu.memory_space<vmem>>, vector<1x32xf32>
    %5 = vector.broadcast %4 : vector<1x32xf32> to vector<18x32xf32>
    %6 = arith.addf %3, %5 : vector<18x32xf32>
    %cst = arith.constant 0.000000e+00 : f32
    %7 = vector.broadcast %cst : f32 to vector<18x32xf32>
    %8 = arith.cmpf ogt, %6, %7 : vector<18x32xf32>
    %cst_5 = arith.constant 2.000000e-01 : f32
    %9 = vector.broadcast %cst_5 : f32 to vector<18x32xf32>
    %10 = arith.mulf %9, %6 : vector<18x32xf32>
    %11 = arith.select %8, %6, %10 : vector<18x32xi1>, vector<18x32xf32>
    %c0_6 = arith.constant 0 : index
    %c0_7 = arith.constant 0 : index
    %12 = vector.load %arg4[%c0_6, %c0_7] : memref<18x32xf32, #tpu.memory_space<vmem>>, vector<18x32xf32>
    tpu.vector_store %arg4[%c0_6, %c0_7], %11 {strides = array<i32>} : memref<18x32xf32, #tpu.memory_space<vmem>>, vector<18x32xf32>,
    return
  }
  func.func @transform_0(%arg0: i32) -> (i32, i32) {
    %c0_i32 = arith.constant 0 : i32
    %c0_i32_0 = arith.constant 0 : i32
    return %arg0, %c0_i32 : i32, i32
  }
  func.func @transform_1(%arg0: i32) -> (i32, i32) {
    %c0_i32 = arith.constant 0 : i32
    %c0_i32_0 = arith.constant 0 : i32
    %c0_i32_1 = arith.constant 0 : i32
    return %c0_i32, %c0_i32_0 : i32, i32
  }
  func.func @transform_2(%arg0: i32) -> (i32, i32) {
    %c0_i32 = arith.constant 0 : i32
    %c0_i32_0 = arith.constant 0 : i32
    %c0_i32_1 = arith.constant 0 : i32
    return %c0_i32, %c0_i32_0 : i32, i32
  }
  func.func @transform_3(%arg0: i32) -> (i32, i32) {
    %c0_i32 = arith.constant 0 : i32
    %c0_i32_0 = arith.constant 0 : i32
    return %arg0, %c0_i32 : i32, i32
  }
}

module attributes {stable_mosaic.version = 11 : i64} {
  func.func @_matmul_bias_kernel(%arg0: i32, %arg1: i32, %arg2: memref<162x64xbf16, #tpu.memory_space<vmem>>, %arg3: memref<64x16xbf16, #tpu.memory_space<vmem>>, %arg4: memref<1x16xf32, #tpu.memory_space<vmem>>, %arg5: memref<162x16xf32, #tpu.memory_space<vmem>>, %arg6: memref<162x16xf32, #tpu.memory_space<vmem>>) attributes {dimension_semantics = [#tpu.dimension_semantics<parallel>, #tpu.dimension_semantics<arbitrary>], iteration_bounds = array<i64: 1, 1>, scalar_prefetch = 0 : i64, scratch_operands = 1 : i64, tpu.core_type = #tpu.core_type<tc>, window_params = [{transform_indices = @transform_0, window_bounds = array<i64: 162, 64>}, {transform_indices = @transform_1, window_bounds = array<i64: 64, 16>}, {pipeline_mode = #tpu.pipeline_mode<synchronous>, transform_indices = @transform_2, window_bounds = array<i64: 1, 16>}, {transform_indices = @transform_3, window_bounds = array<i64: 162, 16>}]} {
    %c0_i32 = arith.constant 0 : i32
    %0 = arith.cmpi eq, %arg1, %c0_i32 : i32
    %1 = arith.extui %0 : i1 to i32
    %c0_i32_0 = arith.constant 0 : i32
    %2 = arith.cmpi ne, %1, %c0_i32_0 : i32
    scf.if %2 {
      %cst_10 = arith.constant 0.000000e+00 : f32
      %12 = vector.broadcast %cst_10 : f32 to vector<162x16xf32>
      %c0_11 = arith.constant 0 : index
      %c0_12 = arith.constant 0 : index
      %13 = vector.load %arg6[%c0_11, %c0_12] : memref<162x16xf32, #tpu.memory_space<vmem>>, vector<162x16xf32>
      tpu.vector_store %arg6[%c0_11, %c0_12], %12 {strides = array<i32>} : memref<162x16xf32, #tpu.memory_space<vmem>>, vector<162x16xf32>,
    } else {
    }
    %c0 = arith.constant 0 : index
    %c0_1 = arith.constant 0 : index
    %3 = vector.load %arg6[%c0, %c0_1] : memref<162x16xf32, #tpu.memory_space<vmem>>, vector<162x16xf32>
    %c0_2 = arith.constant 0 : index
    %c0_3 = arith.constant 0 : index
    %4 = vector.load %arg2[%c0_2, %c0_3] : memref<162x64xbf16, #tpu.memory_space<vmem>>, vector<162x64xbf16>
    %c0_4 = arith.constant 0 : index
    %c0_5 = arith.constant 0 : index
    %5 = vector.load %arg3[%c0_4, %c0_5] : memref<64x16xbf16, #tpu.memory_space<vmem>>, vector<64x16xbf16>
    %cst = arith.constant dense<0.000000e+00> : vector<162x16xf32>
    %6 = tpu.matmul %4, %5, %cst {dimension_numbers = #tpu.dot_dimension_numbers<[1], [0], [0], [1], [0, 0, 1, 1], [], []>} : vector<162x64xbf16>, vector<64x16xbf16>, vector<162x16xf32> -> vector<162x16xf32>
    %7 = arith.addf %3, %6 : vector<162x16xf32>
    %c0_6 = arith.constant 0 : index
    %c0_7 = arith.constant 0 : index
    %8 = vector.load %arg6[%c0_6, %c0_7] : memref<162x16xf32, #tpu.memory_space<vmem>>, vector<162x16xf32>
    tpu.vector_store %arg6[%c0_6, %c0_7], %7 {strides = array<i32>} : memref<162x16xf32, #tpu.memory_space<vmem>>, vector<162x16xf32>,
    %c0_i32_8 = arith.constant 0 : i32
    %9 = arith.cmpi eq, %arg1, %c0_i32_8 : i32
    %10 = arith.extui %9 : i1 to i32
    %c0_i32_9 = arith.constant 0 : i32
    %11 = arith.cmpi ne, %10, %c0_i32_9 : i32
    scf.if %11 {
      %c0_10 = arith.constant 0 : index
      %c0_11 = arith.constant 0 : index
      %12 = vector.load %arg6[%c0_10, %c0_11] : memref<162x16xf32, #tpu.memory_space<vmem>>, vector<162x16xf32>
      %c0_12 = arith.constant 0 : index
      %c0_13 = arith.constant 0 : index
      %13 = vector.load %arg4[%c0_12, %c0_13] : memref<1x16xf32, #tpu.memory_space<vmem>>, vector<1x16xf32>
      %14 = vector.broadcast %13 : vector<1x16xf32> to vector<162x16xf32>
      %15 = arith.addf %12, %14 : vector<162x16xf32>
      %cst_14 = arith.constant 0.000000e+00 : f32
      %16 = vector.broadcast %cst_14 : f32 to vector<162x16xf32>
      %17 = arith.cmpf ogt, %15, %16 : vector<162x16xf32>
      %cst_15 = arith.constant 2.000000e-01 : f32
      %18 = vector.broadcast %cst_15 : f32 to vector<162x16xf32>
      %19 = arith.mulf %18, %15 : vector<162x16xf32>
      %20 = arith.select %17, %15, %19 : vector<162x16xi1>, vector<162x16xf32>
      %c0_16 = arith.constant 0 : index
      %c0_17 = arith.constant 0 : index
      %21 = vector.load %arg5[%c0_16, %c0_17] : memref<162x16xf32, #tpu.memory_space<vmem>>, vector<162x16xf32>
      tpu.vector_store %arg5[%c0_16, %c0_17], %20 {strides = array<i32>} : memref<162x16xf32, #tpu.memory_space<vmem>>, vector<162x16xf32>,
    } else {
    }
    return
  }
  func.func @transform_0(%arg0: i32, %arg1: i32) -> (i32, i32) {
    %c0_i32 = arith.constant 0 : i32
    return %arg0, %arg1 : i32, i32
  }
  func.func @transform_1(%arg0: i32, %arg1: i32) -> (i32, i32) {
    %c0_i32 = arith.constant 0 : i32
    %c0_i32_0 = arith.constant 0 : i32
    return %arg1, %c0_i32 : i32, i32
  }
  func.func @transform_2(%arg0: i32, %arg1: i32) -> (i32, i32) {
    %c0_i32 = arith.constant 0 : i32
    %c0_i32_0 = arith.constant 0 : i32
    %c0_i32_1 = arith.constant 0 : i32
    return %c0_i32, %c0_i32_0 : i32, i32
  }
  func.func @transform_3(%arg0: i32, %arg1: i32) -> (i32, i32) {
    %c0_i32 = arith.constant 0 : i32
    %c0_i32_0 = arith.constant 0 : i32
    return %arg0, %c0_i32 : i32, i32
  }
}

module attributes {stable_mosaic.version = 11 : i64} {
  func.func @_matmul_bias_kernel(%arg0: i32, %arg1: i32, %arg2: memref<50x256xbf16, #tpu.memory_space<vmem>>, %arg3: memref<256x32xbf16, #tpu.memory_space<vmem>>, %arg4: memref<1x32xf32, #tpu.memory_space<vmem>>, %arg5: memref<50x32xf32, #tpu.memory_space<vmem>>, %arg6: memref<50x32xf32, #tpu.memory_space<vmem>>) attributes {dimension_semantics = [#tpu.dimension_semantics<parallel>, #tpu.dimension_semantics<arbitrary>], iteration_bounds = array<i64: 1, 1>, scalar_prefetch = 0 : i64, scratch_operands = 1 : i64, tpu.core_type = #tpu.core_type<tc>, window_params = [{transform_indices = @transform_0, window_bounds = array<i64: 50, 256>}, {transform_indices = @transform_1, window_bounds = array<i64: 256, 32>}, {pipeline_mode = #tpu.pipeline_mode<synchronous>, transform_indices = @transform_2, window_bounds = array<i64: 1, 32>}, {transform_indices = @transform_3, window_bounds = array<i64: 50, 32>}]} {
    %c0_i32 = arith.constant 0 : i32
    %0 = arith.cmpi eq, %arg1, %c0_i32 : i32
    %1 = arith.extui %0 : i1 to i32
    %c0_i32_0 = arith.constant 0 : i32
    %2 = arith.cmpi ne, %1, %c0_i32_0 : i32
    scf.if %2 {
      %cst_10 = arith.constant 0.000000e+00 : f32
      %12 = vector.broadcast %cst_10 : f32 to vector<50x32xf32>
      %c0_11 = arith.constant 0 : index
      %c0_12 = arith.constant 0 : index
      %13 = vector.load %arg6[%c0_11, %c0_12] : memref<50x32xf32, #tpu.memory_space<vmem>>, vector<50x32xf32>
      tpu.vector_store %arg6[%c0_11, %c0_12], %12 {strides = array<i32>} : memref<50x32xf32, #tpu.memory_space<vmem>>, vector<50x32xf32>,
    } else {
    }
    %c0 = arith.constant 0 : index
    %c0_1 = arith.constant 0 : index
    %3 = vector.load %arg6[%c0, %c0_1] : memref<50x32xf32, #tpu.memory_space<vmem>>, vector<50x32xf32>
    %c0_2 = arith.constant 0 : index
    %c0_3 = arith.constant 0 : index
    %4 = vector.load %arg2[%c0_2, %c0_3] : memref<50x256xbf16, #tpu.memory_space<vmem>>, vector<50x256xbf16>
    %c0_4 = arith.constant 0 : index
    %c0_5 = arith.constant 0 : index
    %5 = vector.load %arg3[%c0_4, %c0_5] : memref<256x32xbf16, #tpu.memory_space<vmem>>, vector<256x32xbf16>
    %cst = arith.constant dense<0.000000e+00> : vector<50x32xf32>
    %6 = tpu.matmul %4, %5, %cst {dimension_numbers = #tpu.dot_dimension_numbers<[1], [0], [0], [1], [0, 0, 1, 1], [], []>} : vector<50x256xbf16>, vector<256x32xbf16>, vector<50x32xf32> -> vector<50x32xf32>
    %7 = arith.addf %3, %6 : vector<50x32xf32>
    %c0_6 = arith.constant 0 : index
    %c0_7 = arith.constant 0 : index
    %8 = vector.load %arg6[%c0_6, %c0_7] : memref<50x32xf32, #tpu.memory_space<vmem>>, vector<50x32xf32>
    tpu.vector_store %arg6[%c0_6, %c0_7], %7 {strides = array<i32>} : memref<50x32xf32, #tpu.memory_space<vmem>>, vector<50x32xf32>,
    %c0_i32_8 = arith.constant 0 : i32
    %9 = arith.cmpi eq, %arg1, %c0_i32_8 : i32
    %10 = arith.extui %9 : i1 to i32
    %c0_i32_9 = arith.constant 0 : i32
    %11 = arith.cmpi ne, %10, %c0_i32_9 : i32
    scf.if %11 {
      %c0_10 = arith.constant 0 : index
      %c0_11 = arith.constant 0 : index
      %12 = vector.load %arg6[%c0_10, %c0_11] : memref<50x32xf32, #tpu.memory_space<vmem>>, vector<50x32xf32>
      %c0_12 = arith.constant 0 : index
      %c0_13 = arith.constant 0 : index
      %13 = vector.load %arg4[%c0_12, %c0_13] : memref<1x32xf32, #tpu.memory_space<vmem>>, vector<1x32xf32>
      %14 = vector.broadcast %13 : vector<1x32xf32> to vector<50x32xf32>
      %15 = arith.addf %12, %14 : vector<50x32xf32>
      %c0_14 = arith.constant 0 : index
      %c0_15 = arith.constant 0 : index
      %16 = vector.load %arg5[%c0_14, %c0_15] : memref<50x32xf32, #tpu.memory_space<vmem>>, vector<50x32xf32>
      tpu.vector_store %arg5[%c0_14, %c0_15], %15 {strides = array<i32>} : memref<50x32xf32, #tpu.memory_space<vmem>>, vector<50x32xf32>,
    } else {
    }
    return
  }
  func.func @transform_0(%arg0: i32, %arg1: i32) -> (i32, i32) {
    %c0_i32 = arith.constant 0 : i32
    return %arg0, %arg1 : i32, i32
  }
  func.func @transform_1(%arg0: i32, %arg1: i32) -> (i32, i32) {
    %c0_i32 = arith.constant 0 : i32
    %c0_i32_0 = arith.constant 0 : i32
    return %arg1, %c0_i32 : i32, i32
  }
  func.func @transform_2(%arg0: i32, %arg1: i32) -> (i32, i32) {
    %c0_i32 = arith.constant 0 : i32
    %c0_i32_0 = arith.constant 0 : i32
    %c0_i32_1 = arith.constant 0 : i32
    return %c0_i32, %c0_i32_0 : i32, i32
  }
  func.func @transform_3(%arg0: i32, %arg1: i32) -> (i32, i32) {
    %c0_i32 = arith.constant 0 : i32
    %c0_i32_0 = arith.constant 0 : i32
    return %arg0, %c0_i32 : i32, i32
  }
}

module attributes {stable_mosaic.version = 11 : i64} {
  func.func @_scale_shift_lrelu_kernel(%arg0: i32, %arg1: memref<50x32xf32, #tpu.memory_space<vmem>>, %arg2: memref<1x32xf32, #tpu.memory_space<vmem>>, %arg3: memref<1x32xf32, #tpu.memory_space<vmem>>, %arg4: memref<50x32xf32, #tpu.memory_space<vmem>>) attributes {dimension_semantics = [#tpu.dimension_semantics<parallel>], iteration_bounds = array<i64: 1>, scalar_prefetch = 0 : i64, scratch_operands = 0 : i64, tpu.core_type = #tpu.core_type<tc>, window_params = [{transform_indices = @transform_0, window_bounds = array<i64: 50, 32>}, {pipeline_mode = #tpu.pipeline_mode<synchronous>, transform_indices = @transform_1, window_bounds = array<i64: 1, 32>}, {pipeline_mode = #tpu.pipeline_mode<synchronous>, transform_indices = @transform_2, window_bounds = array<i64: 1, 32>}, {transform_indices = @transform_3, window_bounds = array<i64: 50, 32>}]} {
    %c0 = arith.constant 0 : index
    %c0_0 = arith.constant 0 : index
    %0 = vector.load %arg1[%c0, %c0_0] : memref<50x32xf32, #tpu.memory_space<vmem>>, vector<50x32xf32>
    %c0_1 = arith.constant 0 : index
    %c0_2 = arith.constant 0 : index
    %1 = vector.load %arg2[%c0_1, %c0_2] : memref<1x32xf32, #tpu.memory_space<vmem>>, vector<1x32xf32>
    %2 = vector.broadcast %1 : vector<1x32xf32> to vector<50x32xf32>
    %3 = arith.mulf %0, %2 : vector<50x32xf32>
    %c0_3 = arith.constant 0 : index
    %c0_4 = arith.constant 0 : index
    %4 = vector.load %arg3[%c0_3, %c0_4] : memref<1x32xf32, #tpu.memory_space<vmem>>, vector<1x32xf32>
    %5 = vector.broadcast %4 : vector<1x32xf32> to vector<50x32xf32>
    %6 = arith.addf %3, %5 : vector<50x32xf32>
    %cst = arith.constant 0.000000e+00 : f32
    %7 = vector.broadcast %cst : f32 to vector<50x32xf32>
    %8 = arith.cmpf ogt, %6, %7 : vector<50x32xf32>
    %cst_5 = arith.constant 2.000000e-01 : f32
    %9 = vector.broadcast %cst_5 : f32 to vector<50x32xf32>
    %10 = arith.mulf %9, %6 : vector<50x32xf32>
    %11 = arith.select %8, %6, %10 : vector<50x32xi1>, vector<50x32xf32>
    %c0_6 = arith.constant 0 : index
    %c0_7 = arith.constant 0 : index
    %12 = vector.load %arg4[%c0_6, %c0_7] : memref<50x32xf32, #tpu.memory_space<vmem>>, vector<50x32xf32>
    tpu.vector_store %arg4[%c0_6, %c0_7], %11 {strides = array<i32>} : memref<50x32xf32, #tpu.memory_space<vmem>>, vector<50x32xf32>,
    return
  }
  func.func @transform_0(%arg0: i32) -> (i32, i32) {
    %c0_i32 = arith.constant 0 : i32
    %c0_i32_0 = arith.constant 0 : i32
    return %arg0, %c0_i32 : i32, i32
  }
  func.func @transform_1(%arg0: i32) -> (i32, i32) {
    %c0_i32 = arith.constant 0 : i32
    %c0_i32_0 = arith.constant 0 : i32
    %c0_i32_1 = arith.constant 0 : i32
    return %c0_i32, %c0_i32_0 : i32, i32
  }
  func.func @transform_2(%arg0: i32) -> (i32, i32) {
    %c0_i32 = arith.constant 0 : i32
    %c0_i32_0 = arith.constant 0 : i32
    %c0_i32_1 = arith.constant 0 : i32
    return %c0_i32, %c0_i32_0 : i32, i32
  }
  func.func @transform_3(%arg0: i32) -> (i32, i32) {
    %c0_i32 = arith.constant 0 : i32
    %c0_i32_0 = arith.constant 0 : i32
    return %arg0, %c0_i32 : i32, i32
  }
}

module attributes {stable_mosaic.version = 11 : i64} {
  func.func @_matmul_bias_kernel(%arg0: i32, %arg1: i32, %arg2: memref<18x512xbf16, #tpu.memory_space<vmem>>, %arg3: memref<512x64xbf16, #tpu.memory_space<vmem>>, %arg4: memref<1x64xf32, #tpu.memory_space<vmem>>, %arg5: memref<18x64xf32, #tpu.memory_space<vmem>>, %arg6: memref<18x64xf32, #tpu.memory_space<vmem>>) attributes {dimension_semantics = [#tpu.dimension_semantics<parallel>, #tpu.dimension_semantics<arbitrary>], iteration_bounds = array<i64: 1, 1>, scalar_prefetch = 0 : i64, scratch_operands = 1 : i64, tpu.core_type = #tpu.core_type<tc>, window_params = [{transform_indices = @transform_0, window_bounds = array<i64: 18, 512>}, {transform_indices = @transform_1, window_bounds = array<i64: 512, 64>}, {pipeline_mode = #tpu.pipeline_mode<synchronous>, transform_indices = @transform_2, window_bounds = array<i64: 1, 64>}, {transform_indices = @transform_3, window_bounds = array<i64: 18, 64>}]} {
    %c0_i32 = arith.constant 0 : i32
    %0 = arith.cmpi eq, %arg1, %c0_i32 : i32
    %1 = arith.extui %0 : i1 to i32
    %c0_i32_0 = arith.constant 0 : i32
    %2 = arith.cmpi ne, %1, %c0_i32_0 : i32
    scf.if %2 {
      %cst_10 = arith.constant 0.000000e+00 : f32
      %12 = vector.broadcast %cst_10 : f32 to vector<18x64xf32>
      %c0_11 = arith.constant 0 : index
      %c0_12 = arith.constant 0 : index
      %13 = vector.load %arg6[%c0_11, %c0_12] : memref<18x64xf32, #tpu.memory_space<vmem>>, vector<18x64xf32>
      tpu.vector_store %arg6[%c0_11, %c0_12], %12 {strides = array<i32>} : memref<18x64xf32, #tpu.memory_space<vmem>>, vector<18x64xf32>,
    } else {
    }
    %c0 = arith.constant 0 : index
    %c0_1 = arith.constant 0 : index
    %3 = vector.load %arg6[%c0, %c0_1] : memref<18x64xf32, #tpu.memory_space<vmem>>, vector<18x64xf32>
    %c0_2 = arith.constant 0 : index
    %c0_3 = arith.constant 0 : index
    %4 = vector.load %arg2[%c0_2, %c0_3] : memref<18x512xbf16, #tpu.memory_space<vmem>>, vector<18x512xbf16>
    %c0_4 = arith.constant 0 : index
    %c0_5 = arith.constant 0 : index
    %5 = vector.load %arg3[%c0_4, %c0_5] : memref<512x64xbf16, #tpu.memory_space<vmem>>, vector<512x64xbf16>
    %cst = arith.constant dense<0.000000e+00> : vector<18x64xf32>
    %6 = tpu.matmul %4, %5, %cst {dimension_numbers = #tpu.dot_dimension_numbers<[1], [0], [0], [1], [0, 0, 1, 1], [], []>} : vector<18x512xbf16>, vector<512x64xbf16>, vector<18x64xf32> -> vector<18x64xf32>
    %7 = arith.addf %3, %6 : vector<18x64xf32>
    %c0_6 = arith.constant 0 : index
    %c0_7 = arith.constant 0 : index
    %8 = vector.load %arg6[%c0_6, %c0_7] : memref<18x64xf32, #tpu.memory_space<vmem>>, vector<18x64xf32>
    tpu.vector_store %arg6[%c0_6, %c0_7], %7 {strides = array<i32>} : memref<18x64xf32, #tpu.memory_space<vmem>>, vector<18x64xf32>,
    %c0_i32_8 = arith.constant 0 : i32
    %9 = arith.cmpi eq, %arg1, %c0_i32_8 : i32
    %10 = arith.extui %9 : i1 to i32
    %c0_i32_9 = arith.constant 0 : i32
    %11 = arith.cmpi ne, %10, %c0_i32_9 : i32
    scf.if %11 {
      %c0_10 = arith.constant 0 : index
      %c0_11 = arith.constant 0 : index
      %12 = vector.load %arg6[%c0_10, %c0_11] : memref<18x64xf32, #tpu.memory_space<vmem>>, vector<18x64xf32>
      %c0_12 = arith.constant 0 : index
      %c0_13 = arith.constant 0 : index
      %13 = vector.load %arg4[%c0_12, %c0_13] : memref<1x64xf32, #tpu.memory_space<vmem>>, vector<1x64xf32>
      %14 = vector.broadcast %13 : vector<1x64xf32> to vector<18x64xf32>
      %15 = arith.addf %12, %14 : vector<18x64xf32>
      %c0_14 = arith.constant 0 : index
      %c0_15 = arith.constant 0 : index
      %16 = vector.load %arg5[%c0_14, %c0_15] : memref<18x64xf32, #tpu.memory_space<vmem>>, vector<18x64xf32>
      tpu.vector_store %arg5[%c0_14, %c0_15], %15 {strides = array<i32>} : memref<18x64xf32, #tpu.memory_space<vmem>>, vector<18x64xf32>,
    } else {
    }
    return
  }
  func.func @transform_0(%arg0: i32, %arg1: i32) -> (i32, i32) {
    %c0_i32 = arith.constant 0 : i32
    return %arg0, %arg1 : i32, i32
  }
  func.func @transform_1(%arg0: i32, %arg1: i32) -> (i32, i32) {
    %c0_i32 = arith.constant 0 : i32
    %c0_i32_0 = arith.constant 0 : i32
    return %arg1, %c0_i32 : i32, i32
  }
  func.func @transform_2(%arg0: i32, %arg1: i32) -> (i32, i32) {
    %c0_i32 = arith.constant 0 : i32
    %c0_i32_0 = arith.constant 0 : i32
    %c0_i32_1 = arith.constant 0 : i32
    return %c0_i32, %c0_i32_0 : i32, i32
  }
  func.func @transform_3(%arg0: i32, %arg1: i32) -> (i32, i32) {
    %c0_i32 = arith.constant 0 : i32
    %c0_i32_0 = arith.constant 0 : i32
    return %arg0, %c0_i32 : i32, i32
  }
}

module attributes {stable_mosaic.version = 11 : i64} {
  func.func @_scale_shift_lrelu_kernel(%arg0: i32, %arg1: memref<18x64xf32, #tpu.memory_space<vmem>>, %arg2: memref<1x64xf32, #tpu.memory_space<vmem>>, %arg3: memref<1x64xf32, #tpu.memory_space<vmem>>, %arg4: memref<18x64xf32, #tpu.memory_space<vmem>>) attributes {dimension_semantics = [#tpu.dimension_semantics<parallel>], iteration_bounds = array<i64: 1>, scalar_prefetch = 0 : i64, scratch_operands = 0 : i64, tpu.core_type = #tpu.core_type<tc>, window_params = [{transform_indices = @transform_0, window_bounds = array<i64: 18, 64>}, {pipeline_mode = #tpu.pipeline_mode<synchronous>, transform_indices = @transform_1, window_bounds = array<i64: 1, 64>}, {pipeline_mode = #tpu.pipeline_mode<synchronous>, transform_indices = @transform_2, window_bounds = array<i64: 1, 64>}, {transform_indices = @transform_3, window_bounds = array<i64: 18, 64>}]} {
    %c0 = arith.constant 0 : index
    %c0_0 = arith.constant 0 : index
    %0 = vector.load %arg1[%c0, %c0_0] : memref<18x64xf32, #tpu.memory_space<vmem>>, vector<18x64xf32>
    %c0_1 = arith.constant 0 : index
    %c0_2 = arith.constant 0 : index
    %1 = vector.load %arg2[%c0_1, %c0_2] : memref<1x64xf32, #tpu.memory_space<vmem>>, vector<1x64xf32>
    %2 = vector.broadcast %1 : vector<1x64xf32> to vector<18x64xf32>
    %3 = arith.mulf %0, %2 : vector<18x64xf32>
    %c0_3 = arith.constant 0 : index
    %c0_4 = arith.constant 0 : index
    %4 = vector.load %arg3[%c0_3, %c0_4] : memref<1x64xf32, #tpu.memory_space<vmem>>, vector<1x64xf32>
    %5 = vector.broadcast %4 : vector<1x64xf32> to vector<18x64xf32>
    %6 = arith.addf %3, %5 : vector<18x64xf32>
    %cst = arith.constant 0.000000e+00 : f32
    %7 = vector.broadcast %cst : f32 to vector<18x64xf32>
    %8 = arith.cmpf ogt, %6, %7 : vector<18x64xf32>
    %cst_5 = arith.constant 2.000000e-01 : f32
    %9 = vector.broadcast %cst_5 : f32 to vector<18x64xf32>
    %10 = arith.mulf %9, %6 : vector<18x64xf32>
    %11 = arith.select %8, %6, %10 : vector<18x64xi1>, vector<18x64xf32>
    %c0_6 = arith.constant 0 : index
    %c0_7 = arith.constant 0 : index
    %12 = vector.load %arg4[%c0_6, %c0_7] : memref<18x64xf32, #tpu.memory_space<vmem>>, vector<18x64xf32>
    tpu.vector_store %arg4[%c0_6, %c0_7], %11 {strides = array<i32>} : memref<18x64xf32, #tpu.memory_space<vmem>>, vector<18x64xf32>,
    return
  }
  func.func @transform_0(%arg0: i32) -> (i32, i32) {
    %c0_i32 = arith.constant 0 : i32
    %c0_i32_0 = arith.constant 0 : i32
    return %arg0, %c0_i32 : i32, i32
  }
  func.func @transform_1(%arg0: i32) -> (i32, i32) {
    %c0_i32 = arith.constant 0 : i32
    %c0_i32_0 = arith.constant 0 : i32
    %c0_i32_1 = arith.constant 0 : i32
    return %c0_i32, %c0_i32_0 : i32, i32
  }
  func.func @transform_2(%arg0: i32) -> (i32, i32) {
    %c0_i32 = arith.constant 0 : i32
    %c0_i32_0 = arith.constant 0 : i32
    %c0_i32_1 = arith.constant 0 : i32
    return %c0_i32, %c0_i32_0 : i32, i32
  }
  func.func @transform_3(%arg0: i32) -> (i32, i32) {
    %c0_i32 = arith.constant 0 : i32
    %c0_i32_0 = arith.constant 0 : i32
    return %arg0, %c0_i32 : i32, i32
  }
}

module attributes {stable_mosaic.version = 11 : i64} {
  func.func @_scale_shift_lrelu_kernel(%arg0: i32, %arg1: memref<32x128xf32, #tpu.memory_space<vmem>>, %arg2: memref<1x128xf32, #tpu.memory_space<vmem>>, %arg3: memref<1x128xf32, #tpu.memory_space<vmem>>, %arg4: memref<32x128xf32, #tpu.memory_space<vmem>>) attributes {dimension_semantics = [#tpu.dimension_semantics<parallel>], iteration_bounds = array<i64: 1>, scalar_prefetch = 0 : i64, scratch_operands = 0 : i64, tpu.core_type = #tpu.core_type<tc>, window_params = [{transform_indices = @transform_0, window_bounds = array<i64: 32, 128>}, {pipeline_mode = #tpu.pipeline_mode<synchronous>, transform_indices = @transform_1, window_bounds = array<i64: 1, 128>}, {pipeline_mode = #tpu.pipeline_mode<synchronous>, transform_indices = @transform_2, window_bounds = array<i64: 1, 128>}, {transform_indices = @transform_3, window_bounds = array<i64: 32, 128>}]} {
    %c0 = arith.constant 0 : index
    %c0_0 = arith.constant 0 : index
    %0 = vector.load %arg1[%c0, %c0_0] : memref<32x128xf32, #tpu.memory_space<vmem>>, vector<32x128xf32>
    %c0_1 = arith.constant 0 : index
    %c0_2 = arith.constant 0 : index
    %1 = vector.load %arg2[%c0_1, %c0_2] : memref<1x128xf32, #tpu.memory_space<vmem>>, vector<1x128xf32>
    %2 = vector.broadcast %1 : vector<1x128xf32> to vector<32x128xf32>
    %3 = arith.mulf %0, %2 : vector<32x128xf32>
    %c0_3 = arith.constant 0 : index
    %c0_4 = arith.constant 0 : index
    %4 = vector.load %arg3[%c0_3, %c0_4] : memref<1x128xf32, #tpu.memory_space<vmem>>, vector<1x128xf32>
    %5 = vector.broadcast %4 : vector<1x128xf32> to vector<32x128xf32>
    %6 = arith.addf %3, %5 : vector<32x128xf32>
    %cst = arith.constant 0.000000e+00 : f32
    %7 = vector.broadcast %cst : f32 to vector<32x128xf32>
    %8 = arith.cmpf ogt, %6, %7 : vector<32x128xf32>
    %cst_5 = arith.constant 2.000000e-01 : f32
    %9 = vector.broadcast %cst_5 : f32 to vector<32x128xf32>
    %10 = arith.mulf %9, %6 : vector<32x128xf32>
    %11 = arith.select %8, %6, %10 : vector<32x128xi1>, vector<32x128xf32>
    %c0_6 = arith.constant 0 : index
    %c0_7 = arith.constant 0 : index
    %12 = vector.load %arg4[%c0_6, %c0_7] : memref<32x128xf32, #tpu.memory_space<vmem>>, vector<32x128xf32>
    tpu.vector_store %arg4[%c0_6, %c0_7], %11 {strides = array<i32>} : memref<32x128xf32, #tpu.memory_space<vmem>>, vector<32x128xf32>,
    return
  }
  func.func @transform_0(%arg0: i32) -> (i32, i32) {
    %c0_i32 = arith.constant 0 : i32
    %c0_i32_0 = arith.constant 0 : i32
    return %arg0, %c0_i32 : i32, i32
  }
  func.func @transform_1(%arg0: i32) -> (i32, i32) {
    %c0_i32 = arith.constant 0 : i32
    %c0_i32_0 = arith.constant 0 : i32
    %c0_i32_1 = arith.constant 0 : i32
    return %c0_i32, %c0_i32_0 : i32, i32
  }
  func.func @transform_2(%arg0: i32) -> (i32, i32) {
    %c0_i32 = arith.constant 0 : i32
    %c0_i32_0 = arith.constant 0 : i32
    %c0_i32_1 = arith.constant 0 : i32
    return %c0_i32, %c0_i32_0 : i32, i32
  }
  func.func @transform_3(%arg0: i32) -> (i32, i32) {
    %c0_i32 = arith.constant 0 : i32
    %c0_i32_0 = arith.constant 0 : i32
    return %arg0, %c0_i32 : i32, i32
  }
}

module attributes {stable_mosaic.version = 11 : i64} {
  func.func @_matmul_bias_kernel(%arg0: i32, %arg1: i32, %arg2: memref<32x1024xbf16, #tpu.memory_space<vmem>>, %arg3: memref<1024x128xbf16, #tpu.memory_space<vmem>>, %arg4: memref<1x128xf32, #tpu.memory_space<vmem>>, %arg5: memref<32x128xf32, #tpu.memory_space<vmem>>, %arg6: memref<32x128xf32, #tpu.memory_space<vmem>>) attributes {dimension_semantics = [#tpu.dimension_semantics<parallel>, #tpu.dimension_semantics<arbitrary>], iteration_bounds = array<i64: 1, 1>, scalar_prefetch = 0 : i64, scratch_operands = 1 : i64, tpu.core_type = #tpu.core_type<tc>, window_params = [{transform_indices = @transform_0, window_bounds = array<i64: 32, 1024>}, {transform_indices = @transform_1, window_bounds = array<i64: 1024, 128>}, {pipeline_mode = #tpu.pipeline_mode<synchronous>, transform_indices = @transform_2, window_bounds = array<i64: 1, 128>}, {transform_indices = @transform_3, window_bounds = array<i64: 32, 128>}]} {
    %c0_i32 = arith.constant 0 : i32
    %0 = arith.cmpi eq, %arg1, %c0_i32 : i32
    %1 = arith.extui %0 : i1 to i32
    %c0_i32_0 = arith.constant 0 : i32
    %2 = arith.cmpi ne, %1, %c0_i32_0 : i32
    scf.if %2 {
      %cst_10 = arith.constant 0.000000e+00 : f32
      %12 = vector.broadcast %cst_10 : f32 to vector<32x128xf32>
      %c0_11 = arith.constant 0 : index
      %c0_12 = arith.constant 0 : index
      %13 = vector.load %arg6[%c0_11, %c0_12] : memref<32x128xf32, #tpu.memory_space<vmem>>, vector<32x128xf32>
      tpu.vector_store %arg6[%c0_11, %c0_12], %12 {strides = array<i32>} : memref<32x128xf32, #tpu.memory_space<vmem>>, vector<32x128xf32>,
    } else {
    }
    %c0 = arith.constant 0 : index
    %c0_1 = arith.constant 0 : index
    %3 = vector.load %arg6[%c0, %c0_1] : memref<32x128xf32, #tpu.memory_space<vmem>>, vector<32x128xf32>
    %c0_2 = arith.constant 0 : index
    %c0_3 = arith.constant 0 : index
    %4 = vector.load %arg2[%c0_2, %c0_3] : memref<32x1024xbf16, #tpu.memory_space<vmem>>, vector<32x1024xbf16>
    %c0_4 = arith.constant 0 : index
    %c0_5 = arith.constant 0 : index
    %5 = vector.load %arg3[%c0_4, %c0_5] : memref<1024x128xbf16, #tpu.memory_space<vmem>>, vector<1024x128xbf16>
    %cst = arith.constant dense<0.000000e+00> : vector<32x128xf32>
    %6 = tpu.matmul %4, %5, %cst {dimension_numbers = #tpu.dot_dimension_numbers<[1], [0], [0], [1], [0, 0, 1, 1], [], []>} : vector<32x1024xbf16>, vector<1024x128xbf16>, vector<32x128xf32> -> vector<32x128xf32>
    %7 = arith.addf %3, %6 : vector<32x128xf32>
    %c0_6 = arith.constant 0 : index
    %c0_7 = arith.constant 0 : index
    %8 = vector.load %arg6[%c0_6, %c0_7] : memref<32x128xf32, #tpu.memory_space<vmem>>, vector<32x128xf32>
    tpu.vector_store %arg6[%c0_6, %c0_7], %7 {strides = array<i32>} : memref<32x128xf32, #tpu.memory_space<vmem>>, vector<32x128xf32>,
    %c0_i32_8 = arith.constant 0 : i32
    %9 = arith.cmpi eq, %arg1, %c0_i32_8 : i32
    %10 = arith.extui %9 : i1 to i32
    %c0_i32_9 = arith.constant 0 : i32
    %11 = arith.cmpi ne, %10, %c0_i32_9 : i32
    scf.if %11 {
      %c0_10 = arith.constant 0 : index
      %c0_11 = arith.constant 0 : index
      %12 = vector.load %arg6[%c0_10, %c0_11] : memref<32x128xf32, #tpu.memory_space<vmem>>, vector<32x128xf32>
      %c0_12 = arith.constant 0 : index
      %c0_13 = arith.constant 0 : index
      %13 = vector.load %arg4[%c0_12, %c0_13] : memref<1x128xf32, #tpu.memory_space<vmem>>, vector<1x128xf32>
      %14 = vector.broadcast %13 : vector<1x128xf32> to vector<32x128xf32>
      %15 = arith.addf %12, %14 : vector<32x128xf32>
      %c0_14 = arith.constant 0 : index
      %c0_15 = arith.constant 0 : index
      %16 = vector.load %arg5[%c0_14, %c0_15] : memref<32x128xf32, #tpu.memory_space<vmem>>, vector<32x128xf32>
      tpu.vector_store %arg5[%c0_14, %c0_15], %15 {strides = array<i32>} : memref<32x128xf32, #tpu.memory_space<vmem>>, vector<32x128xf32>,
    } else {
    }
    return
  }
  func.func @transform_0(%arg0: i32, %arg1: i32) -> (i32, i32) {
    %c0_i32 = arith.constant 0 : i32
    return %arg0, %arg1 : i32, i32
  }
  func.func @transform_1(%arg0: i32, %arg1: i32) -> (i32, i32) {
    %c0_i32 = arith.constant 0 : i32
    %c0_i32_0 = arith.constant 0 : i32
    return %arg1, %c0_i32 : i32, i32
  }
  func.func @transform_2(%arg0: i32, %arg1: i32) -> (i32, i32) {
    %c0_i32 = arith.constant 0 : i32
    %c0_i32_0 = arith.constant 0 : i32
    %c0_i32_1 = arith.constant 0 : i32
    return %c0_i32, %c0_i32_0 : i32, i32
  }
  func.func @transform_3(%arg0: i32, %arg1: i32) -> (i32, i32) {
    %c0_i32 = arith.constant 0 : i32
    %c0_i32_0 = arith.constant 0 : i32
    return %arg0, %c0_i32 : i32, i32
  }
}

module attributes {stable_mosaic.version = 11 : i64} {
  func.func @_rowdot_kernel(%arg0: i32, %arg1: memref<50x2048xbf16, #tpu.memory_space<vmem>>, %arg2: memref<1x2048xbf16, #tpu.memory_space<vmem>>, %arg3: memref<1x1xf32, #tpu.memory_space<vmem>>, %arg4: memref<50x1xf32, #tpu.memory_space<vmem>>) attributes {dimension_semantics = [#tpu.dimension_semantics<parallel>], iteration_bounds = array<i64: 1>, scalar_prefetch = 0 : i64, scratch_operands = 0 : i64, tpu.core_type = #tpu.core_type<tc>, window_params = [{transform_indices = @transform_0, window_bounds = array<i64: 50, 2048>}, {pipeline_mode = #tpu.pipeline_mode<synchronous>, transform_indices = @transform_1, window_bounds = array<i64: 1, 2048>}, {pipeline_mode = #tpu.pipeline_mode<synchronous>, transform_indices = @transform_2, window_bounds = array<i64: 1, 1>}, {transform_indices = @transform_3, window_bounds = array<i64: 50, 1>}]} {
    %c0 = arith.constant 0 : index
    %c0_0 = arith.constant 0 : index
    %0 = vector.load %arg1[%c0, %c0_0] : memref<50x2048xbf16, #tpu.memory_space<vmem>>, vector<50x2048xbf16>
    %1 = arith.extf %0 : vector<50x2048xbf16> to vector<50x2048xf32>
    %c0_1 = arith.constant 0 : index
    %c0_2 = arith.constant 0 : index
    %2 = vector.load %arg2[%c0_1, %c0_2] : memref<1x2048xbf16, #tpu.memory_space<vmem>>, vector<1x2048xbf16>
    %3 = arith.extf %2 : vector<1x2048xbf16> to vector<1x2048xf32>
    %4 = vector.broadcast %3 : vector<1x2048xf32> to vector<50x2048xf32>
    %5 = arith.mulf %1, %4 : vector<50x2048xf32>
    %cst = arith.constant dense<0.000000e+00> : vector<50xf32>
    %6 = vector.multi_reduction <add>, %5, %cst [1] : vector<50x2048xf32> to vector<50xf32>
    %7 = vector.shape_cast %6 : vector<50xf32> to vector<50x1xf32>
    %c0_3 = arith.constant 0 : index
    %c0_4 = arith.constant 0 : index
    %8 = vector.load %arg3[%c0_3, %c0_4] : memref<1x1xf32, #tpu.memory_space<vmem>>, vector<1x1xf32>
    %9 = vector.broadcast %8 : vector<1x1xf32> to vector<50x1xf32>
    %10 = arith.addf %7, %9 : vector<50x1xf32>
    %c0_5 = arith.constant 0 : index
    %c0_6 = arith.constant 0 : index
    %11 = vector.load %arg4[%c0_5, %c0_6] : memref<50x1xf32, #tpu.memory_space<vmem>>, vector<50x1xf32>
    tpu.vector_store %arg4[%c0_5, %c0_6], %10 {strides = array<i32>} : memref<50x1xf32, #tpu.memory_space<vmem>>, vector<50x1xf32>,
    return
  }
  func.func @transform_0(%arg0: i32) -> (i32, i32) {
    %c0_i32 = arith.constant 0 : i32
    %c0_i32_0 = arith.constant 0 : i32
    return %arg0, %c0_i32 : i32, i32
  }
  func.func @transform_1(%arg0: i32) -> (i32, i32) {
    %c0_i32 = arith.constant 0 : i32
    %c0_i32_0 = arith.constant 0 : i32
    %c0_i32_1 = arith.constant 0 : i32
    return %c0_i32, %c0_i32_0 : i32, i32
  }
  func.func @transform_2(%arg0: i32) -> (i32, i32) {
    %c0_i32 = arith.constant 0 : i32
    %c0_i32_0 = arith.constant 0 : i32
    %c0_i32_1 = arith.constant 0 : i32
    return %c0_i32, %c0_i32_0 : i32, i32
  }
  func.func @transform_3(%arg0: i32) -> (i32, i32) {
    %c0_i32 = arith.constant 0 : i32
    %c0_i32_0 = arith.constant 0 : i32
    return %arg0, %c0_i32 : i32, i32
  }
}

</mosaic_0001>

<llo_original>
// kernel: _lambda_.40
$region0: #{_lambda_.40}
  #allocation0 [shape = 'u32[]', space=smem, size = 0x4, offset = 0x4, fixed_abs, tag = 'smem constant byte address 0x4 - core index']
  #allocation1 [shape = 'u32[72,128]{1,0:T(1,128)}', space=vmem, size = 0x9000, scoped, tag = 'internal scratch']
  #allocation2 [shape = 'f32[18,16]{1,0:T(8,128)}', space=vmem, size = 0x3000, scoped, tag = 'scratch operand']
  %s0 = inlined_call_operand.vmem [shape: bf16[18,64], index: 0, kind: input, shape index: {}]
  %s1 = inlined_call_operand.vmem [shape: bf16[64,16], index: 1, kind: input, shape index: {}]
  %s2 = inlined_call_operand.vmem [shape: f32[1,16], index: 2, kind: input, shape index: {}]
  %s3 = inlined_call_operand.vmem [shape: f32[18,16], index: 3, kind: output, shape index: {}]
  %s4 = sld [smem:[#allocation0]]
  $region30: #{_lambda_.40} parent=0
    _
  %s6 = ssub.s32 1, %s4
  %s7 = scalar_select 0, %s6, %s4
  // Predicated region
  $region2: #{_lambda_.40} parent=0 // pred_check
    _
  $region3: #{_lambda_.40} parent=0 // pred_check_branch
    %9 = sbr.rel (0) target = $region5
  $region4: #{_lambda_.40} parent=0 // pred_region
    _
  $region5: #{_lambda_.40} parent=0 // pred_fallthru
    _
  // Predicated region
  $region6: #{_lambda_.40} parent=0 // pred_check
    _
  $region7: #{_lambda_.40} parent=0 // pred_check_branch
    %11 = sbr.rel (0) target = $region9
  $region8: #{_lambda_.40} parent=0 // pred_region
    _
  $region9: #{_lambda_.40} parent=0 // pred_fallthru
    _
  // Predicated region
  $region10: #{_lambda_.40} parent=0 // pred_check
    _
  $region11: #{_lambda_.40} parent=0 // pred_check_branch
    %13 = sbr.rel (0) target = $region13
  $region12: #{_lambda_.40} parent=0 // pred_region
    _
  $region13: #{_lambda_.40} parent=0 // pred_fallthru
    _
  %p15 = scmp.eq.s32.totalorder 0, 0
  // Predicated region
  $region14: #{_lambda_.40} parent=0 // pred_check
    %p16 = pneg %p15
  $region15: #{_lambda_.40} parent=0 // pred_check_branch
    %18 = sbr.rel (%p16) target = $region17
  $region16: #{_lambda_.40} parent=0 // pred_region
    %vm19 = vcmask 130048
    %20 = vst.msk [vmem:[#allocation2] sm:$0xff] %vm19, 0.0
    %21 = vst.msk [vmem:[#allocation2 + $0x8] sm:$0xff] %vm19, 0.0
    %vm22 = vcmask 123904
    %23 = vst.msk [vmem:[#allocation2 + $0x10] sm:$0x3] %vm22, 0.0
  $region17: #{_lambda_.40} parent=0 // pred_fallthru
    _
  %v24 = vld [vmem:[#allocation2] sm:$0xff]
  %v25 = vld [vmem:[#allocation2 + $0x8] sm:$0xff]
  %v26 = vld [vmem:[#allocation2 + $0x10] sm:$0x3]
  %v27 = vld [vmem:[%s0] sm:$0xf]
  %v28 = vld [vmem:[%s0 + $0x4] sm:$0xf]
  %v29 = vld [vmem:[%s0 + $0x8] sm:$0x1]
  %v30 = vld [vmem:[%s1] sm:$0xf]
  %v31 = vld [vmem:[%s1 + $0x4] sm:$0xf]
  %v32 = vld [vmem:[%s1 + $0x8] sm:$0xf]
  %v33 = vld [vmem:[%s1 + $0xc] sm:$0xf]
  %v34 = vld [vmem:[%s1 + $0x10] sm:$0xf]
  %v35 = vld [vmem:[%s1 + $0x14] sm:$0xf]
  %v36 = vld [vmem:[%s1 + $0x18] sm:$0xf]
  %v37 = vld [vmem:[%s1 + $0x1c] sm:$0xf]
  %v41 = vunpack.c.l.b16 %v27
  %v42 = vunpack.c.l.b16 %v28
  %v43 = vunpack.c.l.b16 %v29
  %v44 = vpack.c.b16 %v42, %v41
  %v45 = vpack.c.b16 %v43, %v43
  %v54 = vunpack.c.l.b16 %v30
  %v55 = vunpack.c.l.b16 %v31
  %v56 = vunpack.c.l.b16 %v32
  %v57 = vunpack.c.l.b16 %v33
  %v58 = vunpack.c.l.b16 %v34
  %v59 = vunpack.c.l.b16 %v35
  %v60 = vunpack.c.l.b16 %v36
  %v61 = vunpack.c.l.b16 %v37
  %v62 = vpack.c.b16 %v55, %v54
  %v63 = vpack.c.b16 %v57, %v56
  %v64 = vpack.c.b16 %v59, %v58
  %v65 = vpack.c.b16 %v61, %v60
  %vm70 = vcmask 523264
  %v72 = vsel %vm70, %v44, 0
  %v75 = vsel %vm70, %v45, 0
  %77 = vmatpush.bf16.msra.mxu0 0
  %78 = vmatpush.bf16.msra.mxu0 0
  %79 = vmatpush.bf16.msra.mxu0 0
  %80 = vmatpush.bf16.msra.mxu0 0
  %81 = vmatpush.bf16.msra.mxu0 %v65
  %82 = vmatpush.bf16.msra.mxu0 %v64
  %83 = vmatpush.bf16.msra.mxu0 %v63
  %84 = vmatpush.bf16.msra.mxu0 %v62
  %85 = vmatmul.bf16.gmra.mxu0 %v72
  %v86 = vpop.f32.mrf.mxu0
  %v87 = vadd.f32 0.0, %v86
  %v88 = vpop.f32.mrf.mxu0
  %v89 = vadd.f32 0.0, %v88
  %90 = vmatmul.bf16.gmra.mxu0 %v75
  %v91 = vpop.f32.mrf.mxu0
  %v92 = vadd.f32 0.0, %v91
  %v93 = vpop.f32.mrf.mxu0
  %94 = vdwg.mxu0
  %v95 = vadd.f32 %v24, %v87
  %v96 = vadd.f32 %v25, %v89
  %v97 = vadd.f32 %v26, %v92
  %vm98 = vcmask 130048
  %99 = vst.msk [vmem:[#allocation2] sm:$0xff] %vm98, %v95
  %100 = vst.msk [vmem:[#allocation2 + $0x8] sm:$0xff] %vm98, %v96
  %vm101 = vcmask 123904
  %102 = vst.msk [vmem:[#allocation2 + $0x10] sm:$0x3] %vm101, %v97
  // Predicated region
  $region18: #{_lambda_.40} parent=0 // pred_check
    %p103 = pneg %p15
  $region19: #{_lambda_.40} parent=0 // pred_check_branch
    %105 = sbr.rel (%p103) target = $region21
  $region20: #{_lambda_.40} parent=0 // pred_region
    %v106 = vld [vmem:[#allocation2] sm:$0xff]
    %v107 = vld [vmem:[#allocation2 + $0x8] sm:$0xff]
    %v108 = vld [vmem:[#allocation2 + $0x10] sm:$0x3]
    %v109 = vld [vmem:[%s2] sm:$0x1]
    %v111 = vperm.slane %v109, 0
    %v113 = vadd.f32 %v106, %v111
    %v114 = vadd.f32 %v107, %v111
    %v115 = vadd.f32 %v108, %v111
    %vm116 = vcmp.gt.f32.partialorder %v113, 0.0
    %vm117 = vcmp.gt.f32.partialorder %v114, 0.0
    %vm118 = vcmp.gt.f32.partialorder %v115, 0.0
    %v119 = vmul.f32 %v113, 0.2
    %v120 = vmul.f32 %v114, 0.2
    %v121 = vmul.f32 %v115, 0.2
    %v122 = vsel %vm116, %v113, %v119
    %v123 = vsel %vm117, %v114, %v120
    %v124 = vsel %vm118, %v115, %v121
    %125 = vst.msk [vmem:[%s3] sm:$0xff] %vm98, %v122
    %126 = vst.msk [vmem:[%s3 + $0x8] sm:$0xff] %vm98, %v123
    %127 = vst.msk [vmem:[%s3 + $0x10] sm:$0x3] %vm101, %v124
  $region21: #{_lambda_.40} parent=0 // pred_fallthru
    _
  // Predicated region
  $region22: #{_lambda_.40} parent=0 // pred_check
    _
  $region23: #{_lambda_.40} parent=0 // pred_check_branch
    %129 = sbr.rel (0) target = $region25
  $region24: #{_lambda_.40} parent=0 // pred_region
    _
  $region25: #{_lambda_.40} parent=0 // pred_fallthru
    _
  // Predicated region
  $region26: #{_lambda_.40} parent=0 // pred_check
    _
  $region27: #{_lambda_.40} parent=0 // pred_check_branch
    %131 = sbr.rel (0) target = $region29
  $region28: #{_lambda_.40} parent=0 // pred_region
    _
  $region29: #{_lambda_.40} parent=0 // pred_fallthru
    _

// kernel: _lambda_.41
$region0: #{_lambda_.41}
  #allocation0 [shape = 'u32[]', space=smem, size = 0x4, offset = 0x4, fixed_abs, tag = 'smem constant byte address 0x4 - core index']
  #allocation1 [shape = 'u32[72,128]{1,0:T(1,128)}', space=vmem, size = 0x9000, scoped, tag = 'internal scratch']
  #allocation2 [shape = 'f32[8,32]{1,0:T(8,128)}', space=vmem, size = 0x1000, scoped, tag = 'scratch operand']
  %s0 = inlined_call_operand.vmem [shape: bf16[8,256], index: 0, kind: input, shape index: {}]
  %s1 = inlined_call_operand.vmem [shape: bf16[256,32], index: 1, kind: input, shape index: {}]
  %s2 = inlined_call_operand.vmem [shape: f32[1,32], index: 2, kind: input, shape index: {}]
  %s3 = inlined_call_operand.vmem [shape: f32[8,32], index: 3, kind: output, shape index: {}]
  %s4 = sld [smem:[#allocation0]]
  $region30: #{_lambda_.41} parent=0
    _
  %s6 = ssub.s32 1, %s4
  %s7 = scalar_select 0, %s6, %s4
  // Predicated region
  $region2: #{_lambda_.41} parent=0 // pred_check
    _
  $region3: #{_lambda_.41} parent=0 // pred_check_branch
    %9 = sbr.rel (0) target = $region5
  $region4: #{_lambda_.41} parent=0 // pred_region
    _
  $region5: #{_lambda_.41} parent=0 // pred_fallthru
    _
  // Predicated region
  $region6: #{_lambda_.41} parent=0 // pred_check
    _
  $region7: #{_lambda_.41} parent=0 // pred_check_branch
    %11 = sbr.rel (0) target = $region9
  $region8: #{_lambda_.41} parent=0 // pred_region
    _
  $region9: #{_lambda_.41} parent=0 // pred_fallthru
    _
  // Predicated region
  $region10: #{_lambda_.41} parent=0 // pred_check
    _
  $region11: #{_lambda_.41} parent=0 // pred_check_branch
    %13 = sbr.rel (0) target = $region13
  $region12: #{_lambda_.41} parent=0 // pred_region
    _
  $region13: #{_lambda_.41} parent=0 // pred_fallthru
    _
  %p14 = scmp.eq.s32.totalorder 0, 0
  // Predicated region
  $region14: #{_lambda_.41} parent=0 // pred_check
    %p15 = pneg %p14
  $region15: #{_lambda_.41} parent=0 // pred_check_branch
    %17 = sbr.rel (%p15) target = $region17
  $region16: #{_lambda_.41} parent=0 // pred_region
    %vm18 = vcmask 261120
    %19 = vst.msk [vmem:[#allocation2] sm:$0xff] %vm18, 0.0
  $region17: #{_lambda_.41} parent=0 // pred_fallthru
    _
  %v20 = vld [vmem:[#allocation2] sm:$0xff]
  %v21 = vld [vmem:[%s0] sm:$0xff]
  %v22 = vld [vmem:[%s1] sm:$0xf]
  %v23 = vld [vmem:[%s1 + $0x4] sm:$0xf]
  %v24 = vld [vmem:[%s1 + $0x8] sm:$0xf]
  %v25 = vld [vmem:[%s1 + $0xc] sm:$0xf]
  %v26 = vld [vmem:[%s1 + $0x10] sm:$0xf]
  %v27 = vld [vmem:[%s1 + $0x14] sm:$0xf]
  %v28 = vld [vmem:[%s1 + $0x18] sm:$0xf]
  %v29 = vld [vmem:[%s1 + $0x1c] sm:$0xf]
  %v30 = vld [vmem:[%s1 + $0x20] sm:$0xf]
  %v31 = vld [vmem:[%s1 + $0x24] sm:$0xf]
  %v32 = vld [vmem:[%s1 + $0x28] sm:$0xf]
  %v33 = vld [vmem:[%s1 + $0x2c] sm:$0xf]
  %v34 = vld [vmem:[%s1 + $0x30] sm:$0xf]
  %v35 = vld [vmem:[%s1 + $0x34] sm:$0xf]
  %v36 = vld [vmem:[%s1 + $0x38] sm:$0xf]
  %v37 = vld [vmem:[%s1 + $0x3c] sm:$0xf]
  %v38 = vld [vmem:[%s1 + $0x40] sm:$0xf]
  %v39 = vld [vmem:[%s1 + $0x44] sm:$0xf]
  %v40 = vld [vmem:[%s1 + $0x48] sm:$0xf]
  %v41 = vld [vmem:[%s1 + $0x4c] sm:$0xf]
  %v42 = vld [vmem:[%s1 + $0x50] sm:$0xf]
  %v43 = vld [vmem:[%s1 + $0x54] sm:$0xf]
  %v44 = vld [vmem:[%s1 + $0x58] sm:$0xf]
  %v45 = vld [vmem:[%s1 + $0x5c] sm:$0xf]
  %v46 = vld [vmem:[%s1 + $0x60] sm:$0xf]
  %v47 = vld [vmem:[%s1 + $0x64] sm:$0xf]
  %v48 = vld [vmem:[%s1 + $0x68] sm:$0xf]
  %v49 = vld [vmem:[%s1 + $0x6c] sm:$0xf]
  %v50 = vld [vmem:[%s1 + $0x70] sm:$0xf]
  %v51 = vld [vmem:[%s1 + $0x74] sm:$0xf]
  %v52 = vld [vmem:[%s1 + $0x78] sm:$0xf]
  %v53 = vld [vmem:[%s1 + $0x7c] sm:$0xf]
  %v55 = vunpack.c.l.b16 %v21
  %v56 = vunpack.c.h.b16 %v21
  %v57 = vpack.c.b16 %v55, %v55
  %v58 = vpack.c.b16 %v56, %v56
  %v93 = vunpack.c.l.b16 %v22
  %v94 = vunpack.c.l.b16 %v23
  %v95 = vunpack.c.l.b16 %v24
  %v96 = vunpack.c.l.b16 %v25
  %v97 = vunpack.c.l.b16 %v26
  %v98 = vunpack.c.l.b16 %v27
  %v99 = vunpack.c.l.b16 %v28
  %v100 = vunpack.c.l.b16 %v29
  %v101 = vunpack.c.l.b16 %v30
  %v102 = vunpack.c.l.b16 %v31
  %v103 = vunpack.c.l.b16 %v32
  %v104 = vunpack.c.l.b16 %v33
  %v105 = vunpack.c.l.b16 %v34
  %v106 = vunpack.c.l.b16 %v35
  %v107 = vunpack.c.l.b16 %v36
  %v108 = vunpack.c.l.b16 %v37
  %v109 = vunpack.c.l.b16 %v38
  %v110 = vunpack.c.l.b16 %v39
  %v111 = vunpack.c.l.b16 %v40
  %v112 = vunpack.c.l.b16 %v41
  %v113 = vunpack.c.l.b16 %v42
  %v114 = vunpack.c.l.b16 %v43
  %v115 = vunpack.c.l.b16 %v44
  %v116 = vunpack.c.l.b16 %v45
  %v117 = vunpack.c.l.b16 %v46
  %v118 = vunpack.c.l.b16 %v47
  %v119 = vunpack.c.l.b16 %v48
  %v120 = vunpack.c.l.b16 %v49
  %v121 = vunpack.c.l.b16 %v50
  %v122 = vunpack.c.l.b16 %v51
  %v123 = vunpack.c.l.b16 %v52
  %v124 = vunpack.c.l.b16 %v53
  %v125 = vpack.c.b16 %v94, %v93
  %v126 = vpack.c.b16 %v96, %v95
  %v127 = vpack.c.b16 %v98, %v97
  %v128 = vpack.c.b16 %v100, %v99
  %v129 = vpack.c.b16 %v102, %v101
  %v130 = vpack.c.b16 %v104, %v103
  %v131 = vpack.c.b16 %v106, %v105
  %v132 = vpack.c.b16 %v108, %v107
  %v133 = vpack.c.b16 %v110, %v109
  %v134 = vpack.c.b16 %v112, %v111
  %v135 = vpack.c.b16 %v114, %v113
  %v136 = vpack.c.b16 %v116, %v115
  %v137 = vpack.c.b16 %v118, %v117
  %v138 = vpack.c.b16 %v120, %v119
  %v139 = vpack.c.b16 %v122, %v121
  %v140 = vpack.c.b16 %v124, %v123
  %157 = vmatpush.bf16.msra.mxu0 %v132
  %158 = vmatpush.bf16.msra.mxu0 %v131
  %159 = vmatpush.bf16.msra.mxu0 %v130
  %160 = vmatpush.bf16.msra.mxu0 %v129
  %161 = vmatpush.bf16.msra.mxu0 %v128
  %162 = vmatpush.bf16.msra.mxu0 %v127
  %163 = vmatpush.bf16.msra.mxu0 %v126
  %164 = vmatpush.bf16.msra.mxu0 %v125
  %165 = vmatmul.bf16.gmra.mxu0 %v57
  %v166 = vpop.f32.mrf.mxu0
  %v167 = vadd.f32 0.0, %v166
  %v168 = vpop.f32.mrf.mxu0
  %169 = vdwg.mxu0
  %170 = vmatpush.bf16.msra.mxu0 %v140
  %171 = vmatpush.bf16.msra.mxu0 %v139
  %172 = vmatpush.bf16.msra.mxu0 %v138
  %173 = vmatpush.bf16.msra.mxu0 %v137
  %174 = vmatpush.bf16.msra.mxu0 %v136
  %175 = vmatpush.bf16.msra.mxu0 %v135
  %176 = vmatpush.bf16.msra.mxu0 %v134
  %177 = vmatpush.bf16.msra.mxu0 %v133
  %178 = vmatmul.bf16.gmra.mxu0 %v58
  %v179 = vpop.f32.mrf.mxu0
  %v180 = vadd.f32 %v167, %v179
  %v181 = vpop.f32.mrf.mxu0
  %182 = vdwg.mxu0
  %v183 = vadd.f32 %v20, %v180
  %vm184 = vcmask 261120
  %185 = vst.msk [vmem:[#allocation2] sm:$0xff] %vm184, %v183
  // Predicated region
  $region18: #{_lambda_.41} parent=0 // pred_check
    %p186 = pneg %p14
  $region19: #{_lambda_.41} parent=0 // pred_check_branch
    %188 = sbr.rel (%p186) target = $region21
  $region20: #{_lambda_.41} parent=0 // pred_region
    %v189 = vld [vmem:[#allocation2] sm:$0xff]
    %v190 = vld [vmem:[%s2] sm:$0x1]
    %v192 = vperm.slane %v190, 0
    %v194 = vadd.f32 %v189, %v192
    %195 = vst.msk [vmem:[%s3] sm:$0xff] %vm184, %v194
  $region21: #{_lambda_.41} parent=0 // pred_fallthru
    _
  // Predicated region
  $region22: #{_lambda_.41} parent=0 // pred_check
    _
  $region23: #{_lambda_.41} parent=0 // pred_check_branch
    %197 = sbr.rel (0) target = $region25
  $region24: #{_lambda_.41} parent=0 // pred_region
    _
  $region25: #{_lambda_.41} parent=0 // pred_fallthru
    _
  // Predicated region
  $region26: #{_lambda_.41} parent=0 // pred_check
    _
  $region27: #{_lambda_.41} parent=0 // pred_check_branch
    %199 = sbr.rel (0) target = $region29
  $region28: #{_lambda_.41} parent=0 // pred_region
    _
  $region29: #{_lambda_.41} parent=0 // pred_fallthru
    _

// kernel: _lambda_.42
$region0: #{_lambda_.42}
  #allocation0 [shape = 'u32[]', space=smem, size = 0x4, offset = 0x4, fixed_abs, tag = 'smem constant byte address 0x4 - core index']
  #allocation1 [shape = 'u32[72,128]{1,0:T(1,128)}', space=vmem, size = 0x9000, scoped, tag = 'internal scratch']
  %s0 = inlined_call_operand.vmem [shape: f32[8,32], index: 0, kind: input, shape index: {}]
  %s1 = inlined_call_operand.vmem [shape: f32[1,32], index: 1, kind: input, shape index: {}]
  %s2 = inlined_call_operand.vmem [shape: f32[1,32], index: 2, kind: input, shape index: {}]
  %s3 = inlined_call_operand.vmem [shape: f32[8,32], index: 3, kind: output, shape index: {}]
  %s4 = sld [smem:[#allocation0]]
  $region22: #{_lambda_.42} parent=0
    _
  %s6 = ssub.s32 1, %s4
  %s7 = scalar_select 0, %s6, %s4
  // Predicated region
  $region2: #{_lambda_.42} parent=0 // pred_check
    _
  $region3: #{_lambda_.42} parent=0 // pred_check_branch
    %9 = sbr.rel (0) target = $region5
  $region4: #{_lambda_.42} parent=0 // pred_region
    _
  $region5: #{_lambda_.42} parent=0 // pred_fallthru
    _
  // Predicated region
  $region6: #{_lambda_.42} parent=0 // pred_check
    _
  $region7: #{_lambda_.42} parent=0 // pred_check_branch
    %11 = sbr.rel (0) target = $region9
  $region8: #{_lambda_.42} parent=0 // pred_region
    _
  $region9: #{_lambda_.42} parent=0 // pred_fallthru
    _
  // Predicated region
  $region10: #{_lambda_.42} parent=0 // pred_check
    _
  $region11: #{_lambda_.42} parent=0 // pred_check_branch
    %13 = sbr.rel (0) target = $region13
  $region12: #{_lambda_.42} parent=0 // pred_region
    _
  $region13: #{_lambda_.42} parent=0 // pred_fallthru
    _
  %v14 = vld [vmem:[%s0] sm:$0xff]
  %v15 = vld [vmem:[%s1] sm:$0x1]
  %v17 = vperm.slane %v15, 0
  %v19 = vmul.f32 %v14, %v17
  %v20 = vld [vmem:[%s2] sm:$0x1]
  %v22 = vperm.slane %v20, 0
  %v24 = vadd.f32 %v19, %v22
  %vm25 = vcmp.gt.f32.partialorder %v24, 0.0
  %v26 = vmul.f32 %v24, 0.2
  %v27 = vsel %vm25, %v24, %v26
  %vm28 = vcmask 261120
  %29 = vst.msk [vmem:[%s3] sm:$0xff] %vm28, %v27
  // Predicated region
  $region14: #{_lambda_.42} parent=0 // pred_check
    _
  $region15: #{_lambda_.42} parent=0 // pred_check_branch
    %31 = sbr.rel (0) target = $region17
  $region16: #{_lambda_.42} parent=0 // pred_region
    _
  $region17: #{_lambda_.42} parent=0 // pred_fallthru
    _
  // Predicated region
  $region18: #{_lambda_.42} parent=0 // pred_check
    _
  $region19: #{_lambda_.42} parent=0 // pred_check_branch
    %33 = sbr.rel (0) target = $region21
  $region20: #{_lambda_.42} parent=0 // pred_region
    _
  $region21: #{_lambda_.42} parent=0 // pred_fallthru
    _

// kernel: _lambda_.44
$region0: #{_lambda_.44}
  #allocation0 [shape = 'u32[]', space=smem, size = 0x4, offset = 0x4, fixed_abs, tag = 'smem constant byte address 0x4 - core index']
  #allocation1 [shape = 'u32[72,128]{1,0:T(1,128)}', space=vmem, size = 0x9000, scoped, tag = 'internal scratch']
  %s0 = inlined_call_operand.vmem [shape: f32[8,64], index: 0, kind: input, shape index: {}]
  %s1 = inlined_call_operand.vmem [shape: f32[1,64], index: 1, kind: input, shape index: {}]
  %s2 = inlined_call_operand.vmem [shape: f32[1,64], index: 2, kind: input, shape index: {}]
  %s3 = inlined_call_operand.vmem [shape: f32[8,64], index: 3, kind: output, shape index: {}]
  %s4 = sld [smem:[#allocation0]]
  $region22: #{_lambda_.44} parent=0
    _
  %s6 = ssub.s32 1, %s4
  %s7 = scalar_select 0, %s6, %s4
  // Predicated region
  $region2: #{_lambda_.44} parent=0 // pred_check
    _
  $region3: #{_lambda_.44} parent=0 // pred_check_branch
    %9 = sbr.rel (0) target = $region5
  $region4: #{_lambda_.44} parent=0 // pred_region
    _
  $region5: #{_lambda_.44} parent=0 // pred_fallthru
    _
  // Predicated region
  $region6: #{_lambda_.44} parent=0 // pred_check
    _
  $region7: #{_lambda_.44} parent=0 // pred_check_branch
    %11 = sbr.rel (0) target = $region9
  $region8: #{_lambda_.44} parent=0 // pred_region
    _
  $region9: #{_lambda_.44} parent=0 // pred_fallthru
    _
  // Predicated region
  $region10: #{_lambda_.44} parent=0 // pred_check
    _
  $region11: #{_lambda_.44} parent=0 // pred_check_branch
    %13 = sbr.rel (0) target = $region13
  $region12: #{_lambda_.44} parent=0 // pred_region
    _
  $region13: #{_lambda_.44} parent=0 // pred_fallthru
    _
  %v14 = vld [vmem:[%s0] sm:$0xff]
  %v15 = vld [vmem:[%s1] sm:$0x1]
  %v17 = vperm.slane %v15, 0
  %v19 = vmul.f32 %v14, %v17
  %v20 = vld [vmem:[%s2] sm:$0x1]
  %v22 = vperm.slane %v20, 0
  %v24 = vadd.f32 %v19, %v22
  %vm25 = vcmp.gt.f32.partialorder %v24, 0.0
  %v26 = vmul.f32 %v24, 0.2
  %v27 = vsel %vm25, %v24, %v26
  %vm28 = vcmask 523264
  %29 = vst.msk [vmem:[%s3] sm:$0xff] %vm28, %v27
  // Predicated region
  $region14: #{_lambda_.44} parent=0 // pred_check
    _
  $region15: #{_lambda_.44} parent=0 // pred_check_branch
    %31 = sbr.rel (0) target = $region17
  $region16: #{_lambda_.44} parent=0 // pred_region
    _
  $region17: #{_lambda_.44} parent=0 // pred_fallthru
    _
  // Predicated region
  $region18: #{_lambda_.44} parent=0 // pred_check
    _
  $region19: #{_lambda_.44} parent=0 // pred_check_branch
    %33 = sbr.rel (0) target = $region21
  $region20: #{_lambda_.44} parent=0 // pred_region
    _
  $region21: #{_lambda_.44} parent=0 // pred_fallthru
    _

// kernel: _lambda_.43
$region0: #{_lambda_.43}
  #allocation0 [shape = 'u32[]', space=smem, size = 0x4, offset = 0x4, fixed_abs, tag = 'smem constant byte address 0x4 - core index']
  #allocation1 [shape = 'u32[72,128]{1,0:T(1,128)}', space=vmem, size = 0x9000, scoped, tag = 'internal scratch']
  #allocation2 [shape = 'f32[8,64]{1,0:T(8,128)}', space=vmem, size = 0x1000, scoped, tag = 'scratch operand']
  %s0 = inlined_call_operand.vmem [shape: bf16[8,512], index: 0, kind: input, shape index: {}]
  %s1 = inlined_call_operand.vmem [shape: bf16[512,64], index: 1, kind: input, shape index: {}]
  %s2 = inlined_call_operand.vmem [shape: f32[1,64], index: 2, kind: input, shape index: {}]
  %s3 = inlined_call_operand.vmem [shape: f32[8,64], index: 3, kind: output, shape index: {}]
  %s4 = sld [smem:[#allocation0]]
  $region30: #{_lambda_.43} parent=0
    _
  %s6 = ssub.s32 1, %s4
  %s7 = scalar_select 0, %s6, %s4
  // Predicated region
  $region2: #{_lambda_.43} parent=0 // pred_check
    _
  $region3: #{_lambda_.43} parent=0 // pred_check_branch
    %9 = sbr.rel (0) target = $region5
  $region4: #{_lambda_.43} parent=0 // pred_region
    _
  $region5: #{_lambda_.43} parent=0 // pred_fallthru
    _
  // Predicated region
  $region6: #{_lambda_.43} parent=0 // pred_check
    _
  $region7: #{_lambda_.43} parent=0 // pred_check_branch
    %11 = sbr.rel (0) target = $region9
  $region8: #{_lambda_.43} parent=0 // pred_region
    _
  $region9: #{_lambda_.43} parent=0 // pred_fallthru
    _
  // Predicated region
  $region10: #{_lambda_.43} parent=0 // pred_check
    _
  $region11: #{_lambda_.43} parent=0 // pred_check_branch
    %13 = sbr.rel (0) target = $region13
  $region12: #{_lambda_.43} parent=0 // pred_region
    _
  $region13: #{_lambda_.43} parent=0 // pred_fallthru
    _
  %p14 = scmp.eq.s32.totalorder 0, 0
  // Predicated region
  $region14: #{_lambda_.43} parent=0 // pred_check
    %p15 = pneg %p14
  $region15: #{_lambda_.43} parent=0 // pred_check_branch
    %17 = sbr.rel (%p15) target = $region17
  $region16: #{_lambda_.43} parent=0 // pred_region
    %vm18 = vcmask 523264
    %19 = vst.msk [vmem:[#allocation2] sm:$0xff] %vm18, 0.0
  $region17: #{_lambda_.43} parent=0 // pred_fallthru
    _
  %v20 = vld [vmem:[#allocation2] sm:$0xff]
  %v21 = vld [vmem:[%s0] sm:$0xff]
  %v22 = vld [vmem:[%s0 + $0x8] sm:$0xff]
  %v23 = vld [vmem:[%s1] sm:$0xf]
  %v24 = vld [vmem:[%s1 + $0x4] sm:$0xf]
  %v25 = vld [vmem:[%s1 + $0x8] sm:$0xf]
  %v26 = vld [vmem:[%s1 + $0xc] sm:$0xf]
  %v27 = vld [vmem:[%s1 + $0x10] sm:$0xf]
  %v28 = vld [vmem:[%s1 + $0x14] sm:$0xf]
  %v29 = vld [vmem:[%s1 + $0x18] sm:$0xf]
  %v30 = vld [vmem:[%s1 + $0x1c] sm:$0xf]
  %v31 = vld [vmem:[%s1 + $0x20] sm:$0xf]
  %v32 = vld [vmem:[%s1 + $0x24] sm:$0xf]
  %v33 = vld [vmem:[%s1 + $0x28] sm:$0xf]
  %v34 = vld [vmem:[%s1 + $0x2c] sm:$0xf]
  %v35 = vld [vmem:[%s1 + $0x30] sm:$0xf]
  %v36 = vld [vmem:[%s1 + $0x34] sm:$0xf]
  %v37 = vld [vmem:[%s1 + $0x38] sm:$0xf]
  %v38 = vld [vmem:[%s1 + $0x3c] sm:$0xf]
  %v39 = vld [vmem:[%s1 + $0x40] sm:$0xf]
  %v40 = vld [vmem:[%s1 + $0x44] sm:$0xf]
  %v41 = vld [vmem:[%s1 + $0x48] sm:$0xf]
  %v42 = vld [vmem:[%s1 + $0x4c] sm:$0xf]
  %v43 = vld [vmem:[%s1 + $0x50] sm:$0xf]
  %v44 = vld [vmem:[%s1 + $0x54] sm:$0xf]
  %v45 = vld [vmem:[%s1 + $0x58] sm:$0xf]
  %v46 = vld [vmem:[%s1 + $0x5c] sm:$0xf]
  %v47 = vld [vmem:[%s1 + $0x60] sm:$0xf]
  %v48 = vld [vmem:[%s1 + $0x64] sm:$0xf]
  %v49 = vld [vmem:[%s1 + $0x68] sm:$0xf]
  %v50 = vld [vmem:[%s1 + $0x6c] sm:$0xf]
  %v51 = vld [vmem:[%s1 + $0x70] sm:$0xf]
  %v52 = vld [vmem:[%s1 + $0x74] sm:$0xf]
  %v53 = vld [vmem:[%s1 + $0x78] sm:$0xf]
  %v54 = vld [vmem:[%s1 + $0x7c] sm:$0xf]
  %v55 = vld [vmem:[%s1 + $0x80] sm:$0xf]
  %v56 = vld [vmem:[%s1 + $0x84] sm:$0xf]
  %v57 = vld [vmem:[%s1 + $0x88] sm:$0xf]
  %v58 = vld [vmem:[%s1 + $0x8c] sm:$0xf]
  %v59 = vld [vmem:[%s1 + $0x90] sm:$0xf]
  %v60 = vld [vmem:[%s1 + $0x94] sm:$0xf]
  %v61 = vld [vmem:[%s1 + $0x98] sm:$0xf]
  %v62 = vld [vmem:[%s1 + $0x9c] sm:$0xf]
  %v63 = vld [vmem:[%s1 + $0xa0] sm:$0xf]
  %v64 = vld [vmem:[%s1 + $0xa4] sm:$0xf]
  %v65 = vld [vmem:[%s1 + $0xa8] sm:$0xf]
  %v66 = vld [vmem:[%s1 + $0xac] sm:$0xf]
  %v67 = vld [vmem:[%s1 + $0xb0] sm:$0xf]
  %v68 = vld [vmem:[%s1 + $0xb4] sm:$0xf]
  %v69 = vld [vmem:[%s1 + $0xb8] sm:$0xf]
  %v70 = vld [vmem:[%s1 + $0xbc] sm:$0xf]
  %v71 = vld [vmem:[%s1 + $0xc0] sm:$0xf]
  %v72 = vld [vmem:[%s1 + $0xc4] sm:$0xf]
  %v73 = vld [vmem:[%s1 + $0xc8] sm:$0xf]
  %v74 = vld [vmem:[%s1 + $0xcc] sm:$0xf]
  %v75 = vld [vmem:[%s1 + $0xd0] sm:$0xf]
  %v76 = vld [vmem:[%s1 + $0xd4] sm:$0xf]
  %v77 = vld [vmem:[%s1 + $0xd8] sm:$0xf]
  %v78 = vld [vmem:[%s1 + $0xdc] sm:$0xf]
  %v79 = vld [vmem:[%s1 + $0xe0] sm:$0xf]
  %v80 = vld [vmem:[%s1 + $0xe4] sm:$0xf]
  %v81 = vld [vmem:[%s1 + $0xe8] sm:$0xf]
  %v82 = vld [vmem:[%s1 + $0xec] sm:$0xf]
  %v83 = vld [vmem:[%s1 + $0xf0] sm:$0xf]
  %v84 = vld [vmem:[%s1 + $0xf4] sm:$0xf]
  %v85 = vld [vmem:[%s1 + $0xf8] sm:$0xf]
  %v86 = vld [vmem:[%s1 + $0xfc] sm:$0xf]
  %v89 = vunpack.c.l.b16 %v21
  %v90 = vunpack.c.h.b16 %v21
  %v91 = vunpack.c.l.b16 %v22
  %v92 = vunpack.c.h.b16 %v22
  %v93 = vpack.c.b16 %v89, %v89
  %v94 = vpack.c.b16 %v90, %v90
  %v95 = vpack.c.b16 %v91, %v91
  %v96 = vpack.c.b16 %v92, %v92
  %v165 = vunpack.c.l.b16 %v23
  %v166 = vunpack.c.l.b16 %v24
  %v167 = vunpack.c.l.b16 %v25
  %v168 = vunpack.c.l.b16 %v26
  %v169 = vunpack.c.l.b16 %v27
  %v170 = vunpack.c.l.b16 %v28
  %v171 = vunpack.c.l.b16 %v29
  %v172 = vunpack.c.l.b16 %v30
  %v173 = vunpack.c.l.b16 %v31
  %v174 = vunpack.c.l.b16 %v32
  %v175 = vunpack.c.l.b16 %v33
  %v176 = vunpack.c.l.b16 %v34
  %v177 = vunpack.c.l.b16 %v35
  %v178 = vunpack.c.l.b16 %v36
  %v179 = vunpack.c.l.b16 %v37
  %v180 = vunpack.c.l.b16 %v38
  %v181 = vunpack.c.l.b16 %v39
  %v182 = vunpack.c.l.b16 %v40
  %v183 = vunpack.c.l.b16 %v41
  %v184 = vunpack.c.l.b16 %v42
  %v185 = vunpack.c.l.b16 %v43
  %v186 = vunpack.c.l.b16 %v44
  %v187 = vunpack.c.l.b16 %v45
  %v188 = vunpack.c.l.b16 %v46
  %v189 = vunpack.c.l.b16 %v47
  %v190 = vunpack.c.l.b16 %v48
  %v191 = vunpack.c.l.b16 %v49
  %v192 = vunpack.c.l.b16 %v50
  %v193 = vunpack.c.l.b16 %v51
  %v194 = vunpack.c.l.b16 %v52
  %v195 = vunpack.c.l.b16 %v53
  %v196 = vunpack.c.l.b16 %v54
  %v197 = vunpack.c.l.b16 %v55
  %v198 = vunpack.c.l.b16 %v56
  %v199 = vunpack.c.l.b16 %v57
  %v200 = vunpack.c.l.b16 %v58
  %v201 = vunpack.c.l.b16 %v59
  %v202 = vunpack.c.l.b16 %v60
  %v203 = vunpack.c.l.b16 %v61
  %v204 = vunpack.c.l.b16 %v62
  %v205 = vunpack.c.l.b16 %v63
  %v206 = vunpack.c.l.b16 %v64
  %v207 = vunpack.c.l.b16 %v65
  %v208 = vunpack.c.l.b16 %v66
  %v209 = vunpack.c.l.b16 %v67
  %v210 = vunpack.c.l.b16 %v68
  %v211 = vunpack.c.l.b16 %v69
  %v212 = vunpack.c.l.b16 %v70
  %v213 = vunpack.c.l.b16 %v71
  %v214 = vunpack.c.l.b16 %v72
  %v215 = vunpack.c.l.b16 %v73
  %v216 = vunpack.c.l.b16 %v74
  %v217 = vunpack.c.l.b16 %v75
  %v218 = vunpack.c.l.b16 %v76
  %v219 = vunpack.c.l.b16 %v77
  %v220 = vunpack.c.l.b16 %v78
  %v221 = vunpack.c.l.b16 %v79
  %v222 = vunpack.c.l.b16 %v80
  %v223 = vunpack.c.l.b16 %v81
  %v224 = vunpack.c.l.b16 %v82
  %v225 = vunpack.c.l.b16 %v83
  %v226 = vunpack.c.l.b16 %v84
  %v227 = vunpack.c.l.b16 %v85
  %v228 = vunpack.c.l.b16 %v86
  %v229 = vpack.c.b16 %v166, %v165
  %v230 = vpack.c.b16 %v168, %v167
  %v231 = vpack.c.b16 %v170, %v169
  %v232 = vpack.c.b16 %v172, %v171
  %v233 = vpack.c.b16 %v174, %v173
  %v234 = vpack.c.b16 %v176, %v175
  %v235 = vpack.c.b16 %v178, %v177
  %v236 = vpack.c.b16 %v180, %v179
  %v237 = vpack.c.b16 %v182, %v181
  %v238 = vpack.c.b16 %v184, %v183
  %v239 = vpack.c.b16 %v186, %v185
  %v240 = vpack.c.b16 %v188, %v187
  %v241 = vpack.c.b16 %v190, %v189
  %v242 = vpack.c.b16 %v192, %v191
  %v243 = vpack.c.b16 %v194, %v193
  %v244 = vpack.c.b16 %v196, %v195
  %v245 = vpack.c.b16 %v198, %v197
  %v246 = vpack.c.b16 %v200, %v199
  %v247 = vpack.c.b16 %v202, %v201
  %v248 = vpack.c.b16 %v204, %v203
  %v249 = vpack.c.b16 %v206, %v205
  %v250 = vpack.c.b16 %v208, %v207
  %v251 = vpack.c.b16 %v210, %v209
  %v252 = vpack.c.b16 %v212, %v211
  %v253 = vpack.c.b16 %v214, %v213
  %v254 = vpack.c.b16 %v216, %v215
  %v255 = vpack.c.b16 %v218, %v217
  %v256 = vpack.c.b16 %v220, %v219
  %v257 = vpack.c.b16 %v222, %v221
  %v258 = vpack.c.b16 %v224, %v223
  %v259 = vpack.c.b16 %v226, %v225
  %v260 = vpack.c.b16 %v228, %v227
  %293 = vmatpush.bf16.msra.mxu0 %v236
  %294 = vmatpush.bf16.msra.mxu0 %v235
  %295 = vmatpush.bf16.msra.mxu0 %v234
  %296 = vmatpush.bf16.msra.mxu0 %v233
  %297 = vmatpush.bf16.msra.mxu0 %v232
  %298 = vmatpush.bf16.msra.mxu0 %v231
  %299 = vmatpush.bf16.msra.mxu0 %v230
  %300 = vmatpush.bf16.msra.mxu0 %v229
  %301 = vmatmul.bf16.gmra.mxu0 %v93
  %v302 = vpop.f32.mrf.mxu0
  %v303 = vadd.f32 0.0, %v302
  %v304 = vpop.f32.mrf.mxu0
  %305 = vdwg.mxu0
  %306 = vmatpush.bf16.msra.mxu0 %v244
  %307 = vmatpush.bf16.msra.mxu0 %v243
  %308 = vmatpush.bf16.msra.mxu0 %v242
  %309 = vmatpush.bf16.msra.mxu0 %v241
  %310 = vmatpush.bf16.msra.mxu0 %v240
  %311 = vmatpush.bf16.msra.mxu0 %v239
  %312 = vmatpush.bf16.msra.mxu0 %v238
  %313 = vmatpush.bf16.msra.mxu0 %v237
  %314 = vmatmul.bf16.gmra.mxu0 %v94
  %v315 = vpop.f32.mrf.mxu0
  %v316 = vadd.f32 %v303, %v315
  %v317 = vpop.f32.mrf.mxu0
  %318 = vdwg.mxu0
  %319 = vmatpush.bf16.msra.mxu0 %v252
  %320 = vmatpush.bf16.msra.mxu0 %v251
  %321 = vmatpush.bf16.msra.mxu0 %v250
  %322 = vmatpush.bf16.msra.mxu0 %v249
  %323 = vmatpush.bf16.msra.mxu0 %v248
  %324 = vmatpush.bf16.msra.mxu0 %v247
  %325 = vmatpush.bf16.msra.mxu0 %v246
  %326 = vmatpush.bf16.msra.mxu0 %v245
  %327 = vmatmul.bf16.gmra.mxu0 %v95
  %v328 = vpop.f32.mrf.mxu0
  %v329 = vadd.f32 %v316, %v328
  %v330 = vpop.f32.mrf.mxu0
  %331 = vdwg.mxu0
  %332 = vmatpush.bf16.msra.mxu0 %v260
  %333 = vmatpush.bf16.msra.mxu0 %v259
  %334 = vmatpush.bf16.msra.mxu0 %v258
  %335 = vmatpush.bf16.msra.mxu0 %v257
  %336 = vmatpush.bf16.msra.mxu0 %v256
  %337 = vmatpush.bf16.msra.mxu0 %v255
  %338 = vmatpush.bf16.msra.mxu0 %v254
  %339 = vmatpush.bf16.msra.mxu0 %v253
  %340 = vmatmul.bf16.gmra.mxu0 %v96
  %v341 = vpop.f32.mrf.mxu0
  %v342 = vadd.f32 %v329, %v341
  %v343 = vpop.f32.mrf.mxu0
  %344 = vdwg.mxu0
  %v345 = vadd.f32 %v20, %v342
  %vm346 = vcmask 523264
  %347 = vst.msk [vmem:[#allocation2] sm:$0xff] %vm346, %v345
  // Predicated region
  $region18: #{_lambda_.43} parent=0 // pred_check
    %p348 = pneg %p14
  $region19: #{_lambda_.43} parent=0 // pred_check_branch
    %350 = sbr.rel (%p348) target = $region21
  $region20: #{_lambda_.43} parent=0 // pred_region
    %v351 = vld [vmem:[#allocation2] sm:$0xff]
    %v352 = vld [vmem:[%s2] sm:$0x1]
    %v354 = vperm.slane %v352, 0
    %v356 = vadd.f32 %v351, %v354
    %357 = vst.msk [vmem:[%s3] sm:$0xff] %vm346, %v356
  $region21: #{_lambda_.43} parent=0 // pred_fallthru
    _
  // Predicated region
  $region22: #{_lambda_.43} parent=0 // pred_check
    _
  $region23: #{_lambda_.43} parent=0 // pred_check_branch
    %359 = sbr.rel (0) target = $region25
  $region24: #{_lambda_.43} parent=0 // pred_region
    _
  $region25: #{_lambda_.43} parent=0 // pred_fallthru
    _
  // Predicated region
  $region26: #{_lambda_.43} parent=0 // pred_check
    _
  $region27: #{_lambda_.43} parent=0 // pred_check_branch
    %361 = sbr.rel (0) target = $region29
  $region28: #{_lambda_.43} parent=0 // pred_region
    _
  $region29: #{_lambda_.43} parent=0 // pred_fallthru
    _

// kernel: _lambda_.45
$region0: #{_lambda_.45}
  #allocation0 [shape = 'u32[]', space=smem, size = 0x4, offset = 0x4, fixed_abs, tag = 'smem constant byte address 0x4 - core index']
  #allocation1 [shape = 'u32[72,128]{1,0:T(1,128)}', space=vmem, size = 0x9000, scoped, tag = 'internal scratch']
  #allocation2 [shape = 'f32[18,128]{1,0:T(8,128)}', space=vmem, size = 0x3000, scoped, tag = 'scratch operand']
  %s0 = inlined_call_operand.vmem [shape: bf16[18,1024], index: 0, kind: input, shape index: {}]
  %s1 = inlined_call_operand.vmem [shape: bf16[1024,128], index: 1, kind: input, shape index: {}]
  %s2 = inlined_call_operand.vmem [shape: f32[1,128], index: 2, kind: input, shape index: {}]
  %s3 = inlined_call_operand.vmem [shape: f32[18,128], index: 3, kind: output, shape index: {}]
  %s4 = sld [smem:[#allocation0]]
  $region30: #{_lambda_.45} parent=0
    _
  %s6 = ssub.s32 1, %s4
  %s7 = scalar_select 0, %s6, %s4
  // Predicated region
  $region2: #{_lambda_.45} parent=0 // pred_check
    _
  $region3: #{_lambda_.45} parent=0 // pred_check_branch
    %9 = sbr.rel (0) target = $region5
  $region4: #{_lambda_.45} parent=0 // pred_region
    _
  $region5: #{_lambda_.45} parent=0 // pred_fallthru
    _
  // Predicated region
  $region6: #{_lambda_.45} parent=0 // pred_check
    _
  $region7: #{_lambda_.45} parent=0 // pred_check_branch
    %11 = sbr.rel (0) target = $region9
  $region8: #{_lambda_.45} parent=0 // pred_region
    _
  $region9: #{_lambda_.45} parent=0 // pred_fallthru
    _
  // Predicated region
  $region10: #{_lambda_.45} parent=0 // pred_check
    _
  $region11: #{_lambda_.45} parent=0 // pred_check_branch
    %13 = sbr.rel (0) target = $region13
  $region12: #{_lambda_.45} parent=0 // pred_region
    _
  $region13: #{_lambda_.45} parent=0 // pred_fallthru
    _
  %p14 = scmp.eq.s32.totalorder 0, 0
  // Predicated region
  $region14: #{_lambda_.45} parent=0 // pred_check
    %p15 = pneg %p14
  $region15: #{_lambda_.45} parent=0 // pred_check_branch
    %17 = sbr.rel (%p15) target = $region17
  $region16: #{_lambda_.45} parent=0 // pred_region
    %18 = vst [vmem:[#allocation2] sm:$0xff] 0.0
    %19 = vst [vmem:[#allocation2 + $0x8] sm:$0xff] 0.0
    %20 = vst [vmem:[#allocation2 + $0x10] sm:$0x3] 0.0
  $region17: #{_lambda_.45} parent=0 // pred_fallthru
    _
  %v21 = vld [vmem:[#allocation2] sm:$0xff]
  %v22 = vld [vmem:[#allocation2 + $0x8] sm:$0xff]
  %v23 = vld [vmem:[#allocation2 + $0x10] sm:$0x3]
  %v24 = vld [vmem:[%s0] sm:$0xff]
  %v25 = vld [vmem:[%s0 + $0x8] sm:$0xff]
  %v26 = vld [vmem:[%s0 + $0x10] sm:$0xff]
  %v27 = vld [vmem:[%s0 + $0x18] sm:$0xff]
  %v28 = vld [vmem:[%s0 + $0x20] sm:$0xff]
  %v29 = vld [vmem:[%s0 + $0x28] sm:$0xff]
  %v30 = vld [vmem:[%s0 + $0x30] sm:$0xff]
  %v31 = vld [vmem:[%s0 + $0x38] sm:$0xff]
  %v32 = vld [vmem:[%s0 + $0x40] sm:$0x11]
  %v33 = vld [vmem:[%s0 + $0x48] sm:$0x11]
  %v34 = vld [vmem:[%s0 + $0x50] sm:$0x11]
  %v35 = vld [vmem:[%s0 + $0x58] sm:$0x11]
  %v36 = vld [vmem:[%s1] sm:$0xf]
  %v37 = vld [vmem:[%s1 + $0x4] sm:$0xf]
  %v38 = vld [vmem:[%s1 + $0x8] sm:$0xf]
  %v39 = vld [vmem:[%s1 + $0xc] sm:$0xf]
  %v40 = vld [vmem:[%s1 + $0x10] sm:$0xf]
  %v41 = vld [vmem:[%s1 + $0x14] sm:$0xf]
  %v42 = vld [vmem:[%s1 + $0x18] sm:$0xf]
  %v43 = vld [vmem:[%s1 + $0x1c] sm:$0xf]
  %v44 = vld [vmem:[%s1 + $0x20] sm:$0xf]
  %v45 = vld [vmem:[%s1 + $0x24] sm:$0xf]
  %v46 = vld [vmem:[%s1 + $0x28] sm:$0xf]
  %v47 = vld [vmem:[%s1 + $0x2c] sm:$0xf]
  %v48 = vld [vmem:[%s1 + $0x30] sm:$0xf]
  %v49 = vld [vmem:[%s1 + $0x34] sm:$0xf]
  %v50 = vld [vmem:[%s1 + $0x38] sm:$0xf]
  %v51 = vld [vmem:[%s1 + $0x3c] sm:$0xf]
  %v52 = vld [vmem:[%s1 + $0x40] sm:$0xf]
  %v53 = vld [vmem:[%s1 + $0x44] sm:$0xf]
  %v54 = vld [vmem:[%s1 + $0x48] sm:$0xf]
  %v55 = vld [vmem:[%s1 + $0x4c] sm:$0xf]
  %v56 = vld [vmem:[%s1 + $0x50] sm:$0xf]
  %v57 = vld [vmem:[%s1 + $0x54] sm:$0xf]
  %v58 = vld [vmem:[%s1 + $0x58] sm:$0xf]
  %v59 = vld [vmem:[%s1 + $0x5c] sm:$0xf]
  %v60 = vld [vmem:[%s1 + $0x60] sm:$0xf]
  %v61 = vld [vmem:[%s1 + $0x64] sm:$0xf]
  %v62 = vld [vmem:[%s1 + $0x68] sm:$0xf]
  %v63 = vld [vmem:[%s1 + $0x6c] sm:$0xf]
  %v64 = vld [vmem:[%s1 + $0x70] sm:$0xf]
  %v65 = vld [vmem:[%s1 + $0x74] sm:$0xf]
  %v66 = vld [vmem:[%s1 + $0x78] sm:$0xf]
  %v67 = vld [vmem:[%s1 + $0x7c] sm:$0xf]
  %v68 = vld [vmem:[%s1 + $0x80] sm:$0xf]
  %v69 = vld [vmem:[%s1 + $0x84] sm:$0xf]
  %v70 = vld [vmem:[%s1 + $0x88] sm:$0xf]
  %v71 = vld [vmem:[%s1 + $0x8c] sm:$0xf]
  %v72 = vld [vmem:[%s1 + $0x90] sm:$0xf]
  %v73 = vld [vmem:[%s1 + $0x94] sm:$0xf]
  %v74 = vld [vmem:[%s1 + $0x98] sm:$0xf]
  %v75 = vld [vmem:[%s1 + $0x9c] sm:$0xf]
  %v76 = vld [vmem:[%s1 + $0xa0] sm:$0xf]
  %v77 = vld [vmem:[%s1 + $0xa4] sm:$0xf]
  %v78 = vld [vmem:[%s1 + $0xa8] sm:$0xf]
  %v79 = vld [vmem:[%s1 + $0xac] sm:$0xf]
  %v80 = vld [vmem:[%s1 + $0xb0] sm:$0xf]
  %v81 = vld [vmem:[%s1 + $0xb4] sm:$0xf]
  %v82 = vld [vmem:[%s1 + $0xb8] sm:$0xf]
  %v83 = vld [vmem:[%s1 + $0xbc] sm:$0xf]
  %v84 = vld [vmem:[%s1 + $0xc0] sm:$0xf]
  %v85 = vld [vmem:[%s1 + $0xc4] sm:$0xf]
  %v86 = vld [vmem:[%s1 + $0xc8] sm:$0xf]
  %v87 = vld [vmem:[%s1 + $0xcc] sm:$0xf]
  %v88 = vld [vmem:[%s1 + $0xd0] sm:$0xf]
  %v89 = vld [vmem:[%s1 + $0xd4] sm:$0xf]
  %v90 = vld [vmem:[%s1 + $0xd8] sm:$0xf]
  %v91 = vld [vmem:[%s1 + $0xdc] sm:$0xf]
  %v92 = vld [vmem:[%s1 + $0xe0] sm:$0xf]
  %v93 = vld [vmem:[%s1 + $0xe4] sm:$0xf]
  %v94 = vld [vmem:[%s1 + $0xe8] sm:$0xf]
  %v95 = vld [vmem:[%s1 + $0xec] sm:$0xf]
  %v96 = vld [vmem:[%s1 + $0xf0] sm:$0xf]
  %v97 = vld [vmem:[%s1 + $0xf4] sm:$0xf]
  %v98 = vld [vmem:[%s1 + $0xf8] sm:$0xf]
  %v99 = vld [vmem:[%s1 + $0xfc] sm:$0xf]
  %v100 = vld [vmem:[%s1 + $0x100] sm:$0xf]
  %v101 = vld [vmem:[%s1 + $0x104] sm:$0xf]
  %v102 = vld [vmem:[%s1 + $0x108] sm:$0xf]
  %v103 = vld [vmem:[%s1 + $0x10c] sm:$0xf]
  %v104 = vld [vmem:[%s1 + $0x110] sm:$0xf]
  %v105 = vld [vmem:[%s1 + $0x114] sm:$0xf]
  %v106 = vld [vmem:[%s1 + $0x118] sm:$0xf]
  %v107 = vld [vmem:[%s1 + $0x11c] sm:$0xf]
  %v108 = vld [vmem:[%s1 + $0x120] sm:$0xf]
  %v109 = vld [vmem:[%s1 + $0x124] sm:$0xf]
  %v110 = vld [vmem:[%s1 + $0x128] sm:$0xf]
  %v111 = vld [vmem:[%s1 + $0x12c] sm:$0xf]
  %v112 = vld [vmem:[%s1 + $0x130] sm:$0xf]
  %v113 = vld [vmem:[%s1 + $0x134] sm:$0xf]
  %v114 = vld [vmem:[%s1 + $0x138] sm:$0xf]
  %v115 = vld [vmem:[%s1 + $0x13c] sm:$0xf]
  %v116 = vld [vmem:[%s1 + $0x140] sm:$0xf]
  %v117 = vld [vmem:[%s1 + $0x144] sm:$0xf]
  %v118 = vld [vmem:[%s1 + $0x148] sm:$0xf]
  %v119 = vld [vmem:[%s1 + $0x14c] sm:$0xf]
  %v120 = vld [vmem:[%s1 + $0x150] sm:$0xf]
  %v121 = vld [vmem:[%s1 + $0x154] sm:$0xf]
  %v122 = vld [vmem:[%s1 + $0x158] sm:$0xf]
  %v123 = vld [vmem:[%s1 + $0x15c] sm:$0xf]
  %v124 = vld [vmem:[%s1 + $0x160] sm:$0xf]
  %v125 = vld [vmem:[%s1 + $0x164] sm:$0xf]
  %v126 = vld [vmem:[%s1 + $0x168] sm:$0xf]
  %v127 = vld [vmem:[%s1 + $0x16c] sm:$0xf]
  %v128 = vld [vmem:[%s1 + $0x170] sm:$0xf]
  %v129 = vld [vmem:[%s1 + $0x174] sm:$0xf]
  %v130 = vld [vmem:[%s1 + $0x178] sm:$0xf]
  %v131 = vld [vmem:[%s1 + $0x17c] sm:$0xf]
  %v132 = vld [vmem:[%s1 + $0x180] sm:$0xf]
  %v133 = vld [vmem:[%s1 + $0x184] sm:$0xf]
  %v134 = vld [vmem:[%s1 + $0x188] sm:$0xf]
  %v135 = vld [vmem:[%s1 + $0x18c] sm:$0xf]
  %v136 = vld [vmem:[%s1 + $0x190] sm:$0xf]
  %v137 = vld [vmem:[%s1 + $0x194] sm:$0xf]
  %v138 = vld [vmem:[%s1 + $0x198] sm:$0xf]
  %v139 = vld [vmem:[%s1 + $0x19c] sm:$0xf]
  %v140 = vld [vmem:[%s1 + $0x1a0] sm:$0xf]
  %v141 = vld [vmem:[%s1 + $0x1a4] sm:$0xf]
  %v142 = vld [vmem:[%s1 + $0x1a8] sm:$0xf]
  %v143 = vld [vmem:[%s1 + $0x1ac] sm:$0xf]
  %v144 = vld [vmem:[%s1 + $0x1b0] sm:$0xf]
  %v145 = vld [vmem:[%s1 + $0x1b4] sm:$0xf]
  %v146 = vld [vmem:[%s1 + $0x1b8] sm:$0xf]
  %v147 = vld [vmem:[%s1 + $0x1bc] sm:$0xf]
  %v148 = vld [vmem:[%s1 + $0x1c0] sm:$0xf]
  %v149 = vld [vmem:[%s1 + $0x1c4] sm:$0xf]
  %v150 = vld [vmem:[%s1 + $0x1c8] sm:$0xf]
  %v151 = vld [vmem:[%s1 + $0x1cc] sm:$0xf]
  %v152 = vld [vmem:[%s1 + $0x1d0] sm:$0xf]
  %v153 = vld [vmem:[%s1 + $0x1d4] sm:$0xf]
  %v154 = vld [vmem:[%s1 + $0x1d8] sm:$0xf]
  %v155 = vld [vmem:[%s1 + $0x1dc] sm:$0xf]
  %v156 = vld [vmem:[%s1 + $0x1e0] sm:$0xf]
  %v157 = vld [vmem:[%s1 + $0x1e4] sm:$0xf]
  %v158 = vld [vmem:[%s1 + $0x1e8] sm:$0xf]
  %v159 = vld [vmem:[%s1 + $0x1ec] sm:$0xf]
  %v160 = vld [vmem:[%s1 + $0x1f0] sm:$0xf]
  %v161 = vld [vmem:[%s1 + $0x1f4] sm:$0xf]
  %v162 = vld [vmem:[%s1 + $0x1f8] sm:$0xf]
  %v163 = vld [vmem:[%s1 + $0x1fc] sm:$0xf]
  %v176 = vunpack.c.l.b16 %v24
  %v177 = vunpack.c.h.b16 %v24
  %v178 = vunpack.c.l.b16 %v25
  %v179 = vunpack.c.h.b16 %v25
  %v180 = vunpack.c.l.b16 %v26
  %v181 = vunpack.c.h.b16 %v26
  %v182 = vunpack.c.l.b16 %v27
  %v183 = vunpack.c.h.b16 %v27
  %v184 = vunpack.c.l.b16 %v28
  %v185 = vunpack.c.h.b16 %v28
  %v186 = vunpack.c.l.b16 %v29
  %v187 = vunpack.c.h.b16 %v29
  %v188 = vunpack.c.l.b16 %v30
  %v189 = vunpack.c.h.b16 %v30
  %v190 = vunpack.c.l.b16 %v31
  %v191 = vunpack.c.h.b16 %v31
  %v192 = vunpack.c.l.b16 %v32
  %v193 = vunpack.c.h.b16 %v32
  %v194 = vunpack.c.l.b16 %v33
  %v195 = vunpack.c.h.b16 %v33
  %v196 = vunpack.c.l.b16 %v34
  %v197 = vunpack.c.h.b16 %v34
  %v198 = vunpack.c.l.b16 %v35
  %v199 = vunpack.c.h.b16 %v35
  %v200 = vpack.c.b16 %v184, %v176
  %v201 = vpack.c.b16 %v185, %v177
  %v202 = vpack.c.b16 %v186, %v178
  %v203 = vpack.c.b16 %v187, %v179
  %v204 = vpack.c.b16 %v188, %v180
  %v205 = vpack.c.b16 %v189, %v181
  %v206 = vpack.c.b16 %v190, %v182
  %v207 = vpack.c.b16 %v191, %v183
  %v208 = vpack.c.b16 %v192, %v192
  %v209 = vpack.c.b16 %v193, %v193
  %v210 = vpack.c.b16 %v194, %v194
  %v211 = vpack.c.b16 %v195, %v195
  %v212 = vpack.c.b16 %v196, %v196
  %v213 = vpack.c.b16 %v197, %v197
  %v214 = vpack.c.b16 %v198, %v198
  %v215 = vpack.c.b16 %v199, %v199
  %v360 = vunpack.c.l.b16 %v36
  %v361 = vunpack.c.l.b16 %v37
  %v362 = vunpack.c.l.b16 %v38
  %v363 = vunpack.c.l.b16 %v39
  %v364 = vunpack.c.l.b16 %v40
  %v365 = vunpack.c.l.b16 %v41
  %v366 = vunpack.c.l.b16 %v42
  %v367 = vunpack.c.l.b16 %v43
  %v368 = vunpack.c.l.b16 %v44
  %v369 = vunpack.c.l.b16 %v45
  %v370 = vunpack.c.l.b16 %v46
  %v371 = vunpack.c.l.b16 %v47
  %v372 = vunpack.c.l.b16 %v48
  %v373 = vunpack.c.l.b16 %v49
  %v374 = vunpack.c.l.b16 %v50
  %v375 = vunpack.c.l.b16 %v51
  %v376 = vunpack.c.l.b16 %v52
  %v377 = vunpack.c.l.b16 %v53
  %v378 = vunpack.c.l.b16 %v54
  %v379 = vunpack.c.l.b16 %v55
  %v380 = vunpack.c.l.b16 %v56
  %v381 = vunpack.c.l.b16 %v57
  %v382 = vunpack.c.l.b16 %v58
  %v383 = vunpack.c.l.b16 %v59
  %v384 = vunpack.c.l.b16 %v60
  %v385 = vunpack.c.l.b16 %v61
  %v386 = vunpack.c.l.b16 %v62
  %v387 = vunpack.c.l.b16 %v63
  %v388 = vunpack.c.l.b16 %v64
  %v389 = vunpack.c.l.b16 %v65
  %v390 = vunpack.c.l.b16 %v66
  %v391 = vunpack.c.l.b16 %v67
  %v392 = vunpack.c.l.b16 %v68
  %v393 = vunpack.c.l.b16 %v69
  %v394 = vunpack.c.l.b16 %v70
  %v395 = vunpack.c.l.b16 %v71
  %v396 = vunpack.c.l.b16 %v72
  %v397 = vunpack.c.l.b16 %v73
  %v398 = vunpack.c.l.b16 %v74
  %v399 = vunpack.c.l.b16 %v75
  %v400 = vunpack.c.l.b16 %v76
  %v401 = vunpack.c.l.b16 %v77
  %v402 = vunpack.c.l.b16 %v78
  %v403 = vunpack.c.l.b16 %v79
  %v404 = vunpack.c.l.b16 %v80
  %v405 = vunpack.c.l.b16 %v81
  %v406 = vunpack.c.l.b16 %v82
  %v407 = vunpack.c.l.b16 %v83
  %v408 = vunpack.c.l.b16 %v84
  %v409 = vunpack.c.l.b16 %v85
  %v410 = vunpack.c.l.b16 %v86
  %v411 = vunpack.c.l.b16 %v87
  %v412 = vunpack.c.l.b16 %v88
  %v413 = vunpack.c.l.b16 %v89
  %v414 = vunpack.c.l.b16 %v90
  %v415 = vunpack.c.l.b16 %v91
  %v416 = vunpack.c.l.b16 %v92
  %v417 = vunpack.c.l.b16 %v93
  %v418 = vunpack.c.l.b16 %v94
  %v419 = vunpack.c.l.b16 %v95
  %v420 = vunpack.c.l.b16 %v96
  %v421 = vunpack.c.l.b16 %v97
  %v422 = vunpack.c.l.b16 %v98
  %v423 = vunpack.c.l.b16 %v99
  %v424 = vunpack.c.l.b16 %v100
  %v425 = vunpack.c.l.b16 %v101
  %v426 = vunpack.c.l.b16 %v102
  %v427 = vunpack.c.l.b16 %v103
  %v428 = vunpack.c.l.b16 %v104
  %v429 = vunpack.c.l.b16 %v105
  %v430 = vunpack.c.l.b16 %v106
  %v431 = vunpack.c.l.b16 %v107
  %v432 = vunpack.c.l.b16 %v108
  %v433 = vunpack.c.l.b16 %v109
  %v434 = vunpack.c.l.b16 %v110
  %v435 = vunpack.c.l.b16 %v111
  %v436 = vunpack.c.l.b16 %v112
  %v437 = vunpack.c.l.b16 %v113
  %v438 = vunpack.c.l.b16 %v114
  %v439 = vunpack.c.l.b16 %v115
  %v440 = vunpack.c.l.b16 %v116
  %v441 = vunpack.c.l.b16 %v117
  %v442 = vunpack.c.l.b16 %v118
  %v443 = vunpack.c.l.b16 %v119
  %v444 = vunpack.c.l.b16 %v120
  %v445 = vunpack.c.l.b16 %v121
  %v446 = vunpack.c.l.b16 %v122
  %v447 = vunpack.c.l.b16 %v123
  %v448 = vunpack.c.l.b16 %v124
  %v449 = vunpack.c.l.b16 %v125
  %v450 = vunpack.c.l.b16 %v126
  %v451 = vunpack.c.l.b16 %v127
  %v452 = vunpack.c.l.b16 %v128
  %v453 = vunpack.c.l.b16 %v129
  %v454 = vunpack.c.l.b16 %v130
  %v455 = vunpack.c.l.b16 %v131
  %v456 = vunpack.c.l.b16 %v132
  %v457 = vunpack.c.l.b16 %v133
  %v458 = vunpack.c.l.b16 %v134
  %v459 = vunpack.c.l.b16 %v135
  %v460 = vunpack.c.l.b16 %v136
  %v461 = vunpack.c.l.b16 %v137
  %v462 = vunpack.c.l.b16 %v138
  %v463 = vunpack.c.l.b16 %v139
  %v464 = vunpack.c.l.b16 %v140
  %v465 = vunpack.c.l.b16 %v141
  %v466 = vunpack.c.l.b16 %v142
  %v467 = vunpack.c.l.b16 %v143
  %v468 = vunpack.c.l.b16 %v144
  %v469 = vunpack.c.l.b16 %v145
  %v470 = vunpack.c.l.b16 %v146
  %v471 = vunpack.c.l.b16 %v147
  %v472 = vunpack.c.l.b16 %v148
  %v473 = vunpack.c.l.b16 %v149
  %v474 = vunpack.c.l.b16 %v150
  %v475 = vunpack.c.l.b16 %v151
  %v476 = vunpack.c.l.b16 %v152
  %v477 = vunpack.c.l.b16 %v153
  %v478 = vunpack.c.l.b16 %v154
  %v479 = vunpack.c.l.b16 %v155
  %v480 = vunpack.c.l.b16 %v156
  %v481 = vunpack.c.l.b16 %v157
  %v482 = vunpack.c.l.b16 %v158
  %v483 = vunpack.c.l.b16 %v159
  %v484 = vunpack.c.l.b16 %v160
  %v485 = vunpack.c.l.b16 %v161
  %v486 = vunpack.c.l.b16 %v162
  %v487 = vunpack.c.l.b16 %v163
  %v488 = vpack.c.b16 %v361, %v360
  %v489 = vpack.c.b16 %v363, %v362
  %v490 = vpack.c.b16 %v365, %v364
  %v491 = vpack.c.b16 %v367, %v366
  %v492 = vpack.c.b16 %v369, %v368
  %v493 = vpack.c.b16 %v371, %v370
  %v494 = vpack.c.b16 %v373, %v372
  %v495 = vpack.c.b16 %v375, %v374
  %v496 = vpack.c.b16 %v377, %v376
  %v497 = vpack.c.b16 %v379, %v378
  %v498 = vpack.c.b16 %v381, %v380
  %v499 = vpack.c.b16 %v383, %v382
  %v500 = vpack.c.b16 %v385, %v384
  %v501 = vpack.c.b16 %v387, %v386
  %v502 = vpack.c.b16 %v389, %v388
  %v503 = vpack.c.b16 %v391, %v390
  %v504 = vpack.c.b16 %v393, %v392
  %v505 = vpack.c.b16 %v395, %v394
  %v506 = vpack.c.b16 %v397, %v396
  %v507 = vpack.c.b16 %v399, %v398
  %v508 = vpack.c.b16 %v401, %v400
  %v509 = vpack.c.b16 %v403, %v402
  %v510 = vpack.c.b16 %v405, %v404
  %v511 = vpack.c.b16 %v407, %v406
  %v512 = vpack.c.b16 %v409, %v408
  %v513 = vpack.c.b16 %v411, %v410
  %v514 = vpack.c.b16 %v413, %v412
  %v515 = vpack.c.b16 %v415, %v414
  %v516 = vpack.c.b16 %v417, %v416
  %v517 = vpack.c.b16 %v419, %v418
  %v518 = vpack.c.b16 %v421, %v420
  %v519 = vpack.c.b16 %v423, %v422
  %v520 = vpack.c.b16 %v425, %v424
  %v521 = vpack.c.b16 %v427, %v426
  %v522 = vpack.c.b16 %v429, %v428
  %v523 = vpack.c.b16 %v431, %v430
  %v524 = vpack.c.b16 %v433, %v432
  %v525 = vpack.c.b16 %v435, %v434
  %v526 = vpack.c.b16 %v437, %v436
  %v527 = vpack.c.b16 %v439, %v438
  %v528 = vpack.c.b16 %v441, %v440
  %v529 = vpack.c.b16 %v443, %v442
  %v530 = vpack.c.b16 %v445, %v444
  %v531 = vpack.c.b16 %v447, %v446
  %v532 = vpack.c.b16 %v449, %v448
  %v533 = vpack.c.b16 %v451, %v450
  %v534 = vpack.c.b16 %v453, %v452
  %v535 = vpack.c.b16 %v455, %v454
  %v536 = vpack.c.b16 %v457, %v456
  %v537 = vpack.c.b16 %v459, %v458
  %v538 = vpack.c.b16 %v461, %v460
  %v539 = vpack.c.b16 %v463, %v462
  %v540 = vpack.c.b16 %v465, %v464
  %v541 = vpack.c.b16 %v467, %v466
  %v542 = vpack.c.b16 %v469, %v468
  %v543 = vpack.c.b16 %v471, %v470
  %v544 = vpack.c.b16 %v473, %v472
  %v545 = vpack.c.b16 %v475, %v474
  %v546 = vpack.c.b16 %v477, %v476
  %v547 = vpack.c.b16 %v479, %v478
  %v548 = vpack.c.b16 %v481, %v480
  %v549 = vpack.c.b16 %v483, %v482
  %v550 = vpack.c.b16 %v485, %v484
  %v551 = vpack.c.b16 %v487, %v486
  %616 = vmatpush.bf16.msra.mxu0 %v495
  %617 = vmatpush.bf16.msra.mxu0 %v494
  %618 = vmatpush.bf16.msra.mxu0 %v493
  %619 = vmatpush.bf16.msra.mxu0 %v492
  %620 = vmatpush.bf16.msra.mxu0 %v491
  %621 = vmatpush.bf16.msra.mxu0 %v490
  %622 = vmatpush.bf16.msra.mxu0 %v489
  %623 = vmatpush.bf16.msra.mxu0 %v488
  %624 = vmatmul.bf16.gmra.mxu0 %v200
  %v625 = vpop.f32.mrf.mxu0
  %v626 = vadd.f32 0.0, %v625
  %v627 = vpop.f32.mrf.mxu0
  %v628 = vadd.f32 0.0, %v627
  %629 = vmatmul.bf16.gmra.mxu0 %v208
  %v630 = vpop.f32.mrf.mxu0
  %v631 = vadd.f32 0.0, %v630
  %v632 = vpop.f32.mrf.mxu0
  %633 = vdwg.mxu0
  %634 = vmatpush.bf16.msra.mxu0 %v503
  %635 = vmatpush.bf16.msra.mxu0 %v502
  %636 = vmatpush.bf16.msra.mxu0 %v501
  %637 = vmatpush.bf16.msra.mxu0 %v500
  %638 = vmatpush.bf16.msra.mxu0 %v499
  %639 = vmatpush.bf16.msra.mxu0 %v498
  %640 = vmatpush.bf16.msra.mxu0 %v497
  %641 = vmatpush.bf16.msra.mxu0 %v496
  %642 = vmatmul.bf16.gmra.mxu0 %v201
  %v643 = vpop.f32.mrf.mxu0
  %v644 = vadd.f32 %v626, %v643
  %v645 = vpop.f32.mrf.mxu0
  %v646 = vadd.f32 %v628, %v645
  %647 = vmatmul.bf16.gmra.mxu0 %v209
  %v648 = vpop.f32.mrf.mxu0
  %v649 = vadd.f32 %v631, %v648
  %v650 = vpop.f32.mrf.mxu0
  %651 = vdwg.mxu0
  %652 = vmatpush.bf16.msra.mxu0 %v511
  %653 = vmatpush.bf16.msra.mxu0 %v510
  %654 = vmatpush.bf16.msra.mxu0 %v509
  %655 = vmatpush.bf16.msra.mxu0 %v508
  %656 = vmatpush.bf16.msra.mxu0 %v507
  %657 = vmatpush.bf16.msra.mxu0 %v506
  %658 = vmatpush.bf16.msra.mxu0 %v505
  %659 = vmatpush.bf16.msra.mxu0 %v504
  %660 = vmatmul.bf16.gmra.mxu0 %v202
  %v661 = vpop.f32.mrf.mxu0
  %v662 = vadd.f32 %v644, %v661
  %v663 = vpop.f32.mrf.mxu0
  %v664 = vadd.f32 %v646, %v663
  %665 = vmatmul.bf16.gmra.mxu0 %v210
  %v666 = vpop.f32.mrf.mxu0
  %v667 = vadd.f32 %v649, %v666
  %v668 = vpop.f32.mrf.mxu0
  %669 = vdwg.mxu0
  %670 = vmatpush.bf16.msra.mxu0 %v519
  %671 = vmatpush.bf16.msra.mxu0 %v518
  %672 = vmatpush.bf16.msra.mxu0 %v517
  %673 = vmatpush.bf16.msra.mxu0 %v516
  %674 = vmatpush.bf16.msra.mxu0 %v515
  %675 = vmatpush.bf16.msra.mxu0 %v514
  %676 = vmatpush.bf16.msra.mxu0 %v513
  %677 = vmatpush.bf16.msra.mxu0 %v512
  %678 = vmatmul.bf16.gmra.mxu0 %v203
  %v679 = vpop.f32.mrf.mxu0
  %v680 = vadd.f32 %v662, %v679
  %v681 = vpop.f32.mrf.mxu0
  %v682 = vadd.f32 %v664, %v681
  %683 = vmatmul.bf16.gmra.mxu0 %v211
  %v684 = vpop.f32.mrf.mxu0
  %v685 = vadd.f32 %v667, %v684
  %v686 = vpop.f32.mrf.mxu0
  %687 = vdwg.mxu0
  %688 = vmatpush.bf16.msra.mxu0 %v527
  %689 = vmatpush.bf16.msra.mxu0 %v526
  %690 = vmatpush.bf16.msra.mxu0 %v525
  %691 = vmatpush.bf16.msra.mxu0 %v524
  %692 = vmatpush.bf16.msra.mxu0 %v523
  %693 = vmatpush.bf16.msra.mxu0 %v522
  %694 = vmatpush.bf16.msra.mxu0 %v521
  %695 = vmatpush.bf16.msra.mxu0 %v520
  %696 = vmatmul.bf16.gmra.mxu0 %v204
  %v697 = vpop.f32.mrf.mxu0
  %v698 = vadd.f32 %v680, %v697
  %v699 = vpop.f32.mrf.mxu0
  %v700 = vadd.f32 %v682, %v699
  %701 = vmatmul.bf16.gmra.mxu0 %v212
  %v702 = vpop.f32.mrf.mxu0
  %v703 = vadd.f32 %v685, %v702
  %v704 = vpop.f32.mrf.mxu0
  %705 = vdwg.mxu0
  %706 = vmatpush.bf16.msra.mxu0 %v535
  %707 = vmatpush.bf16.msra.mxu0 %v534
  %708 = vmatpush.bf16.msra.mxu0 %v533
  %709 = vmatpush.bf16.msra.mxu0 %v532
  %710 = vmatpush.bf16.msra.mxu0 %v531
  %711 = vmatpush.bf16.msra.mxu0 %v530
  %712 = vmatpush.bf16.msra.mxu0 %v529
  %713 = vmatpush.bf16.msra.mxu0 %v528
  %714 = vmatmul.bf16.gmra.mxu0 %v205
  %v715 = vpop.f32.mrf.mxu0
  %v716 = vadd.f32 %v698, %v715
  %v717 = vpop.f32.mrf.mxu0
  %v718 = vadd.f32 %v700, %v717
  %719 = vmatmul.bf16.gmra.mxu0 %v213
  %v720 = vpop.f32.mrf.mxu0
  %v721 = vadd.f32 %v703, %v720
  %v722 = vpop.f32.mrf.mxu0
  %723 = vdwg.mxu0
  %724 = vmatpush.bf16.msra.mxu0 %v543
  %725 = vmatpush.bf16.msra.mxu0 %v542
  %726 = vmatpush.bf16.msra.mxu0 %v541
  %727 = vmatpush.bf16.msra.mxu0 %v540
  %728 = vmatpush.bf16.msra.mxu0 %v539
  %729 = vmatpush.bf16.msra.mxu0 %v538
  %730 = vmatpush.bf16.msra.mxu0 %v537
  %731 = vmatpush.bf16.msra.mxu0 %v536
  %732 = vmatmul.bf16.gmra.mxu0 %v206
  %v733 = vpop.f32.mrf.mxu0
  %v734 = vadd.f32 %v716, %v733
  %v735 = vpop.f32.mrf.mxu0
  %v736 = vadd.f32 %v718, %v735
  %737 = vmatmul.bf16.gmra.mxu0 %v214
  %v738 = vpop.f32.mrf.mxu0
  %v739 = vadd.f32 %v721, %v738
  %v740 = vpop.f32.mrf.mxu0
  %741 = vdwg.mxu0
  %742 = vmatpush.bf16.msra.mxu0 %v551
  %743 = vmatpush.bf16.msra.mxu0 %v550
  %744 = vmatpush.bf16.msra.mxu0 %v549
  %745 = vmatpush.bf16.msra.mxu0 %v548
  %746 = vmatpush.bf16.msra.mxu0 %v547
  %747 = vmatpush.bf16.msra.mxu0 %v546
  %748 = vmatpush.bf16.msra.mxu0 %v545
  %749 = vmatpush.bf16.msra.mxu0 %v544
  %750 = vmatmul.bf16.gmra.mxu0 %v207
  %v751 = vpop.f32.mrf.mxu0
  %v752 = vadd.f32 %v734, %v751
  %v753 = vpop.f32.mrf.mxu0
  %v754 = vadd.f32 %v736, %v753
  %755 = vmatmul.bf16.gmra.mxu0 %v215
  %v756 = vpop.f32.mrf.mxu0
  %v757 = vadd.f32 %v739, %v756
  %v758 = vpop.f32.mrf.mxu0
  %759 = vdwg.mxu0
  %v760 = vadd.f32 %v21, %v752
  %v761 = vadd.f32 %v22, %v754
  %v762 = vadd.f32 %v23, %v757
  %763 = vst [vmem:[#allocation2] sm:$0xff] %v760
  %764 = vst [vmem:[#allocation2 + $0x8] sm:$0xff] %v761
  %765 = vst [vmem:[#allocation2 + $0x10] sm:$0x3] %v762
  // Predicated region
  $region18: #{_lambda_.45} parent=0 // pred_check
    %p766 = pneg %p14
  $region19: #{_lambda_.45} parent=0 // pred_check_branch
    %768 = sbr.rel (%p766) target = $region21
  $region20: #{_lambda_.45} parent=0 // pred_region
    %v769 = vld [vmem:[#allocation2] sm:$0xff]
    %v770 = vld [vmem:[#allocation2 + $0x8] sm:$0xff]
    %v771 = vld [vmem:[#allocation2 + $0x10] sm:$0x3]
    %v772 = vld [vmem:[%s2] sm:$0x1]
    %v774 = vperm.slane %v772, 0
    %v776 = vadd.f32 %v769, %v774
    %v777 = vadd.f32 %v770, %v774
    %v778 = vadd.f32 %v771, %v774
    %779 = vst [vmem:[%s3] sm:$0xff] %v776
    %780 = vst [vmem:[%s3 + $0x8] sm:$0xff] %v777
    %781 = vst [vmem:[%s3 + $0x10] sm:$0x3] %v778
  $region21: #{_lambda_.45} parent=0 // pred_fallthru
    _
  // Predicated region
  $region22: #{_lambda_.45} parent=0 // pred_check
    _
  $region23: #{_lambda_.45} parent=0 // pred_check_branch
    %783 = sbr.rel (0) target = $region25
  $region24: #{_lambda_.45} parent=0 // pred_region
    _
  $region25: #{_lambda_.45} parent=0 // pred_fallthru
    _
  // Predicated region
  $region26: #{_lambda_.45} parent=0 // pred_check
    _
  $region27: #{_lambda_.45} parent=0 // pred_check_branch
    %785 = sbr.rel (0) target = $region29
  $region28: #{_lambda_.45} parent=0 // pred_region
    _
  $region29: #{_lambda_.45} parent=0 // pred_fallthru
    _

// kernel: _lambda_.46
$region0: #{_lambda_.46}
  #allocation0 [shape = 'u32[]', space=smem, size = 0x4, offset = 0x4, fixed_abs, tag = 'smem constant byte address 0x4 - core index']
  #allocation1 [shape = 'u32[72,128]{1,0:T(1,128)}', space=vmem, size = 0x9000, scoped, tag = 'internal scratch']
  %s0 = inlined_call_operand.vmem [shape: f32[18,128], index: 0, kind: input, shape index: {}]
  %s1 = inlined_call_operand.vmem [shape: f32[1,128], index: 1, kind: input, shape index: {}]
  %s2 = inlined_call_operand.vmem [shape: f32[1,128], index: 2, kind: input, shape index: {}]
  %s3 = inlined_call_operand.vmem [shape: f32[18,128], index: 3, kind: output, shape index: {}]
  %s4 = sld [smem:[#allocation0]]
  $region22: #{_lambda_.46} parent=0
    _
  %s6 = ssub.s32 1, %s4
  %s7 = scalar_select 0, %s6, %s4
  // Predicated region
  $region2: #{_lambda_.46} parent=0 // pred_check
    _
  $region3: #{_lambda_.46} parent=0 // pred_check_branch
    %9 = sbr.rel (0) target = $region5
  $region4: #{_lambda_.46} parent=0 // pred_region
    _
  $region5: #{_lambda_.46} parent=0 // pred_fallthru
    _
  // Predicated region
  $region6: #{_lambda_.46} parent=0 // pred_check
    _
  $region7: #{_lambda_.46} parent=0 // pred_check_branch
    %11 = sbr.rel (0) target = $region9
  $region8: #{_lambda_.46} parent=0 // pred_region
    _
  $region9: #{_lambda_.46} parent=0 // pred_fallthru
    _
  // Predicated region
  $region10: #{_lambda_.46} parent=0 // pred_check
    _
  $region11: #{_lambda_.46} parent=0 // pred_check_branch
    %13 = sbr.rel (0) target = $region13
  $region12: #{_lambda_.46} parent=0 // pred_region
    _
  $region13: #{_lambda_.46} parent=0 // pred_fallthru
    _
  %v14 = vld [vmem:[%s0] sm:$0xff]
  %v15 = vld [vmem:[%s0 + $0x8] sm:$0xff]
  %v16 = vld [vmem:[%s0 + $0x10] sm:$0x3]
  %v17 = vld [vmem:[%s1] sm:$0x1]
  %v19 = vperm.slane %v17, 0
  %v21 = vmul.f32 %v14, %v19
  %v22 = vmul.f32 %v15, %v19
  %v23 = vmul.f32 %v16, %v19
  %v24 = vld [vmem:[%s2] sm:$0x1]
  %v26 = vperm.slane %v24, 0
  %v28 = vadd.f32 %v21, %v26
  %v29 = vadd.f32 %v22, %v26
  %v30 = vadd.f32 %v23, %v26
  %vm31 = vcmp.gt.f32.partialorder %v28, 0.0
  %vm32 = vcmp.gt.f32.partialorder %v29, 0.0
  %vm33 = vcmp.gt.f32.partialorder %v30, 0.0
  %v34 = vmul.f32 %v28, 0.2
  %v35 = vmul.f32 %v29, 0.2
  %v36 = vmul.f32 %v30, 0.2
  %v37 = vsel %vm31, %v28, %v34
  %v38 = vsel %vm32, %v29, %v35
  %v39 = vsel %vm33, %v30, %v36
  %40 = vst [vmem:[%s3] sm:$0xff] %v37
  %41 = vst [vmem:[%s3 + $0x8] sm:$0xff] %v38
  %42 = vst [vmem:[%s3 + $0x10] sm:$0x3] %v39
  // Predicated region
  $region14: #{_lambda_.46} parent=0 // pred_check
    _
  $region15: #{_lambda_.46} parent=0 // pred_check_branch
    %44 = sbr.rel (0) target = $region17
  $region16: #{_lambda_.46} parent=0 // pred_region
    _
  $region17: #{_lambda_.46} parent=0 // pred_fallthru
    _
  // Predicated region
  $region18: #{_lambda_.46} parent=0 // pred_check
    _
  $region19: #{_lambda_.46} parent=0 // pred_check_branch
    %46 = sbr.rel (0) target = $region21
  $region20: #{_lambda_.46} parent=0 // pred_region
    _
  $region21: #{_lambda_.46} parent=0 // pred_fallthru
    _

// kernel: _lambda_.47
$region0: #{_lambda_.47}
  #allocation0 [shape = 'u32[]', space=smem, size = 0x4, offset = 0x4, fixed_abs, tag = 'smem constant byte address 0x4 - core index']
  #allocation1 [shape = 'u32[72,128]{1,0:T(1,128)}', space=vmem, size = 0x9000, scoped, tag = 'internal scratch']
  #allocation2 [shape = 'f32[1,1]{1,0:T(1,128)S(1)}', space=vmem, size = 0x200, scoped, tag = 'scoped memory for _lambda_.47']
  %s0 = inlined_call_operand.vmem [shape: bf16[32,2048], index: 0, kind: input, shape index: {}]
  %s1 = inlined_call_operand.vmem [shape: bf16[1,2048], index: 1, kind: input, shape index: {}]
  %s2 = inlined_call_operand.<no memory space> [shape: f32[1,1], index: 2, kind: input, shape index: {}]
  %s3 = inlined_call_operand.vmem [shape: f32[32,1], index: 3, kind: output, shape index: {}]
  %s4 = sld [smem:[#allocation0]]
  $region22: #{_lambda_.47} parent=0
    _
  %s6 = ssub.s32 1, %s4
  %s7 = scalar_select 0, %s6, %s4
  %v8 = vstv %s2
  %9 = vst [vmem:[#allocation2] sm:$0x1] %v8
  // Predicated region
  $region2: #{_lambda_.47} parent=0 // pred_check
    _
  $region3: #{_lambda_.47} parent=0 // pred_check_branch
    %11 = sbr.rel (0) target = $region5
  $region4: #{_lambda_.47} parent=0 // pred_region
    _
  $region5: #{_lambda_.47} parent=0 // pred_fallthru
    _
  // Predicated region
  $region6: #{_lambda_.47} parent=0 // pred_check
    _
  $region7: #{_lambda_.47} parent=0 // pred_check_branch
    %13 = sbr.rel (0) target = $region9
  $region8: #{_lambda_.47} parent=0 // pred_region
    _
  $region9: #{_lambda_.47} parent=0 // pred_fallthru
    _
  // Predicated region
  $region10: #{_lambda_.47} parent=0 // pred_check
    _
  $region11: #{_lambda_.47} parent=0 // pred_check_branch
    %15 = sbr.rel (0) target = $region13
  $region12: #{_lambda_.47} parent=0 // pred_region
    _
  $region13: #{_lambda_.47} parent=0 // pred_fallthru
    _
  %v16 = vld [vmem:[%s0] sm:$0xff]
  %v17 = vld [vmem:[%s0 + $0x8] sm:$0xff]
  %v18 = vld [vmem:[%s0 + $0x10] sm:$0xff]
  %v19 = vld [vmem:[%s0 + $0x18] sm:$0xff]
  %v20 = vld [vmem:[%s0 + $0x20] sm:$0xff]
  %v21 = vld [vmem:[%s0 + $0x28] sm:$0xff]
  %v22 = vld [vmem:[%s0 + $0x30] sm:$0xff]
  %v23 = vld [vmem:[%s0 + $0x38] sm:$0xff]
  %v24 = vld [vmem:[%s0 + $0x40] sm:$0xff]
  %v25 = vld [vmem:[%s0 + $0x48] sm:$0xff]
  %v26 = vld [vmem:[%s0 + $0x50] sm:$0xff]
  %v27 = vld [vmem:[%s0 + $0x58] sm:$0xff]
  %v28 = vld [vmem:[%s0 + $0x60] sm:$0xff]
  %v29 = vld [vmem:[%s0 + $0x68] sm:$0xff]
  %v30 = vld [vmem:[%s0 + $0x70] sm:$0xff]
  %v31 = vld [vmem:[%s0 + $0x78] sm:$0xff]
  %v32 = vld [vmem:[%s0 + $0x80] sm:$0xff]
  %v33 = vld [vmem:[%s0 + $0x88] sm:$0xff]
  %v34 = vld [vmem:[%s0 + $0x90] sm:$0xff]
  %v35 = vld [vmem:[%s0 + $0x98] sm:$0xff]
  %v36 = vld [vmem:[%s0 + $0xa0] sm:$0xff]
  %v37 = vld [vmem:[%s0 + $0xa8] sm:$0xff]
  %v38 = vld [vmem:[%s0 + $0xb0] sm:$0xff]
  %v39 = vld [vmem:[%s0 + $0xb8] sm:$0xff]
  %v40 = vld [vmem:[%s0 + $0xc0] sm:$0xff]
  %v41 = vld [vmem:[%s0 + $0xc8] sm:$0xff]
  %v42 = vld [vmem:[%s0 + $0xd0] sm:$0xff]
  %v43 = vld [vmem:[%s0 + $0xd8] sm:$0xff]
  %v44 = vld [vmem:[%s0 + $0xe0] sm:$0xff]
  %v45 = vld [vmem:[%s0 + $0xe8] sm:$0xff]
  %v46 = vld [vmem:[%s0 + $0xf0] sm:$0xff]
  %v47 = vld [vmem:[%s0 + $0xf8] sm:$0xff]
  %v48 = vunpack.c.l.bf16 %v16
  %v49 = vunpack.c.h.bf16 %v16
  %v50 = vunpack.c.l.bf16 %v17
  %v51 = vunpack.c.h.bf16 %v17
  %v52 = vunpack.c.l.bf16 %v18
  %v53 = vunpack.c.h.bf16 %v18
  %v54 = vunpack.c.l.bf16 %v19
  %v55 = vunpack.c.h.bf16 %v19
  %v56 = vunpack.c.l.bf16 %v20
  %v57 = vunpack.c.h.bf16 %v20
  %v58 = vunpack.c.l.bf16 %v21
  %v59 = vunpack.c.h.bf16 %v21
  %v60 = vunpack.c.l.bf16 %v22
  %v61 = vunpack.c.h.bf16 %v22
  %v62 = vunpack.c.l.bf16 %v23
  %v63 = vunpack.c.h.bf16 %v23
  %v64 = vunpack.c.l.bf16 %v24
  %v65 = vunpack.c.h.bf16 %v24
  %v66 = vunpack.c.l.bf16 %v25
  %v67 = vunpack.c.h.bf16 %v25
  %v68 = vunpack.c.l.bf16 %v26
  %v69 = vunpack.c.h.bf16 %v26
  %v70 = vunpack.c.l.bf16 %v27
  %v71 = vunpack.c.h.bf16 %v27
  %v72 = vunpack.c.l.bf16 %v28
  %v73 = vunpack.c.h.bf16 %v28
  %v74 = vunpack.c.l.bf16 %v29
  %v75 = vunpack.c.h.bf16 %v29
  %v76 = vunpack.c.l.bf16 %v30
  %v77 = vunpack.c.h.bf16 %v30
  %v78 = vunpack.c.l.bf16 %v31
  %v79 = vunpack.c.h.bf16 %v31
  %v80 = vunpack.c.l.bf16 %v32
  %v81 = vunpack.c.h.bf16 %v32
  %v82 = vunpack.c.l.bf16 %v33
  %v83 = vunpack.c.h.bf16 %v33
  %v84 = vunpack.c.l.bf16 %v34
  %v85 = vunpack.c.h.bf16 %v34
  %v86 = vunpack.c.l.bf16 %v35
  %v87 = vunpack.c.h.bf16 %v35
  %v88 = vunpack.c.l.bf16 %v36
  %v89 = vunpack.c.h.bf16 %v36
  %v90 = vunpack.c.l.bf16 %v37
  %v91 = vunpack.c.h.bf16 %v37
  %v92 = vunpack.c.l.bf16 %v38
  %v93 = vunpack.c.h.bf16 %v38
  %v94 = vunpack.c.l.bf16 %v39
  %v95 = vunpack.c.h.bf16 %v39
  %v96 = vunpack.c.l.bf16 %v40
  %v97 = vunpack.c.h.bf16 %v40
  %v98 = vunpack.c.l.bf16 %v41
  %v99 = vunpack.c.h.bf16 %v41
  %v100 = vunpack.c.l.bf16 %v42
  %v101 = vunpack.c.h.bf16 %v42
  %v102 = vunpack.c.l.bf16 %v43
  %v103 = vunpack.c.h.bf16 %v43
  %v104 = vunpack.c.l.bf16 %v44
  %v105 = vunpack.c.h.bf16 %v44
  %v106 = vunpack.c.l.bf16 %v45
  %v107 = vunpack.c.h.bf16 %v45
  %v108 = vunpack.c.l.bf16 %v46
  %v109 = vunpack.c.h.bf16 %v46
  %v110 = vunpack.c.l.bf16 %v47
  %v111 = vunpack.c.h.bf16 %v47
  %v112 = vld [vmem:[%s1] sm:$0xff]
  %v113 = vld [vmem:[%s1 + $0x8] sm:$0xff]
  %v114 = vunpack.c.l.bf16 %v112
  %v115 = vunpack.c.h.bf16 %v112
  %v116 = vunpack.c.l.bf16 %v113
  %v117 = vunpack.c.h.bf16 %v113
  %v122 = vperm.slane %v114, 0
  %v123 = vperm.slane %v114, 2
  %v124 = vperm.slane %v114, 4
  %v125 = vperm.slane %v114, 6
  %v126 = vperm.slane %v115, 0
  %v127 = vperm.slane %v115, 2
  %v128 = vperm.slane %v115, 4
  %v129 = vperm.slane %v115, 6
  %v130 = vperm.slane %v116, 0
  %v131 = vperm.slane %v116, 2
  %v132 = vperm.slane %v116, 4
  %v133 = vperm.slane %v116, 6
  %v134 = vperm.slane %v117, 0
  %v135 = vperm.slane %v117, 2
  %v136 = vperm.slane %v117, 4
  %v137 = vperm.slane %v117, 6
  %v154 = vperm.slane %v122, 0
  %v155 = vperm.slane %v123, 0
  %v156 = vperm.slane %v124, 0
  %v157 = vperm.slane %v125, 0
  %v158 = vperm.slane %v126, 0
  %v159 = vperm.slane %v127, 0
  %v160 = vperm.slane %v128, 0
  %v161 = vperm.slane %v129, 0
  %v162 = vperm.slane %v130, 0
  %v163 = vperm.slane %v131, 0
  %v164 = vperm.slane %v132, 0
  %v165 = vperm.slane %v133, 0
  %v166 = vperm.slane %v134, 0
  %v167 = vperm.slane %v135, 0
  %v168 = vperm.slane %v136, 0
  %v169 = vperm.slane %v137, 0
  %v170 = vmul.f32 %v48, %v154
  %v171 = vmul.f32 %v49, %v155
  %v172 = vmul.f32 %v50, %v156
  %v173 = vmul.f32 %v51, %v157
  %v174 = vmul.f32 %v52, %v158
  %v175 = vmul.f32 %v53, %v159
  %v176 = vmul.f32 %v54, %v160
  %v177 = vmul.f32 %v55, %v161
  %v178 = vmul.f32 %v56, %v162
  %v179 = vmul.f32 %v57, %v163
  %v180 = vmul.f32 %v58, %v164
  %v181 = vmul.f32 %v59, %v165
  %v182 = vmul.f32 %v60, %v166
  %v183 = vmul.f32 %v61, %v167
  %v184 = vmul.f32 %v62, %v168
  %v185 = vmul.f32 %v63, %v169
  %v186 = vmul.f32 %v64, %v154
  %v187 = vmul.f32 %v65, %v155
  %v188 = vmul.f32 %v66, %v156
  %v189 = vmul.f32 %v67, %v157
  %v190 = vmul.f32 %v68, %v158
  %v191 = vmul.f32 %v69, %v159
  %v192 = vmul.f32 %v70, %v160
  %v193 = vmul.f32 %v71, %v161
  %v194 = vmul.f32 %v72, %v162
  %v195 = vmul.f32 %v73, %v163
  %v196 = vmul.f32 %v74, %v164
  %v197 = vmul.f32 %v75, %v165
  %v198 = vmul.f32 %v76, %v166
  %v199 = vmul.f32 %v77, %v167
  %v200 = vmul.f32 %v78, %v168
  %v201 = vmul.f32 %v79, %v169
  %v202 = vmul.f32 %v80, %v154
  %v203 = vmul.f32 %v81, %v155
  %v204 = vmul.f32 %v82, %v156
  %v205 = vmul.f32 %v83, %v157
  %v206 = vmul.f32 %v84, %v158
  %v207 = vmul.f32 %v85, %v159
  %v208 = vmul.f32 %v86, %v160
  %v209 = vmul.f32 %v87, %v161
  %v210 = vmul.f32 %v88, %v162
  %v211 = vmul.f32 %v89, %v163
  %v212 = vmul.f32 %v90, %v164
  %v213 = vmul.f32 %v91, %v165
  %v214 = vmul.f32 %v92, %v166
  %v215 = vmul.f32 %v93, %v167
  %v216 = vmul.f32 %v94, %v168
  %v217 = vmul.f32 %v95, %v169
  %v218 = vmul.f32 %v96, %v154
  %v219 = vmul.f32 %v97, %v155
  %v220 = vmul.f32 %v98, %v156
  %v221 = vmul.f32 %v99, %v157
  %v222 = vmul.f32 %v100, %v158
  %v223 = vmul.f32 %v101, %v159
  %v224 = vmul.f32 %v102, %v160
  %v225 = vmul.f32 %v103, %v161
  %v226 = vmul.f32 %v104, %v162
  %v227 = vmul.f32 %v105, %v163
  %v228 = vmul.f32 %v106, %v164
  %v229 = vmul.f32 %v107, %v165
  %v230 = vmul.f32 %v108, %v166
  %v231 = vmul.f32 %v109, %v167
  %v232 = vmul.f32 %v110, %v168
  %v233 = vmul.f32 %v111, %v169
  %v234 = vadd.f32 %v170, %v171
  %v235 = vadd.f32 %v234, %v172
  %v236 = vadd.f32 %v235, %v173
  %v237 = vadd.f32 %v236, %v174
  %v238 = vadd.f32 %v237, %v175
  %v239 = vadd.f32 %v238, %v176
  %v240 = vadd.f32 %v239, %v177
  %v241 = vadd.f32 %v240, %v178
  %v242 = vadd.f32 %v241, %v179
  %v243 = vadd.f32 %v242, %v180
  %v244 = vadd.f32 %v243, %v181
  %v245 = vadd.f32 %v244, %v182
  %v246 = vadd.f32 %v245, %v183
  %v247 = vadd.f32 %v246, %v184
  %v248 = vadd.f32 %v247, %v185
  %249 = vadd.xlane.f32.xlu0 %v248
  %v250 = vpop.xlane.xlu0 %249
  %v251 = vadd.f32 %v186, %v187
  %v252 = vadd.f32 %v251, %v188
  %v253 = vadd.f32 %v252, %v189
  %v254 = vadd.f32 %v253, %v190
  %v255 = vadd.f32 %v254, %v191
  %v256 = vadd.f32 %v255, %v192
  %v257 = vadd.f32 %v256, %v193
  %v258 = vadd.f32 %v257, %v194
  %v259 = vadd.f32 %v258, %v195
  %v260 = vadd.f32 %v259, %v196
  %v261 = vadd.f32 %v260, %v197
  %v262 = vadd.f32 %v261, %v198
  %v263 = vadd.f32 %v262, %v199
  %v264 = vadd.f32 %v263, %v200
  %v265 = vadd.f32 %v264, %v201
  %266 = vadd.xlane.f32.xlu0 %v265
  %v267 = vpop.xlane.xlu0 %266
  %v268 = vadd.f32 %v202, %v203
  %v269 = vadd.f32 %v268, %v204
  %v270 = vadd.f32 %v269, %v205
  %v271 = vadd.f32 %v270, %v206
  %v272 = vadd.f32 %v271, %v207
  %v273 = vadd.f32 %v272, %v208
  %v274 = vadd.f32 %v273, %v209
  %v275 = vadd.f32 %v274, %v210
  %v276 = vadd.f32 %v275, %v211
  %v277 = vadd.f32 %v276, %v212
  %v278 = vadd.f32 %v277, %v213
  %v279 = vadd.f32 %v278, %v214
  %v280 = vadd.f32 %v279, %v215
  %v281 = vadd.f32 %v280, %v216
  %v282 = vadd.f32 %v281, %v217
  %283 = vadd.xlane.f32.xlu0 %v282
  %v284 = vpop.xlane.xlu0 %283
  %v285 = vadd.f32 %v218, %v219
  %v286 = vadd.f32 %v285, %v220
  %v287 = vadd.f32 %v286, %v221
  %v288 = vadd.f32 %v287, %v222
  %v289 = vadd.f32 %v288, %v223
  %v290 = vadd.f32 %v289, %v224
  %v291 = vadd.f32 %v290, %v225
  %v292 = vadd.f32 %v291, %v226
  %v293 = vadd.f32 %v292, %v227
  %v294 = vadd.f32 %v293, %v228
  %v295 = vadd.f32 %v294, %v229
  %v296 = vadd.f32 %v295, %v230
  %v297 = vadd.f32 %v296, %v231
  %v298 = vadd.f32 %v297, %v232
  %v299 = vadd.f32 %v298, %v233
  %300 = vadd.xlane.f32.xlu0 %v299
  %v301 = vpop.xlane.xlu0 %300
  %v302 = vld [vmem:[#allocation2] sm:$0x1]
  %v304 = vperm.slane %v302, 0
  %v306 = vadd.f32 %v250, %v304
  %v307 = vadd.f32 %v267, %v304
  %v308 = vadd.f32 %v284, %v304
  %v309 = vadd.f32 %v301, %v304
  %vm310 = vcmask 7168
  %311 = vst.msk [vmem:[%s3] sm:$0xff] %vm310, %v306
  %312 = vst.msk [vmem:[%s3 + $0x8] sm:$0xff] %vm310, %v307
  %313 = vst.msk [vmem:[%s3 + $0x10] sm:$0xff] %vm310, %v308
  %314 = vst.msk [vmem:[%s3 + $0x18] sm:$0xff] %vm310, %v309
  // Predicated region
  $region14: #{_lambda_.47} parent=0 // pred_check
    _
  $region15: #{_lambda_.47} parent=0 // pred_check_branch
    %316 = sbr.rel (0) target = $region17
  $region16: #{_lambda_.47} parent=0 // pred_region
    _
  $region17: #{_lambda_.47} parent=0 // pred_fallthru
    _
  // Predicated region
  $region18: #{_lambda_.47} parent=0 // pred_check
    _
  $region19: #{_lambda_.47} parent=0 // pred_check_branch
    %318 = sbr.rel (0) target = $region21
  $region20: #{_lambda_.47} parent=0 // pred_region
    _
  $region21: #{_lambda_.47} parent=0 // pred_fallthru
    _

// kernel: _lambda_.32
$region0: #{_lambda_.32}
  #allocation0 [shape = 'u32[]', space=smem, size = 0x4, offset = 0x4, fixed_abs, tag = 'smem constant byte address 0x4 - core index']
  #allocation1 [shape = 'u32[72,128]{1,0:T(1,128)}', space=vmem, size = 0x9000, scoped, tag = 'internal scratch']
  #allocation2 [shape = 'f32[50,16]{1,0:T(8,128)}', space=vmem, size = 0x7000, scoped, tag = 'scratch operand']
  %s0 = inlined_call_operand.vmem [shape: bf16[50,64], index: 0, kind: input, shape index: {}]
  %s1 = inlined_call_operand.vmem [shape: bf16[64,16], index: 1, kind: input, shape index: {}]
  %s2 = inlined_call_operand.vmem [shape: f32[1,16], index: 2, kind: input, shape index: {}]
  %s3 = inlined_call_operand.vmem [shape: f32[50,16], index: 3, kind: output, shape index: {}]
  %s4 = sld [smem:[#allocation0]]
  $region30: #{_lambda_.32} parent=0
    _
  %s6 = ssub.s32 1, %s4
  %s7 = scalar_select 0, %s6, %s4
  // Predicated region
  $region2: #{_lambda_.32} parent=0 // pred_check
    _
  $region3: #{_lambda_.32} parent=0 // pred_check_branch
    %9 = sbr.rel (0) target = $region5
  $region4: #{_lambda_.32} parent=0 // pred_region
    _
  $region5: #{_lambda_.32} parent=0 // pred_fallthru
    _
  // Predicated region
  $region6: #{_lambda_.32} parent=0 // pred_check
    _
  $region7: #{_lambda_.32} parent=0 // pred_check_branch
    %11 = sbr.rel (0) target = $region9
  $region8: #{_lambda_.32} parent=0 // pred_region
    _
  $region9: #{_lambda_.32} parent=0 // pred_fallthru
    _
  // Predicated region
  $region10: #{_lambda_.32} parent=0 // pred_check
    _
  $region11: #{_lambda_.32} parent=0 // pred_check_branch
    %13 = sbr.rel (0) target = $region13
  $region12: #{_lambda_.32} parent=0 // pred_region
    _
  $region13: #{_lambda_.32} parent=0 // pred_fallthru
    _
  %p15 = scmp.eq.s32.totalorder 0, 0
  // Predicated region
  $region14: #{_lambda_.32} parent=0 // pred_check
    %p16 = pneg %p15
  $region15: #{_lambda_.32} parent=0 // pred_check_branch
    %18 = sbr.rel (%p16) target = $region17
  $region16: #{_lambda_.32} parent=0 // pred_region
    %vm19 = vcmask 130048
    %20 = vst.msk [vmem:[#allocation2] sm:$0xff] %vm19, 0.0
    %21 = vst.msk [vmem:[#allocation2 + $0x8] sm:$0xff] %vm19, 0.0
    %22 = vst.msk [vmem:[#allocation2 + $0x10] sm:$0xff] %vm19, 0.0
    %23 = vst.msk [vmem:[#allocation2 + $0x18] sm:$0xff] %vm19, 0.0
    %24 = vst.msk [vmem:[#allocation2 + $0x20] sm:$0xff] %vm19, 0.0
    %25 = vst.msk [vmem:[#allocation2 + $0x28] sm:$0xff] %vm19, 0.0
    %vm26 = vcmask 123904
    %27 = vst.msk [vmem:[#allocation2 + $0x30] sm:$0x3] %vm26, 0.0
  $region17: #{_lambda_.32} parent=0 // pred_fallthru
    _
  %v28 = vld [vmem:[#allocation2] sm:$0xff]
  %v29 = vld [vmem:[#allocation2 + $0x8] sm:$0xff]
  %v30 = vld [vmem:[#allocation2 + $0x10] sm:$0xff]
  %v31 = vld [vmem:[#allocation2 + $0x18] sm:$0xff]
  %v32 = vld [vmem:[#allocation2 + $0x20] sm:$0xff]
  %v33 = vld [vmem:[#allocation2 + $0x28] sm:$0xff]
  %v34 = vld [vmem:[#allocation2 + $0x30] sm:$0x3]
  %v35 = vld [vmem:[%s0] sm:$0xf]
  %v36 = vld [vmem:[%s0 + $0x4] sm:$0xf]
  %v37 = vld [vmem:[%s0 + $0x8] sm:$0xf]
  %v38 = vld [vmem:[%s0 + $0xc] sm:$0xf]
  %v39 = vld [vmem:[%s0 + $0x10] sm:$0xf]
  %v40 = vld [vmem:[%s0 + $0x14] sm:$0xf]
  %v41 = vld [vmem:[%s0 + $0x18] sm:$0x1]
  %v42 = vld [vmem:[%s1] sm:$0xf]
  %v43 = vld [vmem:[%s1 + $0x4] sm:$0xf]
  %v44 = vld [vmem:[%s1 + $0x8] sm:$0xf]
  %v45 = vld [vmem:[%s1 + $0xc] sm:$0xf]
  %v46 = vld [vmem:[%s1 + $0x10] sm:$0xf]
  %v47 = vld [vmem:[%s1 + $0x14] sm:$0xf]
  %v48 = vld [vmem:[%s1 + $0x18] sm:$0xf]
  %v49 = vld [vmem:[%s1 + $0x1c] sm:$0xf]
  %v57 = vunpack.c.l.b16 %v35
  %v58 = vunpack.c.l.b16 %v36
  %v59 = vunpack.c.l.b16 %v37
  %v60 = vunpack.c.l.b16 %v38
  %v61 = vunpack.c.l.b16 %v39
  %v62 = vunpack.c.l.b16 %v40
  %v63 = vunpack.c.l.b16 %v41
  %v64 = vpack.c.b16 %v58, %v57
  %v65 = vpack.c.b16 %v60, %v59
  %v66 = vpack.c.b16 %v62, %v61
  %v67 = vpack.c.b16 %v63, %v63
  %v76 = vunpack.c.l.b16 %v42
  %v77 = vunpack.c.l.b16 %v43
  %v78 = vunpack.c.l.b16 %v44
  %v79 = vunpack.c.l.b16 %v45
  %v80 = vunpack.c.l.b16 %v46
  %v81 = vunpack.c.l.b16 %v47
  %v82 = vunpack.c.l.b16 %v48
  %v83 = vunpack.c.l.b16 %v49
  %v84 = vpack.c.b16 %v77, %v76
  %v85 = vpack.c.b16 %v79, %v78
  %v86 = vpack.c.b16 %v81, %v80
  %v87 = vpack.c.b16 %v83, %v82
  %vm92 = vcmask 523264
  %v94 = vsel %vm92, %v64, 0
  %v97 = vsel %vm92, %v65, 0
  %v100 = vsel %vm92, %v66, 0
  %v103 = vsel %vm92, %v67, 0
  %105 = vmatpush.bf16.msra.mxu0 0
  %106 = vmatpush.bf16.msra.mxu0 0
  %107 = vmatpush.bf16.msra.mxu0 0
  %108 = vmatpush.bf16.msra.mxu0 0
  %109 = vmatpush.bf16.msra.mxu0 %v87
  %110 = vmatpush.bf16.msra.mxu0 %v86
  %111 = vmatpush.bf16.msra.mxu0 %v85
  %112 = vmatpush.bf16.msra.mxu0 %v84
  %113 = vmatmul.bf16.gmra.mxu0 %v94
  %v114 = vpop.f32.mrf.mxu0
  %v115 = vadd.f32 0.0, %v114
  %v116 = vpop.f32.mrf.mxu0
  %v117 = vadd.f32 0.0, %v116
  %118 = vmatmul.bf16.gmra.mxu0 %v97
  %v119 = vpop.f32.mrf.mxu0
  %v120 = vadd.f32 0.0, %v119
  %v121 = vpop.f32.mrf.mxu0
  %v122 = vadd.f32 0.0, %v121
  %123 = vmatmul.bf16.gmra.mxu0 %v100
  %v124 = vpop.f32.mrf.mxu0
  %v125 = vadd.f32 0.0, %v124
  %v126 = vpop.f32.mrf.mxu0
  %v127 = vadd.f32 0.0, %v126
  %128 = vmatmul.bf16.gmra.mxu0 %v103
  %v129 = vpop.f32.mrf.mxu0
  %v130 = vadd.f32 0.0, %v129
  %v131 = vpop.f32.mrf.mxu0
  %132 = vdwg.mxu0
  %v133 = vadd.f32 %v28, %v115
  %v134 = vadd.f32 %v29, %v117
  %v135 = vadd.f32 %v30, %v120
  %v136 = vadd.f32 %v31, %v122
  %v137 = vadd.f32 %v32, %v125
  %v138 = vadd.f32 %v33, %v127
  %v139 = vadd.f32 %v34, %v130
  %vm140 = vcmask 130048
  %141 = vst.msk [vmem:[#allocation2] sm:$0xff] %vm140, %v133
  %142 = vst.msk [vmem:[#allocation2 + $0x8] sm:$0xff] %vm140, %v134
  %143 = vst.msk [vmem:[#allocation2 + $0x10] sm:$0xff] %vm140, %v135
  %144 = vst.msk [vmem:[#allocation2 + $0x18] sm:$0xff] %vm140, %v136
  %145 = vst.msk [vmem:[#allocation2 + $0x20] sm:$0xff] %vm140, %v137
  %146 = vst.msk [vmem:[#allocation2 + $0x28] sm:$0xff] %vm140, %v138
  %vm147 = vcmask 123904
  %148 = vst.msk [vmem:[#allocation2 + $0x30] sm:$0x3] %vm147, %v139
  // Predicated region
  $region18: #{_lambda_.32} parent=0 // pred_check
    %p149 = pneg %p15
  $region19: #{_lambda_.32} parent=0 // pred_check_branch
    %151 = sbr.rel (%p149) target = $region21
  $region20: #{_lambda_.32} parent=0 // pred_region
    %v152 = vld [vmem:[#allocation2] sm:$0xff]
    %v153 = vld [vmem:[#allocation2 + $0x8] sm:$0xff]
    %v154 = vld [vmem:[#allocation2 + $0x10] sm:$0xff]
    %v155 = vld [vmem:[#allocation2 + $0x18] sm:$0xff]
    %v156 = vld [vmem:[#allocation2 + $0x20] sm:$0xff]
    %v157 = vld [vmem:[#allocation2 + $0x28] sm:$0xff]
    %v158 = vld [vmem:[#allocation2 + $0x30] sm:$0x3]
    %v159 = vld [vmem:[%s2] sm:$0x1]
    %v161 = vperm.slane %v159, 0
    %v163 = vadd.f32 %v152, %v161
    %v164 = vadd.f32 %v153, %v161
    %v165 = vadd.f32 %v154, %v161
    %v166 = vadd.f32 %v155, %v161
    %v167 = vadd.f32 %v156, %v161
    %v168 = vadd.f32 %v157, %v161
    %v169 = vadd.f32 %v158, %v161
    %vm170 = vcmp.gt.f32.partialorder %v163, 0.0
    %vm171 = vcmp.gt.f32.partialorder %v164, 0.0
    %vm172 = vcmp.gt.f32.partialorder %v165, 0.0
    %vm173 = vcmp.gt.f32.partialorder %v166, 0.0
    %vm174 = vcmp.gt.f32.partialorder %v167, 0.0
    %vm175 = vcmp.gt.f32.partialorder %v168, 0.0
    %vm176 = vcmp.gt.f32.partialorder %v169, 0.0
    %v177 = vmul.f32 %v163, 0.2
    %v178 = vmul.f32 %v164, 0.2
    %v179 = vmul.f32 %v165, 0.2
    %v180 = vmul.f32 %v166, 0.2
    %v181 = vmul.f32 %v167, 0.2
    %v182 = vmul.f32 %v168, 0.2
    %v183 = vmul.f32 %v169, 0.2
    %v184 = vsel %vm170, %v163, %v177
    %v185 = vsel %vm171, %v164, %v178
    %v186 = vsel %vm172, %v165, %v179
    %v187 = vsel %vm173, %v166, %v180
    %v188 = vsel %vm174, %v167, %v181
    %v189 = vsel %vm175, %v168, %v182
    %v190 = vsel %vm176, %v169, %v183
    %191 = vst.msk [vmem:[%s3] sm:$0xff] %vm140, %v184
    %192 = vst.msk [vmem:[%s3 + $0x8] sm:$0xff] %vm140, %v185
    %193 = vst.msk [vmem:[%s3 + $0x10] sm:$0xff] %vm140, %v186
    %194 = vst.msk [vmem:[%s3 + $0x18] sm:$0xff] %vm140, %v187
    %195 = vst.msk [vmem:[%s3 + $0x20] sm:$0xff] %vm140, %v188
    %196 = vst.msk [vmem:[%s3 + $0x28] sm:$0xff] %vm140, %v189
    %197 = vst.msk [vmem:[%s3 + $0x30] sm:$0x3] %vm147, %v190
  $region21: #{_lambda_.32} parent=0 // pred_fallthru
    _
  // Predicated region
  $region22: #{_lambda_.32} parent=0 // pred_check
    _
  $region23: #{_lambda_.32} parent=0 // pred_check_branch
    %199 = sbr.rel (0) target = $region25
  $region24: #{_lambda_.32} parent=0 // pred_region
    _
  $region25: #{_lambda_.32} parent=0 // pred_fallthru
    _
  // Predicated region
  $region26: #{_lambda_.32} parent=0 // pred_check
    _
  $region27: #{_lambda_.32} parent=0 // pred_check_branch
    %201 = sbr.rel (0) target = $region29
  $region28: #{_lambda_.32} parent=0 // pred_region
    _
  $region29: #{_lambda_.32} parent=0 // pred_fallthru
    _

// kernel: _lambda_.34
$region0: #{_lambda_.34}
  #allocation0 [shape = 'u32[]', space=smem, size = 0x4, offset = 0x4, fixed_abs, tag = 'smem constant byte address 0x4 - core index']
  #allocation1 [shape = 'u32[72,128]{1,0:T(1,128)}', space=vmem, size = 0x9000, scoped, tag = 'internal scratch']
  %s0 = inlined_call_operand.vmem [shape: f32[18,32], index: 0, kind: input, shape index: {}]
  %s1 = inlined_call_operand.vmem [shape: f32[1,32], index: 1, kind: input, shape index: {}]
  %s2 = inlined_call_operand.vmem [shape: f32[1,32], index: 2, kind: input, shape index: {}]
  %s3 = inlined_call_operand.vmem [shape: f32[18,32], index: 3, kind: output, shape index: {}]
  %s4 = sld [smem:[#allocation0]]
  $region22: #{_lambda_.34} parent=0
    _
  %s6 = ssub.s32 1, %s4
  %s7 = scalar_select 0, %s6, %s4
  // Predicated region
  $region2: #{_lambda_.34} parent=0 // pred_check
    _
  $region3: #{_lambda_.34} parent=0 // pred_check_branch
    %9 = sbr.rel (0) target = $region5
  $region4: #{_lambda_.34} parent=0 // pred_region
    _
  $region5: #{_lambda_.34} parent=0 // pred_fallthru
    _
  // Predicated region
  $region6: #{_lambda_.34} parent=0 // pred_check
    _
  $region7: #{_lambda_.34} parent=0 // pred_check_branch
    %11 = sbr.rel (0) target = $region9
  $region8: #{_lambda_.34} parent=0 // pred_region
    _
  $region9: #{_lambda_.34} parent=0 // pred_fallthru
    _
  // Predicated region
  $region10: #{_lambda_.34} parent=0 // pred_check
    _
  $region11: #{_lambda_.34} parent=0 // pred_check_branch
    %13 = sbr.rel (0) target = $region13
  $region12: #{_lambda_.34} parent=0 // pred_region
    _
  $region13: #{_lambda_.34} parent=0 // pred_fallthru
    _
  %v14 = vld [vmem:[%s0] sm:$0xff]
  %v15 = vld [vmem:[%s0 + $0x8] sm:$0xff]
  %v16 = vld [vmem:[%s0 + $0x10] sm:$0x3]
  %v17 = vld [vmem:[%s1] sm:$0x1]
  %v19 = vperm.slane %v17, 0
  %v21 = vmul.f32 %v14, %v19
  %v22 = vmul.f32 %v15, %v19
  %v23 = vmul.f32 %v16, %v19
  %v24 = vld [vmem:[%s2] sm:$0x1]
  %v26 = vperm.slane %v24, 0
  %v28 = vadd.f32 %v21, %v26
  %v29 = vadd.f32 %v22, %v26
  %v30 = vadd.f32 %v23, %v26
  %vm31 = vcmp.gt.f32.partialorder %v28, 0.0
  %vm32 = vcmp.gt.f32.partialorder %v29, 0.0
  %vm33 = vcmp.gt.f32.partialorder %v30, 0.0
  %v34 = vmul.f32 %v28, 0.2
  %v35 = vmul.f32 %v29, 0.2
  %v36 = vmul.f32 %v30, 0.2
  %v37 = vsel %vm31, %v28, %v34
  %v38 = vsel %vm32, %v29, %v35
  %v39 = vsel %vm33, %v30, %v36
  %vm40 = vcmask 261120
  %41 = vst.msk [vmem:[%s3] sm:$0xff] %vm40, %v37
  %42 = vst.msk [vmem:[%s3 + $0x8] sm:$0xff] %vm40, %v38
  %vm43 = vcmask 254976
  %44 = vst.msk [vmem:[%s3 + $0x10] sm:$0x3] %vm43, %v39
  // Predicated region
  $region14: #{_lambda_.34} parent=0 // pred_check
    _
  $region15: #{_lambda_.34} parent=0 // pred_check_branch
    %46 = sbr.rel (0) target = $region17
  $region16: #{_lambda_.34} parent=0 // pred_region
    _
  $region17: #{_lambda_.34} parent=0 // pred_fallthru
    _
  // Predicated region
  $region18: #{_lambda_.34} parent=0 // pred_check
    _
  $region19: #{_lambda_.34} parent=0 // pred_check_branch
    %48 = sbr.rel (0) target = $region21
  $region20: #{_lambda_.34} parent=0 // pred_region
    _
  $region21: #{_lambda_.34} parent=0 // pred_fallthru
    _

// kernel: _lambda_.33
$region0: #{_lambda_.33}
  #allocation0 [shape = 'u32[]', space=smem, size = 0x4, offset = 0x4, fixed_abs, tag = 'smem constant byte address 0x4 - core index']
  #allocation1 [shape = 'u32[72,128]{1,0:T(1,128)}', space=vmem, size = 0x9000, scoped, tag = 'internal scratch']
  #allocation2 [shape = 'f32[18,32]{1,0:T(8,128)}', space=vmem, size = 0x3000, scoped, tag = 'scratch operand']
  %s0 = inlined_call_operand.vmem [shape: bf16[18,256], index: 0, kind: input, shape index: {}]
  %s1 = inlined_call_operand.vmem [shape: bf16[256,32], index: 1, kind: input, shape index: {}]
  %s2 = inlined_call_operand.vmem [shape: f32[1,32], index: 2, kind: input, shape index: {}]
  %s3 = inlined_call_operand.vmem [shape: f32[18,32], index: 3, kind: output, shape index: {}]
  %s4 = sld [smem:[#allocation0]]
  $region30: #{_lambda_.33} parent=0
    _
  %s6 = ssub.s32 1, %s4
  %s7 = scalar_select 0, %s6, %s4
  // Predicated region
  $region2: #{_lambda_.33} parent=0 // pred_check
    _
  $region3: #{_lambda_.33} parent=0 // pred_check_branch
    %9 = sbr.rel (0) target = $region5
  $region4: #{_lambda_.33} parent=0 // pred_region
    _
  $region5: #{_lambda_.33} parent=0 // pred_fallthru
    _
  // Predicated region
  $region6: #{_lambda_.33} parent=0 // pred_check
    _
  $region7: #{_lambda_.33} parent=0 // pred_check_branch
    %11 = sbr.rel (0) target = $region9
  $region8: #{_lambda_.33} parent=0 // pred_region
    _
  $region9: #{_lambda_.33} parent=0 // pred_fallthru
    _
  // Predicated region
  $region10: #{_lambda_.33} parent=0 // pred_check
    _
  $region11: #{_lambda_.33} parent=0 // pred_check_branch
    %13 = sbr.rel (0) target = $region13
  $region12: #{_lambda_.33} parent=0 // pred_region
    _
  $region13: #{_lambda_.33} parent=0 // pred_fallthru
    _
  %p14 = scmp.eq.s32.totalorder 0, 0
  // Predicated region
  $region14: #{_lambda_.33} parent=0 // pred_check
    %p15 = pneg %p14
  $region15: #{_lambda_.33} parent=0 // pred_check_branch
    %17 = sbr.rel (%p15) target = $region17
  $region16: #{_lambda_.33} parent=0 // pred_region
    %vm18 = vcmask 261120
    %19 = vst.msk [vmem:[#allocation2] sm:$0xff] %vm18, 0.0
    %20 = vst.msk [vmem:[#allocation2 + $0x8] sm:$0xff] %vm18, 0.0
    %vm21 = vcmask 254976
    %22 = vst.msk [vmem:[#allocation2 + $0x10] sm:$0x3] %vm21, 0.0
  $region17: #{_lambda_.33} parent=0 // pred_fallthru
    _
  %v23 = vld [vmem:[#allocation2] sm:$0xff]
  %v24 = vld [vmem:[#allocation2 + $0x8] sm:$0xff]
  %v25 = vld [vmem:[#allocation2 + $0x10] sm:$0x3]
  %v26 = vld [vmem:[%s0] sm:$0xff]
  %v27 = vld [vmem:[%s0 + $0x8] sm:$0xff]
  %v28 = vld [vmem:[%s0 + $0x10] sm:$0x11]
  %v29 = vld [vmem:[%s1] sm:$0xf]
  %v30 = vld [vmem:[%s1 + $0x4] sm:$0xf]
  %v31 = vld [vmem:[%s1 + $0x8] sm:$0xf]
  %v32 = vld [vmem:[%s1 + $0xc] sm:$0xf]
  %v33 = vld [vmem:[%s1 + $0x10] sm:$0xf]
  %v34 = vld [vmem:[%s1 + $0x14] sm:$0xf]
  %v35 = vld [vmem:[%s1 + $0x18] sm:$0xf]
  %v36 = vld [vmem:[%s1 + $0x1c] sm:$0xf]
  %v37 = vld [vmem:[%s1 + $0x20] sm:$0xf]
  %v38 = vld [vmem:[%s1 + $0x24] sm:$0xf]
  %v39 = vld [vmem:[%s1 + $0x28] sm:$0xf]
  %v40 = vld [vmem:[%s1 + $0x2c] sm:$0xf]
  %v41 = vld [vmem:[%s1 + $0x30] sm:$0xf]
  %v42 = vld [vmem:[%s1 + $0x34] sm:$0xf]
  %v43 = vld [vmem:[%s1 + $0x38] sm:$0xf]
  %v44 = vld [vmem:[%s1 + $0x3c] sm:$0xf]
  %v45 = vld [vmem:[%s1 + $0x40] sm:$0xf]
  %v46 = vld [vmem:[%s1 + $0x44] sm:$0xf]
  %v47 = vld [vmem:[%s1 + $0x48] sm:$0xf]
  %v48 = vld [vmem:[%s1 + $0x4c] sm:$0xf]
  %v49 = vld [vmem:[%s1 + $0x50] sm:$0xf]
  %v50 = vld [vmem:[%s1 + $0x54] sm:$0xf]
  %v51 = vld [vmem:[%s1 + $0x58] sm:$0xf]
  %v52 = vld [vmem:[%s1 + $0x5c] sm:$0xf]
  %v53 = vld [vmem:[%s1 + $0x60] sm:$0xf]
  %v54 = vld [vmem:[%s1 + $0x64] sm:$0xf]
  %v55 = vld [vmem:[%s1 + $0x68] sm:$0xf]
  %v56 = vld [vmem:[%s1 + $0x6c] sm:$0xf]
  %v57 = vld [vmem:[%s1 + $0x70] sm:$0xf]
  %v58 = vld [vmem:[%s1 + $0x74] sm:$0xf]
  %v59 = vld [vmem:[%s1 + $0x78] sm:$0xf]
  %v60 = vld [vmem:[%s1 + $0x7c] sm:$0xf]
  %v64 = vunpack.c.l.b16 %v26
  %v65 = vunpack.c.h.b16 %v26
  %v66 = vunpack.c.l.b16 %v27
  %v67 = vunpack.c.h.b16 %v27
  %v68 = vunpack.c.l.b16 %v28
  %v69 = vunpack.c.h.b16 %v28
  %v70 = vpack.c.b16 %v66, %v64
  %v71 = vpack.c.b16 %v67, %v65
  %v72 = vpack.c.b16 %v68, %v68
  %v73 = vpack.c.b16 %v69, %v69
  %v110 = vunpack.c.l.b16 %v29
  %v111 = vunpack.c.l.b16 %v30
  %v112 = vunpack.c.l.b16 %v31
  %v113 = vunpack.c.l.b16 %v32
  %v114 = vunpack.c.l.b16 %v33
  %v115 = vunpack.c.l.b16 %v34
  %v116 = vunpack.c.l.b16 %v35
  %v117 = vunpack.c.l.b16 %v36
  %v118 = vunpack.c.l.b16 %v37
  %v119 = vunpack.c.l.b16 %v38
  %v120 = vunpack.c.l.b16 %v39
  %v121 = vunpack.c.l.b16 %v40
  %v122 = vunpack.c.l.b16 %v41
  %v123 = vunpack.c.l.b16 %v42
  %v124 = vunpack.c.l.b16 %v43
  %v125 = vunpack.c.l.b16 %v44
  %v126 = vunpack.c.l.b16 %v45
  %v127 = vunpack.c.l.b16 %v46
  %v128 = vunpack.c.l.b16 %v47
  %v129 = vunpack.c.l.b16 %v48
  %v130 = vunpack.c.l.b16 %v49
  %v131 = vunpack.c.l.b16 %v50
  %v132 = vunpack.c.l.b16 %v51
  %v133 = vunpack.c.l.b16 %v52
  %v134 = vunpack.c.l.b16 %v53
  %v135 = vunpack.c.l.b16 %v54
  %v136 = vunpack.c.l.b16 %v55
  %v137 = vunpack.c.l.b16 %v56
  %v138 = vunpack.c.l.b16 %v57
  %v139 = vunpack.c.l.b16 %v58
  %v140 = vunpack.c.l.b16 %v59
  %v141 = vunpack.c.l.b16 %v60
  %v142 = vpack.c.b16 %v111, %v110
  %v143 = vpack.c.b16 %v113, %v112
  %v144 = vpack.c.b16 %v115, %v114
  %v145 = vpack.c.b16 %v117, %v116
  %v146 = vpack.c.b16 %v119, %v118
  %v147 = vpack.c.b16 %v121, %v120
  %v148 = vpack.c.b16 %v123, %v122
  %v149 = vpack.c.b16 %v125, %v124
  %v150 = vpack.c.b16 %v127, %v126
  %v151 = vpack.c.b16 %v129, %v128
  %v152 = vpack.c.b16 %v131, %v130
  %v153 = vpack.c.b16 %v133, %v132
  %v154 = vpack.c.b16 %v135, %v134
  %v155 = vpack.c.b16 %v137, %v136
  %v156 = vpack.c.b16 %v139, %v138
  %v157 = vpack.c.b16 %v141, %v140
  %174 = vmatpush.bf16.msra.mxu0 %v149
  %175 = vmatpush.bf16.msra.mxu0 %v148
  %176 = vmatpush.bf16.msra.mxu0 %v147
  %177 = vmatpush.bf16.msra.mxu0 %v146
  %178 = vmatpush.bf16.msra.mxu0 %v145
  %179 = vmatpush.bf16.msra.mxu0 %v144
  %180 = vmatpush.bf16.msra.mxu0 %v143
  %181 = vmatpush.bf16.msra.mxu0 %v142
  %182 = vmatmul.bf16.gmra.mxu0 %v70
  %v183 = vpop.f32.mrf.mxu0
  %v184 = vadd.f32 0.0, %v183
  %v185 = vpop.f32.mrf.mxu0
  %v186 = vadd.f32 0.0, %v185
  %187 = vmatmul.bf16.gmra.mxu0 %v72
  %v188 = vpop.f32.mrf.mxu0
  %v189 = vadd.f32 0.0, %v188
  %v190 = vpop.f32.mrf.mxu0
  %191 = vdwg.mxu0
  %192 = vmatpush.bf16.msra.mxu0 %v157
  %193 = vmatpush.bf16.msra.mxu0 %v156
  %194 = vmatpush.bf16.msra.mxu0 %v155
  %195 = vmatpush.bf16.msra.mxu0 %v154
  %196 = vmatpush.bf16.msra.mxu0 %v153
  %197 = vmatpush.bf16.msra.mxu0 %v152
  %198 = vmatpush.bf16.msra.mxu0 %v151
  %199 = vmatpush.bf16.msra.mxu0 %v150
  %200 = vmatmul.bf16.gmra.mxu0 %v71
  %v201 = vpop.f32.mrf.mxu0
  %v202 = vadd.f32 %v184, %v201
  %v203 = vpop.f32.mrf.mxu0
  %v204 = vadd.f32 %v186, %v203
  %205 = vmatmul.bf16.gmra.mxu0 %v73
  %v206 = vpop.f32.mrf.mxu0
  %v207 = vadd.f32 %v189, %v206
  %v208 = vpop.f32.mrf.mxu0
  %209 = vdwg.mxu0
  %v210 = vadd.f32 %v23, %v202
  %v211 = vadd.f32 %v24, %v204
  %v212 = vadd.f32 %v25, %v207
  %vm213 = vcmask 261120
  %214 = vst.msk [vmem:[#allocation2] sm:$0xff] %vm213, %v210
  %215 = vst.msk [vmem:[#allocation2 + $0x8] sm:$0xff] %vm213, %v211
  %vm216 = vcmask 254976
  %217 = vst.msk [vmem:[#allocation2 + $0x10] sm:$0x3] %vm216, %v212
  // Predicated region
  $region18: #{_lambda_.33} parent=0 // pred_check
    %p218 = pneg %p14
  $region19: #{_lambda_.33} parent=0 // pred_check_branch
    %220 = sbr.rel (%p218) target = $region21
  $region20: #{_lambda_.33} parent=0 // pred_region
    %v221 = vld [vmem:[#allocation2] sm:$0xff]
    %v222 = vld [vmem:[#allocation2 + $0x8] sm:$0xff]
    %v223 = vld [vmem:[#allocation2 + $0x10] sm:$0x3]
    %v224 = vld [vmem:[%s2] sm:$0x1]
    %v226 = vperm.slane %v224, 0
    %v228 = vadd.f32 %v221, %v226
    %v229 = vadd.f32 %v222, %v226
    %v230 = vadd.f32 %v223, %v226
    %231 = vst.msk [vmem:[%s3] sm:$0xff] %vm213, %v228
    %232 = vst.msk [vmem:[%s3 + $0x8] sm:$0xff] %vm213, %v229
    %233 = vst.msk [vmem:[%s3 + $0x10] sm:$0x3] %vm216, %v230
  $region21: #{_lambda_.33} parent=0 // pred_fallthru
    _
  // Predicated region
  $region22: #{_lambda_.33} parent=0 // pred_check
    _
  $region23: #{_lambda_.33} parent=0 // pred_check_branch
    %235 = sbr.rel (0) target = $region25
  $region24: #{_lambda_.33} parent=0 // pred_region
    _
  $region25: #{_lambda_.33} parent=0 // pred_fallthru
    _
  // Predicated region
  $region26: #{_lambda_.33} parent=0 // pred_check
    _
  $region27: #{_lambda_.33} parent=0 // pred_check_branch
    %237 = sbr.rel (0) target = $region29
  $region28: #{_lambda_.33} parent=0 // pred_region
    _
  $region29: #{_lambda_.33} parent=0 // pred_fallthru
    _

// kernel: _lambda_.24
$region0: #{_lambda_.24}
  #allocation0 [shape = 'u32[]', space=smem, size = 0x4, offset = 0x4, fixed_abs, tag = 'smem constant byte address 0x4 - core index']
  #allocation1 [shape = 'u32[72,128]{1,0:T(1,128)}', space=vmem, size = 0x9000, scoped, tag = 'internal scratch']
  #allocation2 [shape = 'f32[162,16]{1,0:T(8,128)}', space=vmem, size = 0x15000, scoped, tag = 'scratch operand']
  %s0 = inlined_call_operand.vmem [shape: bf16[162,64], index: 0, kind: input, shape index: {}]
  %s1 = inlined_call_operand.vmem [shape: bf16[64,16], index: 1, kind: input, shape index: {}]
  %s2 = inlined_call_operand.vmem [shape: f32[1,16], index: 2, kind: input, shape index: {}]
  %s3 = inlined_call_operand.vmem [shape: f32[162,16], index: 3, kind: output, shape index: {}]
  %s4 = sld [smem:[#allocation0]]
  $region30: #{_lambda_.24} parent=0
    _
  %s6 = ssub.s32 1, %s4
  %s7 = scalar_select 0, %s6, %s4
  // Predicated region
  $region2: #{_lambda_.24} parent=0 // pred_check
    _
  $region3: #{_lambda_.24} parent=0 // pred_check_branch
    %9 = sbr.rel (0) target = $region5
  $region4: #{_lambda_.24} parent=0 // pred_region
    _
  $region5: #{_lambda_.24} parent=0 // pred_fallthru
    _
  // Predicated region
  $region6: #{_lambda_.24} parent=0 // pred_check
    _
  $region7: #{_lambda_.24} parent=0 // pred_check_branch
    %11 = sbr.rel (0) target = $region9
  $region8: #{_lambda_.24} parent=0 // pred_region
    _
  $region9: #{_lambda_.24} parent=0 // pred_fallthru
    _
  // Predicated region
  $region10: #{_lambda_.24} parent=0 // pred_check
    _
  $region11: #{_lambda_.24} parent=0 // pred_check_branch
    %13 = sbr.rel (0) target = $region13
  $region12: #{_lambda_.24} parent=0 // pred_region
    _
  $region13: #{_lambda_.24} parent=0 // pred_fallthru
    _
  %p15 = scmp.eq.s32.totalorder 0, 0
  // Predicated region
  $region14: #{_lambda_.24} parent=0 // pred_check
    %p16 = pneg %p15
  $region15: #{_lambda_.24} parent=0 // pred_check_branch
    %18 = sbr.rel (%p16) target = $region17
  $region16: #{_lambda_.24} parent=0 // pred_region
    %vm19 = vcmask 130048
    %20 = vst.msk [vmem:[#allocation2] sm:$0xff] %vm19, 0.0
    %21 = vst.msk [vmem:[#allocation2 + $0x8] sm:$0xff] %vm19, 0.0
    %22 = vst.msk [vmem:[#allocation2 + $0x10] sm:$0xff] %vm19, 0.0
    %23 = vst.msk [vmem:[#allocation2 + $0x18] sm:$0xff] %vm19, 0.0
    %24 = vst.msk [vmem:[#allocation2 + $0x20] sm:$0xff] %vm19, 0.0
    %25 = vst.msk [vmem:[#allocation2 + $0x28] sm:$0xff] %vm19, 0.0
    %26 = vst.msk [vmem:[#allocation2 + $0x30] sm:$0xff] %vm19, 0.0
    %27 = vst.msk [vmem:[#allocation2 + $0x38] sm:$0xff] %vm19, 0.0
    %28 = vst.msk [vmem:[#allocation2 + $0x40] sm:$0xff] %vm19, 0.0
    %29 = vst.msk [vmem:[#allocation2 + $0x48] sm:$0xff] %vm19, 0.0
    %30 = vst.msk [vmem:[#allocation2 + $0x50] sm:$0xff] %vm19, 0.0
    %31 = vst.msk [vmem:[#allocation2 + $0x58] sm:$0xff] %vm19, 0.0
    %32 = vst.msk [vmem:[#allocation2 + $0x60] sm:$0xff] %vm19, 0.0
    %33 = vst.msk [vmem:[#allocation2 + $0x68] sm:$0xff] %vm19, 0.0
    %34 = vst.msk [vmem:[#allocation2 + $0x70] sm:$0xff] %vm19, 0.0
    %35 = vst.msk [vmem:[#allocation2 + $0x78] sm:$0xff] %vm19, 0.0
    %36 = vst.msk [vmem:[#allocation2 + $0x80] sm:$0xff] %vm19, 0.0
    %37 = vst.msk [vmem:[#allocation2 + $0x88] sm:$0xff] %vm19, 0.0
    %38 = vst.msk [vmem:[#allocation2 + $0x90] sm:$0xff] %vm19, 0.0
    %39 = vst.msk [vmem:[#allocation2 + $0x98] sm:$0xff] %vm19, 0.0
    %vm40 = vcmask 123904
    %41 = vst.msk [vmem:[#allocation2 + $0xa0] sm:$0x3] %vm40, 0.0
  $region17: #{_lambda_.24} parent=0 // pred_fallthru
    _
  %v42 = vld [vmem:[#allocation2] sm:$0xff]
  %v43 = vld [vmem:[#allocation2 + $0x8] sm:$0xff]
  %v44 = vld [vmem:[#allocation2 + $0x10] sm:$0xff]
  %v45 = vld [vmem:[#allocation2 + $0x18] sm:$0xff]
  %v46 = vld [vmem:[#allocation2 + $0x20] sm:$0xff]
  %v47 = vld [vmem:[#allocation2 + $0x28] sm:$0xff]
  %v48 = vld [vmem:[#allocation2 + $0x30] sm:$0xff]
  %v49 = vld [vmem:[#allocation2 + $0x38] sm:$0xff]
  %v50 = vld [vmem:[#allocation2 + $0x40] sm:$0xff]
  %v51 = vld [vmem:[#allocation2 + $0x48] sm:$0xff]
  %v52 = vld [vmem:[#allocation2 + $0x50] sm:$0xff]
  %v53 = vld [vmem:[#allocation2 + $0x58] sm:$0xff]
  %v54 = vld [vmem:[#allocation2 + $0x60] sm:$0xff]
  %v55 = vld [vmem:[#allocation2 + $0x68] sm:$0xff]
  %v56 = vld [vmem:[#allocation2 + $0x70] sm:$0xff]
  %v57 = vld [vmem:[#allocation2 + $0x78] sm:$0xff]
  %v58 = vld [vmem:[#allocation2 + $0x80] sm:$0xff]
  %v59 = vld [vmem:[#allocation2 + $0x88] sm:$0xff]
  %v60 = vld [vmem:[#allocation2 + $0x90] sm:$0xff]
  %v61 = vld [vmem:[#allocation2 + $0x98] sm:$0xff]
  %v62 = vld [vmem:[#allocation2 + $0xa0] sm:$0x3]
  %v63 = vld [vmem:[%s0] sm:$0xf]
  %v64 = vld [vmem:[%s0 + $0x4] sm:$0xf]
  %v65 = vld [vmem:[%s0 + $0x8] sm:$0xf]
  %v66 = vld [vmem:[%s0 + $0xc] sm:$0xf]
  %v67 = vld [vmem:[%s0 + $0x10] sm:$0xf]
  %v68 = vld [vmem:[%s0 + $0x14] sm:$0xf]
  %v69 = vld [vmem:[%s0 + $0x18] sm:$0xf]
  %v70 = vld [vmem:[%s0 + $0x1c] sm:$0xf]
  %v71 = vld [vmem:[%s0 + $0x20] sm:$0xf]
  %v72 = vld [vmem:[%s0 + $0x24] sm:$0xf]
  %v73 = vld [vmem:[%s0 + $0x28] sm:$0xf]
  %v74 = vld [vmem:[%s0 + $0x2c] sm:$0xf]
  %v75 = vld [vmem:[%s0 + $0x30] sm:$0xf]
  %v76 = vld [vmem:[%s0 + $0x34] sm:$0xf]
  %v77 = vld [vmem:[%s0 + $0x38] sm:$0xf]
  %v78 = vld [vmem:[%s0 + $0x3c] sm:$0xf]
  %v79 = vld [vmem:[%s0 + $0x40] sm:$0xf]
  %v80 = vld [vmem:[%s0 + $0x44] sm:$0xf]
  %v81 = vld [vmem:[%s0 + $0x48] sm:$0xf]
  %v82 = vld [vmem:[%s0 + $0x4c] sm:$0xf]
  %v83 = vld [vmem:[%s0 + $0x50] sm:$0x1]
  %v84 = vld [vmem:[%s1] sm:$0xf]
  %v85 = vld [vmem:[%s1 + $0x4] sm:$0xf]
  %v86 = vld [vmem:[%s1 + $0x8] sm:$0xf]
  %v87 = vld [vmem:[%s1 + $0xc] sm:$0xf]
  %v88 = vld [vmem:[%s1 + $0x10] sm:$0xf]
  %v89 = vld [vmem:[%s1 + $0x14] sm:$0xf]
  %v90 = vld [vmem:[%s1 + $0x18] sm:$0xf]
  %v91 = vld [vmem:[%s1 + $0x1c] sm:$0xf]
  %v113 = vunpack.c.l.b16 %v63
  %v114 = vunpack.c.l.b16 %v64
  %v115 = vunpack.c.l.b16 %v65
  %v116 = vunpack.c.l.b16 %v66
  %v117 = vunpack.c.l.b16 %v67
  %v118 = vunpack.c.l.b16 %v68
  %v119 = vunpack.c.l.b16 %v69
  %v120 = vunpack.c.l.b16 %v70
  %v121 = vunpack.c.l.b16 %v71
  %v122 = vunpack.c.l.b16 %v72
  %v123 = vunpack.c.l.b16 %v73
  %v124 = vunpack.c.l.b16 %v74
  %v125 = vunpack.c.l.b16 %v75
  %v126 = vunpack.c.l.b16 %v76
  %v127 = vunpack.c.l.b16 %v77
  %v128 = vunpack.c.l.b16 %v78
  %v129 = vunpack.c.l.b16 %v79
  %v130 = vunpack.c.l.b16 %v80
  %v131 = vunpack.c.l.b16 %v81
  %v132 = vunpack.c.l.b16 %v82
  %v133 = vunpack.c.l.b16 %v83
  %v134 = vpack.c.b16 %v114, %v113
  %v135 = vpack.c.b16 %v116, %v115
  %v136 = vpack.c.b16 %v118, %v117
  %v137 = vpack.c.b16 %v120, %v119
  %v138 = vpack.c.b16 %v122, %v121
  %v139 = vpack.c.b16 %v124, %v123
  %v140 = vpack.c.b16 %v126, %v125
  %v141 = vpack.c.b16 %v128, %v127
  %v142 = vpack.c.b16 %v130, %v129
  %v143 = vpack.c.b16 %v132, %v131
  %v144 = vpack.c.b16 %v133, %v133
  %v153 = vunpack.c.l.b16 %v84
  %v154 = vunpack.c.l.b16 %v85
  %v155 = vunpack.c.l.b16 %v86
  %v156 = vunpack.c.l.b16 %v87
  %v157 = vunpack.c.l.b16 %v88
  %v158 = vunpack.c.l.b16 %v89
  %v159 = vunpack.c.l.b16 %v90
  %v160 = vunpack.c.l.b16 %v91
  %v161 = vpack.c.b16 %v154, %v153
  %v162 = vpack.c.b16 %v156, %v155
  %v163 = vpack.c.b16 %v158, %v157
  %v164 = vpack.c.b16 %v160, %v159
  %vm169 = vcmask 523264
  %v171 = vsel %vm169, %v134, 0
  %v174 = vsel %vm169, %v135, 0
  %v177 = vsel %vm169, %v136, 0
  %v180 = vsel %vm169, %v137, 0
  %v183 = vsel %vm169, %v138, 0
  %v186 = vsel %vm169, %v139, 0
  %v189 = vsel %vm169, %v140, 0
  %v192 = vsel %vm169, %v141, 0
  %v195 = vsel %vm169, %v142, 0
  %v198 = vsel %vm169, %v143, 0
  %v201 = vsel %vm169, %v144, 0
  %203 = vmatpush.bf16.msra.mxu0 0
  %204 = vmatpush.bf16.msra.mxu0 0
  %205 = vmatpush.bf16.msra.mxu0 0
  %206 = vmatpush.bf16.msra.mxu0 0
  %207 = vmatpush.bf16.msra.mxu0 %v164
  %208 = vmatpush.bf16.msra.mxu0 %v163
  %209 = vmatpush.bf16.msra.mxu0 %v162
  %210 = vmatpush.bf16.msra.mxu0 %v161
  %211 = vmatmul.bf16.gmra.mxu0 %v171
  %v212 = vpop.f32.mrf.mxu0
  %v213 = vadd.f32 0.0, %v212
  %v214 = vpop.f32.mrf.mxu0
  %v215 = vadd.f32 0.0, %v214
  %216 = vmatmul.bf16.gmra.mxu0 %v174
  %v217 = vpop.f32.mrf.mxu0
  %v218 = vadd.f32 0.0, %v217
  %v219 = vpop.f32.mrf.mxu0
  %v220 = vadd.f32 0.0, %v219
  %221 = vmatmul.bf16.gmra.mxu0 %v177
  %v222 = vpop.f32.mrf.mxu0
  %v223 = vadd.f32 0.0, %v222
  %v224 = vpop.f32.mrf.mxu0
  %v225 = vadd.f32 0.0, %v224
  %226 = vmatmul.bf16.gmra.mxu0 %v180
  %v227 = vpop.f32.mrf.mxu0
  %v228 = vadd.f32 0.0, %v227
  %v229 = vpop.f32.mrf.mxu0
  %v230 = vadd.f32 0.0, %v229
  %231 = vmatmul.bf16.gmra.mxu0 %v183
  %v232 = vpop.f32.mrf.mxu0
  %v233 = vadd.f32 0.0, %v232
  %v234 = vpop.f32.mrf.mxu0
  %v235 = vadd.f32 0.0, %v234
  %236 = vmatmul.bf16.gmra.mxu0 %v186
  %v237 = vpop.f32.mrf.mxu0
  %v238 = vadd.f32 0.0, %v237
  %v239 = vpop.f32.mrf.mxu0
  %v240 = vadd.f32 0.0, %v239
  %241 = vmatmul.bf16.gmra.mxu0 %v189
  %v242 = vpop.f32.mrf.mxu0
  %v243 = vadd.f32 0.0, %v242
  %v244 = vpop.f32.mrf.mxu0
  %v245 = vadd.f32 0.0, %v244
  %246 = vmatmul.bf16.gmra.mxu0 %v192
  %v247 = vpop.f32.mrf.mxu0
  %v248 = vadd.f32 0.0, %v247
  %v249 = vpop.f32.mrf.mxu0
  %v250 = vadd.f32 0.0, %v249
  %251 = vmatmul.bf16.gmra.mxu0 %v195
  %v252 = vpop.f32.mrf.mxu0
  %v253 = vadd.f32 0.0, %v252
  %v254 = vpop.f32.mrf.mxu0
  %v255 = vadd.f32 0.0, %v254
  %256 = vmatmul.bf16.gmra.mxu0 %v198
  %v257 = vpop.f32.mrf.mxu0
  %v258 = vadd.f32 0.0, %v257
  %v259 = vpop.f32.mrf.mxu0
  %v260 = vadd.f32 0.0, %v259
  %261 = vmatmul.bf16.gmra.mxu0 %v201
  %v262 = vpop.f32.mrf.mxu0
  %v263 = vadd.f32 0.0, %v262
  %v264 = vpop.f32.mrf.mxu0
  %265 = vdwg.mxu0
  %v266 = vadd.f32 %v42, %v213
  %v267 = vadd.f32 %v43, %v215
  %v268 = vadd.f32 %v44, %v218
  %v269 = vadd.f32 %v45, %v220
  %v270 = vadd.f32 %v46, %v223
  %v271 = vadd.f32 %v47, %v225
  %v272 = vadd.f32 %v48, %v228
  %v273 = vadd.f32 %v49, %v230
  %v274 = vadd.f32 %v50, %v233
  %v275 = vadd.f32 %v51, %v235
  %v276 = vadd.f32 %v52, %v238
  %v277 = vadd.f32 %v53, %v240
  %v278 = vadd.f32 %v54, %v243
  %v279 = vadd.f32 %v55, %v245
  %v280 = vadd.f32 %v56, %v248
  %v281 = vadd.f32 %v57, %v250
  %v282 = vadd.f32 %v58, %v253
  %v283 = vadd.f32 %v59, %v255
  %v284 = vadd.f32 %v60, %v258
  %v285 = vadd.f32 %v61, %v260
  %v286 = vadd.f32 %v62, %v263
  %vm287 = vcmask 130048
  %288 = vst.msk [vmem:[#allocation2] sm:$0xff] %vm287, %v266
  %289 = vst.msk [vmem:[#allocation2 + $0x8] sm:$0xff] %vm287, %v267
  %290 = vst.msk [vmem:[#allocation2 + $0x10] sm:$0xff] %vm287, %v268
  %291 = vst.msk [vmem:[#allocation2 + $0x18] sm:$0xff] %vm287, %v269
  %292 = vst.msk [vmem:[#allocation2 + $0x20] sm:$0xff] %vm287, %v270
  %293 = vst.msk [vmem:[#allocation2 + $0x28] sm:$0xff] %vm287, %v271
  %294 = vst.msk [vmem:[#allocation2 + $0x30] sm:$0xff] %vm287, %v272
  %295 = vst.msk [vmem:[#allocation2 + $0x38] sm:$0xff] %vm287, %v273
  %296 = vst.msk [vmem:[#allocation2 + $0x40] sm:$0xff] %vm287, %v274
  %297 = vst.msk [vmem:[#allocation2 + $0x48] sm:$0xff] %vm287, %v275
  %298 = vst.msk [vmem:[#allocation2 + $0x50] sm:$0xff] %vm287, %v276
  %299 = vst.msk [vmem:[#allocation2 + $0x58] sm:$0xff] %vm287, %v277
  %300 = vst.msk [vmem:[#allocation2 + $0x60] sm:$0xff] %vm287, %v278
  %301 = vst.msk [vmem:[#allocation2 + $0x68] sm:$0xff] %vm287, %v279
  %302 = vst.msk [vmem:[#allocation2 + $0x70] sm:$0xff] %vm287, %v280
  %303 = vst.msk [vmem:[#allocation2 + $0x78] sm:$0xff] %vm287, %v281
  %304 = vst.msk [vmem:[#allocation2 + $0x80] sm:$0xff] %vm287, %v282
  %305 = vst.msk [vmem:[#allocation2 + $0x88] sm:$0xff] %vm287, %v283
  %306 = vst.msk [vmem:[#allocation2 + $0x90] sm:$0xff] %vm287, %v284
  %307 = vst.msk [vmem:[#allocation2 + $0x98] sm:$0xff] %vm287, %v285
  %vm308 = vcmask 123904
  %309 = vst.msk [vmem:[#allocation2 + $0xa0] sm:$0x3] %vm308, %v286
  // Predicated region
  $region18: #{_lambda_.24} parent=0 // pred_check
    %p310 = pneg %p15
  $region19: #{_lambda_.24} parent=0 // pred_check_branch
    %312 = sbr.rel (%p310) target = $region21
  $region20: #{_lambda_.24} parent=0 // pred_region
    %v313 = vld [vmem:[#allocation2] sm:$0xff]
    %v314 = vld [vmem:[#allocation2 + $0x8] sm:$0xff]
    %v315 = vld [vmem:[#allocation2 + $0x10] sm:$0xff]
    %v316 = vld [vmem:[#allocation2 + $0x18] sm:$0xff]
    %v317 = vld [vmem:[#allocation2 + $0x20] sm:$0xff]
    %v318 = vld [vmem:[#allocation2 + $0x28] sm:$0xff]
    %v319 = vld [vmem:[#allocation2 + $0x30] sm:$0xff]
    %v320 = vld [vmem:[#allocation2 + $0x38] sm:$0xff]
    %v321 = vld [vmem:[#allocation2 + $0x40] sm:$0xff]
    %v322 = vld [vmem:[#allocation2 + $0x48] sm:$0xff]
    %v323 = vld [vmem:[#allocation2 + $0x50] sm:$0xff]
    %v324 = vld [vmem:[#allocation2 + $0x58] sm:$0xff]
    %v325 = vld [vmem:[#allocation2 + $0x60] sm:$0xff]
    %v326 = vld [vmem:[#allocation2 + $0x68] sm:$0xff]
    %v327 = vld [vmem:[#allocation2 + $0x70] sm:$0xff]
    %v328 = vld [vmem:[#allocation2 + $0x78] sm:$0xff]
    %v329 = vld [vmem:[#allocation2 + $0x80] sm:$0xff]
    %v330 = vld [vmem:[#allocation2 + $0x88] sm:$0xff]
    %v331 = vld [vmem:[#allocation2 + $0x90] sm:$0xff]
    %v332 = vld [vmem:[#allocation2 + $0x98] sm:$0xff]
    %v333 = vld [vmem:[#allocation2 + $0xa0] sm:$0x3]
    %v334 = vld [vmem:[%s2] sm:$0x1]
    %v336 = vperm.slane %v334, 0
    %v338 = vadd.f32 %v313, %v336
    %v339 = vadd.f32 %v314, %v336
    %v340 = vadd.f32 %v315, %v336
    %v341 = vadd.f32 %v316, %v336
    %v342 = vadd.f32 %v317, %v336
    %v343 = vadd.f32 %v318, %v336
    %v344 = vadd.f32 %v319, %v336
    %v345 = vadd.f32 %v320, %v336
    %v346 = vadd.f32 %v321, %v336
    %v347 = vadd.f32 %v322, %v336
    %v348 = vadd.f32 %v323, %v336
    %v349 = vadd.f32 %v324, %v336
    %v350 = vadd.f32 %v325, %v336
    %v351 = vadd.f32 %v326, %v336
    %v352 = vadd.f32 %v327, %v336
    %v353 = vadd.f32 %v328, %v336
    %v354 = vadd.f32 %v329, %v336
    %v355 = vadd.f32 %v330, %v336
    %v356 = vadd.f32 %v331, %v336
    %v357 = vadd.f32 %v332, %v336
    %v358 = vadd.f32 %v333, %v336
    %vm359 = vcmp.gt.f32.partialorder %v338, 0.0
    %vm360 = vcmp.gt.f32.partialorder %v339, 0.0
    %vm361 = vcmp.gt.f32.partialorder %v340, 0.0
    %vm362 = vcmp.gt.f32.partialorder %v341, 0.0
    %vm363 = vcmp.gt.f32.partialorder %v342, 0.0
    %vm364 = vcmp.gt.f32.partialorder %v343, 0.0
    %vm365 = vcmp.gt.f32.partialorder %v344, 0.0
    %vm366 = vcmp.gt.f32.partialorder %v345, 0.0
    %vm367 = vcmp.gt.f32.partialorder %v346, 0.0
    %vm368 = vcmp.gt.f32.partialorder %v347, 0.0
    %vm369 = vcmp.gt.f32.partialorder %v348, 0.0
    %vm370 = vcmp.gt.f32.partialorder %v349, 0.0
    %vm371 = vcmp.gt.f32.partialorder %v350, 0.0
    %vm372 = vcmp.gt.f32.partialorder %v351, 0.0
    %vm373 = vcmp.gt.f32.partialorder %v352, 0.0
    %vm374 = vcmp.gt.f32.partialorder %v353, 0.0
    %vm375 = vcmp.gt.f32.partialorder %v354, 0.0
    %vm376 = vcmp.gt.f32.partialorder %v355, 0.0
    %vm377 = vcmp.gt.f32.partialorder %v356, 0.0
    %vm378 = vcmp.gt.f32.partialorder %v357, 0.0
    %vm379 = vcmp.gt.f32.partialorder %v358, 0.0
    %v380 = vmul.f32 %v338, 0.2
    %v381 = vmul.f32 %v339, 0.2
    %v382 = vmul.f32 %v340, 0.2
    %v383 = vmul.f32 %v341, 0.2
    %v384 = vmul.f32 %v342, 0.2
    %v385 = vmul.f32 %v343, 0.2
    %v386 = vmul.f32 %v344, 0.2
    %v387 = vmul.f32 %v345, 0.2
    %v388 = vmul.f32 %v346, 0.2
    %v389 = vmul.f32 %v347, 0.2
    %v390 = vmul.f32 %v348, 0.2
    %v391 = vmul.f32 %v349, 0.2
    %v392 = vmul.f32 %v350, 0.2
    %v393 = vmul.f32 %v351, 0.2
    %v394 = vmul.f32 %v352, 0.2
    %v395 = vmul.f32 %v353, 0.2
    %v396 = vmul.f32 %v354, 0.2
    %v397 = vmul.f32 %v355, 0.2
    %v398 = vmul.f32 %v356, 0.2
    %v399 = vmul.f32 %v357, 0.2
    %v400 = vmul.f32 %v358, 0.2
    %v401 = vsel %vm359, %v338, %v380
    %v402 = vsel %vm360, %v339, %v381
    %v403 = vsel %vm361, %v340, %v382
    %v404 = vsel %vm362, %v341, %v383
    %v405 = vsel %vm363, %v342, %v384
    %v406 = vsel %vm364, %v343, %v385
    %v407 = vsel %vm365, %v344, %v386
    %v408 = vsel %vm366, %v345, %v387
    %v409 = vsel %vm367, %v346, %v388
    %v410 = vsel %vm368, %v347, %v389
    %v411 = vsel %vm369, %v348, %v390
    %v412 = vsel %vm370, %v349, %v391
    %v413 = vsel %vm371, %v350, %v392
    %v414 = vsel %vm372, %v351, %v393
    %v415 = vsel %vm373, %v352, %v394
    %v416 = vsel %vm374, %v353, %v395
    %v417 = vsel %vm375, %v354, %v396
    %v418 = vsel %vm376, %v355, %v397
    %v419 = vsel %vm377, %v356, %v398
    %v420 = vsel %vm378, %v357, %v399
    %v421 = vsel %vm379, %v358, %v400
    %422 = vst.msk [vmem:[%s3] sm:$0xff] %vm287, %v401
    %423 = vst.msk [vmem:[%s3 + $0x8] sm:$0xff] %vm287, %v402
    %424 = vst.msk [vmem:[%s3 + $0x10] sm:$0xff] %vm287, %v403
    %425 = vst.msk [vmem:[%s3 + $0x18] sm:$0xff] %vm287, %v404
    %426 = vst.msk [vmem:[%s3 + $0x20] sm:$0xff] %vm287, %v405
    %427 = vst.msk [vmem:[%s3 + $0x28] sm:$0xff] %vm287, %v406
    %428 = vst.msk [vmem:[%s3 + $0x30] sm:$0xff] %vm287, %v407
    %429 = vst.msk [vmem:[%s3 + $0x38] sm:$0xff] %vm287, %v408
    %430 = vst.msk [vmem:[%s3 + $0x40] sm:$0xff] %vm287, %v409
    %431 = vst.msk [vmem:[%s3 + $0x48] sm:$0xff] %vm287, %v410
    %432 = vst.msk [vmem:[%s3 + $0x50] sm:$0xff] %vm287, %v411
    %433 = vst.msk [vmem:[%s3 + $0x58] sm:$0xff] %vm287, %v412
    %434 = vst.msk [vmem:[%s3 + $0x60] sm:$0xff] %vm287, %v413
    %435 = vst.msk [vmem:[%s3 + $0x68] sm:$0xff] %vm287, %v414
    %436 = vst.msk [vmem:[%s3 + $0x70] sm:$0xff] %vm287, %v415
    %437 = vst.msk [vmem:[%s3 + $0x78] sm:$0xff] %vm287, %v416
    %438 = vst.msk [vmem:[%s3 + $0x80] sm:$0xff] %vm287, %v417
    %439 = vst.msk [vmem:[%s3 + $0x88] sm:$0xff] %vm287, %v418
    %440 = vst.msk [vmem:[%s3 + $0x90] sm:$0xff] %vm287, %v419
    %441 = vst.msk [vmem:[%s3 + $0x98] sm:$0xff] %vm287, %v420
    %442 = vst.msk [vmem:[%s3 + $0xa0] sm:$0x3] %vm308, %v421
  $region21: #{_lambda_.24} parent=0 // pred_fallthru
    _
  // Predicated region
  $region22: #{_lambda_.24} parent=0 // pred_check
    _
  $region23: #{_lambda_.24} parent=0 // pred_check_branch
    %444 = sbr.rel (0) target = $region25
  $region24: #{_lambda_.24} parent=0 // pred_region
    _
  $region25: #{_lambda_.24} parent=0 // pred_fallthru
    _
  // Predicated region
  $region26: #{_lambda_.24} parent=0 // pred_check
    _
  $region27: #{_lambda_.24} parent=0 // pred_check_branch
    %446 = sbr.rel (0) target = $region29
  $region28: #{_lambda_.24} parent=0 // pred_region
    _
  $region29: #{_lambda_.24} parent=0 // pred_fallthru
    _

// kernel: _lambda_.25
$region0: #{_lambda_.25}
  #allocation0 [shape = 'u32[]', space=smem, size = 0x4, offset = 0x4, fixed_abs, tag = 'smem constant byte address 0x4 - core index']
  #allocation1 [shape = 'u32[72,128]{1,0:T(1,128)}', space=vmem, size = 0x9000, scoped, tag = 'internal scratch']
  #allocation2 [shape = 'f32[50,32]{1,0:T(8,128)}', space=vmem, size = 0x7000, scoped, tag = 'scratch operand']
  %s0 = inlined_call_operand.vmem [shape: bf16[50,256], index: 0, kind: input, shape index: {}]
  %s1 = inlined_call_operand.vmem [shape: bf16[256,32], index: 1, kind: input, shape index: {}]
  %s2 = inlined_call_operand.vmem [shape: f32[1,32], index: 2, kind: input, shape index: {}]
  %s3 = inlined_call_operand.vmem [shape: f32[50,32], index: 3, kind: output, shape index: {}]
  %s4 = sld [smem:[#allocation0]]
  $region30: #{_lambda_.25} parent=0
    _
  %s6 = ssub.s32 1, %s4
  %s7 = scalar_select 0, %s6, %s4
  // Predicated region
  $region2: #{_lambda_.25} parent=0 // pred_check
    _
  $region3: #{_lambda_.25} parent=0 // pred_check_branch
    %9 = sbr.rel (0) target = $region5
  $region4: #{_lambda_.25} parent=0 // pred_region
    _
  $region5: #{_lambda_.25} parent=0 // pred_fallthru
    _
  // Predicated region
  $region6: #{_lambda_.25} parent=0 // pred_check
    _
  $region7: #{_lambda_.25} parent=0 // pred_check_branch
    %11 = sbr.rel (0) target = $region9
  $region8: #{_lambda_.25} parent=0 // pred_region
    _
  $region9: #{_lambda_.25} parent=0 // pred_fallthru
    _
  // Predicated region
  $region10: #{_lambda_.25} parent=0 // pred_check
    _
  $region11: #{_lambda_.25} parent=0 // pred_check_branch
    %13 = sbr.rel (0) target = $region13
  $region12: #{_lambda_.25} parent=0 // pred_region
    _
  $region13: #{_lambda_.25} parent=0 // pred_fallthru
    _
  %p14 = scmp.eq.s32.totalorder 0, 0
  // Predicated region
  $region14: #{_lambda_.25} parent=0 // pred_check
    %p15 = pneg %p14
  $region15: #{_lambda_.25} parent=0 // pred_check_branch
    %17 = sbr.rel (%p15) target = $region17
  $region16: #{_lambda_.25} parent=0 // pred_region
    %vm18 = vcmask 261120
    %19 = vst.msk [vmem:[#allocation2] sm:$0xff] %vm18, 0.0
    %20 = vst.msk [vmem:[#allocation2 + $0x8] sm:$0xff] %vm18, 0.0
    %21 = vst.msk [vmem:[#allocation2 + $0x10] sm:$0xff] %vm18, 0.0
    %22 = vst.msk [vmem:[#allocation2 + $0x18] sm:$0xff] %vm18, 0.0
    %23 = vst.msk [vmem:[#allocation2 + $0x20] sm:$0xff] %vm18, 0.0
    %24 = vst.msk [vmem:[#allocation2 + $0x28] sm:$0xff] %vm18, 0.0
    %vm25 = vcmask 254976
    %26 = vst.msk [vmem:[#allocation2 + $0x30] sm:$0x3] %vm25, 0.0
  $region17: #{_lambda_.25} parent=0 // pred_fallthru
    _
  %v27 = vld [vmem:[#allocation2] sm:$0xff]
  %v28 = vld [vmem:[#allocation2 + $0x8] sm:$0xff]
  %v29 = vld [vmem:[#allocation2 + $0x10] sm:$0xff]
  %v30 = vld [vmem:[#allocation2 + $0x18] sm:$0xff]
  %v31 = vld [vmem:[#allocation2 + $0x20] sm:$0xff]
  %v32 = vld [vmem:[#allocation2 + $0x28] sm:$0xff]
  %v33 = vld [vmem:[#allocation2 + $0x30] sm:$0x3]
  %v34 = vld [vmem:[%s0] sm:$0xff]
  %v35 = vld [vmem:[%s0 + $0x8] sm:$0xff]
  %v36 = vld [vmem:[%s0 + $0x10] sm:$0xff]
  %v37 = vld [vmem:[%s0 + $0x18] sm:$0xff]
  %v38 = vld [vmem:[%s0 + $0x20] sm:$0xff]
  %v39 = vld [vmem:[%s0 + $0x28] sm:$0xff]
  %v40 = vld [vmem:[%s0 + $0x30] sm:$0x11]
  %v41 = vld [vmem:[%s1] sm:$0xf]
  %v42 = vld [vmem:[%s1 + $0x4] sm:$0xf]
  %v43 = vld [vmem:[%s1 + $0x8] sm:$0xf]
  %v44 = vld [vmem:[%s1 + $0xc] sm:$0xf]
  %v45 = vld [vmem:[%s1 + $0x10] sm:$0xf]
  %v46 = vld [vmem:[%s1 + $0x14] sm:$0xf]
  %v47 = vld [vmem:[%s1 + $0x18] sm:$0xf]
  %v48 = vld [vmem:[%s1 + $0x1c] sm:$0xf]
  %v49 = vld [vmem:[%s1 + $0x20] sm:$0xf]
  %v50 = vld [vmem:[%s1 + $0x24] sm:$0xf]
  %v51 = vld [vmem:[%s1 + $0x28] sm:$0xf]
  %v52 = vld [vmem:[%s1 + $0x2c] sm:$0xf]
  %v53 = vld [vmem:[%s1 + $0x30] sm:$0xf]
  %v54 = vld [vmem:[%s1 + $0x34] sm:$0xf]
  %v55 = vld [vmem:[%s1 + $0x38] sm:$0xf]
  %v56 = vld [vmem:[%s1 + $0x3c] sm:$0xf]
  %v57 = vld [vmem:[%s1 + $0x40] sm:$0xf]
  %v58 = vld [vmem:[%s1 + $0x44] sm:$0xf]
  %v59 = vld [vmem:[%s1 + $0x48] sm:$0xf]
  %v60 = vld [vmem:[%s1 + $0x4c] sm:$0xf]
  %v61 = vld [vmem:[%s1 + $0x50] sm:$0xf]
  %v62 = vld [vmem:[%s1 + $0x54] sm:$0xf]
  %v63 = vld [vmem:[%s1 + $0x58] sm:$0xf]
  %v64 = vld [vmem:[%s1 + $0x5c] sm:$0xf]
  %v65 = vld [vmem:[%s1 + $0x60] sm:$0xf]
  %v66 = vld [vmem:[%s1 + $0x64] sm:$0xf]
  %v67 = vld [vmem:[%s1 + $0x68] sm:$0xf]
  %v68 = vld [vmem:[%s1 + $0x6c] sm:$0xf]
  %v69 = vld [vmem:[%s1 + $0x70] sm:$0xf]
  %v70 = vld [vmem:[%s1 + $0x74] sm:$0xf]
  %v71 = vld [vmem:[%s1 + $0x78] sm:$0xf]
  %v72 = vld [vmem:[%s1 + $0x7c] sm:$0xf]
  %v80 = vunpack.c.l.b16 %v34
  %v81 = vunpack.c.h.b16 %v34
  %v82 = vunpack.c.l.b16 %v35
  %v83 = vunpack.c.h.b16 %v35
  %v84 = vunpack.c.l.b16 %v36
  %v85 = vunpack.c.h.b16 %v36
  %v86 = vunpack.c.l.b16 %v37
  %v87 = vunpack.c.h.b16 %v37
  %v88 = vunpack.c.l.b16 %v38
  %v89 = vunpack.c.h.b16 %v38
  %v90 = vunpack.c.l.b16 %v39
  %v91 = vunpack.c.h.b16 %v39
  %v92 = vunpack.c.l.b16 %v40
  %v93 = vunpack.c.h.b16 %v40
  %v94 = vpack.c.b16 %v82, %v80
  %v95 = vpack.c.b16 %v83, %v81
  %v96 = vpack.c.b16 %v86, %v84
  %v97 = vpack.c.b16 %v87, %v85
  %v98 = vpack.c.b16 %v90, %v88
  %v99 = vpack.c.b16 %v91, %v89
  %v100 = vpack.c.b16 %v92, %v92
  %v101 = vpack.c.b16 %v93, %v93
  %v142 = vunpack.c.l.b16 %v41
  %v143 = vunpack.c.l.b16 %v42
  %v144 = vunpack.c.l.b16 %v43
  %v145 = vunpack.c.l.b16 %v44
  %v146 = vunpack.c.l.b16 %v45
  %v147 = vunpack.c.l.b16 %v46
  %v148 = vunpack.c.l.b16 %v47
  %v149 = vunpack.c.l.b16 %v48
  %v150 = vunpack.c.l.b16 %v49
  %v151 = vunpack.c.l.b16 %v50
  %v152 = vunpack.c.l.b16 %v51
  %v153 = vunpack.c.l.b16 %v52
  %v154 = vunpack.c.l.b16 %v53
  %v155 = vunpack.c.l.b16 %v54
  %v156 = vunpack.c.l.b16 %v55
  %v157 = vunpack.c.l.b16 %v56
  %v158 = vunpack.c.l.b16 %v57
  %v159 = vunpack.c.l.b16 %v58
  %v160 = vunpack.c.l.b16 %v59
  %v161 = vunpack.c.l.b16 %v60
  %v162 = vunpack.c.l.b16 %v61
  %v163 = vunpack.c.l.b16 %v62
  %v164 = vunpack.c.l.b16 %v63
  %v165 = vunpack.c.l.b16 %v64
  %v166 = vunpack.c.l.b16 %v65
  %v167 = vunpack.c.l.b16 %v66
  %v168 = vunpack.c.l.b16 %v67
  %v169 = vunpack.c.l.b16 %v68
  %v170 = vunpack.c.l.b16 %v69
  %v171 = vunpack.c.l.b16 %v70
  %v172 = vunpack.c.l.b16 %v71
  %v173 = vunpack.c.l.b16 %v72
  %v174 = vpack.c.b16 %v143, %v142
  %v175 = vpack.c.b16 %v145, %v144
  %v176 = vpack.c.b16 %v147, %v146
  %v177 = vpack.c.b16 %v149, %v148
  %v178 = vpack.c.b16 %v151, %v150
  %v179 = vpack.c.b16 %v153, %v152
  %v180 = vpack.c.b16 %v155, %v154
  %v181 = vpack.c.b16 %v157, %v156
  %v182 = vpack.c.b16 %v159, %v158
  %v183 = vpack.c.b16 %v161, %v160
  %v184 = vpack.c.b16 %v163, %v162
  %v185 = vpack.c.b16 %v165, %v164
  %v186 = vpack.c.b16 %v167, %v166
  %v187 = vpack.c.b16 %v169, %v168
  %v188 = vpack.c.b16 %v171, %v170
  %v189 = vpack.c.b16 %v173, %v172
  %206 = vmatpush.bf16.msra.mxu0 %v181
  %207 = vmatpush.bf16.msra.mxu0 %v180
  %208 = vmatpush.bf16.msra.mxu0 %v179
  %209 = vmatpush.bf16.msra.mxu0 %v178
  %210 = vmatpush.bf16.msra.mxu0 %v177
  %211 = vmatpush.bf16.msra.mxu0 %v176
  %212 = vmatpush.bf16.msra.mxu0 %v175
  %213 = vmatpush.bf16.msra.mxu0 %v174
  %214 = vmatmul.bf16.gmra.mxu0 %v94
  %v215 = vpop.f32.mrf.mxu0
  %v216 = vadd.f32 0.0, %v215
  %v217 = vpop.f32.mrf.mxu0
  %v218 = vadd.f32 0.0, %v217
  %219 = vmatmul.bf16.gmra.mxu0 %v96
  %v220 = vpop.f32.mrf.mxu0
  %v221 = vadd.f32 0.0, %v220
  %v222 = vpop.f32.mrf.mxu0
  %v223 = vadd.f32 0.0, %v222
  %224 = vmatmul.bf16.gmra.mxu0 %v98
  %v225 = vpop.f32.mrf.mxu0
  %v226 = vadd.f32 0.0, %v225
  %v227 = vpop.f32.mrf.mxu0
  %v228 = vadd.f32 0.0, %v227
  %229 = vmatmul.bf16.gmra.mxu0 %v100
  %v230 = vpop.f32.mrf.mxu0
  %v231 = vadd.f32 0.0, %v230
  %v232 = vpop.f32.mrf.mxu0
  %233 = vdwg.mxu0
  %234 = vmatpush.bf16.msra.mxu0 %v189
  %235 = vmatpush.bf16.msra.mxu0 %v188
  %236 = vmatpush.bf16.msra.mxu0 %v187
  %237 = vmatpush.bf16.msra.mxu0 %v186
  %238 = vmatpush.bf16.msra.mxu0 %v185
  %239 = vmatpush.bf16.msra.mxu0 %v184
  %240 = vmatpush.bf16.msra.mxu0 %v183
  %241 = vmatpush.bf16.msra.mxu0 %v182
  %242 = vmatmul.bf16.gmra.mxu0 %v95
  %v243 = vpop.f32.mrf.mxu0
  %v244 = vadd.f32 %v216, %v243
  %v245 = vpop.f32.mrf.mxu0
  %v246 = vadd.f32 %v218, %v245
  %247 = vmatmul.bf16.gmra.mxu0 %v97
  %v248 = vpop.f32.mrf.mxu0
  %v249 = vadd.f32 %v221, %v248
  %v250 = vpop.f32.mrf.mxu0
  %v251 = vadd.f32 %v223, %v250
  %252 = vmatmul.bf16.gmra.mxu0 %v99
  %v253 = vpop.f32.mrf.mxu0
  %v254 = vadd.f32 %v226, %v253
  %v255 = vpop.f32.mrf.mxu0
  %v256 = vadd.f32 %v228, %v255
  %257 = vmatmul.bf16.gmra.mxu0 %v101
  %v258 = vpop.f32.mrf.mxu0
  %v259 = vadd.f32 %v231, %v258
  %v260 = vpop.f32.mrf.mxu0
  %261 = vdwg.mxu0
  %v262 = vadd.f32 %v27, %v244
  %v263 = vadd.f32 %v28, %v246
  %v264 = vadd.f32 %v29, %v249
  %v265 = vadd.f32 %v30, %v251
  %v266 = vadd.f32 %v31, %v254
  %v267 = vadd.f32 %v32, %v256
  %v268 = vadd.f32 %v33, %v259
  %vm269 = vcmask 261120
  %270 = vst.msk [vmem:[#allocation2] sm:$0xff] %vm269, %v262
  %271 = vst.msk [vmem:[#allocation2 + $0x8] sm:$0xff] %vm269, %v263
  %272 = vst.msk [vmem:[#allocation2 + $0x10] sm:$0xff] %vm269, %v264
  %273 = vst.msk [vmem:[#allocation2 + $0x18] sm:$0xff] %vm269, %v265
  %274 = vst.msk [vmem:[#allocation2 + $0x20] sm:$0xff] %vm269, %v266
  %275 = vst.msk [vmem:[#allocation2 + $0x28] sm:$0xff] %vm269, %v267
  %vm276 = vcmask 254976
  %277 = vst.msk [vmem:[#allocation2 + $0x30] sm:$0x3] %vm276, %v268
  // Predicated region
  $region18: #{_lambda_.25} parent=0 // pred_check
    %p278 = pneg %p14
  $region19: #{_lambda_.25} parent=0 // pred_check_branch
    %280 = sbr.rel (%p278) target = $region21
  $region20: #{_lambda_.25} parent=0 // pred_region
    %v281 = vld [vmem:[#allocation2] sm:$0xff]
    %v282 = vld [vmem:[#allocation2 + $0x8] sm:$0xff]
    %v283 = vld [vmem:[#allocation2 + $0x10] sm:$0xff]
    %v284 = vld [vmem:[#allocation2 + $0x18] sm:$0xff]
    %v285 = vld [vmem:[#allocation2 + $0x20] sm:$0xff]
    %v286 = vld [vmem:[#allocation2 + $0x28] sm:$0xff]
    %v287 = vld [vmem:[#allocation2 + $0x30] sm:$0x3]
    %v288 = vld [vmem:[%s2] sm:$0x1]
    %v290 = vperm.slane %v288, 0
    %v292 = vadd.f32 %v281, %v290
    %v293 = vadd.f32 %v282, %v290
    %v294 = vadd.f32 %v283, %v290
    %v295 = vadd.f32 %v284, %v290
    %v296 = vadd.f32 %v285, %v290
    %v297 = vadd.f32 %v286, %v290
    %v298 = vadd.f32 %v287, %v290
    %299 = vst.msk [vmem:[%s3] sm:$0xff] %vm269, %v292
    %300 = vst.msk [vmem:[%s3 + $0x8] sm:$0xff] %vm269, %v293
    %301 = vst.msk [vmem:[%s3 + $0x10] sm:$0xff] %vm269, %v294
    %302 = vst.msk [vmem:[%s3 + $0x18] sm:$0xff] %vm269, %v295
    %303 = vst.msk [vmem:[%s3 + $0x20] sm:$0xff] %vm269, %v296
    %304 = vst.msk [vmem:[%s3 + $0x28] sm:$0xff] %vm269, %v297
    %305 = vst.msk [vmem:[%s3 + $0x30] sm:$0x3] %vm276, %v298
  $region21: #{_lambda_.25} parent=0 // pred_fallthru
    _
  // Predicated region
  $region22: #{_lambda_.25} parent=0 // pred_check
    _
  $region23: #{_lambda_.25} parent=0 // pred_check_branch
    %307 = sbr.rel (0) target = $region25
  $region24: #{_lambda_.25} parent=0 // pred_region
    _
  $region25: #{_lambda_.25} parent=0 // pred_fallthru
    _
  // Predicated region
  $region26: #{_lambda_.25} parent=0 // pred_check
    _
  $region27: #{_lambda_.25} parent=0 // pred_check_branch
    %309 = sbr.rel (0) target = $region29
  $region28: #{_lambda_.25} parent=0 // pred_region
    _
  $region29: #{_lambda_.25} parent=0 // pred_fallthru
    _

// kernel: _lambda_.26
$region0: #{_lambda_.26}
  #allocation0 [shape = 'u32[]', space=smem, size = 0x4, offset = 0x4, fixed_abs, tag = 'smem constant byte address 0x4 - core index']
  #allocation1 [shape = 'u32[72,128]{1,0:T(1,128)}', space=vmem, size = 0x9000, scoped, tag = 'internal scratch']
  %s0 = inlined_call_operand.vmem [shape: f32[50,32], index: 0, kind: input, shape index: {}]
  %s1 = inlined_call_operand.vmem [shape: f32[1,32], index: 1, kind: input, shape index: {}]
  %s2 = inlined_call_operand.vmem [shape: f32[1,32], index: 2, kind: input, shape index: {}]
  %s3 = inlined_call_operand.vmem [shape: f32[50,32], index: 3, kind: output, shape index: {}]
  %s4 = sld [smem:[#allocation0]]
  $region22: #{_lambda_.26} parent=0
    _
  %s6 = ssub.s32 1, %s4
  %s7 = scalar_select 0, %s6, %s4
  // Predicated region
  $region2: #{_lambda_.26} parent=0 // pred_check
    _
  $region3: #{_lambda_.26} parent=0 // pred_check_branch
    %9 = sbr.rel (0) target = $region5
  $region4: #{_lambda_.26} parent=0 // pred_region
    _
  $region5: #{_lambda_.26} parent=0 // pred_fallthru
    _
  // Predicated region
  $region6: #{_lambda_.26} parent=0 // pred_check
    _
  $region7: #{_lambda_.26} parent=0 // pred_check_branch
    %11 = sbr.rel (0) target = $region9
  $region8: #{_lambda_.26} parent=0 // pred_region
    _
  $region9: #{_lambda_.26} parent=0 // pred_fallthru
    _
  // Predicated region
  $region10: #{_lambda_.26} parent=0 // pred_check
    _
  $region11: #{_lambda_.26} parent=0 // pred_check_branch
    %13 = sbr.rel (0) target = $region13
  $region12: #{_lambda_.26} parent=0 // pred_region
    _
  $region13: #{_lambda_.26} parent=0 // pred_fallthru
    _
  %v14 = vld [vmem:[%s0] sm:$0xff]
  %v15 = vld [vmem:[%s0 + $0x8] sm:$0xff]
  %v16 = vld [vmem:[%s0 + $0x10] sm:$0xff]
  %v17 = vld [vmem:[%s0 + $0x18] sm:$0xff]
  %v18 = vld [vmem:[%s0 + $0x20] sm:$0xff]
  %v19 = vld [vmem:[%s0 + $0x28] sm:$0xff]
  %v20 = vld [vmem:[%s0 + $0x30] sm:$0x3]
  %v21 = vld [vmem:[%s1] sm:$0x1]
  %v23 = vperm.slane %v21, 0
  %v25 = vmul.f32 %v14, %v23
  %v26 = vmul.f32 %v15, %v23
  %v27 = vmul.f32 %v16, %v23
  %v28 = vmul.f32 %v17, %v23
  %v29 = vmul.f32 %v18, %v23
  %v30 = vmul.f32 %v19, %v23
  %v31 = vmul.f32 %v20, %v23
  %v32 = vld [vmem:[%s2] sm:$0x1]
  %v34 = vperm.slane %v32, 0
  %v36 = vadd.f32 %v25, %v34
  %v37 = vadd.f32 %v26, %v34
  %v38 = vadd.f32 %v27, %v34
  %v39 = vadd.f32 %v28, %v34
  %v40 = vadd.f32 %v29, %v34
  %v41 = vadd.f32 %v30, %v34
  %v42 = vadd.f32 %v31, %v34
  %vm43 = vcmp.gt.f32.partialorder %v36, 0.0
  %vm44 = vcmp.gt.f32.partialorder %v37, 0.0
  %vm45 = vcmp.gt.f32.partialorder %v38, 0.0
  %vm46 = vcmp.gt.f32.partialorder %v39, 0.0
  %vm47 = vcmp.gt.f32.partialorder %v40, 0.0
  %vm48 = vcmp.gt.f32.partialorder %v41, 0.0
  %vm49 = vcmp.gt.f32.partialorder %v42, 0.0
  %v50 = vmul.f32 %v36, 0.2
  %v51 = vmul.f32 %v37, 0.2
  %v52 = vmul.f32 %v38, 0.2
  %v53 = vmul.f32 %v39, 0.2
  %v54 = vmul.f32 %v40, 0.2
  %v55 = vmul.f32 %v41, 0.2
  %v56 = vmul.f32 %v42, 0.2
  %v57 = vsel %vm43, %v36, %v50
  %v58 = vsel %vm44, %v37, %v51
  %v59 = vsel %vm45, %v38, %v52
  %v60 = vsel %vm46, %v39, %v53
  %v61 = vsel %vm47, %v40, %v54
  %v62 = vsel %vm48, %v41, %v55
  %v63 = vsel %vm49, %v42, %v56
  %vm64 = vcmask 261120
  %65 = vst.msk [vmem:[%s3] sm:$0xff] %vm64, %v57
  %66 = vst.msk [vmem:[%s3 + $0x8] sm:$0xff] %vm64, %v58
  %67 = vst.msk [vmem:[%s3 + $0x10] sm:$0xff] %vm64, %v59
  %68 = vst.msk [vmem:[%s3 + $0x18] sm:$0xff] %vm64, %v60
  %69 = vst.msk [vmem:[%s3 + $0x20] sm:$0xff] %vm64, %v61
  %70 = vst.msk [vmem:[%s3 + $0x28] sm:$0xff] %vm64, %v62
  %vm71 = vcmask 254976
  %72 = vst.msk [vmem:[%s3 + $0x30] sm:$0x3] %vm71, %v63
  // Predicated region
  $region14: #{_lambda_.26} parent=0 // pred_check
    _
  $region15: #{_lambda_.26} parent=0 // pred_check_branch
    %74 = sbr.rel (0) target = $region17
  $region16: #{_lambda_.26} parent=0 // pred_region
    _
  $region17: #{_lambda_.26} parent=0 // pred_fallthru
    _
  // Predicated region
  $region18: #{_lambda_.26} parent=0 // pred_check
    _
  $region19: #{_lambda_.26} parent=0 // pred_check_branch
    %76 = sbr.rel (0) target = $region21
  $region20: #{_lambda_.26} parent=0 // pred_region
    _
  $region21: #{_lambda_.26} parent=0 // pred_fallthru
    _

// kernel: _lambda_.28
$region0: #{_lambda_.28}
  #allocation0 [shape = 'u32[]', space=smem, size = 0x4, offset = 0x4, fixed_abs, tag = 'smem constant byte address 0x4 - core index']
  #allocation1 [shape = 'u32[72,128]{1,0:T(1,128)}', space=vmem, size = 0x9000, scoped, tag = 'internal scratch']
  %s0 = inlined_call_operand.vmem [shape: f32[18,64], index: 0, kind: input, shape index: {}]
  %s1 = inlined_call_operand.vmem [shape: f32[1,64], index: 1, kind: input, shape index: {}]
  %s2 = inlined_call_operand.vmem [shape: f32[1,64], index: 2, kind: input, shape index: {}]
  %s3 = inlined_call_operand.vmem [shape: f32[18,64], index: 3, kind: output, shape index: {}]
  %s4 = sld [smem:[#allocation0]]
  $region22: #{_lambda_.28} parent=0
    _
  %s6 = ssub.s32 1, %s4
  %s7 = scalar_select 0, %s6, %s4
  // Predicated region
  $region2: #{_lambda_.28} parent=0 // pred_check
    _
  $region3: #{_lambda_.28} parent=0 // pred_check_branch
    %9 = sbr.rel (0) target = $region5
  $region4: #{_lambda_.28} parent=0 // pred_region
    _
  $region5: #{_lambda_.28} parent=0 // pred_fallthru
    _
  // Predicated region
  $region6: #{_lambda_.28} parent=0 // pred_check
    _
  $region7: #{_lambda_.28} parent=0 // pred_check_branch
    %11 = sbr.rel (0) target = $region9
  $region8: #{_lambda_.28} parent=0 // pred_region
    _
  $region9: #{_lambda_.28} parent=0 // pred_fallthru
    _
  // Predicated region
  $region10: #{_lambda_.28} parent=0 // pred_check
    _
  $region11: #{_lambda_.28} parent=0 // pred_check_branch
    %13 = sbr.rel (0) target = $region13
  $region12: #{_lambda_.28} parent=0 // pred_region
    _
  $region13: #{_lambda_.28} parent=0 // pred_fallthru
    _
  %v14 = vld [vmem:[%s0] sm:$0xff]
  %v15 = vld [vmem:[%s0 + $0x8] sm:$0xff]
  %v16 = vld [vmem:[%s0 + $0x10] sm:$0x3]
  %v17 = vld [vmem:[%s1] sm:$0x1]
  %v19 = vperm.slane %v17, 0
  %v21 = vmul.f32 %v14, %v19
  %v22 = vmul.f32 %v15, %v19
  %v23 = vmul.f32 %v16, %v19
  %v24 = vld [vmem:[%s2] sm:$0x1]
  %v26 = vperm.slane %v24, 0
  %v28 = vadd.f32 %v21, %v26
  %v29 = vadd.f32 %v22, %v26
  %v30 = vadd.f32 %v23, %v26
  %vm31 = vcmp.gt.f32.partialorder %v28, 0.0
  %vm32 = vcmp.gt.f32.partialorder %v29, 0.0
  %vm33 = vcmp.gt.f32.partialorder %v30, 0.0
  %v34 = vmul.f32 %v28, 0.2
  %v35 = vmul.f32 %v29, 0.2
  %v36 = vmul.f32 %v30, 0.2
  %v37 = vsel %vm31, %v28, %v34
  %v38 = vsel %vm32, %v29, %v35
  %v39 = vsel %vm33, %v30, %v36
  %vm40 = vcmask 523264
  %41 = vst.msk [vmem:[%s3] sm:$0xff] %vm40, %v37
  %42 = vst.msk [vmem:[%s3 + $0x8] sm:$0xff] %vm40, %v38
  %vm43 = vcmask 517120
  %44 = vst.msk [vmem:[%s3 + $0x10] sm:$0x3] %vm43, %v39
  // Predicated region
  $region14: #{_lambda_.28} parent=0 // pred_check
    _
  $region15: #{_lambda_.28} parent=0 // pred_check_branch
    %46 = sbr.rel (0) target = $region17
  $region16: #{_lambda_.28} parent=0 // pred_region
    _
  $region17: #{_lambda_.28} parent=0 // pred_fallthru
    _
  // Predicated region
  $region18: #{_lambda_.28} parent=0 // pred_check
    _
  $region19: #{_lambda_.28} parent=0 // pred_check_branch
    %48 = sbr.rel (0) target = $region21
  $region20: #{_lambda_.28} parent=0 // pred_region
    _
  $region21: #{_lambda_.28} parent=0 // pred_fallthru
    _

// kernel: _lambda_.27
$region0: #{_lambda_.27}
  #allocation0 [shape = 'u32[]', space=smem, size = 0x4, offset = 0x4, fixed_abs, tag = 'smem constant byte address 0x4 - core index']
  #allocation1 [shape = 'u32[72,128]{1,0:T(1,128)}', space=vmem, size = 0x9000, scoped, tag = 'internal scratch']
  #allocation2 [shape = 'f32[18,64]{1,0:T(8,128)}', space=vmem, size = 0x3000, scoped, tag = 'scratch operand']
  %s0 = inlined_call_operand.vmem [shape: bf16[18,512], index: 0, kind: input, shape index: {}]
  %s1 = inlined_call_operand.vmem [shape: bf16[512,64], index: 1, kind: input, shape index: {}]
  %s2 = inlined_call_operand.vmem [shape: f32[1,64], index: 2, kind: input, shape index: {}]
  %s3 = inlined_call_operand.vmem [shape: f32[18,64], index: 3, kind: output, shape index: {}]
  %s4 = sld [smem:[#allocation0]]
  $region30: #{_lambda_.27} parent=0
    _
  %s6 = ssub.s32 1, %s4
  %s7 = scalar_select 0, %s6, %s4
  // Predicated region
  $region2: #{_lambda_.27} parent=0 // pred_check
    _
  $region3: #{_lambda_.27} parent=0 // pred_check_branch
    %9 = sbr.rel (0) target = $region5
  $region4: #{_lambda_.27} parent=0 // pred_region
    _
  $region5: #{_lambda_.27} parent=0 // pred_fallthru
    _
  // Predicated region
  $region6: #{_lambda_.27} parent=0 // pred_check
    _
  $region7: #{_lambda_.27} parent=0 // pred_check_branch
    %11 = sbr.rel (0) target = $region9
  $region8: #{_lambda_.27} parent=0 // pred_region
    _
  $region9: #{_lambda_.27} parent=0 // pred_fallthru
    _
  // Predicated region
  $region10: #{_lambda_.27} parent=0 // pred_check
    _
  $region11: #{_lambda_.27} parent=0 // pred_check_branch
    %13 = sbr.rel (0) target = $region13
  $region12: #{_lambda_.27} parent=0 // pred_region
    _
  $region13: #{_lambda_.27} parent=0 // pred_fallthru
    _
  %p14 = scmp.eq.s32.totalorder 0, 0
  // Predicated region
  $region14: #{_lambda_.27} parent=0 // pred_check
    %p15 = pneg %p14
  $region15: #{_lambda_.27} parent=0 // pred_check_branch
    %17 = sbr.rel (%p15) target = $region17
  $region16: #{_lambda_.27} parent=0 // pred_region
    %vm18 = vcmask 523264
    %19 = vst.msk [vmem:[#allocation2] sm:$0xff] %vm18, 0.0
    %20 = vst.msk [vmem:[#allocation2 + $0x8] sm:$0xff] %vm18, 0.0
    %vm21 = vcmask 517120
    %22 = vst.msk [vmem:[#allocation2 + $0x10] sm:$0x3] %vm21, 0.0
  $region17: #{_lambda_.27} parent=0 // pred_fallthru
    _
  %v23 = vld [vmem:[#allocation2] sm:$0xff]
  %v24 = vld [vmem:[#allocation2 + $0x8] sm:$0xff]
  %v25 = vld [vmem:[#allocation2 + $0x10] sm:$0x3]
  %v26 = vld [vmem:[%s0] sm:$0xff]
  %v27 = vld [vmem:[%s0 + $0x8] sm:$0xff]
  %v28 = vld [vmem:[%s0 + $0x10] sm:$0xff]
  %v29 = vld [vmem:[%s0 + $0x18] sm:$0xff]
  %v30 = vld [vmem:[%s0 + $0x20] sm:$0x11]
  %v31 = vld [vmem:[%s0 + $0x28] sm:$0x11]
  %v32 = vld [vmem:[%s1] sm:$0xf]
  %v33 = vld [vmem:[%s1 + $0x4] sm:$0xf]
  %v34 = vld [vmem:[%s1 + $0x8] sm:$0xf]
  %v35 = vld [vmem:[%s1 + $0xc] sm:$0xf]
  %v36 = vld [vmem:[%s1 + $0x10] sm:$0xf]
  %v37 = vld [vmem:[%s1 + $0x14] sm:$0xf]
  %v38 = vld [vmem:[%s1 + $0x18] sm:$0xf]
  %v39 = vld [vmem:[%s1 + $0x1c] sm:$0xf]
  %v40 = vld [vmem:[%s1 + $0x20] sm:$0xf]
  %v41 = vld [vmem:[%s1 + $0x24] sm:$0xf]
  %v42 = vld [vmem:[%s1 + $0x28] sm:$0xf]
  %v43 = vld [vmem:[%s1 + $0x2c] sm:$0xf]
  %v44 = vld [vmem:[%s1 + $0x30] sm:$0xf]
  %v45 = vld [vmem:[%s1 + $0x34] sm:$0xf]
  %v46 = vld [vmem:[%s1 + $0x38] sm:$0xf]
  %v47 = vld [vmem:[%s1 + $0x3c] sm:$0xf]
  %v48 = vld [vmem:[%s1 + $0x40] sm:$0xf]
  %v49 = vld [vmem:[%s1 + $0x44] sm:$0xf]
  %v50 = vld [vmem:[%s1 + $0x48] sm:$0xf]
  %v51 = vld [vmem:[%s1 + $0x4c] sm:$0xf]
  %v52 = vld [vmem:[%s1 + $0x50] sm:$0xf]
  %v53 = vld [vmem:[%s1 + $0x54] sm:$0xf]
  %v54 = vld [vmem:[%s1 + $0x58] sm:$0xf]
  %v55 = vld [vmem:[%s1 + $0x5c] sm:$0xf]
  %v56 = vld [vmem:[%s1 + $0x60] sm:$0xf]
  %v57 = vld [vmem:[%s1 + $0x64] sm:$0xf]
  %v58 = vld [vmem:[%s1 + $0x68] sm:$0xf]
  %v59 = vld [vmem:[%s1 + $0x6c] sm:$0xf]
  %v60 = vld [vmem:[%s1 + $0x70] sm:$0xf]
  %v61 = vld [vmem:[%s1 + $0x74] sm:$0xf]
  %v62 = vld [vmem:[%s1 + $0x78] sm:$0xf]
  %v63 = vld [vmem:[%s1 + $0x7c] sm:$0xf]
  %v64 = vld [vmem:[%s1 + $0x80] sm:$0xf]
  %v65 = vld [vmem:[%s1 + $0x84] sm:$0xf]
  %v66 = vld [vmem:[%s1 + $0x88] sm:$0xf]
  %v67 = vld [vmem:[%s1 + $0x8c] sm:$0xf]
  %v68 = vld [vmem:[%s1 + $0x90] sm:$0xf]
  %v69 = vld [vmem:[%s1 + $0x94] sm:$0xf]
  %v70 = vld [vmem:[%s1 + $0x98] sm:$0xf]
  %v71 = vld [vmem:[%s1 + $0x9c] sm:$0xf]
  %v72 = vld [vmem:[%s1 + $0xa0] sm:$0xf]
  %v73 = vld [vmem:[%s1 + $0xa4] sm:$0xf]
  %v74 = vld [vmem:[%s1 + $0xa8] sm:$0xf]
  %v75 = vld [vmem:[%s1 + $0xac] sm:$0xf]
  %v76 = vld [vmem:[%s1 + $0xb0] sm:$0xf]
  %v77 = vld [vmem:[%s1 + $0xb4] sm:$0xf]
  %v78 = vld [vmem:[%s1 + $0xb8] sm:$0xf]
  %v79 = vld [vmem:[%s1 + $0xbc] sm:$0xf]
  %v80 = vld [vmem:[%s1 + $0xc0] sm:$0xf]
  %v81 = vld [vmem:[%s1 + $0xc4] sm:$0xf]
  %v82 = vld [vmem:[%s1 + $0xc8] sm:$0xf]
  %v83 = vld [vmem:[%s1 + $0xcc] sm:$0xf]
  %v84 = vld [vmem:[%s1 + $0xd0] sm:$0xf]
  %v85 = vld [vmem:[%s1 + $0xd4] sm:$0xf]
  %v86 = vld [vmem:[%s1 + $0xd8] sm:$0xf]
  %v87 = vld [vmem:[%s1 + $0xdc] sm:$0xf]
  %v88 = vld [vmem:[%s1 + $0xe0] sm:$0xf]
  %v89 = vld [vmem:[%s1 + $0xe4] sm:$0xf]
  %v90 = vld [vmem:[%s1 + $0xe8] sm:$0xf]
  %v91 = vld [vmem:[%s1 + $0xec] sm:$0xf]
  %v92 = vld [vmem:[%s1 + $0xf0] sm:$0xf]
  %v93 = vld [vmem:[%s1 + $0xf4] sm:$0xf]
  %v94 = vld [vmem:[%s1 + $0xf8] sm:$0xf]
  %v95 = vld [vmem:[%s1 + $0xfc] sm:$0xf]
  %v102 = vunpack.c.l.b16 %v26
  %v103 = vunpack.c.h.b16 %v26
  %v104 = vunpack.c.l.b16 %v27
  %v105 = vunpack.c.h.b16 %v27
  %v106 = vunpack.c.l.b16 %v28
  %v107 = vunpack.c.h.b16 %v28
  %v108 = vunpack.c.l.b16 %v29
  %v109 = vunpack.c.h.b16 %v29
  %v110 = vunpack.c.l.b16 %v30
  %v111 = vunpack.c.h.b16 %v30
  %v112 = vunpack.c.l.b16 %v31
  %v113 = vunpack.c.h.b16 %v31
  %v114 = vpack.c.b16 %v106, %v102
  %v115 = vpack.c.b16 %v107, %v103
  %v116 = vpack.c.b16 %v108, %v104
  %v117 = vpack.c.b16 %v109, %v105
  %v118 = vpack.c.b16 %v110, %v110
  %v119 = vpack.c.b16 %v111, %v111
  %v120 = vpack.c.b16 %v112, %v112
  %v121 = vpack.c.b16 %v113, %v113
  %v194 = vunpack.c.l.b16 %v32
  %v195 = vunpack.c.l.b16 %v33
  %v196 = vunpack.c.l.b16 %v34
  %v197 = vunpack.c.l.b16 %v35
  %v198 = vunpack.c.l.b16 %v36
  %v199 = vunpack.c.l.b16 %v37
  %v200 = vunpack.c.l.b16 %v38
  %v201 = vunpack.c.l.b16 %v39
  %v202 = vunpack.c.l.b16 %v40
  %v203 = vunpack.c.l.b16 %v41
  %v204 = vunpack.c.l.b16 %v42
  %v205 = vunpack.c.l.b16 %v43
  %v206 = vunpack.c.l.b16 %v44
  %v207 = vunpack.c.l.b16 %v45
  %v208 = vunpack.c.l.b16 %v46
  %v209 = vunpack.c.l.b16 %v47
  %v210 = vunpack.c.l.b16 %v48
  %v211 = vunpack.c.l.b16 %v49
  %v212 = vunpack.c.l.b16 %v50
  %v213 = vunpack.c.l.b16 %v51
  %v214 = vunpack.c.l.b16 %v52
  %v215 = vunpack.c.l.b16 %v53
  %v216 = vunpack.c.l.b16 %v54
  %v217 = vunpack.c.l.b16 %v55
  %v218 = vunpack.c.l.b16 %v56
  %v219 = vunpack.c.l.b16 %v57
  %v220 = vunpack.c.l.b16 %v58
  %v221 = vunpack.c.l.b16 %v59
  %v222 = vunpack.c.l.b16 %v60
  %v223 = vunpack.c.l.b16 %v61
  %v224 = vunpack.c.l.b16 %v62
  %v225 = vunpack.c.l.b16 %v63
  %v226 = vunpack.c.l.b16 %v64
  %v227 = vunpack.c.l.b16 %v65
  %v228 = vunpack.c.l.b16 %v66
  %v229 = vunpack.c.l.b16 %v67
  %v230 = vunpack.c.l.b16 %v68
  %v231 = vunpack.c.l.b16 %v69
  %v232 = vunpack.c.l.b16 %v70
  %v233 = vunpack.c.l.b16 %v71
  %v234 = vunpack.c.l.b16 %v72
  %v235 = vunpack.c.l.b16 %v73
  %v236 = vunpack.c.l.b16 %v74
  %v237 = vunpack.c.l.b16 %v75
  %v238 = vunpack.c.l.b16 %v76
  %v239 = vunpack.c.l.b16 %v77
  %v240 = vunpack.c.l.b16 %v78
  %v241 = vunpack.c.l.b16 %v79
  %v242 = vunpack.c.l.b16 %v80
  %v243 = vunpack.c.l.b16 %v81
  %v244 = vunpack.c.l.b16 %v82
  %v245 = vunpack.c.l.b16 %v83
  %v246 = vunpack.c.l.b16 %v84
  %v247 = vunpack.c.l.b16 %v85
  %v248 = vunpack.c.l.b16 %v86
  %v249 = vunpack.c.l.b16 %v87
  %v250 = vunpack.c.l.b16 %v88
  %v251 = vunpack.c.l.b16 %v89
  %v252 = vunpack.c.l.b16 %v90
  %v253 = vunpack.c.l.b16 %v91
  %v254 = vunpack.c.l.b16 %v92
  %v255 = vunpack.c.l.b16 %v93
  %v256 = vunpack.c.l.b16 %v94
  %v257 = vunpack.c.l.b16 %v95
  %v258 = vpack.c.b16 %v195, %v194
  %v259 = vpack.c.b16 %v197, %v196
  %v260 = vpack.c.b16 %v199, %v198
  %v261 = vpack.c.b16 %v201, %v200
  %v262 = vpack.c.b16 %v203, %v202
  %v263 = vpack.c.b16 %v205, %v204
  %v264 = vpack.c.b16 %v207, %v206
  %v265 = vpack.c.b16 %v209, %v208
  %v266 = vpack.c.b16 %v211, %v210
  %v267 = vpack.c.b16 %v213, %v212
  %v268 = vpack.c.b16 %v215, %v214
  %v269 = vpack.c.b16 %v217, %v216
  %v270 = vpack.c.b16 %v219, %v218
  %v271 = vpack.c.b16 %v221, %v220
  %v272 = vpack.c.b16 %v223, %v222
  %v273 = vpack.c.b16 %v225, %v224
  %v274 = vpack.c.b16 %v227, %v226
  %v275 = vpack.c.b16 %v229, %v228
  %v276 = vpack.c.b16 %v231, %v230
  %v277 = vpack.c.b16 %v233, %v232
  %v278 = vpack.c.b16 %v235, %v234
  %v279 = vpack.c.b16 %v237, %v236
  %v280 = vpack.c.b16 %v239, %v238
  %v281 = vpack.c.b16 %v241, %v240
  %v282 = vpack.c.b16 %v243, %v242
  %v283 = vpack.c.b16 %v245, %v244
  %v284 = vpack.c.b16 %v247, %v246
  %v285 = vpack.c.b16 %v249, %v248
  %v286 = vpack.c.b16 %v251, %v250
  %v287 = vpack.c.b16 %v253, %v252
  %v288 = vpack.c.b16 %v255, %v254
  %v289 = vpack.c.b16 %v257, %v256
  %322 = vmatpush.bf16.msra.mxu0 %v265
  %323 = vmatpush.bf16.msra.mxu0 %v264
  %324 = vmatpush.bf16.msra.mxu0 %v263
  %325 = vmatpush.bf16.msra.mxu0 %v262
  %326 = vmatpush.bf16.msra.mxu0 %v261
  %327 = vmatpush.bf16.msra.mxu0 %v260
  %328 = vmatpush.bf16.msra.mxu0 %v259
  %329 = vmatpush.bf16.msra.mxu0 %v258
  %330 = vmatmul.bf16.gmra.mxu0 %v114
  %v331 = vpop.f32.mrf.mxu0
  %v332 = vadd.f32 0.0, %v331
  %v333 = vpop.f32.mrf.mxu0
  %v334 = vadd.f32 0.0, %v333
  %335 = vmatmul.bf16.gmra.mxu0 %v118
  %v336 = vpop.f32.mrf.mxu0
  %v337 = vadd.f32 0.0, %v336
  %v338 = vpop.f32.mrf.mxu0
  %339 = vdwg.mxu0
  %340 = vmatpush.bf16.msra.mxu0 %v273
  %341 = vmatpush.bf16.msra.mxu0 %v272
  %342 = vmatpush.bf16.msra.mxu0 %v271
  %343 = vmatpush.bf16.msra.mxu0 %v270
  %344 = vmatpush.bf16.msra.mxu0 %v269
  %345 = vmatpush.bf16.msra.mxu0 %v268
  %346 = vmatpush.bf16.msra.mxu0 %v267
  %347 = vmatpush.bf16.msra.mxu0 %v266
  %348 = vmatmul.bf16.gmra.mxu0 %v115
  %v349 = vpop.f32.mrf.mxu0
  %v350 = vadd.f32 %v332, %v349
  %v351 = vpop.f32.mrf.mxu0
  %v352 = vadd.f32 %v334, %v351
  %353 = vmatmul.bf16.gmra.mxu0 %v119
  %v354 = vpop.f32.mrf.mxu0
  %v355 = vadd.f32 %v337, %v354
  %v356 = vpop.f32.mrf.mxu0
  %357 = vdwg.mxu0
  %358 = vmatpush.bf16.msra.mxu0 %v281
  %359 = vmatpush.bf16.msra.mxu0 %v280
  %360 = vmatpush.bf16.msra.mxu0 %v279
  %361 = vmatpush.bf16.msra.mxu0 %v278
  %362 = vmatpush.bf16.msra.mxu0 %v277
  %363 = vmatpush.bf16.msra.mxu0 %v276
  %364 = vmatpush.bf16.msra.mxu0 %v275
  %365 = vmatpush.bf16.msra.mxu0 %v274
  %366 = vmatmul.bf16.gmra.mxu0 %v116
  %v367 = vpop.f32.mrf.mxu0
  %v368 = vadd.f32 %v350, %v367
  %v369 = vpop.f32.mrf.mxu0
  %v370 = vadd.f32 %v352, %v369
  %371 = vmatmul.bf16.gmra.mxu0 %v120
  %v372 = vpop.f32.mrf.mxu0
  %v373 = vadd.f32 %v355, %v372
  %v374 = vpop.f32.mrf.mxu0
  %375 = vdwg.mxu0
  %376 = vmatpush.bf16.msra.mxu0 %v289
  %377 = vmatpush.bf16.msra.mxu0 %v288
  %378 = vmatpush.bf16.msra.mxu0 %v287
  %379 = vmatpush.bf16.msra.mxu0 %v286
  %380 = vmatpush.bf16.msra.mxu0 %v285
  %381 = vmatpush.bf16.msra.mxu0 %v284
  %382 = vmatpush.bf16.msra.mxu0 %v283
  %383 = vmatpush.bf16.msra.mxu0 %v282
  %384 = vmatmul.bf16.gmra.mxu0 %v117
  %v385 = vpop.f32.mrf.mxu0
  %v386 = vadd.f32 %v368, %v385
  %v387 = vpop.f32.mrf.mxu0
  %v388 = vadd.f32 %v370, %v387
  %389 = vmatmul.bf16.gmra.mxu0 %v121
  %v390 = vpop.f32.mrf.mxu0
  %v391 = vadd.f32 %v373, %v390
  %v392 = vpop.f32.mrf.mxu0
  %393 = vdwg.mxu0
  %v394 = vadd.f32 %v23, %v386
  %v395 = vadd.f32 %v24, %v388
  %v396 = vadd.f32 %v25, %v391
  %vm397 = vcmask 523264
  %398 = vst.msk [vmem:[#allocation2] sm:$0xff] %vm397, %v394
  %399 = vst.msk [vmem:[#allocation2 + $0x8] sm:$0xff] %vm397, %v395
  %vm400 = vcmask 517120
  %401 = vst.msk [vmem:[#allocation2 + $0x10] sm:$0x3] %vm400, %v396
  // Predicated region
  $region18: #{_lambda_.27} parent=0 // pred_check
    %p402 = pneg %p14
  $region19: #{_lambda_.27} parent=0 // pred_check_branch
    %404 = sbr.rel (%p402) target = $region21
  $region20: #{_lambda_.27} parent=0 // pred_region
    %v405 = vld [vmem:[#allocation2] sm:$0xff]
    %v406 = vld [vmem:[#allocation2 + $0x8] sm:$0xff]
    %v407 = vld [vmem:[#allocation2 + $0x10] sm:$0x3]
    %v408 = vld [vmem:[%s2] sm:$0x1]
    %v410 = vperm.slane %v408, 0
    %v412 = vadd.f32 %v405, %v410
    %v413 = vadd.f32 %v406, %v410
    %v414 = vadd.f32 %v407, %v410
    %415 = vst.msk [vmem:[%s3] sm:$0xff] %vm397, %v412
    %416 = vst.msk [vmem:[%s3 + $0x8] sm:$0xff] %vm397, %v413
    %417 = vst.msk [vmem:[%s3 + $0x10] sm:$0x3] %vm400, %v414
  $region21: #{_lambda_.27} parent=0 // pred_fallthru
    _
  // Predicated region
  $region22: #{_lambda_.27} parent=0 // pred_check
    _
  $region23: #{_lambda_.27} parent=0 // pred_check_branch
    %419 = sbr.rel (0) target = $region25
  $region24: #{_lambda_.27} parent=0 // pred_region
    _
  $region25: #{_lambda_.27} parent=0 // pred_fallthru
    _
  // Predicated region
  $region26: #{_lambda_.27} parent=0 // pred_check
    _
  $region27: #{_lambda_.27} parent=0 // pred_check_branch
    %421 = sbr.rel (0) target = $region29
  $region28: #{_lambda_.27} parent=0 // pred_region
    _
  $region29: #{_lambda_.27} parent=0 // pred_fallthru
    _

// kernel: _lambda_.30
$region0: #{_lambda_.30}
  #allocation0 [shape = 'u32[]', space=smem, size = 0x4, offset = 0x4, fixed_abs, tag = 'smem constant byte address 0x4 - core index']
  #allocation1 [shape = 'u32[72,128]{1,0:T(1,128)}', space=vmem, size = 0x9000, scoped, tag = 'internal scratch']
  %s0 = inlined_call_operand.vmem [shape: f32[32,128], index: 0, kind: input, shape index: {}]
  %s1 = inlined_call_operand.vmem [shape: f32[1,128], index: 1, kind: input, shape index: {}]
  %s2 = inlined_call_operand.vmem [shape: f32[1,128], index: 2, kind: input, shape index: {}]
  %s3 = inlined_call_operand.vmem [shape: f32[32,128], index: 3, kind: output, shape index: {}]
  %s4 = sld [smem:[#allocation0]]
  $region22: #{_lambda_.30} parent=0
    _
  %s6 = ssub.s32 1, %s4
  %s7 = scalar_select 0, %s6, %s4
  // Predicated region
  $region2: #{_lambda_.30} parent=0 // pred_check
    _
  $region3: #{_lambda_.30} parent=0 // pred_check_branch
    %9 = sbr.rel (0) target = $region5
  $region4: #{_lambda_.30} parent=0 // pred_region
    _
  $region5: #{_lambda_.30} parent=0 // pred_fallthru
    _
  // Predicated region
  $region6: #{_lambda_.30} parent=0 // pred_check
    _
  $region7: #{_lambda_.30} parent=0 // pred_check_branch
    %11 = sbr.rel (0) target = $region9
  $region8: #{_lambda_.30} parent=0 // pred_region
    _
  $region9: #{_lambda_.30} parent=0 // pred_fallthru
    _
  // Predicated region
  $region10: #{_lambda_.30} parent=0 // pred_check
    _
  $region11: #{_lambda_.30} parent=0 // pred_check_branch
    %13 = sbr.rel (0) target = $region13
  $region12: #{_lambda_.30} parent=0 // pred_region
    _
  $region13: #{_lambda_.30} parent=0 // pred_fallthru
    _
  %v14 = vld [vmem:[%s0] sm:$0xff]
  %v15 = vld [vmem:[%s0 + $0x8] sm:$0xff]
  %v16 = vld [vmem:[%s0 + $0x10] sm:$0xff]
  %v17 = vld [vmem:[%s0 + $0x18] sm:$0xff]
  %v18 = vld [vmem:[%s1] sm:$0x1]
  %v20 = vperm.slane %v18, 0
  %v22 = vmul.f32 %v14, %v20
  %v23 = vmul.f32 %v15, %v20
  %v24 = vmul.f32 %v16, %v20
  %v25 = vmul.f32 %v17, %v20
  %v26 = vld [vmem:[%s2] sm:$0x1]
  %v28 = vperm.slane %v26, 0
  %v30 = vadd.f32 %v22, %v28
  %v31 = vadd.f32 %v23, %v28
  %v32 = vadd.f32 %v24, %v28
  %v33 = vadd.f32 %v25, %v28
  %vm34 = vcmp.gt.f32.partialorder %v30, 0.0
  %vm35 = vcmp.gt.f32.partialorder %v31, 0.0
  %vm36 = vcmp.gt.f32.partialorder %v32, 0.0
  %vm37 = vcmp.gt.f32.partialorder %v33, 0.0
  %v38 = vmul.f32 %v30, 0.2
  %v39 = vmul.f32 %v31, 0.2
  %v40 = vmul.f32 %v32, 0.2
  %v41 = vmul.f32 %v33, 0.2
  %v42 = vsel %vm34, %v30, %v38
  %v43 = vsel %vm35, %v31, %v39
  %v44 = vsel %vm36, %v32, %v40
  %v45 = vsel %vm37, %v33, %v41
  %46 = vst [vmem:[%s3] sm:$0xff] %v42
  %47 = vst [vmem:[%s3 + $0x8] sm:$0xff] %v43
  %48 = vst [vmem:[%s3 + $0x10] sm:$0xff] %v44
  %49 = vst [vmem:[%s3 + $0x18] sm:$0xff] %v45
  // Predicated region
  $region14: #{_lambda_.30} parent=0 // pred_check
    _
  $region15: #{_lambda_.30} parent=0 // pred_check_branch
    %51 = sbr.rel (0) target = $region17
  $region16: #{_lambda_.30} parent=0 // pred_region
    _
  $region17: #{_lambda_.30} parent=0 // pred_fallthru
    _
  // Predicated region
  $region18: #{_lambda_.30} parent=0 // pred_check
    _
  $region19: #{_lambda_.30} parent=0 // pred_check_branch
    %53 = sbr.rel (0) target = $region21
  $region20: #{_lambda_.30} parent=0 // pred_region
    _
  $region21: #{_lambda_.30} parent=0 // pred_fallthru
    _

// kernel: _lambda_.29
$region0: #{_lambda_.29}
  #allocation0 [shape = 'u32[]', space=smem, size = 0x4, offset = 0x4, fixed_abs, tag = 'smem constant byte address 0x4 - core index']
  #allocation1 [shape = 'u32[72,128]{1,0:T(1,128)}', space=vmem, size = 0x9000, scoped, tag = 'internal scratch']
  #allocation2 [shape = 'f32[32,128]{1,0:T(8,128)}', space=vmem, size = 0x4000, scoped, tag = 'scratch operand']
  %s0 = inlined_call_operand.vmem [shape: bf16[32,1024], index: 0, kind: input, shape index: {}]
  %s1 = inlined_call_operand.vmem [shape: bf16[1024,128], index: 1, kind: input, shape index: {}]
  %s2 = inlined_call_operand.vmem [shape: f32[1,128], index: 2, kind: input, shape index: {}]
  %s3 = inlined_call_operand.vmem [shape: f32[32,128], index: 3, kind: output, shape index: {}]
  %s4 = sld [smem:[#allocation0]]
  $region30: #{_lambda_.29} parent=0
    _
  %s6 = ssub.s32 1, %s4
  %s7 = scalar_select 0, %s6, %s4
  // Predicated region
  $region2: #{_lambda_.29} parent=0 // pred_check
    _
  $region3: #{_lambda_.29} parent=0 // pred_check_branch
    %9 = sbr.rel (0) target = $region5
  $region4: #{_lambda_.29} parent=0 // pred_region
    _
  $region5: #{_lambda_.29} parent=0 // pred_fallthru
    _
  // Predicated region
  $region6: #{_lambda_.29} parent=0 // pred_check
    _
  $region7: #{_lambda_.29} parent=0 // pred_check_branch
    %11 = sbr.rel (0) target = $region9
  $region8: #{_lambda_.29} parent=0 // pred_region
    _
  $region9: #{_lambda_.29} parent=0 // pred_fallthru
    _
  // Predicated region
  $region10: #{_lambda_.29} parent=0 // pred_check
    _
  $region11: #{_lambda_.29} parent=0 // pred_check_branch
    %13 = sbr.rel (0) target = $region13
  $region12: #{_lambda_.29} parent=0 // pred_region
    _
  $region13: #{_lambda_.29} parent=0 // pred_fallthru
    _
  %p14 = scmp.eq.s32.totalorder 0, 0
  // Predicated region
  $region14: #{_lambda_.29} parent=0 // pred_check
    %p15 = pneg %p14
  $region15: #{_lambda_.29} parent=0 // pred_check_branch
    %17 = sbr.rel (%p15) target = $region17
  $region16: #{_lambda_.29} parent=0 // pred_region
    %18 = vst [vmem:[#allocation2] sm:$0xff] 0.0
    %19 = vst [vmem:[#allocation2 + $0x8] sm:$0xff] 0.0
    %20 = vst [vmem:[#allocation2 + $0x10] sm:$0xff] 0.0
    %21 = vst [vmem:[#allocation2 + $0x18] sm:$0xff] 0.0
  $region17: #{_lambda_.29} parent=0 // pred_fallthru
    _
  %v22 = vld [vmem:[#allocation2] sm:$0xff]
  %v23 = vld [vmem:[#allocation2 + $0x8] sm:$0xff]
  %v24 = vld [vmem:[#allocation2 + $0x10] sm:$0xff]
  %v25 = vld [vmem:[#allocation2 + $0x18] sm:$0xff]
  %v26 = vld [vmem:[%s0] sm:$0xff]
  %v27 = vld [vmem:[%s0 + $0x8] sm:$0xff]
  %v28 = vld [vmem:[%s0 + $0x10] sm:$0xff]
  %v29 = vld [vmem:[%s0 + $0x18] sm:$0xff]
  %v30 = vld [vmem:[%s0 + $0x20] sm:$0xff]
  %v31 = vld [vmem:[%s0 + $0x28] sm:$0xff]
  %v32 = vld [vmem:[%s0 + $0x30] sm:$0xff]
  %v33 = vld [vmem:[%s0 + $0x38] sm:$0xff]
  %v34 = vld [vmem:[%s0 + $0x40] sm:$0xff]
  %v35 = vld [vmem:[%s0 + $0x48] sm:$0xff]
  %v36 = vld [vmem:[%s0 + $0x50] sm:$0xff]
  %v37 = vld [vmem:[%s0 + $0x58] sm:$0xff]
  %v38 = vld [vmem:[%s0 + $0x60] sm:$0xff]
  %v39 = vld [vmem:[%s0 + $0x68] sm:$0xff]
  %v40 = vld [vmem:[%s0 + $0x70] sm:$0xff]
  %v41 = vld [vmem:[%s0 + $0x78] sm:$0xff]
  %v42 = vld [vmem:[%s1] sm:$0xf]
  %v43 = vld [vmem:[%s1 + $0x4] sm:$0xf]
  %v44 = vld [vmem:[%s1 + $0x8] sm:$0xf]
  %v45 = vld [vmem:[%s1 + $0xc] sm:$0xf]
  %v46 = vld [vmem:[%s1 + $0x10] sm:$0xf]
  %v47 = vld [vmem:[%s1 + $0x14] sm:$0xf]
  %v48 = vld [vmem:[%s1 + $0x18] sm:$0xf]
  %v49 = vld [vmem:[%s1 + $0x1c] sm:$0xf]
  %v50 = vld [vmem:[%s1 + $0x20] sm:$0xf]
  %v51 = vld [vmem:[%s1 + $0x24] sm:$0xf]
  %v52 = vld [vmem:[%s1 + $0x28] sm:$0xf]
  %v53 = vld [vmem:[%s1 + $0x2c] sm:$0xf]
  %v54 = vld [vmem:[%s1 + $0x30] sm:$0xf]
  %v55 = vld [vmem:[%s1 + $0x34] sm:$0xf]
  %v56 = vld [vmem:[%s1 + $0x38] sm:$0xf]
  %v57 = vld [vmem:[%s1 + $0x3c] sm:$0xf]
  %v58 = vld [vmem:[%s1 + $0x40] sm:$0xf]
  %v59 = vld [vmem:[%s1 + $0x44] sm:$0xf]
  %v60 = vld [vmem:[%s1 + $0x48] sm:$0xf]
  %v61 = vld [vmem:[%s1 + $0x4c] sm:$0xf]
  %v62 = vld [vmem:[%s1 + $0x50] sm:$0xf]
  %v63 = vld [vmem:[%s1 + $0x54] sm:$0xf]
  %v64 = vld [vmem:[%s1 + $0x58] sm:$0xf]
  %v65 = vld [vmem:[%s1 + $0x5c] sm:$0xf]
  %v66 = vld [vmem:[%s1 + $0x60] sm:$0xf]
  %v67 = vld [vmem:[%s1 + $0x64] sm:$0xf]
  %v68 = vld [vmem:[%s1 + $0x68] sm:$0xf]
  %v69 = vld [vmem:[%s1 + $0x6c] sm:$0xf]
  %v70 = vld [vmem:[%s1 + $0x70] sm:$0xf]
  %v71 = vld [vmem:[%s1 + $0x74] sm:$0xf]
  %v72 = vld [vmem:[%s1 + $0x78] sm:$0xf]
  %v73 = vld [vmem:[%s1 + $0x7c] sm:$0xf]
  %v74 = vld [vmem:[%s1 + $0x80] sm:$0xf]
  %v75 = vld [vmem:[%s1 + $0x84] sm:$0xf]
  %v76 = vld [vmem:[%s1 + $0x88] sm:$0xf]
  %v77 = vld [vmem:[%s1 + $0x8c] sm:$0xf]
  %v78 = vld [vmem:[%s1 + $0x90] sm:$0xf]
  %v79 = vld [vmem:[%s1 + $0x94] sm:$0xf]
  %v80 = vld [vmem:[%s1 + $0x98] sm:$0xf]
  %v81 = vld [vmem:[%s1 + $0x9c] sm:$0xf]
  %v82 = vld [vmem:[%s1 + $0xa0] sm:$0xf]
  %v83 = vld [vmem:[%s1 + $0xa4] sm:$0xf]
  %v84 = vld [vmem:[%s1 + $0xa8] sm:$0xf]
  %v85 = vld [vmem:[%s1 + $0xac] sm:$0xf]
  %v86 = vld [vmem:[%s1 + $0xb0] sm:$0xf]
  %v87 = vld [vmem:[%s1 + $0xb4] sm:$0xf]
  %v88 = vld [vmem:[%s1 + $0xb8] sm:$0xf]
  %v89 = vld [vmem:[%s1 + $0xbc] sm:$0xf]
  %v90 = vld [vmem:[%s1 + $0xc0] sm:$0xf]
  %v91 = vld [vmem:[%s1 + $0xc4] sm:$0xf]
  %v92 = vld [vmem:[%s1 + $0xc8] sm:$0xf]
  %v93 = vld [vmem:[%s1 + $0xcc] sm:$0xf]
  %v94 = vld [vmem:[%s1 + $0xd0] sm:$0xf]
  %v95 = vld [vmem:[%s1 + $0xd4] sm:$0xf]
  %v96 = vld [vmem:[%s1 + $0xd8] sm:$0xf]
  %v97 = vld [vmem:[%s1 + $0xdc] sm:$0xf]
  %v98 = vld [vmem:[%s1 + $0xe0] sm:$0xf]
  %v99 = vld [vmem:[%s1 + $0xe4] sm:$0xf]
  %v100 = vld [vmem:[%s1 + $0xe8] sm:$0xf]
  %v101 = vld [vmem:[%s1 + $0xec] sm:$0xf]
  %v102 = vld [vmem:[%s1 + $0xf0] sm:$0xf]
  %v103 = vld [vmem:[%s1 + $0xf4] sm:$0xf]
  %v104 = vld [vmem:[%s1 + $0xf8] sm:$0xf]
  %v105 = vld [vmem:[%s1 + $0xfc] sm:$0xf]
  %v106 = vld [vmem:[%s1 + $0x100] sm:$0xf]
  %v107 = vld [vmem:[%s1 + $0x104] sm:$0xf]
  %v108 = vld [vmem:[%s1 + $0x108] sm:$0xf]
  %v109 = vld [vmem:[%s1 + $0x10c] sm:$0xf]
  %v110 = vld [vmem:[%s1 + $0x110] sm:$0xf]
  %v111 = vld [vmem:[%s1 + $0x114] sm:$0xf]
  %v112 = vld [vmem:[%s1 + $0x118] sm:$0xf]
  %v113 = vld [vmem:[%s1 + $0x11c] sm:$0xf]
  %v114 = vld [vmem:[%s1 + $0x120] sm:$0xf]
  %v115 = vld [vmem:[%s1 + $0x124] sm:$0xf]
  %v116 = vld [vmem:[%s1 + $0x128] sm:$0xf]
  %v117 = vld [vmem:[%s1 + $0x12c] sm:$0xf]
  %v118 = vld [vmem:[%s1 + $0x130] sm:$0xf]
  %v119 = vld [vmem:[%s1 + $0x134] sm:$0xf]
  %v120 = vld [vmem:[%s1 + $0x138] sm:$0xf]
  %v121 = vld [vmem:[%s1 + $0x13c] sm:$0xf]
  %v122 = vld [vmem:[%s1 + $0x140] sm:$0xf]
  %v123 = vld [vmem:[%s1 + $0x144] sm:$0xf]
  %v124 = vld [vmem:[%s1 + $0x148] sm:$0xf]
  %v125 = vld [vmem:[%s1 + $0x14c] sm:$0xf]
  %v126 = vld [vmem:[%s1 + $0x150] sm:$0xf]
  %v127 = vld [vmem:[%s1 + $0x154] sm:$0xf]
  %v128 = vld [vmem:[%s1 + $0x158] sm:$0xf]
  %v129 = vld [vmem:[%s1 + $0x15c] sm:$0xf]
  %v130 = vld [vmem:[%s1 + $0x160] sm:$0xf]
  %v131 = vld [vmem:[%s1 + $0x164] sm:$0xf]
  %v132 = vld [vmem:[%s1 + $0x168] sm:$0xf]
  %v133 = vld [vmem:[%s1 + $0x16c] sm:$0xf]
  %v134 = vld [vmem:[%s1 + $0x170] sm:$0xf]
  %v135 = vld [vmem:[%s1 + $0x174] sm:$0xf]
  %v136 = vld [vmem:[%s1 + $0x178] sm:$0xf]
  %v137 = vld [vmem:[%s1 + $0x17c] sm:$0xf]
  %v138 = vld [vmem:[%s1 + $0x180] sm:$0xf]
  %v139 = vld [vmem:[%s1 + $0x184] sm:$0xf]
  %v140 = vld [vmem:[%s1 + $0x188] sm:$0xf]
  %v141 = vld [vmem:[%s1 + $0x18c] sm:$0xf]
  %v142 = vld [vmem:[%s1 + $0x190] sm:$0xf]
  %v143 = vld [vmem:[%s1 + $0x194] sm:$0xf]
  %v144 = vld [vmem:[%s1 + $0x198] sm:$0xf]
  %v145 = vld [vmem:[%s1 + $0x19c] sm:$0xf]
  %v146 = vld [vmem:[%s1 + $0x1a0] sm:$0xf]
  %v147 = vld [vmem:[%s1 + $0x1a4] sm:$0xf]
  %v148 = vld [vmem:[%s1 + $0x1a8] sm:$0xf]
  %v149 = vld [vmem:[%s1 + $0x1ac] sm:$0xf]
  %v150 = vld [vmem:[%s1 + $0x1b0] sm:$0xf]
  %v151 = vld [vmem:[%s1 + $0x1b4] sm:$0xf]
  %v152 = vld [vmem:[%s1 + $0x1b8] sm:$0xf]
  %v153 = vld [vmem:[%s1 + $0x1bc] sm:$0xf]
  %v154 = vld [vmem:[%s1 + $0x1c0] sm:$0xf]
  %v155 = vld [vmem:[%s1 + $0x1c4] sm:$0xf]
  %v156 = vld [vmem:[%s1 + $0x1c8] sm:$0xf]
  %v157 = vld [vmem:[%s1 + $0x1cc] sm:$0xf]
  %v158 = vld [vmem:[%s1 + $0x1d0] sm:$0xf]
  %v159 = vld [vmem:[%s1 + $0x1d4] sm:$0xf]
  %v160 = vld [vmem:[%s1 + $0x1d8] sm:$0xf]
  %v161 = vld [vmem:[%s1 + $0x1dc] sm:$0xf]
  %v162 = vld [vmem:[%s1 + $0x1e0] sm:$0xf]
  %v163 = vld [vmem:[%s1 + $0x1e4] sm:$0xf]
  %v164 = vld [vmem:[%s1 + $0x1e8] sm:$0xf]
  %v165 = vld [vmem:[%s1 + $0x1ec] sm:$0xf]
  %v166 = vld [vmem:[%s1 + $0x1f0] sm:$0xf]
  %v167 = vld [vmem:[%s1 + $0x1f4] sm:$0xf]
  %v168 = vld [vmem:[%s1 + $0x1f8] sm:$0xf]
  %v169 = vld [vmem:[%s1 + $0x1fc] sm:$0xf]
  %v186 = vunpack.c.l.b16 %v26
  %v187 = vunpack.c.h.b16 %v26
  %v188 = vunpack.c.l.b16 %v27
  %v189 = vunpack.c.h.b16 %v27
  %v190 = vunpack.c.l.b16 %v28
  %v191 = vunpack.c.h.b16 %v28
  %v192 = vunpack.c.l.b16 %v29
  %v193 = vunpack.c.h.b16 %v29
  %v194 = vunpack.c.l.b16 %v30
  %v195 = vunpack.c.h.b16 %v30
  %v196 = vunpack.c.l.b16 %v31
  %v197 = vunpack.c.h.b16 %v31
  %v198 = vunpack.c.l.b16 %v32
  %v199 = vunpack.c.h.b16 %v32
  %v200 = vunpack.c.l.b16 %v33
  %v201 = vunpack.c.h.b16 %v33
  %v202 = vunpack.c.l.b16 %v34
  %v203 = vunpack.c.h.b16 %v34
  %v204 = vunpack.c.l.b16 %v35
  %v205 = vunpack.c.h.b16 %v35
  %v206 = vunpack.c.l.b16 %v36
  %v207 = vunpack.c.h.b16 %v36
  %v208 = vunpack.c.l.b16 %v37
  %v209 = vunpack.c.h.b16 %v37
  %v210 = vunpack.c.l.b16 %v38
  %v211 = vunpack.c.h.b16 %v38
  %v212 = vunpack.c.l.b16 %v39
  %v213 = vunpack.c.h.b16 %v39
  %v214 = vunpack.c.l.b16 %v40
  %v215 = vunpack.c.h.b16 %v40
  %v216 = vunpack.c.l.b16 %v41
  %v217 = vunpack.c.h.b16 %v41
  %v218 = vpack.c.b16 %v194, %v186
  %v219 = vpack.c.b16 %v195, %v187
  %v220 = vpack.c.b16 %v196, %v188
  %v221 = vpack.c.b16 %v197, %v189
  %v222 = vpack.c.b16 %v198, %v190
  %v223 = vpack.c.b16 %v199, %v191
  %v224 = vpack.c.b16 %v200, %v192
  %v225 = vpack.c.b16 %v201, %v193
  %v226 = vpack.c.b16 %v210, %v202
  %v227 = vpack.c.b16 %v211, %v203
  %v228 = vpack.c.b16 %v212, %v204
  %v229 = vpack.c.b16 %v213, %v205
  %v230 = vpack.c.b16 %v214, %v206
  %v231 = vpack.c.b16 %v215, %v207
  %v232 = vpack.c.b16 %v216, %v208
  %v233 = vpack.c.b16 %v217, %v209
  %v378 = vunpack.c.l.b16 %v42
  %v379 = vunpack.c.l.b16 %v43
  %v380 = vunpack.c.l.b16 %v44
  %v381 = vunpack.c.l.b16 %v45
  %v382 = vunpack.c.l.b16 %v46
  %v383 = vunpack.c.l.b16 %v47
  %v384 = vunpack.c.l.b16 %v48
  %v385 = vunpack.c.l.b16 %v49
  %v386 = vunpack.c.l.b16 %v50
  %v387 = vunpack.c.l.b16 %v51
  %v388 = vunpack.c.l.b16 %v52
  %v389 = vunpack.c.l.b16 %v53
  %v390 = vunpack.c.l.b16 %v54
  %v391 = vunpack.c.l.b16 %v55
  %v392 = vunpack.c.l.b16 %v56
  %v393 = vunpack.c.l.b16 %v57
  %v394 = vunpack.c.l.b16 %v58
  %v395 = vunpack.c.l.b16 %v59
  %v396 = vunpack.c.l.b16 %v60
  %v397 = vunpack.c.l.b16 %v61
  %v398 = vunpack.c.l.b16 %v62
  %v399 = vunpack.c.l.b16 %v63
  %v400 = vunpack.c.l.b16 %v64
  %v401 = vunpack.c.l.b16 %v65
  %v402 = vunpack.c.l.b16 %v66
  %v403 = vunpack.c.l.b16 %v67
  %v404 = vunpack.c.l.b16 %v68
  %v405 = vunpack.c.l.b16 %v69
  %v406 = vunpack.c.l.b16 %v70
  %v407 = vunpack.c.l.b16 %v71
  %v408 = vunpack.c.l.b16 %v72
  %v409 = vunpack.c.l.b16 %v73
  %v410 = vunpack.c.l.b16 %v74
  %v411 = vunpack.c.l.b16 %v75
  %v412 = vunpack.c.l.b16 %v76
  %v413 = vunpack.c.l.b16 %v77
  %v414 = vunpack.c.l.b16 %v78
  %v415 = vunpack.c.l.b16 %v79
  %v416 = vunpack.c.l.b16 %v80
  %v417 = vunpack.c.l.b16 %v81
  %v418 = vunpack.c.l.b16 %v82
  %v419 = vunpack.c.l.b16 %v83
  %v420 = vunpack.c.l.b16 %v84
  %v421 = vunpack.c.l.b16 %v85
  %v422 = vunpack.c.l.b16 %v86
  %v423 = vunpack.c.l.b16 %v87
  %v424 = vunpack.c.l.b16 %v88
  %v425 = vunpack.c.l.b16 %v89
  %v426 = vunpack.c.l.b16 %v90
  %v427 = vunpack.c.l.b16 %v91
  %v428 = vunpack.c.l.b16 %v92
  %v429 = vunpack.c.l.b16 %v93
  %v430 = vunpack.c.l.b16 %v94
  %v431 = vunpack.c.l.b16 %v95
  %v432 = vunpack.c.l.b16 %v96
  %v433 = vunpack.c.l.b16 %v97
  %v434 = vunpack.c.l.b16 %v98
  %v435 = vunpack.c.l.b16 %v99
  %v436 = vunpack.c.l.b16 %v100
  %v437 = vunpack.c.l.b16 %v101
  %v438 = vunpack.c.l.b16 %v102
  %v439 = vunpack.c.l.b16 %v103
  %v440 = vunpack.c.l.b16 %v104
  %v441 = vunpack.c.l.b16 %v105
  %v442 = vunpack.c.l.b16 %v106
  %v443 = vunpack.c.l.b16 %v107
  %v444 = vunpack.c.l.b16 %v108
  %v445 = vunpack.c.l.b16 %v109
  %v446 = vunpack.c.l.b16 %v110
  %v447 = vunpack.c.l.b16 %v111
  %v448 = vunpack.c.l.b16 %v112
  %v449 = vunpack.c.l.b16 %v113
  %v450 = vunpack.c.l.b16 %v114
  %v451 = vunpack.c.l.b16 %v115
  %v452 = vunpack.c.l.b16 %v116
  %v453 = vunpack.c.l.b16 %v117
  %v454 = vunpack.c.l.b16 %v118
  %v455 = vunpack.c.l.b16 %v119
  %v456 = vunpack.c.l.b16 %v120
  %v457 = vunpack.c.l.b16 %v121
  %v458 = vunpack.c.l.b16 %v122
  %v459 = vunpack.c.l.b16 %v123
  %v460 = vunpack.c.l.b16 %v124
  %v461 = vunpack.c.l.b16 %v125
  %v462 = vunpack.c.l.b16 %v126
  %v463 = vunpack.c.l.b16 %v127
  %v464 = vunpack.c.l.b16 %v128
  %v465 = vunpack.c.l.b16 %v129
  %v466 = vunpack.c.l.b16 %v130
  %v467 = vunpack.c.l.b16 %v131
  %v468 = vunpack.c.l.b16 %v132
  %v469 = vunpack.c.l.b16 %v133
  %v470 = vunpack.c.l.b16 %v134
  %v471 = vunpack.c.l.b16 %v135
  %v472 = vunpack.c.l.b16 %v136
  %v473 = vunpack.c.l.b16 %v137
  %v474 = vunpack.c.l.b16 %v138
  %v475 = vunpack.c.l.b16 %v139
  %v476 = vunpack.c.l.b16 %v140
  %v477 = vunpack.c.l.b16 %v141
  %v478 = vunpack.c.l.b16 %v142
  %v479 = vunpack.c.l.b16 %v143
  %v480 = vunpack.c.l.b16 %v144
  %v481 = vunpack.c.l.b16 %v145
  %v482 = vunpack.c.l.b16 %v146
  %v483 = vunpack.c.l.b16 %v147
  %v484 = vunpack.c.l.b16 %v148
  %v485 = vunpack.c.l.b16 %v149
  %v486 = vunpack.c.l.b16 %v150
  %v487 = vunpack.c.l.b16 %v151
  %v488 = vunpack.c.l.b16 %v152
  %v489 = vunpack.c.l.b16 %v153
  %v490 = vunpack.c.l.b16 %v154
  %v491 = vunpack.c.l.b16 %v155
  %v492 = vunpack.c.l.b16 %v156
  %v493 = vunpack.c.l.b16 %v157
  %v494 = vunpack.c.l.b16 %v158
  %v495 = vunpack.c.l.b16 %v159
  %v496 = vunpack.c.l.b16 %v160
  %v497 = vunpack.c.l.b16 %v161
  %v498 = vunpack.c.l.b16 %v162
  %v499 = vunpack.c.l.b16 %v163
  %v500 = vunpack.c.l.b16 %v164
  %v501 = vunpack.c.l.b16 %v165
  %v502 = vunpack.c.l.b16 %v166
  %v503 = vunpack.c.l.b16 %v167
  %v504 = vunpack.c.l.b16 %v168
  %v505 = vunpack.c.l.b16 %v169
  %v506 = vpack.c.b16 %v379, %v378
  %v507 = vpack.c.b16 %v381, %v380
  %v508 = vpack.c.b16 %v383, %v382
  %v509 = vpack.c.b16 %v385, %v384
  %v510 = vpack.c.b16 %v387, %v386
  %v511 = vpack.c.b16 %v389, %v388
  %v512 = vpack.c.b16 %v391, %v390
  %v513 = vpack.c.b16 %v393, %v392
  %v514 = vpack.c.b16 %v395, %v394
  %v515 = vpack.c.b16 %v397, %v396
  %v516 = vpack.c.b16 %v399, %v398
  %v517 = vpack.c.b16 %v401, %v400
  %v518 = vpack.c.b16 %v403, %v402
  %v519 = vpack.c.b16 %v405, %v404
  %v520 = vpack.c.b16 %v407, %v406
  %v521 = vpack.c.b16 %v409, %v408
  %v522 = vpack.c.b16 %v411, %v410
  %v523 = vpack.c.b16 %v413, %v412
  %v524 = vpack.c.b16 %v415, %v414
  %v525 = vpack.c.b16 %v417, %v416
  %v526 = vpack.c.b16 %v419, %v418
  %v527 = vpack.c.b16 %v421, %v420
  %v528 = vpack.c.b16 %v423, %v422
  %v529 = vpack.c.b16 %v425, %v424
  %v530 = vpack.c.b16 %v427, %v426
  %v531 = vpack.c.b16 %v429, %v428
  %v532 = vpack.c.b16 %v431, %v430
  %v533 = vpack.c.b16 %v433, %v432
  %v534 = vpack.c.b16 %v435, %v434
  %v535 = vpack.c.b16 %v437, %v436
  %v536 = vpack.c.b16 %v439, %v438
  %v537 = vpack.c.b16 %v441, %v440
  %v538 = vpack.c.b16 %v443, %v442
  %v539 = vpack.c.b16 %v445, %v444
  %v540 = vpack.c.b16 %v447, %v446
  %v541 = vpack.c.b16 %v449, %v448
  %v542 = vpack.c.b16 %v451, %v450
  %v543 = vpack.c.b16 %v453, %v452
  %v544 = vpack.c.b16 %v455, %v454
  %v545 = vpack.c.b16 %v457, %v456
  %v546 = vpack.c.b16 %v459, %v458
  %v547 = vpack.c.b16 %v461, %v460
  %v548 = vpack.c.b16 %v463, %v462
  %v549 = vpack.c.b16 %v465, %v464
  %v550 = vpack.c.b16 %v467, %v466
  %v551 = vpack.c.b16 %v469, %v468
  %v552 = vpack.c.b16 %v471, %v470
  %v553 = vpack.c.b16 %v473, %v472
  %v554 = vpack.c.b16 %v475, %v474
  %v555 = vpack.c.b16 %v477, %v476
  %v556 = vpack.c.b16 %v479, %v478
  %v557 = vpack.c.b16 %v481, %v480
  %v558 = vpack.c.b16 %v483, %v482
  %v559 = vpack.c.b16 %v485, %v484
  %v560 = vpack.c.b16 %v487, %v486
  %v561 = vpack.c.b16 %v489, %v488
  %v562 = vpack.c.b16 %v491, %v490
  %v563 = vpack.c.b16 %v493, %v492
  %v564 = vpack.c.b16 %v495, %v494
  %v565 = vpack.c.b16 %v497, %v496
  %v566 = vpack.c.b16 %v499, %v498
  %v567 = vpack.c.b16 %v501, %v500
  %v568 = vpack.c.b16 %v503, %v502
  %v569 = vpack.c.b16 %v505, %v504
  %634 = vmatpush.bf16.msra.mxu0 %v513
  %635 = vmatpush.bf16.msra.mxu0 %v512
  %636 = vmatpush.bf16.msra.mxu0 %v511
  %637 = vmatpush.bf16.msra.mxu0 %v510
  %638 = vmatpush.bf16.msra.mxu0 %v509
  %639 = vmatpush.bf16.msra.mxu0 %v508
  %640 = vmatpush.bf16.msra.mxu0 %v507
  %641 = vmatpush.bf16.msra.mxu0 %v506
  %642 = vmatmul.bf16.gmra.mxu0 %v218
  %v643 = vpop.f32.mrf.mxu0
  %v644 = vadd.f32 0.0, %v643
  %v645 = vpop.f32.mrf.mxu0
  %v646 = vadd.f32 0.0, %v645
  %647 = vmatmul.bf16.gmra.mxu0 %v226
  %v648 = vpop.f32.mrf.mxu0
  %v649 = vadd.f32 0.0, %v648
  %v650 = vpop.f32.mrf.mxu0
  %v651 = vadd.f32 0.0, %v650
  %652 = vdwg.mxu0
  %653 = vmatpush.bf16.msra.mxu0 %v521
  %654 = vmatpush.bf16.msra.mxu0 %v520
  %655 = vmatpush.bf16.msra.mxu0 %v519
  %656 = vmatpush.bf16.msra.mxu0 %v518
  %657 = vmatpush.bf16.msra.mxu0 %v517
  %658 = vmatpush.bf16.msra.mxu0 %v516
  %659 = vmatpush.bf16.msra.mxu0 %v515
  %660 = vmatpush.bf16.msra.mxu0 %v514
  %661 = vmatmul.bf16.gmra.mxu0 %v219
  %v662 = vpop.f32.mrf.mxu0
  %v663 = vadd.f32 %v644, %v662
  %v664 = vpop.f32.mrf.mxu0
  %v665 = vadd.f32 %v646, %v664
  %666 = vmatmul.bf16.gmra.mxu0 %v227
  %v667 = vpop.f32.mrf.mxu0
  %v668 = vadd.f32 %v649, %v667
  %v669 = vpop.f32.mrf.mxu0
  %v670 = vadd.f32 %v651, %v669
  %671 = vdwg.mxu0
  %672 = vmatpush.bf16.msra.mxu0 %v529
  %673 = vmatpush.bf16.msra.mxu0 %v528
  %674 = vmatpush.bf16.msra.mxu0 %v527
  %675 = vmatpush.bf16.msra.mxu0 %v526
  %676 = vmatpush.bf16.msra.mxu0 %v525
  %677 = vmatpush.bf16.msra.mxu0 %v524
  %678 = vmatpush.bf16.msra.mxu0 %v523
  %679 = vmatpush.bf16.msra.mxu0 %v522
  %680 = vmatmul.bf16.gmra.mxu0 %v220
  %v681 = vpop.f32.mrf.mxu0
  %v682 = vadd.f32 %v663, %v681
  %v683 = vpop.f32.mrf.mxu0
  %v684 = vadd.f32 %v665, %v683
  %685 = vmatmul.bf16.gmra.mxu0 %v228
  %v686 = vpop.f32.mrf.mxu0
  %v687 = vadd.f32 %v668, %v686
  %v688 = vpop.f32.mrf.mxu0
  %v689 = vadd.f32 %v670, %v688
  %690 = vdwg.mxu0
  %691 = vmatpush.bf16.msra.mxu0 %v537
  %692 = vmatpush.bf16.msra.mxu0 %v536
  %693 = vmatpush.bf16.msra.mxu0 %v535
  %694 = vmatpush.bf16.msra.mxu0 %v534
  %695 = vmatpush.bf16.msra.mxu0 %v533
  %696 = vmatpush.bf16.msra.mxu0 %v532
  %697 = vmatpush.bf16.msra.mxu0 %v531
  %698 = vmatpush.bf16.msra.mxu0 %v530
  %699 = vmatmul.bf16.gmra.mxu0 %v221
  %v700 = vpop.f32.mrf.mxu0
  %v701 = vadd.f32 %v682, %v700
  %v702 = vpop.f32.mrf.mxu0
  %v703 = vadd.f32 %v684, %v702
  %704 = vmatmul.bf16.gmra.mxu0 %v229
  %v705 = vpop.f32.mrf.mxu0
  %v706 = vadd.f32 %v687, %v705
  %v707 = vpop.f32.mrf.mxu0
  %v708 = vadd.f32 %v689, %v707
  %709 = vdwg.mxu0
  %710 = vmatpush.bf16.msra.mxu0 %v545
  %711 = vmatpush.bf16.msra.mxu0 %v544
  %712 = vmatpush.bf16.msra.mxu0 %v543
  %713 = vmatpush.bf16.msra.mxu0 %v542
  %714 = vmatpush.bf16.msra.mxu0 %v541
  %715 = vmatpush.bf16.msra.mxu0 %v540
  %716 = vmatpush.bf16.msra.mxu0 %v539
  %717 = vmatpush.bf16.msra.mxu0 %v538
  %718 = vmatmul.bf16.gmra.mxu0 %v222
  %v719 = vpop.f32.mrf.mxu0
  %v720 = vadd.f32 %v701, %v719
  %v721 = vpop.f32.mrf.mxu0
  %v722 = vadd.f32 %v703, %v721
  %723 = vmatmul.bf16.gmra.mxu0 %v230
  %v724 = vpop.f32.mrf.mxu0
  %v725 = vadd.f32 %v706, %v724
  %v726 = vpop.f32.mrf.mxu0
  %v727 = vadd.f32 %v708, %v726
  %728 = vdwg.mxu0
  %729 = vmatpush.bf16.msra.mxu0 %v553
  %730 = vmatpush.bf16.msra.mxu0 %v552
  %731 = vmatpush.bf16.msra.mxu0 %v551
  %732 = vmatpush.bf16.msra.mxu0 %v550
  %733 = vmatpush.bf16.msra.mxu0 %v549
  %734 = vmatpush.bf16.msra.mxu0 %v548
  %735 = vmatpush.bf16.msra.mxu0 %v547
  %736 = vmatpush.bf16.msra.mxu0 %v546
  %737 = vmatmul.bf16.gmra.mxu0 %v223
  %v738 = vpop.f32.mrf.mxu0
  %v739 = vadd.f32 %v720, %v738
  %v740 = vpop.f32.mrf.mxu0
  %v741 = vadd.f32 %v722, %v740
  %742 = vmatmul.bf16.gmra.mxu0 %v231
  %v743 = vpop.f32.mrf.mxu0
  %v744 = vadd.f32 %v725, %v743
  %v745 = vpop.f32.mrf.mxu0
  %v746 = vadd.f32 %v727, %v745
  %747 = vdwg.mxu0
  %748 = vmatpush.bf16.msra.mxu0 %v561
  %749 = vmatpush.bf16.msra.mxu0 %v560
  %750 = vmatpush.bf16.msra.mxu0 %v559
  %751 = vmatpush.bf16.msra.mxu0 %v558
  %752 = vmatpush.bf16.msra.mxu0 %v557
  %753 = vmatpush.bf16.msra.mxu0 %v556
  %754 = vmatpush.bf16.msra.mxu0 %v555
  %755 = vmatpush.bf16.msra.mxu0 %v554
  %756 = vmatmul.bf16.gmra.mxu0 %v224
  %v757 = vpop.f32.mrf.mxu0
  %v758 = vadd.f32 %v739, %v757
  %v759 = vpop.f32.mrf.mxu0
  %v760 = vadd.f32 %v741, %v759
  %761 = vmatmul.bf16.gmra.mxu0 %v232
  %v762 = vpop.f32.mrf.mxu0
  %v763 = vadd.f32 %v744, %v762
  %v764 = vpop.f32.mrf.mxu0
  %v765 = vadd.f32 %v746, %v764
  %766 = vdwg.mxu0
  %767 = vmatpush.bf16.msra.mxu0 %v569
  %768 = vmatpush.bf16.msra.mxu0 %v568
  %769 = vmatpush.bf16.msra.mxu0 %v567
  %770 = vmatpush.bf16.msra.mxu0 %v566
  %771 = vmatpush.bf16.msra.mxu0 %v565
  %772 = vmatpush.bf16.msra.mxu0 %v564
  %773 = vmatpush.bf16.msra.mxu0 %v563
  %774 = vmatpush.bf16.msra.mxu0 %v562
  %775 = vmatmul.bf16.gmra.mxu0 %v225
  %v776 = vpop.f32.mrf.mxu0
  %v777 = vadd.f32 %v758, %v776
  %v778 = vpop.f32.mrf.mxu0
  %v779 = vadd.f32 %v760, %v778
  %780 = vmatmul.bf16.gmra.mxu0 %v233
  %v781 = vpop.f32.mrf.mxu0
  %v782 = vadd.f32 %v763, %v781
  %v783 = vpop.f32.mrf.mxu0
  %v784 = vadd.f32 %v765, %v783
  %785 = vdwg.mxu0
  %v786 = vadd.f32 %v22, %v777
  %v787 = vadd.f32 %v23, %v779
  %v788 = vadd.f32 %v24, %v782
  %v789 = vadd.f32 %v25, %v784
  %790 = vst [vmem:[#allocation2] sm:$0xff] %v786
  %791 = vst [vmem:[#allocation2 + $0x8] sm:$0xff] %v787
  %792 = vst [vmem:[#allocation2 + $0x10] sm:$0xff] %v788
  %793 = vst [vmem:[#allocation2 + $0x18] sm:$0xff] %v789
  // Predicated region
  $region18: #{_lambda_.29} parent=0 // pred_check
    %p794 = pneg %p14
  $region19: #{_lambda_.29} parent=0 // pred_check_branch
    %796 = sbr.rel (%p794) target = $region21
  $region20: #{_lambda_.29} parent=0 // pred_region
    %v797 = vld [vmem:[#allocation2] sm:$0xff]
    %v798 = vld [vmem:[#allocation2 + $0x8] sm:$0xff]
    %v799 = vld [vmem:[#allocation2 + $0x10] sm:$0xff]
    %v800 = vld [vmem:[#allocation2 + $0x18] sm:$0xff]
    %v801 = vld [vmem:[%s2] sm:$0x1]
    %v803 = vperm.slane %v801, 0
    %v805 = vadd.f32 %v797, %v803
    %v806 = vadd.f32 %v798, %v803
    %v807 = vadd.f32 %v799, %v803
    %v808 = vadd.f32 %v800, %v803
    %809 = vst [vmem:[%s3] sm:$0xff] %v805
    %810 = vst [vmem:[%s3 + $0x8] sm:$0xff] %v806
    %811 = vst [vmem:[%s3 + $0x10] sm:$0xff] %v807
    %812 = vst [vmem:[%s3 + $0x18] sm:$0xff] %v808
  $region21: #{_lambda_.29} parent=0 // pred_fallthru
    _
  // Predicated region
  $region22: #{_lambda_.29} parent=0 // pred_check
    _
  $region23: #{_lambda_.29} parent=0 // pred_check_branch
    %814 = sbr.rel (0) target = $region25
  $region24: #{_lambda_.29} parent=0 // pred_region
    _
  $region25: #{_lambda_.29} parent=0 // pred_fallthru
    _
  // Predicated region
  $region26: #{_lambda_.29} parent=0 // pred_check
    _
  $region27: #{_lambda_.29} parent=0 // pred_check_branch
    %816 = sbr.rel (0) target = $region29
  $region28: #{_lambda_.29} parent=0 // pred_region
    _
  $region29: #{_lambda_.29} parent=0 // pred_fallthru
    _

// kernel: _lambda_.31
$region0: #{_lambda_.31}
  #allocation0 [shape = 'u32[]', space=smem, size = 0x4, offset = 0x4, fixed_abs, tag = 'smem constant byte address 0x4 - core index']
  #allocation1 [shape = 'u32[72,128]{1,0:T(1,128)}', space=vmem, size = 0x9000, scoped, tag = 'internal scratch']
  #allocation2 [shape = 'f32[1,1]{1,0:T(1,128)S(1)}', space=vmem, size = 0x200, scoped, tag = 'scoped memory for _lambda_.31']
  %s0 = inlined_call_operand.vmem [shape: bf16[50,2048], index: 0, kind: input, shape index: {}]
  %s1 = inlined_call_operand.vmem [shape: bf16[1,2048], index: 1, kind: input, shape index: {}]
  %s2 = inlined_call_operand.<no memory space> [shape: f32[1,1], index: 2, kind: input, shape index: {}]
  %s3 = inlined_call_operand.vmem [shape: f32[50,1], index: 3, kind: output, shape index: {}]
  %s4 = sld [smem:[#allocation0]]
  $region22: #{_lambda_.31} parent=0
    _
  %s6 = ssub.s32 1, %s4
  %s7 = scalar_select 0, %s6, %s4
  %v8 = vstv %s2
  %9 = vst [vmem:[#allocation2] sm:$0x1] %v8
  // Predicated region
  $region2: #{_lambda_.31} parent=0 // pred_check
    _
  $region3: #{_lambda_.31} parent=0 // pred_check_branch
    %11 = sbr.rel (0) target = $region5
  $region4: #{_lambda_.31} parent=0 // pred_region
    _
  $region5: #{_lambda_.31} parent=0 // pred_fallthru
    _
  // Predicated region
  $region6: #{_lambda_.31} parent=0 // pred_check
    _
  $region7: #{_lambda_.31} parent=0 // pred_check_branch
    %13 = sbr.rel (0) target = $region9
  $region8: #{_lambda_.31} parent=0 // pred_region
    _
  $region9: #{_lambda_.31} parent=0 // pred_fallthru
    _
  // Predicated region
  $region10: #{_lambda_.31} parent=0 // pred_check
    _
  $region11: #{_lambda_.31} parent=0 // pred_check_branch
    %15 = sbr.rel (0) target = $region13
  $region12: #{_lambda_.31} parent=0 // pred_region
    _
  $region13: #{_lambda_.31} parent=0 // pred_fallthru
    _
  %v16 = vld [vmem:[%s0] sm:$0xff]
  %v17 = vld [vmem:[%s0 + $0x8] sm:$0xff]
  %v18 = vld [vmem:[%s0 + $0x10] sm:$0xff]
  %v19 = vld [vmem:[%s0 + $0x18] sm:$0xff]
  %v20 = vld [vmem:[%s0 + $0x20] sm:$0xff]
  %v21 = vld [vmem:[%s0 + $0x28] sm:$0xff]
  %v22 = vld [vmem:[%s0 + $0x30] sm:$0xff]
  %v23 = vld [vmem:[%s0 + $0x38] sm:$0xff]
  %v24 = vld [vmem:[%s0 + $0x40] sm:$0xff]
  %v25 = vld [vmem:[%s0 + $0x48] sm:$0xff]
  %v26 = vld [vmem:[%s0 + $0x50] sm:$0xff]
  %v27 = vld [vmem:[%s0 + $0x58] sm:$0xff]
  %v28 = vld [vmem:[%s0 + $0x60] sm:$0xff]
  %v29 = vld [vmem:[%s0 + $0x68] sm:$0xff]
  %v30 = vld [vmem:[%s0 + $0x70] sm:$0xff]
  %v31 = vld [vmem:[%s0 + $0x78] sm:$0xff]
  %v32 = vld [vmem:[%s0 + $0x80] sm:$0xff]
  %v33 = vld [vmem:[%s0 + $0x88] sm:$0xff]
  %v34 = vld [vmem:[%s0 + $0x90] sm:$0xff]
  %v35 = vld [vmem:[%s0 + $0x98] sm:$0xff]
  %v36 = vld [vmem:[%s0 + $0xa0] sm:$0xff]
  %v37 = vld [vmem:[%s0 + $0xa8] sm:$0xff]
  %v38 = vld [vmem:[%s0 + $0xb0] sm:$0xff]
  %v39 = vld [vmem:[%s0 + $0xb8] sm:$0xff]
  %v40 = vld [vmem:[%s0 + $0xc0] sm:$0xff]
  %v41 = vld [vmem:[%s0 + $0xc8] sm:$0xff]
  %v42 = vld [vmem:[%s0 + $0xd0] sm:$0xff]
  %v43 = vld [vmem:[%s0 + $0xd8] sm:$0xff]
  %v44 = vld [vmem:[%s0 + $0xe0] sm:$0xff]
  %v45 = vld [vmem:[%s0 + $0xe8] sm:$0xff]
  %v46 = vld [vmem:[%s0 + $0xf0] sm:$0xff]
  %v47 = vld [vmem:[%s0 + $0xf8] sm:$0xff]
  %v48 = vld [vmem:[%s0 + $0x100] sm:$0xff]
  %v49 = vld [vmem:[%s0 + $0x108] sm:$0xff]
  %v50 = vld [vmem:[%s0 + $0x110] sm:$0xff]
  %v51 = vld [vmem:[%s0 + $0x118] sm:$0xff]
  %v52 = vld [vmem:[%s0 + $0x120] sm:$0xff]
  %v53 = vld [vmem:[%s0 + $0x128] sm:$0xff]
  %v54 = vld [vmem:[%s0 + $0x130] sm:$0xff]
  %v55 = vld [vmem:[%s0 + $0x138] sm:$0xff]
  %v56 = vld [vmem:[%s0 + $0x140] sm:$0xff]
  %v57 = vld [vmem:[%s0 + $0x148] sm:$0xff]
  %v58 = vld [vmem:[%s0 + $0x150] sm:$0xff]
  %v59 = vld [vmem:[%s0 + $0x158] sm:$0xff]
  %v60 = vld [vmem:[%s0 + $0x160] sm:$0xff]
  %v61 = vld [vmem:[%s0 + $0x168] sm:$0xff]
  %v62 = vld [vmem:[%s0 + $0x170] sm:$0xff]
  %v63 = vld [vmem:[%s0 + $0x178] sm:$0xff]
  %v64 = vld [vmem:[%s0 + $0x180] sm:$0x11]
  %v65 = vld [vmem:[%s0 + $0x188] sm:$0x11]
  %v66 = vld [vmem:[%s0 + $0x190] sm:$0x11]
  %v67 = vld [vmem:[%s0 + $0x198] sm:$0x11]
  %v68 = vld [vmem:[%s0 + $0x1a0] sm:$0x11]
  %v69 = vld [vmem:[%s0 + $0x1a8] sm:$0x11]
  %v70 = vld [vmem:[%s0 + $0x1b0] sm:$0x11]
  %v71 = vld [vmem:[%s0 + $0x1b8] sm:$0x11]
  %v72 = vunpack.c.l.bf16 %v16
  %v73 = vunpack.c.h.bf16 %v16
  %v74 = vunpack.c.l.bf16 %v17
  %v75 = vunpack.c.h.bf16 %v17
  %v76 = vunpack.c.l.bf16 %v18
  %v77 = vunpack.c.h.bf16 %v18
  %v78 = vunpack.c.l.bf16 %v19
  %v79 = vunpack.c.h.bf16 %v19
  %v80 = vunpack.c.l.bf16 %v20
  %v81 = vunpack.c.h.bf16 %v20
  %v82 = vunpack.c.l.bf16 %v21
  %v83 = vunpack.c.h.bf16 %v21
  %v84 = vunpack.c.l.bf16 %v22
  %v85 = vunpack.c.h.bf16 %v22
  %v86 = vunpack.c.l.bf16 %v23
  %v87 = vunpack.c.h.bf16 %v23
  %v88 = vunpack.c.l.bf16 %v24
  %v89 = vunpack.c.h.bf16 %v24
  %v90 = vunpack.c.l.bf16 %v25
  %v91 = vunpack.c.h.bf16 %v25
  %v92 = vunpack.c.l.bf16 %v26
  %v93 = vunpack.c.h.bf16 %v26
  %v94 = vunpack.c.l.bf16 %v27
  %v95 = vunpack.c.h.bf16 %v27
  %v96 = vunpack.c.l.bf16 %v28
  %v97 = vunpack.c.h.bf16 %v28
  %v98 = vunpack.c.l.bf16 %v29
  %v99 = vunpack.c.h.bf16 %v29
  %v100 = vunpack.c.l.bf16 %v30
  %v101 = vunpack.c.h.bf16 %v30
  %v102 = vunpack.c.l.bf16 %v31
  %v103 = vunpack.c.h.bf16 %v31
  %v104 = vunpack.c.l.bf16 %v32
  %v105 = vunpack.c.h.bf16 %v32
  %v106 = vunpack.c.l.bf16 %v33
  %v107 = vunpack.c.h.bf16 %v33
  %v108 = vunpack.c.l.bf16 %v34
  %v109 = vunpack.c.h.bf16 %v34
  %v110 = vunpack.c.l.bf16 %v35
  %v111 = vunpack.c.h.bf16 %v35
  %v112 = vunpack.c.l.bf16 %v36
  %v113 = vunpack.c.h.bf16 %v36
  %v114 = vunpack.c.l.bf16 %v37
  %v115 = vunpack.c.h.bf16 %v37
  %v116 = vunpack.c.l.bf16 %v38
  %v117 = vunpack.c.h.bf16 %v38
  %v118 = vunpack.c.l.bf16 %v39
  %v119 = vunpack.c.h.bf16 %v39
  %v120 = vunpack.c.l.bf16 %v40
  %v121 = vunpack.c.h.bf16 %v40
  %v122 = vunpack.c.l.bf16 %v41
  %v123 = vunpack.c.h.bf16 %v41
  %v124 = vunpack.c.l.bf16 %v42
  %v125 = vunpack.c.h.bf16 %v42
  %v126 = vunpack.c.l.bf16 %v43
  %v127 = vunpack.c.h.bf16 %v43
  %v128 = vunpack.c.l.bf16 %v44
  %v129 = vunpack.c.h.bf16 %v44
  %v130 = vunpack.c.l.bf16 %v45
  %v131 = vunpack.c.h.bf16 %v45
  %v132 = vunpack.c.l.bf16 %v46
  %v133 = vunpack.c.h.bf16 %v46
  %v134 = vunpack.c.l.bf16 %v47
  %v135 = vunpack.c.h.bf16 %v47
  %v136 = vunpack.c.l.bf16 %v48
  %v137 = vunpack.c.h.bf16 %v48
  %v138 = vunpack.c.l.bf16 %v49
  %v139 = vunpack.c.h.bf16 %v49
  %v140 = vunpack.c.l.bf16 %v50
  %v141 = vunpack.c.h.bf16 %v50
  %v142 = vunpack.c.l.bf16 %v51
  %v143 = vunpack.c.h.bf16 %v51
  %v144 = vunpack.c.l.bf16 %v52
  %v145 = vunpack.c.h.bf16 %v52
  %v146 = vunpack.c.l.bf16 %v53
  %v147 = vunpack.c.h.bf16 %v53
  %v148 = vunpack.c.l.bf16 %v54
  %v149 = vunpack.c.h.bf16 %v54
  %v150 = vunpack.c.l.bf16 %v55
  %v151 = vunpack.c.h.bf16 %v55
  %v152 = vunpack.c.l.bf16 %v56
  %v153 = vunpack.c.h.bf16 %v56
  %v154 = vunpack.c.l.bf16 %v57
  %v155 = vunpack.c.h.bf16 %v57
  %v156 = vunpack.c.l.bf16 %v58
  %v157 = vunpack.c.h.bf16 %v58
  %v158 = vunpack.c.l.bf16 %v59
  %v159 = vunpack.c.h.bf16 %v59
  %v160 = vunpack.c.l.bf16 %v60
  %v161 = vunpack.c.h.bf16 %v60
  %v162 = vunpack.c.l.bf16 %v61
  %v163 = vunpack.c.h.bf16 %v61
  %v164 = vunpack.c.l.bf16 %v62
  %v165 = vunpack.c.h.bf16 %v62
  %v166 = vunpack.c.l.bf16 %v63
  %v167 = vunpack.c.h.bf16 %v63
  %v168 = vunpack.c.l.bf16 %v64
  %v169 = vunpack.c.h.bf16 %v64
  %v170 = vunpack.c.l.bf16 %v65
  %v171 = vunpack.c.h.bf16 %v65
  %v172 = vunpack.c.l.bf16 %v66
  %v173 = vunpack.c.h.bf16 %v66
  %v174 = vunpack.c.l.bf16 %v67
  %v175 = vunpack.c.h.bf16 %v67
  %v176 = vunpack.c.l.bf16 %v68
  %v177 = vunpack.c.h.bf16 %v68
  %v178 = vunpack.c.l.bf16 %v69
  %v179 = vunpack.c.h.bf16 %v69
  %v180 = vunpack.c.l.bf16 %v70
  %v181 = vunpack.c.h.bf16 %v70
  %v182 = vunpack.c.l.bf16 %v71
  %v183 = vunpack.c.h.bf16 %v71
  %v184 = vld [vmem:[%s1] sm:$0xff]
  %v185 = vld [vmem:[%s1 + $0x8] sm:$0xff]
  %v186 = vunpack.c.l.bf16 %v184
  %v187 = vunpack.c.h.bf16 %v184
  %v188 = vunpack.c.l.bf16 %v185
  %v189 = vunpack.c.h.bf16 %v185
  %v194 = vperm.slane %v186, 0
  %v195 = vperm.slane %v186, 2
  %v196 = vperm.slane %v186, 4
  %v197 = vperm.slane %v186, 6
  %v198 = vperm.slane %v187, 0
  %v199 = vperm.slane %v187, 2
  %v200 = vperm.slane %v187, 4
  %v201 = vperm.slane %v187, 6
  %v202 = vperm.slane %v188, 0
  %v203 = vperm.slane %v188, 2
  %v204 = vperm.slane %v188, 4
  %v205 = vperm.slane %v188, 6
  %v206 = vperm.slane %v189, 0
  %v207 = vperm.slane %v189, 2
  %v208 = vperm.slane %v189, 4
  %v209 = vperm.slane %v189, 6
  %v226 = vperm.slane %v194, 0
  %v227 = vperm.slane %v195, 0
  %v228 = vperm.slane %v196, 0
  %v229 = vperm.slane %v197, 0
  %v230 = vperm.slane %v198, 0
  %v231 = vperm.slane %v199, 0
  %v232 = vperm.slane %v200, 0
  %v233 = vperm.slane %v201, 0
  %v234 = vperm.slane %v202, 0
  %v235 = vperm.slane %v203, 0
  %v236 = vperm.slane %v204, 0
  %v237 = vperm.slane %v205, 0
  %v238 = vperm.slane %v206, 0
  %v239 = vperm.slane %v207, 0
  %v240 = vperm.slane %v208, 0
  %v241 = vperm.slane %v209, 0
  %v242 = vmul.f32 %v72, %v226
  %v243 = vmul.f32 %v73, %v227
  %v244 = vmul.f32 %v74, %v228
  %v245 = vmul.f32 %v75, %v229
  %v246 = vmul.f32 %v76, %v230
  %v247 = vmul.f32 %v77, %v231
  %v248 = vmul.f32 %v78, %v232
  %v249 = vmul.f32 %v79, %v233
  %v250 = vmul.f32 %v80, %v234
  %v251 = vmul.f32 %v81, %v235
  %v252 = vmul.f32 %v82, %v236
  %v253 = vmul.f32 %v83, %v237
  %v254 = vmul.f32 %v84, %v238
  %v255 = vmul.f32 %v85, %v239
  %v256 = vmul.f32 %v86, %v240
  %v257 = vmul.f32 %v87, %v241
  %v258 = vmul.f32 %v88, %v226
  %v259 = vmul.f32 %v89, %v227
  %v260 = vmul.f32 %v90, %v228
  %v261 = vmul.f32 %v91, %v229
  %v262 = vmul.f32 %v92, %v230
  %v263 = vmul.f32 %v93, %v231
  %v264 = vmul.f32 %v94, %v232
  %v265 = vmul.f32 %v95, %v233
  %v266 = vmul.f32 %v96, %v234
  %v267 = vmul.f32 %v97, %v235
  %v268 = vmul.f32 %v98, %v236
  %v269 = vmul.f32 %v99, %v237
  %v270 = vmul.f32 %v100, %v238
  %v271 = vmul.f32 %v101, %v239
  %v272 = vmul.f32 %v102, %v240
  %v273 = vmul.f32 %v103, %v241
  %v274 = vmul.f32 %v104, %v226
  %v275 = vmul.f32 %v105, %v227
  %v276 = vmul.f32 %v106, %v228
  %v277 = vmul.f32 %v107, %v229
  %v278 = vmul.f32 %v108, %v230
  %v279 = vmul.f32 %v109, %v231
  %v280 = vmul.f32 %v110, %v232
  %v281 = vmul.f32 %v111, %v233
  %v282 = vmul.f32 %v112, %v234
  %v283 = vmul.f32 %v113, %v235
  %v284 = vmul.f32 %v114, %v236
  %v285 = vmul.f32 %v115, %v237
  %v286 = vmul.f32 %v116, %v238
  %v287 = vmul.f32 %v117, %v239
  %v288 = vmul.f32 %v118, %v240
  %v289 = vmul.f32 %v119, %v241
  %v290 = vmul.f32 %v120, %v226
  %v291 = vmul.f32 %v121, %v227
  %v292 = vmul.f32 %v122, %v228
  %v293 = vmul.f32 %v123, %v229
  %v294 = vmul.f32 %v124, %v230
  %v295 = vmul.f32 %v125, %v231
  %v296 = vmul.f32 %v126, %v232
  %v297 = vmul.f32 %v127, %v233
  %v298 = vmul.f32 %v128, %v234
  %v299 = vmul.f32 %v129, %v235
  %v300 = vmul.f32 %v130, %v236
  %v301 = vmul.f32 %v131, %v237
  %v302 = vmul.f32 %v132, %v238
  %v303 = vmul.f32 %v133, %v239
  %v304 = vmul.f32 %v134, %v240
  %v305 = vmul.f32 %v135, %v241
  %v306 = vmul.f32 %v136, %v226
  %v307 = vmul.f32 %v137, %v227
  %v308 = vmul.f32 %v138, %v228
  %v309 = vmul.f32 %v139, %v229
  %v310 = vmul.f32 %v140, %v230
  %v311 = vmul.f32 %v141, %v231
  %v312 = vmul.f32 %v142, %v232
  %v313 = vmul.f32 %v143, %v233
  %v314 = vmul.f32 %v144, %v234
  %v315 = vmul.f32 %v145, %v235
  %v316 = vmul.f32 %v146, %v236
  %v317 = vmul.f32 %v147, %v237
  %v318 = vmul.f32 %v148, %v238
  %v319 = vmul.f32 %v149, %v239
  %v320 = vmul.f32 %v150, %v240
  %v321 = vmul.f32 %v151, %v241
  %v322 = vmul.f32 %v152, %v226
  %v323 = vmul.f32 %v153, %v227
  %v324 = vmul.f32 %v154, %v228
  %v325 = vmul.f32 %v155, %v229
  %v326 = vmul.f32 %v156, %v230
  %v327 = vmul.f32 %v157, %v231
  %v328 = vmul.f32 %v158, %v232
  %v329 = vmul.f32 %v159, %v233
  %v330 = vmul.f32 %v160, %v234
  %v331 = vmul.f32 %v161, %v235
  %v332 = vmul.f32 %v162, %v236
  %v333 = vmul.f32 %v163, %v237
  %v334 = vmul.f32 %v164, %v238
  %v335 = vmul.f32 %v165, %v239
  %v336 = vmul.f32 %v166, %v240
  %v337 = vmul.f32 %v167, %v241
  %v338 = vmul.f32 %v168, %v226
  %v339 = vmul.f32 %v169, %v227
  %v340 = vmul.f32 %v170, %v228
  %v341 = vmul.f32 %v171, %v229
  %v342 = vmul.f32 %v172, %v230
  %v343 = vmul.f32 %v173, %v231
  %v344 = vmul.f32 %v174, %v232
  %v345 = vmul.f32 %v175, %v233
  %v346 = vmul.f32 %v176, %v234
  %v347 = vmul.f32 %v177, %v235
  %v348 = vmul.f32 %v178, %v236
  %v349 = vmul.f32 %v179, %v237
  %v350 = vmul.f32 %v180, %v238
  %v351 = vmul.f32 %v181, %v239
  %v352 = vmul.f32 %v182, %v240
  %v353 = vmul.f32 %v183, %v241
  %v354 = vadd.f32 %v242, %v243
  %v355 = vadd.f32 %v354, %v244
  %v356 = vadd.f32 %v355, %v245
  %v357 = vadd.f32 %v356, %v246
  %v358 = vadd.f32 %v357, %v247
  %v359 = vadd.f32 %v358, %v248
  %v360 = vadd.f32 %v359, %v249
  %v361 = vadd.f32 %v360, %v250
  %v362 = vadd.f32 %v361, %v251
  %v363 = vadd.f32 %v362, %v252
  %v364 = vadd.f32 %v363, %v253
  %v365 = vadd.f32 %v364, %v254
  %v366 = vadd.f32 %v365, %v255
  %v367 = vadd.f32 %v366, %v256
  %v368 = vadd.f32 %v367, %v257
  %369 = vadd.xlane.f32.xlu0 %v368
  %v370 = vpop.xlane.xlu0 %369
  %v371 = vadd.f32 %v258, %v259
  %v372 = vadd.f32 %v371, %v260
  %v373 = vadd.f32 %v372, %v261
  %v374 = vadd.f32 %v373, %v262
  %v375 = vadd.f32 %v374, %v263
  %v376 = vadd.f32 %v375, %v264
  %v377 = vadd.f32 %v376, %v265
  %v378 = vadd.f32 %v377, %v266
  %v379 = vadd.f32 %v378, %v267
  %v380 = vadd.f32 %v379, %v268
  %v381 = vadd.f32 %v380, %v269
  %v382 = vadd.f32 %v381, %v270
  %v383 = vadd.f32 %v382, %v271
  %v384 = vadd.f32 %v383, %v272
  %v385 = vadd.f32 %v384, %v273
  %386 = vadd.xlane.f32.xlu0 %v385
  %v387 = vpop.xlane.xlu0 %386
  %v388 = vadd.f32 %v274, %v275
  %v389 = vadd.f32 %v388, %v276
  %v390 = vadd.f32 %v389, %v277
  %v391 = vadd.f32 %v390, %v278
  %v392 = vadd.f32 %v391, %v279
  %v393 = vadd.f32 %v392, %v280
  %v394 = vadd.f32 %v393, %v281
  %v395 = vadd.f32 %v394, %v282
  %v396 = vadd.f32 %v395, %v283
  %v397 = vadd.f32 %v396, %v284
  %v398 = vadd.f32 %v397, %v285
  %v399 = vadd.f32 %v398, %v286
  %v400 = vadd.f32 %v399, %v287
  %v401 = vadd.f32 %v400, %v288
  %v402 = vadd.f32 %v401, %v289
  %403 = vadd.xlane.f32.xlu0 %v402
  %v404 = vpop.xlane.xlu0 %403
  %v405 = vadd.f32 %v290, %v291
  %v406 = vadd.f32 %v405, %v292
  %v407 = vadd.f32 %v406, %v293
  %v408 = vadd.f32 %v407, %v294
  %v409 = vadd.f32 %v408, %v295
  %v410 = vadd.f32 %v409, %v296
  %v411 = vadd.f32 %v410, %v297
  %v412 = vadd.f32 %v411, %v298
  %v413 = vadd.f32 %v412, %v299
  %v414 = vadd.f32 %v413, %v300
  %v415 = vadd.f32 %v414, %v301
  %v416 = vadd.f32 %v415, %v302
  %v417 = vadd.f32 %v416, %v303
  %v418 = vadd.f32 %v417, %v304
  %v419 = vadd.f32 %v418, %v305
  %420 = vadd.xlane.f32.xlu0 %v419
  %v421 = vpop.xlane.xlu0 %420
  %v422 = vadd.f32 %v306, %v307
  %v423 = vadd.f32 %v422, %v308
  %v424 = vadd.f32 %v423, %v309
  %v425 = vadd.f32 %v424, %v310
  %v426 = vadd.f32 %v425, %v311
  %v427 = vadd.f32 %v426, %v312
  %v428 = vadd.f32 %v427, %v313
  %v429 = vadd.f32 %v428, %v314
  %v430 = vadd.f32 %v429, %v315
  %v431 = vadd.f32 %v430, %v316
  %v432 = vadd.f32 %v431, %v317
  %v433 = vadd.f32 %v432, %v318
  %v434 = vadd.f32 %v433, %v319
  %v435 = vadd.f32 %v434, %v320
  %v436 = vadd.f32 %v435, %v321
  %437 = vadd.xlane.f32.xlu0 %v436
  %v438 = vpop.xlane.xlu0 %437
  %v439 = vadd.f32 %v322, %v323
  %v440 = vadd.f32 %v439, %v324
  %v441 = vadd.f32 %v440, %v325
  %v442 = vadd.f32 %v441, %v326
  %v443 = vadd.f32 %v442, %v327
  %v444 = vadd.f32 %v443, %v328
  %v445 = vadd.f32 %v444, %v329
  %v446 = vadd.f32 %v445, %v330
  %v447 = vadd.f32 %v446, %v331
  %v448 = vadd.f32 %v447, %v332
  %v449 = vadd.f32 %v448, %v333
  %v450 = vadd.f32 %v449, %v334
  %v451 = vadd.f32 %v450, %v335
  %v452 = vadd.f32 %v451, %v336
  %v453 = vadd.f32 %v452, %v337
  %454 = vadd.xlane.f32.xlu0 %v453
  %v455 = vpop.xlane.xlu0 %454
  %vm456 = vcmask 1041408
  %v457 = vsel %vm456, %v338, 0.0
  %v458 = vsel %vm456, %v339, 0.0
  %v459 = vadd.f32 %v457, %v458
  %v460 = vsel %vm456, %v340, 0.0
  %v461 = vadd.f32 %v459, %v460
  %v462 = vsel %vm456, %v341, 0.0
  %v463 = vadd.f32 %v461, %v462
  %v464 = vsel %vm456, %v342, 0.0
  %v465 = vadd.f32 %v463, %v464
  %v466 = vsel %vm456, %v343, 0.0
  %v467 = vadd.f32 %v465, %v466
  %v468 = vsel %vm456, %v344, 0.0
  %v469 = vadd.f32 %v467, %v468
  %v470 = vsel %vm456, %v345, 0.0
  %v471 = vadd.f32 %v469, %v470
  %v472 = vsel %vm456, %v346, 0.0
  %v473 = vadd.f32 %v471, %v472
  %v474 = vsel %vm456, %v347, 0.0
  %v475 = vadd.f32 %v473, %v474
  %v476 = vsel %vm456, %v348, 0.0
  %v477 = vadd.f32 %v475, %v476
  %v478 = vsel %vm456, %v349, 0.0
  %v479 = vadd.f32 %v477, %v478
  %v480 = vsel %vm456, %v350, 0.0
  %v481 = vadd.f32 %v479, %v480
  %v482 = vsel %vm456, %v351, 0.0
  %v483 = vadd.f32 %v481, %v482
  %v484 = vsel %vm456, %v352, 0.0
  %v485 = vadd.f32 %v483, %v484
  %v486 = vsel %vm456, %v353, 0.0
  %v487 = vadd.f32 %v485, %v486
  %488 = vadd.xlane.f32.xlu0 %v487
  %v489 = vpop.xlane.xlu0 %488
  %v490 = vld [vmem:[#allocation2] sm:$0x1]
  %v492 = vperm.slane %v490, 0
  %v494 = vadd.f32 %v370, %v492
  %v495 = vadd.f32 %v387, %v492
  %v496 = vadd.f32 %v404, %v492
  %v497 = vadd.f32 %v421, %v492
  %v498 = vadd.f32 %v438, %v492
  %v499 = vadd.f32 %v455, %v492
  %v500 = vadd.f32 %v489, %v492
  %vm501 = vcmask 7168
  %502 = vst.msk [vmem:[%s3] sm:$0xff] %vm501, %v494
  %503 = vst.msk [vmem:[%s3 + $0x8] sm:$0xff] %vm501, %v495
  %504 = vst.msk [vmem:[%s3 + $0x10] sm:$0xff] %vm501, %v496
  %505 = vst.msk [vmem:[%s3 + $0x18] sm:$0xff] %vm501, %v497
  %506 = vst.msk [vmem:[%s3 + $0x20] sm:$0xff] %vm501, %v498
  %507 = vst.msk [vmem:[%s3 + $0x28] sm:$0xff] %vm501, %v499
  %vm508 = vcmask 1024
  %509 = vst.msk [vmem:[%s3 + $0x30] sm:$0x3] %vm508, %v500
  // Predicated region
  $region14: #{_lambda_.31} parent=0 // pred_check
    _
  $region15: #{_lambda_.31} parent=0 // pred_check_branch
    %511 = sbr.rel (0) target = $region17
  $region16: #{_lambda_.31} parent=0 // pred_region
    _
  $region17: #{_lambda_.31} parent=0 // pred_fallthru
    _
  // Predicated region
  $region18: #{_lambda_.31} parent=0 // pred_check
    _
  $region19: #{_lambda_.31} parent=0 // pred_check_branch
    %513 = sbr.rel (0) target = $region21
  $region20: #{_lambda_.31} parent=0 // pred_region
    _
  $region21: #{_lambda_.31} parent=0 // pred_fallthru
    _

</llo_original>
